<compile_context>
chip_gen: v7x
topology: tpu7x:2x2x1
jax: 0.10.0
libtpu: 0.0.40
codegen_flags: <defaults>
</compile_context>

<pallas_src>
import functools
import math

import jax
import jax.numpy as jnp
from jax.experimental import pallas as pl
from jax.experimental.pallas import tpu as pltpu


# -----------------------------------------------------------------------------
# Helpers
# -----------------------------------------------------------------------------
def _vmem_budget():
    try:
        cap = pltpu.get_tpu_info().vmem_capacity_bytes
    except Exception:  # pragma: no cover - fallback when query unavailable
        cap = 128 << 20
    # conservative per-kernel working-set budget (leave headroom for
    # double-buffering and compiler scratch); smaller on 64 MiB parts (v7x).
    return (16 << 20) if cap <= (64 << 20) else (24 << 20)


_VMEM_BUDGET = _vmem_budget()


def _cparams(sem, vmem_mb=None):
    kw = dict(dimension_semantics=sem)
    if vmem_mb is not None:
        kw["vmem_limit_bytes"] = vmem_mb << 20
    return pltpu.CompilerParams(**kw)


def _tile_m(M, cap=512, min_grid=4):
    """Largest token-tile dividing M that still leaves >= min_grid grid steps."""
    cands = [t for t in (512, 256, 128, 64, 32, 16, 8) if t <= cap]
    for t in cands:
        if M % t == 0 and M // t >= min_grid:
            return t
    for t in cands:
        if M % t == 0:
            return t
    return M  # fallback: single full block (still legal: equals full dim)


def _pick_wb(NW, L, D, budget):
    """Windows per attention grid step, bounded by a VMEM working-set budget."""
    for wb in (8, 4, 2, 1):
        if NW % wb:
            continue
        io = 4 * wb * L * D * 2 * 2       # q, k, v, o bf16, double-buffered
        tmp = 3 * wb * L * L * 4          # f32 score / exp temporaries
        if io + tmp <= budget:
            return wb
    # TODO(synk): flash-style key tiling for windows whose full score matrix
    # does not fit even at WB=1.
    return 1


def _pick_tq(L, D, budget):
    for tq in (1024, 512, 256, 128, 64, 32, 16, 8):
        if L % tq:
            continue
        io = (tq * D + L * D) * 2 * 2 + tq * L * 2 * 2
        tmp = 3 * tq * L * 4
        if io + tmp <= budget:
            return tq
    return L


def _pick_tr(L, budget):
    a_bytes = 2 * L * L * 2               # double-buffered bf16 A_k block
    for tr in (L, 1024, 512, 256, 128, 64, 32, 16, 8):
        if L % tr:
            continue
        if 2 * tr * L * 4 + a_bytes <= budget:
            return tr
    # TODO(synk): K-tile the A_k stream for very large L where the full
    # [L, L] bf16 block alone exceeds the VMEM budget.
    return 8 if L % 8 == 0 else L


def _pick_nll_tr(L, budget):
    for tr in (L, 1024, 512, 256, 128, 64, 32, 16, 8):
        if L % tr:
            continue
        if 2 * tr * L * 4 <= budget:
            return tr
    return L


# -----------------------------------------------------------------------------
# Pallas kernels
# -----------------------------------------------------------------------------
def _multi_proj_kernel(*refs, n_out):
    # One read of x (bf16), n_out matmuls -> n_out separate bf16 outputs
    # (avoids lane-sparse column slicing of a fused [*,3D] output).
    x_ref = refs[0]
    w_refs = refs[1:1 + n_out]
    b_refs = refs[1 + n_out:1 + 2 * n_out]
    o_refs = refs[1 + 2 * n_out:]
    x = x_ref[...]
    for w_ref, b_ref, o_ref in zip(w_refs, b_refs, o_refs):
        acc = jnp.dot(x, w_ref[...], preferred_element_type=jnp.float32)
        acc = acc + b_ref[...]
        o_ref[...] = acc.astype(o_ref.dtype)


def pallas_multi_proj(x, ws, bs):
    """x: [M, K] (bf16) -> tuple of bf16 [M, N_i] for each (w_i, b_i)."""
    M, K = x.shape
    n = len(ws)
    TM = _tile_m(M)
    return pl.pallas_call(
        functools.partial(_multi_proj_kernel, n_out=n),
        out_shape=tuple(jax.ShapeDtypeStruct((M, w.shape[1]), jnp.bfloat16)
                        for w in ws),
        grid=(M // TM,),
        in_specs=([pl.BlockSpec((TM, K), lambda i: (i, 0))]
                  + [pl.BlockSpec(w.shape, lambda i: (0, 0)) for w in ws]
                  + [pl.BlockSpec((1, b.shape[0]), lambda i: (0, 0)) for b in bs]),
        out_specs=tuple(pl.BlockSpec((TM, w.shape[1]), lambda i: (i, 0))
                        for w in ws),
        compiler_params=_cparams(("parallel",)),
    )(x, *ws, *[b.reshape(1, -1) for b in bs])


def _backbone_kernel(x_ref, w1_ref, b1_ref, w2_ref, b2_ref, o_ref):
    # patchify conv (im2col matmul) + ReLU + 1x1 conv, intermediate in VMEM
    h = jnp.dot(x_ref[...], w1_ref[...],
                preferred_element_type=jnp.float32) + b1_ref[...]
    h = jnp.maximum(h, 0.0)
    o = jnp.dot(h.astype(jnp.bfloat16), w2_ref[...],
                preferred_element_type=jnp.float32) + b2_ref[...]
    o_ref[...] = o.astype(o_ref.dtype)


def pallas_backbone_mlp(x, w1, b1, w2, b2):
    M, K = x.shape
    D = w1.shape[1]
    TM = _tile_m(M)
    return pl.pallas_call(
        _backbone_kernel,
        out_shape=jax.ShapeDtypeStruct((M, D), jnp.bfloat16),
        grid=(M // TM,),
        in_specs=[
            pl.BlockSpec((TM, K), lambda i: (i, 0)),
            pl.BlockSpec((K, D), lambda i: (0, 0)),
            pl.BlockSpec((1, D), lambda i: (0, 0)),
            pl.BlockSpec((D, D), lambda i: (0, 0)),
            pl.BlockSpec((1, D), lambda i: (0, 0)),
        ],
        out_specs=pl.BlockSpec((TM, D), lambda i: (i, 0)),
        compiler_params=_cparams(("parallel",)),
    )(x, w1, b1.reshape(1, D), w2, b2.reshape(1, D))


def _proj_ln_kernel(x_ref, w_ref, b_ref, g_ref, beta_ref, o_ref):
    # out = LayerNorm(x @ w + b) * g + beta   (fused matmul epilogue, f32 math)
    y = jnp.dot(x_ref[...], w_ref[...],
                preferred_element_type=jnp.float32) + b_ref[...]
    mu = jnp.mean(y, axis=-1, keepdims=True)
    var = jnp.mean(jnp.square(y - mu), axis=-1, keepdims=True)
    y = (y - mu) * jax.lax.rsqrt(var + 1e-5)
    o_ref[...] = (y * g_ref[...] + beta_ref[...]).astype(o_ref.dtype)


def pallas_proj_ln(x, w, b, g, beta):
    M, K = x.shape
    N = w.shape[1]
    TM = _tile_m(M)
    return pl.pallas_call(
        _proj_ln_kernel,
        out_shape=jax.ShapeDtypeStruct((M, N), jnp.bfloat16),
        grid=(M // TM,),
        in_specs=[
            pl.BlockSpec((TM, K), lambda i: (i, 0)),
            pl.BlockSpec((K, N), lambda i: (0, 0)),
            pl.BlockSpec((1, N), lambda i: (0, 0)),
            pl.BlockSpec((1, N), lambda i: (0, 0)),
            pl.BlockSpec((1, N), lambda i: (0, 0)),
        ],
        out_specs=pl.BlockSpec((TM, N), lambda i: (i, 0)),
        compiler_params=_cparams(("parallel",)),
    )(x, w, b.reshape(1, N), g.reshape(1, N), beta.reshape(1, N))


def _ffn_kernel(src_ref, msg_ref, w1a_ref, w1b_ref, b1_ref, w2_ref, b2_ref,
                g_ref, beta_ref, o_ref):
    # out = src + LN(ffn2(gelu(concat(src,msg) @ w1 + b1)))   fully fused,
    # hidden activation stays in VMEM.
    src = src_ref[...]
    h = (jnp.dot(src, w1a_ref[...], preferred_element_type=jnp.float32)
         + jnp.dot(msg_ref[...], w1b_ref[...], preferred_element_type=jnp.float32)
         + b1_ref[...])
    # TODO(synk): PyTorch nn.GELU() is exact-erf; tanh approximation used here.
    h = jax.nn.gelu(h, approximate=True)
    y = jnp.dot(h.astype(jnp.bfloat16), w2_ref[...],
                preferred_element_type=jnp.float32) + b2_ref[...]
    mu = jnp.mean(y, axis=-1, keepdims=True)
    var = jnp.mean(jnp.square(y - mu), axis=-1, keepdims=True)
    y = (y - mu) * jax.lax.rsqrt(var + 1e-5)
    out = src.astype(jnp.float32) + y * g_ref[...] + beta_ref[...]
    o_ref[...] = out.astype(o_ref.dtype)


def pallas_ffn_block(src, msg, w1a, w1b, b1, w2, b2, g, beta):
    M, D = src.shape
    Dh = w1a.shape[1]
    TM = _tile_m(M, cap=256)   # smaller tile keeps the fused hidden h off the vst slot (v5e)
    return pl.pallas_call(
        _ffn_kernel,
        out_shape=jax.ShapeDtypeStruct((M, D), jnp.bfloat16),
        grid=(M // TM,),
        in_specs=[
            pl.BlockSpec((TM, D), lambda i: (i, 0)),
            pl.BlockSpec((TM, D), lambda i: (i, 0)),
            pl.BlockSpec((D, Dh), lambda i: (0, 0)),
            pl.BlockSpec((D, Dh), lambda i: (0, 0)),
            pl.BlockSpec((1, Dh), lambda i: (0, 0)),
            pl.BlockSpec((Dh, D), lambda i: (0, 0)),
            pl.BlockSpec((1, D), lambda i: (0, 0)),
            pl.BlockSpec((1, D), lambda i: (0, 0)),
            pl.BlockSpec((1, D), lambda i: (0, 0)),
        ],
        out_specs=pl.BlockSpec((TM, D), lambda i: (i, 0)),
        compiler_params=_cparams(("parallel",)),
    )(src, msg, w1a, w1b, b1.reshape(1, Dh), w2, b2.reshape(1, D),
      g.reshape(1, D), beta.reshape(1, D))


def _attn_kernel(q_ref, k_ref, v_ref, o_ref, *, scale):
    # fold 1/sqrt(D) into Q: O(L*D) multiplies instead of O(L^2) on the scores
    q = q_ref[...] * jnp.asarray(scale, dtype=q_ref.dtype)   # [WB, L, D] bf16
    k = k_ref[...]
    v = v_ref[...]
    s = jnp.einsum("bqd,bkd->bqk", q, k, preferred_element_type=jnp.float32)
    s = s - jnp.max(s, axis=-1, keepdims=True)
    p = jnp.exp(s)
    p = p * pl.reciprocal(jnp.sum(p, axis=-1, keepdims=True), approx=True)
    o = jnp.einsum("bqk,bkd->bqd", p.astype(v.dtype), v,
                   preferred_element_type=jnp.float32)
    o_ref[...] = o.astype(o_ref.dtype)


def pallas_window_attention(q, k, v):
    """q, k, v: [NW, L, D] bf16; WB windows per grid step, VMEM-budgeted."""
    NW, L, D = q.shape
    scale = 1.0 / math.sqrt(D)
    WB = _pick_wb(NW, L, D, _VMEM_BUDGET)
    spec = pl.BlockSpec((WB, L, D), lambda b: (b, 0, 0))
    return pl.pallas_call(
        functools.partial(_attn_kernel, scale=scale),
        out_shape=jax.ShapeDtypeStruct((NW, L, D), jnp.bfloat16),
        grid=(NW // WB,),
        in_specs=[spec, spec, spec],
        out_specs=spec,
        compiler_params=_cparams(("parallel",), vmem_mb=48),
    )(q, k, v)


def _corr_softmax_kernel(f1_ref, f2_ref, o_ref, *, scale):
    f1 = f1_ref[0] * jnp.asarray(scale, dtype=f1_ref.dtype)   # [TQ, D] bf16
    f2 = f2_ref[0]                                            # [L, D]  bf16
    s = jax.lax.dot_general(f1, f2, (((1,), (1,)), ((), ())),
                            preferred_element_type=jnp.float32)
    s = s - jnp.max(s, axis=-1, keepdims=True)
    p = jnp.exp(s)
    # exact division: these probabilities feed a chained matrix product + log()
    p = p / jnp.sum(p, axis=-1, keepdims=True)
    o_ref[0] = p.astype(o_ref.dtype)


def pallas_global_correlation_softmax(f1, f2, temperature=None):
    """f1, f2: [N, L, D] bf16 -> probabilities [N, L, L] bf16, query-tiled."""
    N, L, D = f1.shape
    scale = 1.0 / math.sqrt(D)
    if temperature is not None:
        scale = scale / temperature
    TQ = _pick_tq(L, D, _VMEM_BUDGET)
    return pl.pallas_call(
        functools.partial(_corr_softmax_kernel, scale=scale),
        out_shape=jax.ShapeDtypeStruct((N, L, L), jnp.bfloat16),
        grid=(N, L // TQ),
        in_specs=[
            pl.BlockSpec((1, TQ, D), lambda b, qi: (b, qi, 0)),
            pl.BlockSpec((1, L, D), lambda b, qi: (b, 0, 0)),
        ],
        out_specs=pl.BlockSpec((1, TQ, L), lambda b, qi: (b, qi, 0)),
        compiler_params=_cparams(("parallel", "parallel"), vmem_mb=48),
    )(f1, f2)


def _chain_kernel(a_ref, o_ref, *, tr):
    r = pl.program_id(1)
    k = pl.program_id(2)

    @pl.when(k == 0)
    def _():
        off = pl.multiple_of(r * tr, tr)
        o_ref[0] = a_ref[0, 0, pl.ds(off, tr), :].astype(jnp.float32)

    @pl.when(k > 0)
    def _():
        # accumulator stays f32 & VMEM-resident; only the (TR,L) slab is cast
        # to bf16 for the MXU each step; A_k streams in bf16 from HBM.
        acc = o_ref[0].astype(jnp.bfloat16)
        o_ref[0] = jnp.dot(acc, a_ref[0, 0], preferred_element_type=jnp.float32)


def pallas_affinity_chain(As):
    """As: [B, P, L, L] bf16 -> At = A_0 @ A_1 @ ... (f32), row-tiled."""
    B, P, L, _ = As.shape
    TR = _pick_tr(L, _VMEM_BUDGET)
    R = L // TR
    return pl.pallas_call(
        functools.partial(_chain_kernel, tr=TR),
        out_shape=jax.ShapeDtypeStruct((B, L, L), jnp.float32),
        grid=(B, R, P),
        in_specs=[pl.BlockSpec((1, 1, L, L), lambda b, r, k: (b, k, 0, 0))],
        out_specs=pl.BlockSpec((1, TR, L), lambda b, r, k: (b, r, 0)),
        compiler_params=_cparams(("parallel", "parallel", "arbitrary"),
                                 vmem_mb=48),
    )(As)


def _nll_kernel(at_ref, tgt_ref, mask_ref, nll_ref, cor_ref):
    at = at_ref[0]                  # [TR, L] f32
    tgt = tgt_ref[0]                # [TR, 1] int32
    m = mask_ref[0]                 # [TR, 1] f32
    L = at.shape[-1]
    col = jax.lax.broadcasted_iota(jnp.int32, at.shape, 1)
    # negative log-likelihood of the target column
    p_tgt = jnp.sum(jnp.where(col == tgt, at, 0.0), axis=-1, keepdims=True)
    nll_ref[0] = (m * (-jnp.log(p_tgt + 1e-12))).astype(nll_ref.dtype)
    # fused argmax / accuracy (first max index, like torch.argmax)
    row_max = jnp.max(at, axis=-1, keepdims=True)
    pred = jnp.min(jnp.where(at == row_max, col, L), axis=-1, keepdims=True)
    cor_ref[0] = (m * (pred == tgt).astype(jnp.float32)).astype(cor_ref.dtype)


def pallas_masked_nll_acc(at, tgt_idx, mask):
    """at: [B, L, L] f32; tgt_idx: [B, L] int32; mask: [B, L]
       -> (per-row NLL [B, L, 1], per-row correct flag [B, L, 1])."""
    B, L, _ = at.shape
    TR = _pick_nll_tr(L, _VMEM_BUDGET)
    R = L // TR
    mat_spec = pl.BlockSpec((1, TR, L), lambda b, r: (b, r, 0))
    vec_spec = pl.BlockSpec((1, TR, 1), lambda b, r: (b, r, 0))
    return pl.pallas_call(
        _nll_kernel,
        out_shape=(jax.ShapeDtypeStruct((B, L, 1), jnp.float32),
                   jax.ShapeDtypeStruct((B, L, 1), jnp.float32)),
        grid=(B, R),
        in_specs=[mat_spec, vec_spec, vec_spec],
        out_specs=(vec_spec, vec_spec),
        compiler_params=_cparams(("parallel", "parallel"), vmem_mb=48),
    )(at, tgt_idx.reshape(B, L, 1), mask.reshape(B, L, 1).astype(jnp.float32))


# -----------------------------------------------------------------------------
# Plain-JAX glue (layout plumbing, positional encoding, labels)
# -----------------------------------------------------------------------------
IMAGENET_MEAN = jnp.array([0.485, 0.456, 0.406], jnp.float32)
IMAGENET_STD = jnp.array([0.229, 0.224, 0.225], jnp.float32)


def normalize_imgs(x, divideby255=True):
    if divideby255:
        x = x / 255.0
    mean = IMAGENET_MEAN.reshape(3, 1, 1)
    std = IMAGENET_STD.reshape(3, 1, 1)
    return (x - mean) / std


def position_encoding_2d(h, w, d):
    """GMFlow-style 2D sine/cosine positional encoding [h, w, d]."""
    d_half = d // 2
    ys = jnp.arange(h, dtype=jnp.float32)[:, None, None]
    xs = jnp.arange(w, dtype=jnp.float32)[None, :, None]
    dim_t = jnp.arange(d_half // 2, dtype=jnp.float32)
    freq = 1.0 / (10000.0 ** (2.0 * dim_t / d_half))
    pe_y = jnp.concatenate([jnp.sin(ys * freq), jnp.cos(ys * freq)], axis=-1)
    pe_x = jnp.concatenate([jnp.sin(xs * freq), jnp.cos(xs * freq)], axis=-1)
    pe_y = jnp.broadcast_to(pe_y, (h, w, d_half))
    pe_x = jnp.broadcast_to(pe_x, (h, w, d_half))
    return jnp.concatenate([pe_y, pe_x], axis=-1)


def window_partition(x, s):
    N, H, W, D = x.shape
    x = x.reshape(N, s, H // s, s, W // s, D)
    x = x.transpose(0, 1, 3, 2, 4, 5)
    return x.reshape(N * s * s, (H // s) * (W // s), D)


def window_unpartition(x, s, N, H, W, D):
    x = x.reshape(N, s, s, H // s, W // s, D)
    x = x.transpose(0, 1, 3, 2, 4, 5)
    return x.reshape(N, H, W, D)


def get_affine_transformed_labels(affine_mat, B, H_, W_):
    # TODO(synk): utils.align_feat (grid_sample affine warp) approximated by
    # applying the affine matrix directly to the integer coordinate grid; the
    # dense one-hot is never materialized — an int32 target index is returned.
    ys, xs = jnp.meshgrid(jnp.arange(H_, dtype=jnp.float32),
                          jnp.arange(W_, dtype=jnp.float32), indexing="ij")
    ones = jnp.ones_like(xs)
    coords = jnp.stack([xs, ys, ones], axis=-1)               # [H_, W_, 3]
    new = jnp.einsum("bij,hwj->bhwi", affine_mat, coords)     # [B, H_, W_, 2]
    new = jnp.round(new).astype(jnp.int32)
    nx, ny = new[..., 0], new[..., 1]
    inbounds = (nx >= 0) & (nx < W_) & (ny >= 0) & (ny < H_)
    idx = jnp.clip(ny, 0, H_ - 1) * W_ + jnp.clip(nx, 0, W_ - 1)
    return idx.reshape(B, H_ * W_), inbounds.reshape(B, H_ * W_).astype(jnp.float32)


# -----------------------------------------------------------------------------
# Parameters (deterministic init — synthetic weights, no checkpoint)
# Weights are stored in bf16 once; biases / LN affine stay f32.
# -----------------------------------------------------------------------------
def _dense(key, k_in, k_out):
    w = jax.random.normal(key, (k_in, k_out), jnp.float32) / math.sqrt(k_in)
    return {"w": w.astype(jnp.bfloat16), "b": jnp.zeros((k_out,), jnp.float32)}


def init_gmrw_params(key, feature_channels=32, num_layers=2,
                     ffn_dim_expansion=4, patch=8, in_ch=3):
    D = feature_channels
    Dh = 2 * D * ffn_dim_expansion
    keys = jax.random.split(key, 2 + num_layers)
    params = {
        # TODO(synk): full residual CNNEncoder stack replaced by a stride-8
        # patchify conv (im2col matmul) + pointwise 1x1 conv.
        "patch_embed": _dense(keys[0], in_ch * patch * patch, D),
        "conv1x1": _dense(keys[1], D, D),
        "layers": [],
    }

    def block(kk):
        return {
            "wq": _dense(kk[0], D, D), "wk": _dense(kk[1], D, D),
            "wv": _dense(kk[2], D, D), "wo": _dense(kk[3], D, D),
            "ln1_g": jnp.ones((D,), jnp.float32), "ln1_b": jnp.zeros((D,), jnp.float32),
            "ffn1a": _dense(kk[4], D, Dh), "ffn1b": _dense(kk[5], D, Dh),
            "ffn2": _dense(kk[6], Dh, D),
            "ln2_g": jnp.ones((D,), jnp.float32), "ln2_b": jnp.zeros((D,), jnp.float32),
        }

    for li in range(num_layers):
        k = jax.random.split(keys[2 + li], 14)
        params["layers"].append({"self": block(k[:7]), "cross": block(k[7:])})
    return params


# -----------------------------------------------------------------------------
# Model pieces
# -----------------------------------------------------------------------------
def backbone(imgs, params, patch=8):
    """Simplified CNNEncoder: stride-8 conv (im2col) + 1x1 conv, fused in one kernel."""
    N, C, H, W = imgs.shape
    H_, W_ = H // patch, W // patch
    x = imgs.reshape(N, C, H_, patch, W_, patch)
    x = x.transpose(0, 2, 4, 1, 3, 5).reshape(N * H_ * W_, C * patch * patch)
    feat = pallas_backbone_mlp(x.astype(jnp.bfloat16),
                               params["patch_embed"]["w"], params["patch_embed"]["b"],
                               params["conv1x1"]["w"], params["conv1x1"]["b"])
    D = feat.shape[-1]
    return feat.reshape(N, H_, W_, D)


def transformer_layer(source, target, p, splits):
    """One GMFlow-style attention layer (swin window partition, no shift)."""
    N, H_, W_, D = source.shape
    src_flat = source.reshape(-1, D)

    if source is target:      # self-attention: one fused-input QKV kernel, 3 outputs
        q, k, v = pallas_multi_proj(
            src_flat,
            [p["wq"]["w"], p["wk"]["w"], p["wv"]["w"]],
            [p["wq"]["b"], p["wk"]["b"], p["wv"]["b"]])
    else:                     # cross-attention: Q on source, fused K/V on target
        tgt_flat = target.reshape(-1, D)
        (q,) = pallas_multi_proj(src_flat, [p["wq"]["w"]], [p["wq"]["b"]])
        k, v = pallas_multi_proj(tgt_flat,
                                 [p["wk"]["w"], p["wv"]["w"]],
                                 [p["wk"]["b"], p["wv"]["b"]])

    q = q.reshape(N, H_, W_, D)
    k = k.reshape(N, H_, W_, D)
    v = v.reshape(N, H_, W_, D)
    qw = window_partition(q, splits)
    kw = window_partition(k, splits)
    vw = window_partition(v, splits)
    msg = pallas_window_attention(qw, kw, vw)
    msg = window_unpartition(msg, splits, N, H_, W_, D)

    # fused output projection + LayerNorm
    msg = pallas_proj_ln(msg.reshape(-1, D), p["wo"]["w"], p["wo"]["b"],
                         p["ln1_g"], p["ln1_b"])

    # fused concat -> FFN1 -> GELU -> FFN2 -> LayerNorm -> residual
    out = pallas_ffn_block(src_flat, msg,
                           p["ffn1a"]["w"], p["ffn1b"]["w"], p["ffn1a"]["b"],
                           p["ffn2"]["w"], p["ffn2"]["b"],
                           p["ln2_g"], p["ln2_b"])
    return out.reshape(N, H_, W_, D)


def feature_transformer(f1, f2, params, splits):
    """Bidirectional FeatureTransformer (self-attn + cross-attn per layer)."""
    N = f1.shape[0]
    concat0 = jnp.concatenate([f1, f2], axis=0)
    concat1 = jnp.concatenate([f2, f1], axis=0)
    for layer in params["layers"]:
        concat0 = transformer_layer(concat0, concat0, layer["self"], splits)
        concat0 = transformer_layer(concat0, concat1, layer["cross"], splits)
        a, b = concat0[:N], concat0[N:]
        concat1 = jnp.concatenate([b, a], axis=0)
    return concat0[:N], concat0[N:]


# -----------------------------------------------------------------------------
# GMRW forward
# -----------------------------------------------------------------------------
def gmrw_forward(params, x, affine_mat_b2f, smoothness_loss_weight,
                 *, attn_splits=2, patch=8, temperature=None):
    B, T2, C, H, W = x.shape
    T = T2 // 2
    assert T == 2 and C == 3  # args.no_of_frames == 2

    images = normalize_imgs(x, divideby255=True)
    forward_images = images[:, :T]
    backward_images = images[:, T:]
    images1 = jnp.concatenate([forward_images, backward_images[:, 1:-1]], axis=1)
    images2 = jnp.concatenate([forward_images[:, 1:], backward_images[:, 1:]], axis=1)

    flat1 = images1.reshape(-1, C, H, W)
    flat2 = images2.reshape(-1, C, H, W)
    NP = flat1.shape[0]             # B * (2T - 2)
    n_pairs = NP // B

    # ---- extract_feature (shared backbone over cat(img1, img2)) ----
    concat = jnp.concatenate([flat1, flat2], axis=0)
    feats = backbone(concat, params, patch=patch)        # [2*NP, H_, W_, D] bf16
    feature1, feature2 = feats[:NP], feats[NP:]
    H_, W_, D = feature1.shape[1:]

    # ---- feature_add_position (per attn split) ----
    pe = position_encoding_2d(H_ // attn_splits, W_ // attn_splits, D)
    pe = jnp.tile(pe, (attn_splits, attn_splits, 1)).astype(jnp.bfloat16)
    feature1 = feature1 + pe
    feature2 = feature2 + pe

    # ---- FeatureTransformer ----
    feature1, feature2 = feature_transformer(feature1, feature2, params, attn_splits)

    # ---- global_correlation_softmax ----
    # TODO(synk): weighted_argmax / window_threshold post-processing omitted.
    f1_tok = feature1.reshape(NP, H_ * W_, D)
    f2_tok = feature2.reshape(NP, H_ * W_, D)
    probabilities = pallas_global_correlation_softmax(f1_tok, f2_tok,
                                                      temperature=temperature)

    all_pairs = probabilities.reshape(B, n_pairs, H_, W_, H_, W_)
    As = probabilities.reshape(B, n_pairs, H_ * W_, H_ * W_)
    At = pallas_affinity_chain(As)            # f32 chained product, row-tiled

    tgt_idx, mask = get_affine_transformed_labels(affine_mat_b2f, B, H_, W_)

    # TODO(synk): LogNLLMaskNeighbourLoss's neighbour aggregation unavailable;
    # implemented as masked negative log-likelihood with 'sum' aggregation.
    nll, correct = pallas_masked_nll_acc(At, tgt_idx, mask)
    cycle_loss = jnp.sum(nll)
    acc = 100.0 * jnp.sum(correct) / jnp.maximum(jnp.sum(mask), 1.0)

    diags = {
        "cycle_loss": cycle_loss,
        "accuracy": acc,
        "cycle loss": cycle_loss,
        "accuracy (out of 100%)": acc,
    }
    variables_log = {}
    # TODO(synk): smoothness-loss branch and torch.distributed all_reduce omitted
    # (args.smoothness_loss=False, args.local_rank=-1 path).
    loss = cycle_loss
    return all_pairs, loss, diags, variables_log


# -----------------------------------------------------------------------------
# Main
# -----------------------------------------------------------------------------
if __name__ == "__main__":
    key = jax.random.PRNGKey(0)
    kp, kx = jax.random.split(key)

    # Small test config: feature_channels 128 -> 32, num_transformer_layers 6 -> 2.
    # TODO(synk): with D=32 the output last dims are lane-sparse (<128); kernels
    # are sized/aligned for the D=128 production config.
    D = 32
    NUM_LAYERS = 2
    params = init_gmrw_params(kp, feature_channels=D, num_layers=NUM_LAYERS,
                              ffn_dim_expansion=4, patch=8, in_ch=3)

    B, T2, C, H, W = 2, 4, 3, 64, 64          # x: [B, 2*T, C, H, W], T=2
    x = jax.random.uniform(kx, (B, T2, C, H, W), jnp.float32, 0.0, 255.0)
    affine_eye = jnp.tile(
        jnp.array([[1.0, 0.0, 0.0], [0.0, 1.0, 0.0]], jnp.float32), (B, 1, 1))

    fwd = jax.jit(functools.partial(gmrw_forward, attn_splits=2, patch=8,
                                    temperature=None))
    all_pairs, loss, diags, variables_log = fwd(params, x, affine_eye, 0.0)
    jax.block_until_ready((all_pairs, loss))

    assert all_pairs.shape == (B, 2, H // 8, W // 8, H // 8, W // 8)
    assert jnp.isfinite(loss)
    print("KERNEL_OK")
</pallas_src>

<mosaic_0001>
module attributes {stable_mosaic.version = 11 : i64} {
  func.func @_backbone_kernel(%arg0: i32, %arg1: memref<128x192xbf16, #tpu.memory_space<vmem>>, %arg2: memref<192x32xbf16, #tpu.memory_space<vmem>>, %arg3: memref<1x32xf32, #tpu.memory_space<vmem>>, %arg4: memref<32x32xbf16, #tpu.memory_space<vmem>>, %arg5: memref<1x32xf32, #tpu.memory_space<vmem>>, %arg6: memref<128x32xbf16, #tpu.memory_space<vmem>>) attributes {dimension_semantics = [#tpu.dimension_semantics<parallel>], iteration_bounds = array<i64: 4>, scalar_prefetch = 0 : i64, scratch_operands = 0 : i64, tpu.core_type = #tpu.core_type<tc>, window_params = [{transform_indices = @transform_0, window_bounds = array<i64: 128, 192>}, {pipeline_mode = #tpu.pipeline_mode<synchronous>, transform_indices = @transform_1, window_bounds = array<i64: 192, 32>}, {pipeline_mode = #tpu.pipeline_mode<synchronous>, transform_indices = @transform_2, window_bounds = array<i64: 1, 32>}, {pipeline_mode = #tpu.pipeline_mode<synchronous>, transform_indices = @transform_3, window_bounds = array<i64: 32, 32>}, {pipeline_mode = #tpu.pipeline_mode<synchronous>, transform_indices = @transform_4, window_bounds = array<i64: 1, 32>}, {transform_indices = @transform_5, window_bounds = array<i64: 128, 32>}]} {
    %c0 = arith.constant 0 : index
    %c0_0 = arith.constant 0 : index
    %0 = vector.load %arg1[%c0, %c0_0] : memref<128x192xbf16, #tpu.memory_space<vmem>>, vector<128x192xbf16>
    %c0_1 = arith.constant 0 : index
    %c0_2 = arith.constant 0 : index
    %1 = vector.load %arg2[%c0_1, %c0_2] : memref<192x32xbf16, #tpu.memory_space<vmem>>, vector<192x32xbf16>
    %cst = arith.constant dense<0.000000e+00> : vector<128x32xf32>
    %2 = tpu.matmul %0, %1, %cst {dimension_numbers = #tpu.dot_dimension_numbers<[1], [0], [0], [1], [0, 0, 1, 1], [], []>} : vector<128x192xbf16>, vector<192x32xbf16>, vector<128x32xf32> -> vector<128x32xf32>
    %c0_3 = arith.constant 0 : index
    %c0_4 = arith.constant 0 : index
    %3 = vector.load %arg3[%c0_3, %c0_4] : memref<1x32xf32, #tpu.memory_space<vmem>>, vector<1x32xf32>
    %4 = vector.broadcast %3 : vector<1x32xf32> to vector<128x32xf32>
    %5 = arith.addf %2, %4 : vector<128x32xf32>
    %cst_5 = arith.constant 0.000000e+00 : f32
    %6 = vector.broadcast %cst_5 : f32 to vector<128x32xf32>
    %7 = arith.maximumf %5, %6 : vector<128x32xf32>
    %8 = arith.truncf %7 : vector<128x32xf32> to vector<128x32xbf16>
    %c0_6 = arith.constant 0 : index
    %c0_7 = arith.constant 0 : index
    %9 = vector.load %arg4[%c0_6, %c0_7] : memref<32x32xbf16, #tpu.memory_space<vmem>>, vector<32x32xbf16>
    %cst_8 = arith.constant dense<0.000000e+00> : vector<128x32xf32>
    %10 = tpu.matmul %8, %9, %cst_8 {dimension_numbers = #tpu.dot_dimension_numbers<[1], [0], [0], [1], [0, 0, 1, 1], [], []>} : vector<128x32xbf16>, vector<32x32xbf16>, vector<128x32xf32> -> vector<128x32xf32>
    %c0_9 = arith.constant 0 : index
    %c0_10 = arith.constant 0 : index
    %11 = vector.load %arg5[%c0_9, %c0_10] : memref<1x32xf32, #tpu.memory_space<vmem>>, vector<1x32xf32>
    %12 = vector.broadcast %11 : vector<1x32xf32> to vector<128x32xf32>
    %13 = arith.addf %10, %12 : vector<128x32xf32>
    %14 = arith.truncf %13 : vector<128x32xf32> to vector<128x32xbf16>
    %c0_11 = arith.constant 0 : index
    %c0_12 = arith.constant 0 : index
    %15 = vector.load %arg6[%c0_11, %c0_12] : memref<128x32xbf16, #tpu.memory_space<vmem>>, vector<128x32xbf16>
    tpu.vector_store %arg6[%c0_11, %c0_12], %14 {strides = array<i32>} : memref<128x32xbf16, #tpu.memory_space<vmem>>, vector<128x32xbf16>,
    return
  }
  func.func @transform_0(%arg0: i32) -> (i32, i32) {
    %c0_i32 = arith.constant 0 : i32
    %c0_i32_0 = arith.constant 0 : i32
    return %arg0, %c0_i32 : i32, i32
  }
  func.func @transform_1(%arg0: i32) -> (i32, i32) {
    %c0_i32 = arith.constant 0 : i32
    %c0_i32_0 = arith.constant 0 : i32
    %c0_i32_1 = arith.constant 0 : i32
    return %c0_i32, %c0_i32_0 : i32, i32
  }
  func.func @transform_2(%arg0: i32) -> (i32, i32) {
    %c0_i32 = arith.constant 0 : i32
    %c0_i32_0 = arith.constant 0 : i32
    %c0_i32_1 = arith.constant 0 : i32
    return %c0_i32, %c0_i32_0 : i32, i32
  }
  func.func @transform_3(%arg0: i32) -> (i32, i32) {
    %c0_i32 = arith.constant 0 : i32
    %c0_i32_0 = arith.constant 0 : i32
    %c0_i32_1 = arith.constant 0 : i32
    return %c0_i32, %c0_i32_0 : i32, i32
  }
  func.func @transform_4(%arg0: i32) -> (i32, i32) {
    %c0_i32 = arith.constant 0 : i32
    %c0_i32_0 = arith.constant 0 : i32
    %c0_i32_1 = arith.constant 0 : i32
    return %c0_i32, %c0_i32_0 : i32, i32
  }
  func.func @transform_5(%arg0: i32) -> (i32, i32) {
    %c0_i32 = arith.constant 0 : i32
    %c0_i32_0 = arith.constant 0 : i32
    return %arg0, %c0_i32 : i32, i32
  }
}

module attributes {stable_mosaic.version = 11 : i64} {
  func.func @_multi_proj_kernel(%arg0: i32, %arg1: memref<128x32xbf16, #tpu.memory_space<vmem>>, %arg2: memref<32x32xbf16, #tpu.memory_space<vmem>>, %arg3: memref<32x32xbf16, #tpu.memory_space<vmem>>, %arg4: memref<32x32xbf16, #tpu.memory_space<vmem>>, %arg5: memref<1x32xf32, #tpu.memory_space<vmem>>, %arg6: memref<1x32xf32, #tpu.memory_space<vmem>>, %arg7: memref<1x32xf32, #tpu.memory_space<vmem>>, %arg8: memref<128x32xbf16, #tpu.memory_space<vmem>>, %arg9: memref<128x32xbf16, #tpu.memory_space<vmem>>, %arg10: memref<128x32xbf16, #tpu.memory_space<vmem>>) attributes {dimension_semantics = [#tpu.dimension_semantics<parallel>], iteration_bounds = array<i64: 4>, scalar_prefetch = 0 : i64, scratch_operands = 0 : i64, tpu.core_type = #tpu.core_type<tc>, window_params = [{transform_indices = @transform_0, window_bounds = array<i64: 128, 32>}, {pipeline_mode = #tpu.pipeline_mode<synchronous>, transform_indices = @transform_1, window_bounds = array<i64: 32, 32>}, {pipeline_mode = #tpu.pipeline_mode<synchronous>, transform_indices = @transform_2, window_bounds = array<i64: 32, 32>}, {pipeline_mode = #tpu.pipeline_mode<synchronous>, transform_indices = @transform_3, window_bounds = array<i64: 32, 32>}, {pipeline_mode = #tpu.pipeline_mode<synchronous>, transform_indices = @transform_4, window_bounds = array<i64: 1, 32>}, {pipeline_mode = #tpu.pipeline_mode<synchronous>, transform_indices = @transform_5, window_bounds = array<i64: 1, 32>}, {pipeline_mode = #tpu.pipeline_mode<synchronous>, transform_indices = @transform_6, window_bounds = array<i64: 1, 32>}, {transform_indices = @transform_7, window_bounds = array<i64: 128, 32>}, {transform_indices = @transform_8, window_bounds = array<i64: 128, 32>}, {transform_indices = @transform_9, window_bounds = array<i64: 128, 32>}]} {
    %c0 = arith.constant 0 : index
    %c0_0 = arith.constant 0 : index
    %0 = vector.load %arg1[%c0, %c0_0] : memref<128x32xbf16, #tpu.memory_space<vmem>>, vector<128x32xbf16>
    %c0_1 = arith.constant 0 : index
    %c0_2 = arith.constant 0 : index
    %1 = vector.load %arg2[%c0_1, %c0_2] : memref<32x32xbf16, #tpu.memory_space<vmem>>, vector<32x32xbf16>
    %cst = arith.constant dense<0.000000e+00> : vector<128x32xf32>
    %2 = tpu.matmul %0, %1, %cst {dimension_numbers = #tpu.dot_dimension_numbers<[1], [0], [0], [1], [0, 0, 1, 1], [], []>} : vector<128x32xbf16>, vector<32x32xbf16>, vector<128x32xf32> -> vector<128x32xf32>
    %c0_3 = arith.constant 0 : index
    %c0_4 = arith.constant 0 : index
    %3 = vector.load %arg5[%c0_3, %c0_4] : memref<1x32xf32, #tpu.memory_space<vmem>>, vector<1x32xf32>
    %4 = vector.broadcast %3 : vector<1x32xf32> to vector<128x32xf32>
    %5 = arith.addf %2, %4 : vector<128x32xf32>
    %6 = arith.truncf %5 : vector<128x32xf32> to vector<128x32xbf16>
    %c0_5 = arith.constant 0 : index
    %c0_6 = arith.constant 0 : index
    %7 = vector.load %arg8[%c0_5, %c0_6] : memref<128x32xbf16, #tpu.memory_space<vmem>>, vector<128x32xbf16>
    tpu.vector_store %arg8[%c0_5, %c0_6], %6 {strides = array<i32>} : memref<128x32xbf16, #tpu.memory_space<vmem>>, vector<128x32xbf16>,
    %c0_7 = arith.constant 0 : index
    %c0_8 = arith.constant 0 : index
    %8 = vector.load %arg3[%c0_7, %c0_8] : memref<32x32xbf16, #tpu.memory_space<vmem>>, vector<32x32xbf16>
    %cst_9 = arith.constant dense<0.000000e+00> : vector<128x32xf32>
    %9 = tpu.matmul %0, %8, %cst_9 {dimension_numbers = #tpu.dot_dimension_numbers<[1], [0], [0], [1], [0, 0, 1, 1], [], []>} : vector<128x32xbf16>, vector<32x32xbf16>, vector<128x32xf32> -> vector<128x32xf32>
    %c0_10 = arith.constant 0 : index
    %c0_11 = arith.constant 0 : index
    %10 = vector.load %arg6[%c0_10, %c0_11] : memref<1x32xf32, #tpu.memory_space<vmem>>, vector<1x32xf32>
    %11 = vector.broadcast %10 : vector<1x32xf32> to vector<128x32xf32>
    %12 = arith.addf %9, %11 : vector<128x32xf32>
    %13 = arith.truncf %12 : vector<128x32xf32> to vector<128x32xbf16>
    %c0_12 = arith.constant 0 : index
    %c0_13 = arith.constant 0 : index
    %14 = vector.load %arg9[%c0_12, %c0_13] : memref<128x32xbf16, #tpu.memory_space<vmem>>, vector<128x32xbf16>
    tpu.vector_store %arg9[%c0_12, %c0_13], %13 {strides = array<i32>} : memref<128x32xbf16, #tpu.memory_space<vmem>>, vector<128x32xbf16>,
    %c0_14 = arith.constant 0 : index
    %c0_15 = arith.constant 0 : index
    %15 = vector.load %arg4[%c0_14, %c0_15] : memref<32x32xbf16, #tpu.memory_space<vmem>>, vector<32x32xbf16>
    %cst_16 = arith.constant dense<0.000000e+00> : vector<128x32xf32>
    %16 = tpu.matmul %0, %15, %cst_16 {dimension_numbers = #tpu.dot_dimension_numbers<[1], [0], [0], [1], [0, 0, 1, 1], [], []>} : vector<128x32xbf16>, vector<32x32xbf16>, vector<128x32xf32> -> vector<128x32xf32>
    %c0_17 = arith.constant 0 : index
    %c0_18 = arith.constant 0 : index
    %17 = vector.load %arg7[%c0_17, %c0_18] : memref<1x32xf32, #tpu.memory_space<vmem>>, vector<1x32xf32>
    %18 = vector.broadcast %17 : vector<1x32xf32> to vector<128x32xf32>
    %19 = arith.addf %16, %18 : vector<128x32xf32>
    %20 = arith.truncf %19 : vector<128x32xf32> to vector<128x32xbf16>
    %c0_19 = arith.constant 0 : index
    %c0_20 = arith.constant 0 : index
    %21 = vector.load %arg10[%c0_19, %c0_20] : memref<128x32xbf16, #tpu.memory_space<vmem>>, vector<128x32xbf16>
    tpu.vector_store %arg10[%c0_19, %c0_20], %20 {strides = array<i32>} : memref<128x32xbf16, #tpu.memory_space<vmem>>, vector<128x32xbf16>,
    return
  }
  func.func @transform_0(%arg0: i32) -> (i32, i32) {
    %c0_i32 = arith.constant 0 : i32
    %c0_i32_0 = arith.constant 0 : i32
    return %arg0, %c0_i32 : i32, i32
  }
  func.func @transform_1(%arg0: i32) -> (i32, i32) {
    %c0_i32 = arith.constant 0 : i32
    %c0_i32_0 = arith.constant 0 : i32
    %c0_i32_1 = arith.constant 0 : i32
    return %c0_i32, %c0_i32_0 : i32, i32
  }
  func.func @transform_2(%arg0: i32) -> (i32, i32) {
    %c0_i32 = arith.constant 0 : i32
    %c0_i32_0 = arith.constant 0 : i32
    %c0_i32_1 = arith.constant 0 : i32
    return %c0_i32, %c0_i32_0 : i32, i32
  }
  func.func @transform_3(%arg0: i32) -> (i32, i32) {
    %c0_i32 = arith.constant 0 : i32
    %c0_i32_0 = arith.constant 0 : i32
    %c0_i32_1 = arith.constant 0 : i32
    return %c0_i32, %c0_i32_0 : i32, i32
  }
  func.func @transform_4(%arg0: i32) -> (i32, i32) {
    %c0_i32 = arith.constant 0 : i32
    %c0_i32_0 = arith.constant 0 : i32
    %c0_i32_1 = arith.constant 0 : i32
    return %c0_i32, %c0_i32_0 : i32, i32
  }
  func.func @transform_5(%arg0: i32) -> (i32, i32) {
    %c0_i32 = arith.constant 0 : i32
    %c0_i32_0 = arith.constant 0 : i32
    %c0_i32_1 = arith.constant 0 : i32
    return %c0_i32, %c0_i32_0 : i32, i32
  }
  func.func @transform_6(%arg0: i32) -> (i32, i32) {
    %c0_i32 = arith.constant 0 : i32
    %c0_i32_0 = arith.constant 0 : i32
    %c0_i32_1 = arith.constant 0 : i32
    return %c0_i32, %c0_i32_0 : i32, i32
  }
  func.func @transform_7(%arg0: i32) -> (i32, i32) {
    %c0_i32 = arith.constant 0 : i32
    %c0_i32_0 = arith.constant 0 : i32
    return %arg0, %c0_i32 : i32, i32
  }
  func.func @transform_8(%arg0: i32) -> (i32, i32) {
    %c0_i32 = arith.constant 0 : i32
    %c0_i32_0 = arith.constant 0 : i32
    return %arg0, %c0_i32 : i32, i32
  }
  func.func @transform_9(%arg0: i32) -> (i32, i32) {
    %c0_i32 = arith.constant 0 : i32
    %c0_i32_0 = arith.constant 0 : i32
    return %arg0, %c0_i32 : i32, i32
  }
}

module attributes {stable_mosaic.version = 11 : i64} {
  func.func @_attn_kernel(%arg0: i32, %arg1: memref<8x16x32xbf16, #tpu.memory_space<vmem>>, %arg2: memref<8x16x32xbf16, #tpu.memory_space<vmem>>, %arg3: memref<8x16x32xbf16, #tpu.memory_space<vmem>>, %arg4: memref<8x16x32xbf16, #tpu.memory_space<vmem>>) attributes {dimension_semantics = [#tpu.dimension_semantics<parallel>], iteration_bounds = array<i64: 4>, scalar_prefetch = 0 : i64, scratch_operands = 0 : i64, tpu.core_type = #tpu.core_type<tc>, window_params = [{transform_indices = @transform_0, window_bounds = array<i64: 8, 16, 32>}, {transform_indices = @transform_1, window_bounds = array<i64: 8, 16, 32>}, {transform_indices = @transform_2, window_bounds = array<i64: 8, 16, 32>}, {transform_indices = @transform_3, window_bounds = array<i64: 8, 16, 32>}]} {
    %c0 = arith.constant 0 : index
    %c0_0 = arith.constant 0 : index
    %c0_1 = arith.constant 0 : index
    %0 = vector.load %arg1[%c0, %c0_0, %c0_1] : memref<8x16x32xbf16, #tpu.memory_space<vmem>>, vector<8x16x32xbf16>
    %cst = arith.constant 1.767580e-01 : bf16
    %1 = vector.broadcast %cst : bf16 to vector<8x16x32xbf16>
    %2 = arith.mulf %0, %1 : vector<8x16x32xbf16>
    %c0_2 = arith.constant 0 : index
    %c0_3 = arith.constant 0 : index
    %c0_4 = arith.constant 0 : index
    %3 = vector.load %arg2[%c0_2, %c0_3, %c0_4] : memref<8x16x32xbf16, #tpu.memory_space<vmem>>, vector<8x16x32xbf16>
    %c0_5 = arith.constant 0 : index
    %c0_6 = arith.constant 0 : index
    %c0_7 = arith.constant 0 : index
    %4 = vector.load %arg3[%c0_5, %c0_6, %c0_7] : memref<8x16x32xbf16, #tpu.memory_space<vmem>>, vector<8x16x32xbf16>
    "tpu.trace_start"() <{level = 10 : i32, message = "bqd,bkd->bqk"}> : () -> ()
    %cst_8 = arith.constant dense<0.000000e+00> : vector<8x16x16xf32>
    %5 = tpu.matmul %2, %3, %cst_8 {dimension_numbers = #tpu.dot_dimension_numbers<[2], [2], [1], [1], [0, 0, 0, 1, 1, 1], [0], [0]>} : vector<8x16x32xbf16>, vector<8x16x32xbf16>, vector<8x16x16xf32> -> vector<8x16x16xf32>
    "tpu.trace_stop"() : () -> ()
    %cst_9 = arith.constant dense<0xFF800000> : vector<8x16xf32>
    %6 = vector.multi_reduction <maximumf>, %5, %cst_9 [2] : vector<8x16x16xf32> to vector<8x16xf32>
    %7 = vector.shape_cast %6 : vector<8x16xf32> to vector<8x16x1xf32>
    %8 = vector.broadcast %7 : vector<8x16x1xf32> to vector<8x16x16xf32>
    %9 = arith.subf %5, %8 : vector<8x16x16xf32>
    %10 = math.exp %9 : vector<8x16x16xf32>
    %cst_10 = arith.constant dense<0.000000e+00> : vector<8x16xf32>
    %11 = vector.multi_reduction <add>, %10, %cst_10 [2] : vector<8x16x16xf32> to vector<8x16xf32>
    %12 = vector.shape_cast %11 : vector<8x16xf32> to vector<8x16x1xf32>
    %13 = tpu.reciprocal %12 {approx = true} : vector<8x16x1xf32> -> vector<8x16x1xf32>
    %14 = vector.broadcast %13 : vector<8x16x1xf32> to vector<8x16x16xf32>
    %15 = arith.mulf %10, %14 : vector<8x16x16xf32>
    %16 = arith.truncf %15 : vector<8x16x16xf32> to vector<8x16x16xbf16>
    "tpu.trace_start"() <{level = 10 : i32, message = "bqk,bkd->bqd"}> : () -> ()
    %cst_11 = arith.constant dense<0.000000e+00> : vector<8x16x32xf32>
    %17 = tpu.matmul %16, %4, %cst_11 {dimension_numbers = #tpu.dot_dimension_numbers<[2], [1], [1], [2], [0, 0, 0, 1, 1, 2], [0], [0]>} : vector<8x16x16xbf16>, vector<8x16x32xbf16>, vector<8x16x32xf32> -> vector<8x16x32xf32>
    "tpu.trace_stop"() : () -> ()
    %18 = arith.truncf %17 : vector<8x16x32xf32> to vector<8x16x32xbf16>
    %c0_12 = arith.constant 0 : index
    %c0_13 = arith.constant 0 : index
    %c0_14 = arith.constant 0 : index
    %19 = vector.load %arg4[%c0_12, %c0_13, %c0_14] : memref<8x16x32xbf16, #tpu.memory_space<vmem>>, vector<8x16x32xbf16>
    tpu.vector_store %arg4[%c0_12, %c0_13, %c0_14], %18 {strides = array<i32>} : memref<8x16x32xbf16, #tpu.memory_space<vmem>>, vector<8x16x32xbf16>,
    return
  }
  func.func @transform_0(%arg0: i32) -> (i32, i32, i32) {
    %c0_i32 = arith.constant 0 : i32
    %c0_i32_0 = arith.constant 0 : i32
    %c0_i32_1 = arith.constant 0 : i32
    return %arg0, %c0_i32, %c0_i32_0 : i32, i32, i32
  }
  func.func @transform_1(%arg0: i32) -> (i32, i32, i32) {
    %c0_i32 = arith.constant 0 : i32
    %c0_i32_0 = arith.constant 0 : i32
    %c0_i32_1 = arith.constant 0 : i32
    return %arg0, %c0_i32, %c0_i32_0 : i32, i32, i32
  }
  func.func @transform_2(%arg0: i32) -> (i32, i32, i32) {
    %c0_i32 = arith.constant 0 : i32
    %c0_i32_0 = arith.constant 0 : i32
    %c0_i32_1 = arith.constant 0 : i32
    return %arg0, %c0_i32, %c0_i32_0 : i32, i32, i32
  }
  func.func @transform_3(%arg0: i32) -> (i32, i32, i32) {
    %c0_i32 = arith.constant 0 : i32
    %c0_i32_0 = arith.constant 0 : i32
    %c0_i32_1 = arith.constant 0 : i32
    return %arg0, %c0_i32, %c0_i32_0 : i32, i32, i32
  }
}

module attributes {stable_mosaic.version = 11 : i64} {
  func.func @_proj_ln_kernel(%arg0: i32, %arg1: memref<128x32xbf16, #tpu.memory_space<vmem>>, %arg2: memref<32x32xbf16, #tpu.memory_space<vmem>>, %arg3: memref<1x32xf32, #tpu.memory_space<vmem>>, %arg4: memref<1x32xf32, #tpu.memory_space<vmem>>, %arg5: memref<1x32xf32, #tpu.memory_space<vmem>>, %arg6: memref<128x32xbf16, #tpu.memory_space<vmem>>) attributes {dimension_semantics = [#tpu.dimension_semantics<parallel>], iteration_bounds = array<i64: 4>, scalar_prefetch = 0 : i64, scratch_operands = 0 : i64, tpu.core_type = #tpu.core_type<tc>, window_params = [{transform_indices = @transform_0, window_bounds = array<i64: 128, 32>}, {pipeline_mode = #tpu.pipeline_mode<synchronous>, transform_indices = @transform_1, window_bounds = array<i64: 32, 32>}, {pipeline_mode = #tpu.pipeline_mode<synchronous>, transform_indices = @transform_2, window_bounds = array<i64: 1, 32>}, {pipeline_mode = #tpu.pipeline_mode<synchronous>, transform_indices = @transform_3, window_bounds = array<i64: 1, 32>}, {pipeline_mode = #tpu.pipeline_mode<synchronous>, transform_indices = @transform_4, window_bounds = array<i64: 1, 32>}, {transform_indices = @transform_5, window_bounds = array<i64: 128, 32>}]} {
    %c0 = arith.constant 0 : index
    %c0_0 = arith.constant 0 : index
    %0 = vector.load %arg1[%c0, %c0_0] : memref<128x32xbf16, #tpu.memory_space<vmem>>, vector<128x32xbf16>
    %c0_1 = arith.constant 0 : index
    %c0_2 = arith.constant 0 : index
    %1 = vector.load %arg2[%c0_1, %c0_2] : memref<32x32xbf16, #tpu.memory_space<vmem>>, vector<32x32xbf16>
    %cst = arith.constant dense<0.000000e+00> : vector<128x32xf32>
    %2 = tpu.matmul %0, %1, %cst {dimension_numbers = #tpu.dot_dimension_numbers<[1], [0], [0], [1], [0, 0, 1, 1], [], []>} : vector<128x32xbf16>, vector<32x32xbf16>, vector<128x32xf32> -> vector<128x32xf32>
    %c0_3 = arith.constant 0 : index
    %c0_4 = arith.constant 0 : index
    %3 = vector.load %arg3[%c0_3, %c0_4] : memref<1x32xf32, #tpu.memory_space<vmem>>, vector<1x32xf32>
    %4 = vector.broadcast %3 : vector<1x32xf32> to vector<128x32xf32>
    %5 = arith.addf %2, %4 : vector<128x32xf32>
    %cst_5 = arith.constant dense<0.000000e+00> : vector<128xf32>
    %6 = vector.multi_reduction <add>, %5, %cst_5 [1] : vector<128x32xf32> to vector<128xf32>
    %7 = vector.shape_cast %6 : vector<128xf32> to vector<128x1xf32>
    %cst_6 = arith.constant 3.200000e+01 : f32
    %8 = vector.broadcast %cst_6 : f32 to vector<128x1xf32>
    %9 = arith.divf %7, %8 : vector<128x1xf32>
    %10 = vector.broadcast %9 : vector<128x1xf32> to vector<128x32xf32>
    %11 = arith.subf %5, %10 : vector<128x32xf32>
    %12 = arith.mulf %11, %11 : vector<128x32xf32>
    %cst_7 = arith.constant dense<0.000000e+00> : vector<128xf32>
    %13 = vector.multi_reduction <add>, %12, %cst_7 [1] : vector<128x32xf32> to vector<128xf32>
    %14 = vector.shape_cast %13 : vector<128xf32> to vector<128x1xf32>
    %cst_8 = arith.constant 3.200000e+01 : f32
    %15 = vector.broadcast %cst_8 : f32 to vector<128x1xf32>
    %16 = arith.divf %14, %15 : vector<128x1xf32>
    %17 = vector.broadcast %9 : vector<128x1xf32> to vector<128x32xf32>
    %18 = arith.subf %5, %17 : vector<128x32xf32>
    %cst_9 = arith.constant 9.99999974E-6 : f32
    %19 = vector.broadcast %cst_9 : f32 to vector<128x1xf32>
    %20 = arith.addf %16, %19 : vector<128x1xf32>
    %21 = math.rsqrt %20 : vector<128x1xf32>
    %22 = vector.broadcast %21 : vector<128x1xf32> to vector<128x32xf32>
    %23 = arith.mulf %18, %22 : vector<128x32xf32>
    %c0_10 = arith.constant 0 : index
    %c0_11 = arith.constant 0 : index
    %24 = vector.load %arg4[%c0_10, %c0_11] : memref<1x32xf32, #tpu.memory_space<vmem>>, vector<1x32xf32>
    %25 = vector.broadcast %24 : vector<1x32xf32> to vector<128x32xf32>
    %26 = arith.mulf %23, %25 : vector<128x32xf32>
    %c0_12 = arith.constant 0 : index
    %c0_13 = arith.constant 0 : index
    %27 = vector.load %arg5[%c0_12, %c0_13] : memref<1x32xf32, #tpu.memory_space<vmem>>, vector<1x32xf32>
    %28 = vector.broadcast %27 : vector<1x32xf32> to vector<128x32xf32>
    %29 = arith.addf %26, %28 : vector<128x32xf32>
    %30 = arith.truncf %29 : vector<128x32xf32> to vector<128x32xbf16>
    %c0_14 = arith.constant 0 : index
    %c0_15 = arith.constant 0 : index
    %31 = vector.load %arg6[%c0_14, %c0_15] : memref<128x32xbf16, #tpu.memory_space<vmem>>, vector<128x32xbf16>
    tpu.vector_store %arg6[%c0_14, %c0_15], %30 {strides = array<i32>} : memref<128x32xbf16, #tpu.memory_space<vmem>>, vector<128x32xbf16>,
    return
  }
  func.func @transform_0(%arg0: i32) -> (i32, i32) {
    %c0_i32 = arith.constant 0 : i32
    %c0_i32_0 = arith.constant 0 : i32
    return %arg0, %c0_i32 : i32, i32
  }
  func.func @transform_1(%arg0: i32) -> (i32, i32) {
    %c0_i32 = arith.constant 0 : i32
    %c0_i32_0 = arith.constant 0 : i32
    %c0_i32_1 = arith.constant 0 : i32
    return %c0_i32, %c0_i32_0 : i32, i32
  }
  func.func @transform_2(%arg0: i32) -> (i32, i32) {
    %c0_i32 = arith.constant 0 : i32
    %c0_i32_0 = arith.constant 0 : i32
    %c0_i32_1 = arith.constant 0 : i32
    return %c0_i32, %c0_i32_0 : i32, i32
  }
  func.func @transform_3(%arg0: i32) -> (i32, i32) {
    %c0_i32 = arith.constant 0 : i32
    %c0_i32_0 = arith.constant 0 : i32
    %c0_i32_1 = arith.constant 0 : i32
    return %c0_i32, %c0_i32_0 : i32, i32
  }
  func.func @transform_4(%arg0: i32) -> (i32, i32) {
    %c0_i32 = arith.constant 0 : i32
    %c0_i32_0 = arith.constant 0 : i32
    %c0_i32_1 = arith.constant 0 : i32
    return %c0_i32, %c0_i32_0 : i32, i32
  }
  func.func @transform_5(%arg0: i32) -> (i32, i32) {
    %c0_i32 = arith.constant 0 : i32
    %c0_i32_0 = arith.constant 0 : i32
    return %arg0, %c0_i32 : i32, i32
  }
}

module attributes {stable_mosaic.version = 11 : i64} {
  func.func @_ffn_kernel(%arg0: i32, %arg1: memref<128x32xbf16, #tpu.memory_space<vmem>>, %arg2: memref<128x32xbf16, #tpu.memory_space<vmem>>, %arg3: memref<32x256xbf16, #tpu.memory_space<vmem>>, %arg4: memref<32x256xbf16, #tpu.memory_space<vmem>>, %arg5: memref<1x256xf32, #tpu.memory_space<vmem>>, %arg6: memref<256x32xbf16, #tpu.memory_space<vmem>>, %arg7: memref<1x32xf32, #tpu.memory_space<vmem>>, %arg8: memref<1x32xf32, #tpu.memory_space<vmem>>, %arg9: memref<1x32xf32, #tpu.memory_space<vmem>>, %arg10: memref<128x32xbf16, #tpu.memory_space<vmem>>) attributes {dimension_semantics = [#tpu.dimension_semantics<parallel>], iteration_bounds = array<i64: 4>, scalar_prefetch = 0 : i64, scratch_operands = 0 : i64, tpu.core_type = #tpu.core_type<tc>, window_params = [{transform_indices = @transform_0, window_bounds = array<i64: 128, 32>}, {transform_indices = @transform_1, window_bounds = array<i64: 128, 32>}, {pipeline_mode = #tpu.pipeline_mode<synchronous>, transform_indices = @transform_2, window_bounds = array<i64: 32, 256>}, {pipeline_mode = #tpu.pipeline_mode<synchronous>, transform_indices = @transform_3, window_bounds = array<i64: 32, 256>}, {pipeline_mode = #tpu.pipeline_mode<synchronous>, transform_indices = @transform_4, window_bounds = array<i64: 1, 256>}, {pipeline_mode = #tpu.pipeline_mode<synchronous>, transform_indices = @transform_5, window_bounds = array<i64: 256, 32>}, {pipeline_mode = #tpu.pipeline_mode<synchronous>, transform_indices = @transform_6, window_bounds = array<i64: 1, 32>}, {pipeline_mode = #tpu.pipeline_mode<synchronous>, transform_indices = @transform_7, window_bounds = array<i64: 1, 32>}, {pipeline_mode = #tpu.pipeline_mode<synchronous>, transform_indices = @transform_8, window_bounds = array<i64: 1, 32>}, {transform_indices = @transform_9, window_bounds = array<i64: 128, 32>}]} {
    %c0 = arith.constant 0 : index
    %c0_0 = arith.constant 0 : index
    %0 = vector.load %arg1[%c0, %c0_0] : memref<128x32xbf16, #tpu.memory_space<vmem>>, vector<128x32xbf16>
    %c0_1 = arith.constant 0 : index
    %c0_2 = arith.constant 0 : index
    %1 = vector.load %arg3[%c0_1, %c0_2] : memref<32x256xbf16, #tpu.memory_space<vmem>>, vector<32x256xbf16>
    %cst = arith.constant dense<0.000000e+00> : vector<128x256xf32>
    %2 = tpu.matmul %0, %1, %cst {dimension_numbers = #tpu.dot_dimension_numbers<[1], [0], [0], [1], [0, 0, 1, 1], [], []>} : vector<128x32xbf16>, vector<32x256xbf16>, vector<128x256xf32> -> vector<128x256xf32>
    %c0_3 = arith.constant 0 : index
    %c0_4 = arith.constant 0 : index
    %3 = vector.load %arg2[%c0_3, %c0_4] : memref<128x32xbf16, #tpu.memory_space<vmem>>, vector<128x32xbf16>
    %c0_5 = arith.constant 0 : index
    %c0_6 = arith.constant 0 : index
    %4 = vector.load %arg4[%c0_5, %c0_6] : memref<32x256xbf16, #tpu.memory_space<vmem>>, vector<32x256xbf16>
    %cst_7 = arith.constant dense<0.000000e+00> : vector<128x256xf32>
    %5 = tpu.matmul %3, %4, %cst_7 {dimension_numbers = #tpu.dot_dimension_numbers<[1], [0], [0], [1], [0, 0, 1, 1], [], []>} : vector<128x32xbf16>, vector<32x256xbf16>, vector<128x256xf32> -> vector<128x256xf32>
    %6 = arith.addf %2, %5 : vector<128x256xf32>
    %c0_8 = arith.constant 0 : index
    %c0_9 = arith.constant 0 : index
    %7 = vector.load %arg5[%c0_8, %c0_9] : memref<1x256xf32, #tpu.memory_space<vmem>>, vector<1x256xf32>
    %8 = vector.broadcast %7 : vector<1x256xf32> to vector<128x256xf32>
    %9 = arith.addf %6, %8 : vector<128x256xf32>
    %10 = arith.mulf %9, %9 : vector<128x256xf32>
    %11 = arith.mulf %9, %10 : vector<128x256xf32>
    %cst_10 = arith.constant 4.471500e-02 : f32
    %12 = vector.broadcast %cst_10 : f32 to vector<128x256xf32>
    %13 = arith.mulf %12, %11 : vector<128x256xf32>
    %14 = arith.addf %9, %13 : vector<128x256xf32>
    %cst_11 = arith.constant 0.797884583 : f32
    %15 = vector.broadcast %cst_11 : f32 to vector<128x256xf32>
    %16 = arith.mulf %15, %14 : vector<128x256xf32>
    %17 = math.tanh %16 : vector<128x256xf32>
    %cst_12 = arith.constant 1.000000e+00 : f32
    %18 = vector.broadcast %cst_12 : f32 to vector<128x256xf32>
    %19 = arith.addf %18, %17 : vector<128x256xf32>
    %cst_13 = arith.constant 5.000000e-01 : f32
    %20 = vector.broadcast %cst_13 : f32 to vector<128x256xf32>
    %21 = arith.mulf %20, %19 : vector<128x256xf32>
    %22 = arith.mulf %9, %21 : vector<128x256xf32>
    %23 = arith.truncf %22 : vector<128x256xf32> to vector<128x256xbf16>
    %c0_14 = arith.constant 0 : index
    %c0_15 = arith.constant 0 : index
    %24 = vector.load %arg6[%c0_14, %c0_15] : memref<256x32xbf16, #tpu.memory_space<vmem>>, vector<256x32xbf16>
    %cst_16 = arith.constant dense<0.000000e+00> : vector<128x32xf32>
    %25 = tpu.matmul %23, %24, %cst_16 {dimension_numbers = #tpu.dot_dimension_numbers<[1], [0], [0], [1], [0, 0, 1, 1], [], []>} : vector<128x256xbf16>, vector<256x32xbf16>, vector<128x32xf32> -> vector<128x32xf32>
    %c0_17 = arith.constant 0 : index
    %c0_18 = arith.constant 0 : index
    %26 = vector.load %arg7[%c0_17, %c0_18] : memref<1x32xf32, #tpu.memory_space<vmem>>, vector<1x32xf32>
    %27 = vector.broadcast %26 : vector<1x32xf32> to vector<128x32xf32>
    %28 = arith.addf %25, %27 : vector<128x32xf32>
    %cst_19 = arith.constant dense<0.000000e+00> : vector<128xf32>
    %29 = vector.multi_reduction <add>, %28, %cst_19 [1] : vector<128x32xf32> to vector<128xf32>
    %30 = vector.shape_cast %29 : vector<128xf32> to vector<128x1xf32>
    %cst_20 = arith.constant 3.200000e+01 : f32
    %31 = vector.broadcast %cst_20 : f32 to vector<128x1xf32>
    %32 = arith.divf %30, %31 : vector<128x1xf32>
    %33 = vector.broadcast %32 : vector<128x1xf32> to vector<128x32xf32>
    %34 = arith.subf %28, %33 : vector<128x32xf32>
    %35 = arith.mulf %34, %34 : vector<128x32xf32>
    %cst_21 = arith.constant dense<0.000000e+00> : vector<128xf32>
    %36 = vector.multi_reduction <add>, %35, %cst_21 [1] : vector<128x32xf32> to vector<128xf32>
    %37 = vector.shape_cast %36 : vector<128xf32> to vector<128x1xf32>
    %cst_22 = arith.constant 3.200000e+01 : f32
    %38 = vector.broadcast %cst_22 : f32 to vector<128x1xf32>
    %39 = arith.divf %37, %38 : vector<128x1xf32>
    %40 = vector.broadcast %32 : vector<128x1xf32> to vector<128x32xf32>
    %41 = arith.subf %28, %40 : vector<128x32xf32>
    %cst_23 = arith.constant 9.99999974E-6 : f32
    %42 = vector.broadcast %cst_23 : f32 to vector<128x1xf32>
    %43 = arith.addf %39, %42 : vector<128x1xf32>
    %44 = math.rsqrt %43 : vector<128x1xf32>
    %45 = vector.broadcast %44 : vector<128x1xf32> to vector<128x32xf32>
    %46 = arith.mulf %41, %45 : vector<128x32xf32>
    %47 = arith.extf %0 : vector<128x32xbf16> to vector<128x32xf32>
    %c0_24 = arith.constant 0 : index
    %c0_25 = arith.constant 0 : index
    %48 = vector.load %arg8[%c0_24, %c0_25] : memref<1x32xf32, #tpu.memory_space<vmem>>, vector<1x32xf32>
    %49 = vector.broadcast %48 : vector<1x32xf32> to vector<128x32xf32>
    %50 = arith.mulf %46, %49 : vector<128x32xf32>
    %51 = arith.addf %47, %50 : vector<128x32xf32>
    %c0_26 = arith.constant 0 : index
    %c0_27 = arith.constant 0 : index
    %52 = vector.load %arg9[%c0_26, %c0_27] : memref<1x32xf32, #tpu.memory_space<vmem>>, vector<1x32xf32>
    %53 = vector.broadcast %52 : vector<1x32xf32> to vector<128x32xf32>
    %54 = arith.addf %51, %53 : vector<128x32xf32>
    %55 = arith.truncf %54 : vector<128x32xf32> to vector<128x32xbf16>
    %c0_28 = arith.constant 0 : index
    %c0_29 = arith.constant 0 : index
    %56 = vector.load %arg10[%c0_28, %c0_29] : memref<128x32xbf16, #tpu.memory_space<vmem>>, vector<128x32xbf16>
    tpu.vector_store %arg10[%c0_28, %c0_29], %55 {strides = array<i32>} : memref<128x32xbf16, #tpu.memory_space<vmem>>, vector<128x32xbf16>,
    return
  }
  func.func @transform_0(%arg0: i32) -> (i32, i32) {
    %c0_i32 = arith.constant 0 : i32
    %c0_i32_0 = arith.constant 0 : i32
    return %arg0, %c0_i32 : i32, i32
  }
  func.func @transform_1(%arg0: i32) -> (i32, i32) {
    %c0_i32 = arith.constant 0 : i32
    %c0_i32_0 = arith.constant 0 : i32
    return %arg0, %c0_i32 : i32, i32
  }
  func.func @transform_2(%arg0: i32) -> (i32, i32) {
    %c0_i32 = arith.constant 0 : i32
    %c0_i32_0 = arith.constant 0 : i32
    %c0_i32_1 = arith.constant 0 : i32
    return %c0_i32, %c0_i32_0 : i32, i32
  }
  func.func @transform_3(%arg0: i32) -> (i32, i32) {
    %c0_i32 = arith.constant 0 : i32
    %c0_i32_0 = arith.constant 0 : i32
    %c0_i32_1 = arith.constant 0 : i32
    return %c0_i32, %c0_i32_0 : i32, i32
  }
  func.func @transform_4(%arg0: i32) -> (i32, i32) {
    %c0_i32 = arith.constant 0 : i32
    %c0_i32_0 = arith.constant 0 : i32
    %c0_i32_1 = arith.constant 0 : i32
    return %c0_i32, %c0_i32_0 : i32, i32
  }
  func.func @transform_5(%arg0: i32) -> (i32, i32) {
    %c0_i32 = arith.constant 0 : i32
    %c0_i32_0 = arith.constant 0 : i32
    %c0_i32_1 = arith.constant 0 : i32
    return %c0_i32, %c0_i32_0 : i32, i32
  }
  func.func @transform_6(%arg0: i32) -> (i32, i32) {
    %c0_i32 = arith.constant 0 : i32
    %c0_i32_0 = arith.constant 0 : i32
    %c0_i32_1 = arith.constant 0 : i32
    return %c0_i32, %c0_i32_0 : i32, i32
  }
  func.func @transform_7(%arg0: i32) -> (i32, i32) {
    %c0_i32 = arith.constant 0 : i32
    %c0_i32_0 = arith.constant 0 : i32
    %c0_i32_1 = arith.constant 0 : i32
    return %c0_i32, %c0_i32_0 : i32, i32
  }
  func.func @transform_8(%arg0: i32) -> (i32, i32) {
    %c0_i32 = arith.constant 0 : i32
    %c0_i32_0 = arith.constant 0 : i32
    %c0_i32_1 = arith.constant 0 : i32
    return %c0_i32, %c0_i32_0 : i32, i32
  }
  func.func @transform_9(%arg0: i32) -> (i32, i32) {
    %c0_i32 = arith.constant 0 : i32
    %c0_i32_0 = arith.constant 0 : i32
    return %arg0, %c0_i32 : i32, i32
  }
}

module attributes {stable_mosaic.version = 11 : i64} {
  func.func @_multi_proj_kernel(%arg0: i32, %arg1: memref<128x32xbf16, #tpu.memory_space<vmem>>, %arg2: memref<32x32xbf16, #tpu.memory_space<vmem>>, %arg3: memref<1x32xf32, #tpu.memory_space<vmem>>, %arg4: memref<128x32xbf16, #tpu.memory_space<vmem>>) attributes {dimension_semantics = [#tpu.dimension_semantics<parallel>], iteration_bounds = array<i64: 4>, scalar_prefetch = 0 : i64, scratch_operands = 0 : i64, tpu.core_type = #tpu.core_type<tc>, window_params = [{transform_indices = @transform_0, window_bounds = array<i64: 128, 32>}, {pipeline_mode = #tpu.pipeline_mode<synchronous>, transform_indices = @transform_1, window_bounds = array<i64: 32, 32>}, {pipeline_mode = #tpu.pipeline_mode<synchronous>, transform_indices = @transform_2, window_bounds = array<i64: 1, 32>}, {transform_indices = @transform_3, window_bounds = array<i64: 128, 32>}]} {
    %c0 = arith.constant 0 : index
    %c0_0 = arith.constant 0 : index
    %0 = vector.load %arg1[%c0, %c0_0] : memref<128x32xbf16, #tpu.memory_space<vmem>>, vector<128x32xbf16>
    %c0_1 = arith.constant 0 : index
    %c0_2 = arith.constant 0 : index
    %1 = vector.load %arg2[%c0_1, %c0_2] : memref<32x32xbf16, #tpu.memory_space<vmem>>, vector<32x32xbf16>
    %cst = arith.constant dense<0.000000e+00> : vector<128x32xf32>
    %2 = tpu.matmul %0, %1, %cst {dimension_numbers = #tpu.dot_dimension_numbers<[1], [0], [0], [1], [0, 0, 1, 1], [], []>} : vector<128x32xbf16>, vector<32x32xbf16>, vector<128x32xf32> -> vector<128x32xf32>
    %c0_3 = arith.constant 0 : index
    %c0_4 = arith.constant 0 : index
    %3 = vector.load %arg3[%c0_3, %c0_4] : memref<1x32xf32, #tpu.memory_space<vmem>>, vector<1x32xf32>
    %4 = vector.broadcast %3 : vector<1x32xf32> to vector<128x32xf32>
    %5 = arith.addf %2, %4 : vector<128x32xf32>
    %6 = arith.truncf %5 : vector<128x32xf32> to vector<128x32xbf16>
    %c0_5 = arith.constant 0 : index
    %c0_6 = arith.constant 0 : index
    %7 = vector.load %arg4[%c0_5, %c0_6] : memref<128x32xbf16, #tpu.memory_space<vmem>>, vector<128x32xbf16>
    tpu.vector_store %arg4[%c0_5, %c0_6], %6 {strides = array<i32>} : memref<128x32xbf16, #tpu.memory_space<vmem>>, vector<128x32xbf16>,
    return
  }
  func.func @transform_0(%arg0: i32) -> (i32, i32) {
    %c0_i32 = arith.constant 0 : i32
    %c0_i32_0 = arith.constant 0 : i32
    return %arg0, %c0_i32 : i32, i32
  }
  func.func @transform_1(%arg0: i32) -> (i32, i32) {
    %c0_i32 = arith.constant 0 : i32
    %c0_i32_0 = arith.constant 0 : i32
    %c0_i32_1 = arith.constant 0 : i32
    return %c0_i32, %c0_i32_0 : i32, i32
  }
  func.func @transform_2(%arg0: i32) -> (i32, i32) {
    %c0_i32 = arith.constant 0 : i32
    %c0_i32_0 = arith.constant 0 : i32
    %c0_i32_1 = arith.constant 0 : i32
    return %c0_i32, %c0_i32_0 : i32, i32
  }
  func.func @transform_3(%arg0: i32) -> (i32, i32) {
    %c0_i32 = arith.constant 0 : i32
    %c0_i32_0 = arith.constant 0 : i32
    return %arg0, %c0_i32 : i32, i32
  }
}

module attributes {stable_mosaic.version = 11 : i64} {
  func.func @_multi_proj_kernel(%arg0: i32, %arg1: memref<128x32xbf16, #tpu.memory_space<vmem>>, %arg2: memref<32x32xbf16, #tpu.memory_space<vmem>>, %arg3: memref<32x32xbf16, #tpu.memory_space<vmem>>, %arg4: memref<1x32xf32, #tpu.memory_space<vmem>>, %arg5: memref<1x32xf32, #tpu.memory_space<vmem>>, %arg6: memref<128x32xbf16, #tpu.memory_space<vmem>>, %arg7: memref<128x32xbf16, #tpu.memory_space<vmem>>) attributes {dimension_semantics = [#tpu.dimension_semantics<parallel>], iteration_bounds = array<i64: 4>, scalar_prefetch = 0 : i64, scratch_operands = 0 : i64, tpu.core_type = #tpu.core_type<tc>, window_params = [{transform_indices = @transform_0, window_bounds = array<i64: 128, 32>}, {pipeline_mode = #tpu.pipeline_mode<synchronous>, transform_indices = @transform_1, window_bounds = array<i64: 32, 32>}, {pipeline_mode = #tpu.pipeline_mode<synchronous>, transform_indices = @transform_2, window_bounds = array<i64: 32, 32>}, {pipeline_mode = #tpu.pipeline_mode<synchronous>, transform_indices = @transform_3, window_bounds = array<i64: 1, 32>}, {pipeline_mode = #tpu.pipeline_mode<synchronous>, transform_indices = @transform_4, window_bounds = array<i64: 1, 32>}, {transform_indices = @transform_5, window_bounds = array<i64: 128, 32>}, {transform_indices = @transform_6, window_bounds = array<i64: 128, 32>}]} {
    %c0 = arith.constant 0 : index
    %c0_0 = arith.constant 0 : index
    %0 = vector.load %arg1[%c0, %c0_0] : memref<128x32xbf16, #tpu.memory_space<vmem>>, vector<128x32xbf16>
    %c0_1 = arith.constant 0 : index
    %c0_2 = arith.constant 0 : index
    %1 = vector.load %arg2[%c0_1, %c0_2] : memref<32x32xbf16, #tpu.memory_space<vmem>>, vector<32x32xbf16>
    %cst = arith.constant dense<0.000000e+00> : vector<128x32xf32>
    %2 = tpu.matmul %0, %1, %cst {dimension_numbers = #tpu.dot_dimension_numbers<[1], [0], [0], [1], [0, 0, 1, 1], [], []>} : vector<128x32xbf16>, vector<32x32xbf16>, vector<128x32xf32> -> vector<128x32xf32>
    %c0_3 = arith.constant 0 : index
    %c0_4 = arith.constant 0 : index
    %3 = vector.load %arg4[%c0_3, %c0_4] : memref<1x32xf32, #tpu.memory_space<vmem>>, vector<1x32xf32>
    %4 = vector.broadcast %3 : vector<1x32xf32> to vector<128x32xf32>
    %5 = arith.addf %2, %4 : vector<128x32xf32>
    %6 = arith.truncf %5 : vector<128x32xf32> to vector<128x32xbf16>
    %c0_5 = arith.constant 0 : index
    %c0_6 = arith.constant 0 : index
    %7 = vector.load %arg6[%c0_5, %c0_6] : memref<128x32xbf16, #tpu.memory_space<vmem>>, vector<128x32xbf16>
    tpu.vector_store %arg6[%c0_5, %c0_6], %6 {strides = array<i32>} : memref<128x32xbf16, #tpu.memory_space<vmem>>, vector<128x32xbf16>,
    %c0_7 = arith.constant 0 : index
    %c0_8 = arith.constant 0 : index
    %8 = vector.load %arg3[%c0_7, %c0_8] : memref<32x32xbf16, #tpu.memory_space<vmem>>, vector<32x32xbf16>
    %cst_9 = arith.constant dense<0.000000e+00> : vector<128x32xf32>
    %9 = tpu.matmul %0, %8, %cst_9 {dimension_numbers = #tpu.dot_dimension_numbers<[1], [0], [0], [1], [0, 0, 1, 1], [], []>} : vector<128x32xbf16>, vector<32x32xbf16>, vector<128x32xf32> -> vector<128x32xf32>
    %c0_10 = arith.constant 0 : index
    %c0_11 = arith.constant 0 : index
    %10 = vector.load %arg5[%c0_10, %c0_11] : memref<1x32xf32, #tpu.memory_space<vmem>>, vector<1x32xf32>
    %11 = vector.broadcast %10 : vector<1x32xf32> to vector<128x32xf32>
    %12 = arith.addf %9, %11 : vector<128x32xf32>
    %13 = arith.truncf %12 : vector<128x32xf32> to vector<128x32xbf16>
    %c0_12 = arith.constant 0 : index
    %c0_13 = arith.constant 0 : index
    %14 = vector.load %arg7[%c0_12, %c0_13] : memref<128x32xbf16, #tpu.memory_space<vmem>>, vector<128x32xbf16>
    tpu.vector_store %arg7[%c0_12, %c0_13], %13 {strides = array<i32>} : memref<128x32xbf16, #tpu.memory_space<vmem>>, vector<128x32xbf16>,
    return
  }
  func.func @transform_0(%arg0: i32) -> (i32, i32) {
    %c0_i32 = arith.constant 0 : i32
    %c0_i32_0 = arith.constant 0 : i32
    return %arg0, %c0_i32 : i32, i32
  }
  func.func @transform_1(%arg0: i32) -> (i32, i32) {
    %c0_i32 = arith.constant 0 : i32
    %c0_i32_0 = arith.constant 0 : i32
    %c0_i32_1 = arith.constant 0 : i32
    return %c0_i32, %c0_i32_0 : i32, i32
  }
  func.func @transform_2(%arg0: i32) -> (i32, i32) {
    %c0_i32 = arith.constant 0 : i32
    %c0_i32_0 = arith.constant 0 : i32
    %c0_i32_1 = arith.constant 0 : i32
    return %c0_i32, %c0_i32_0 : i32, i32
  }
  func.func @transform_3(%arg0: i32) -> (i32, i32) {
    %c0_i32 = arith.constant 0 : i32
    %c0_i32_0 = arith.constant 0 : i32
    %c0_i32_1 = arith.constant 0 : i32
    return %c0_i32, %c0_i32_0 : i32, i32
  }
  func.func @transform_4(%arg0: i32) -> (i32, i32) {
    %c0_i32 = arith.constant 0 : i32
    %c0_i32_0 = arith.constant 0 : i32
    %c0_i32_1 = arith.constant 0 : i32
    return %c0_i32, %c0_i32_0 : i32, i32
  }
  func.func @transform_5(%arg0: i32) -> (i32, i32) {
    %c0_i32 = arith.constant 0 : i32
    %c0_i32_0 = arith.constant 0 : i32
    return %arg0, %c0_i32 : i32, i32
  }
  func.func @transform_6(%arg0: i32) -> (i32, i32) {
    %c0_i32 = arith.constant 0 : i32
    %c0_i32_0 = arith.constant 0 : i32
    return %arg0, %c0_i32 : i32, i32
  }
}

module attributes {stable_mosaic.version = 11 : i64} {
  func.func @_corr_softmax_kernel(%arg0: i32, %arg1: i32, %arg2: memref<1x64x32xbf16, #tpu.memory_space<vmem>>, %arg3: memref<1x64x32xbf16, #tpu.memory_space<vmem>>, %arg4: memref<1x64x64xbf16, #tpu.memory_space<vmem>>) attributes {dimension_semantics = [#tpu.dimension_semantics<parallel>, #tpu.dimension_semantics<parallel>], iteration_bounds = array<i64: 4, 1>, scalar_prefetch = 0 : i64, scratch_operands = 0 : i64, tpu.core_type = #tpu.core_type<tc>, window_params = [{transform_indices = @transform_0, window_bounds = array<i64: 1, 64, 32>}, {transform_indices = @transform_1, window_bounds = array<i64: 1, 64, 32>}, {transform_indices = @transform_2, window_bounds = array<i64: 1, 64, 64>}]} {
    %c0 = arith.constant 0 : index
    %c0_0 = arith.constant 0 : index
    %c0_1 = arith.constant 0 : index
    %0 = vector.load %arg2[%c0, %c0_0, %c0_1] : memref<1x64x32xbf16, #tpu.memory_space<vmem>>, vector<1x64x32xbf16>
    %1 = vector.shape_cast %0 : vector<1x64x32xbf16> to vector<64x32xbf16>
    %cst = arith.constant 1.767580e-01 : bf16
    %2 = vector.broadcast %cst : bf16 to vector<64x32xbf16>
    %3 = arith.mulf %1, %2 : vector<64x32xbf16>
    %c0_2 = arith.constant 0 : index
    %c0_3 = arith.constant 0 : index
    %c0_4 = arith.constant 0 : index
    %4 = vector.load %arg3[%c0_2, %c0_3, %c0_4] : memref<1x64x32xbf16, #tpu.memory_space<vmem>>, vector<1x64x32xbf16>
    %5 = vector.shape_cast %4 : vector<1x64x32xbf16> to vector<64x32xbf16>
    %cst_5 = arith.constant dense<0.000000e+00> : vector<64x64xf32>
    %6 = tpu.matmul %3, %5, %cst_5 {dimension_numbers = #tpu.dot_dimension_numbers<[1], [1], [0], [0], [0, 0, 1, 0], [], []>} : vector<64x32xbf16>, vector<64x32xbf16>, vector<64x64xf32> -> vector<64x64xf32>
    %cst_6 = arith.constant dense<0xFF800000> : vector<64xf32>
    %7 = vector.multi_reduction <maximumf>, %6, %cst_6 [1] : vector<64x64xf32> to vector<64xf32>
    %8 = vector.shape_cast %7 : vector<64xf32> to vector<64x1xf32>
    %9 = vector.broadcast %8 : vector<64x1xf32> to vector<64x64xf32>
    %10 = arith.subf %6, %9 : vector<64x64xf32>
    %11 = math.exp %10 : vector<64x64xf32>
    %cst_7 = arith.constant dense<0.000000e+00> : vector<64xf32>
    %12 = vector.multi_reduction <add>, %11, %cst_7 [1] : vector<64x64xf32> to vector<64xf32>
    %13 = vector.shape_cast %12 : vector<64xf32> to vector<64x1xf32>
    %14 = vector.broadcast %13 : vector<64x1xf32> to vector<64x64xf32>
    %15 = arith.divf %11, %14 : vector<64x64xf32>
    %16 = arith.truncf %15 : vector<64x64xf32> to vector<64x64xbf16>
    %c0_8 = arith.constant 0 : index
    %c0_9 = arith.constant 0 : index
    %c0_10 = arith.constant 0 : index
    %17 = vector.load %arg4[%c0_8, %c0_9, %c0_10] : memref<1x64x64xbf16, #tpu.memory_space<vmem>>, vector<1x64x64xbf16>
    %18 = vector.shape_cast %17 : vector<1x64x64xbf16> to vector<64x64xbf16>
    %19 = vector.shape_cast %16 : vector<64x64xbf16> to vector<1x64x64xbf16>
    tpu.vector_store %arg4[%c0_8, %c0_9, %c0_10], %19 {strides = array<i32>} : memref<1x64x64xbf16, #tpu.memory_space<vmem>>, vector<1x64x64xbf16>,
    return
  }
  func.func @transform_0(%arg0: i32, %arg1: i32) -> (i32, i32, i32) {
    %c0_i32 = arith.constant 0 : i32
    %c0_i32_0 = arith.constant 0 : i32
    return %arg0, %arg1, %c0_i32 : i32, i32, i32
  }
  func.func @transform_1(%arg0: i32, %arg1: i32) -> (i32, i32, i32) {
    %c0_i32 = arith.constant 0 : i32
    %c0_i32_0 = arith.constant 0 : i32
    %c0_i32_1 = arith.constant 0 : i32
    return %arg0, %c0_i32, %c0_i32_0 : i32, i32, i32
  }
  func.func @transform_2(%arg0: i32, %arg1: i32) -> (i32, i32, i32) {
    %c0_i32 = arith.constant 0 : i32
    %c0_i32_0 = arith.constant 0 : i32
    return %arg0, %arg1, %c0_i32 : i32, i32, i32
  }
}

module attributes {stable_mosaic.version = 11 : i64} {
  func.func @_chain_kernel(%arg0: i32, %arg1: i32, %arg2: i32, %arg3: memref<1x1x64x64xbf16, #tpu.memory_space<vmem>>, %arg4: memref<1x64x64xf32, #tpu.memory_space<vmem>>) attributes {dimension_semantics = [#tpu.dimension_semantics<parallel>, #tpu.dimension_semantics<parallel>, #tpu.dimension_semantics<arbitrary>], iteration_bounds = array<i64: 2, 1, 2>, scalar_prefetch = 0 : i64, scratch_operands = 0 : i64, tpu.core_type = #tpu.core_type<tc>, window_params = [{transform_indices = @transform_0, window_bounds = array<i64: 1, 1, 64, 64>}, {transform_indices = @transform_1, window_bounds = array<i64: 1, 64, 64>}]} {
    %c0_i32 = arith.constant 0 : i32
    %0 = arith.cmpi eq, %arg2, %c0_i32 : i32
    %1 = arith.extui %0 : i1 to i32
    %c0_i32_0 = arith.constant 0 : i32
    %2 = arith.cmpi ne, %1, %c0_i32_0 : i32
    scf.if %2 {
      %c64_i32 = arith.constant 64 : i32
      %6 = arith.muli %arg1, %c64_i32 : i32
      %7 = tpu.assume_multiple %6, 64 : i32
      %c0 = arith.constant 0 : index
      %c0_3 = arith.constant 0 : index
      %8 = arith.index_cast %7 : i32 to index
      %c0_4 = arith.constant 0 : index
      %9 = vector.load %arg3[%c0, %c0_3, %8, %c0_4] : memref<1x1x64x64xbf16, #tpu.memory_space<vmem>>, vector<1x1x64x64xbf16>
      %10 = vector.shape_cast %9 : vector<1x1x64x64xbf16> to vector<64x64xbf16>
      %11 = arith.extf %10 : vector<64x64xbf16> to vector<64x64xf32>
      %c0_5 = arith.constant 0 : index
      %c0_6 = arith.constant 0 : index
      %c0_7 = arith.constant 0 : index
      %12 = vector.load %arg4[%c0_5, %c0_6, %c0_7] : memref<1x64x64xf32, #tpu.memory_space<vmem>>, vector<1x64x64xf32>
      %13 = vector.shape_cast %12 : vector<1x64x64xf32> to vector<64x64xf32>
      %14 = vector.shape_cast %11 : vector<64x64xf32> to vector<1x64x64xf32>
      tpu.vector_store %arg4[%c0_5, %c0_6, %c0_7], %14 {strides = array<i32>} : memref<1x64x64xf32, #tpu.memory_space<vmem>>, vector<1x64x64xf32>,
    } else {
    }
    %c0_i32_1 = arith.constant 0 : i32
    %3 = arith.cmpi sgt, %arg2, %c0_i32_1 : i32
    %4 = arith.extui %3 : i1 to i32
    %c0_i32_2 = arith.constant 0 : i32
    %5 = arith.cmpi ne, %4, %c0_i32_2 : i32
    scf.if %5 {
      %c0 = arith.constant 0 : index
      %c0_3 = arith.constant 0 : index
      %c0_4 = arith.constant 0 : index
      %6 = vector.load %arg4[%c0, %c0_3, %c0_4] : memref<1x64x64xf32, #tpu.memory_space<vmem>>, vector<1x64x64xf32>
      %7 = vector.shape_cast %6 : vector<1x64x64xf32> to vector<64x64xf32>
      %8 = arith.truncf %7 : vector<64x64xf32> to vector<64x64xbf16>
      %c0_5 = arith.constant 0 : index
      %c0_6 = arith.constant 0 : index
      %c0_7 = arith.constant 0 : index
      %c0_8 = arith.constant 0 : index
      %9 = vector.load %arg3[%c0_5, %c0_6, %c0_7, %c0_8] : memref<1x1x64x64xbf16, #tpu.memory_space<vmem>>, vector<1x1x64x64xbf16>
      %10 = vector.shape_cast %9 : vector<1x1x64x64xbf16> to vector<64x64xbf16>
      %cst = arith.constant dense<0.000000e+00> : vector<64x64xf32>
      %11 = tpu.matmul %8, %10, %cst {dimension_numbers = #tpu.dot_dimension_numbers<[1], [0], [0], [1], [0, 0, 1, 1], [], []>} : vector<64x64xbf16>, vector<64x64xbf16>, vector<64x64xf32> -> vector<64x64xf32>
      %c0_9 = arith.constant 0 : index
      %c0_10 = arith.constant 0 : index
      %c0_11 = arith.constant 0 : index
      %12 = vector.load %arg4[%c0_9, %c0_10, %c0_11] : memref<1x64x64xf32, #tpu.memory_space<vmem>>, vector<1x64x64xf32>
      %13 = vector.shape_cast %12 : vector<1x64x64xf32> to vector<64x64xf32>
      %14 = vector.shape_cast %11 : vector<64x64xf32> to vector<1x64x64xf32>
      tpu.vector_store %arg4[%c0_9, %c0_10, %c0_11], %14 {strides = array<i32>} : memref<1x64x64xf32, #tpu.memory_space<vmem>>, vector<1x64x64xf32>,
    } else {
    }
    return
  }
  func.func @transform_0(%arg0: i32, %arg1: i32, %arg2: i32) -> (i32, i32, i32, i32) {
    %c0_i32 = arith.constant 0 : i32
    %c0_i32_0 = arith.constant 0 : i32
    %c0_i32_1 = arith.constant 0 : i32
    return %arg0, %arg2, %c0_i32, %c0_i32_0 : i32, i32, i32, i32
  }
  func.func @transform_1(%arg0: i32, %arg1: i32, %arg2: i32) -> (i32, i32, i32) {
    %c0_i32 = arith.constant 0 : i32
    %c0_i32_0 = arith.constant 0 : i32
    return %arg0, %arg1, %c0_i32 : i32, i32, i32
  }
}

module attributes {stable_mosaic.version = 11 : i64} {
  func.func @_nll_kernel(%arg0: i32, %arg1: i32, %arg2: memref<1x64x64xf32, #tpu.memory_space<vmem>>, %arg3: memref<1x64x1xi32, #tpu.memory_space<vmem>>, %arg4: memref<1x64x1xf32, #tpu.memory_space<vmem>>, %arg5: memref<1x64x1xf32, #tpu.memory_space<vmem>>, %arg6: memref<1x64x1xf32, #tpu.memory_space<vmem>>) attributes {dimension_semantics = [#tpu.dimension_semantics<parallel>, #tpu.dimension_semantics<parallel>], iteration_bounds = array<i64: 2, 1>, scalar_prefetch = 0 : i64, scratch_operands = 0 : i64, tpu.core_type = #tpu.core_type<tc>, window_params = [{transform_indices = @transform_0, window_bounds = array<i64: 1, 64, 64>}, {transform_indices = @transform_1, window_bounds = array<i64: 1, 64, 1>}, {transform_indices = @transform_2, window_bounds = array<i64: 1, 64, 1>}, {transform_indices = @transform_3, window_bounds = array<i64: 1, 64, 1>}, {transform_indices = @transform_4, window_bounds = array<i64: 1, 64, 1>}]} {
    %c0 = arith.constant 0 : index
    %c0_0 = arith.constant 0 : index
    %c0_1 = arith.constant 0 : index
    %0 = vector.load %arg2[%c0, %c0_0, %c0_1] : memref<1x64x64xf32, #tpu.memory_space<vmem>>, vector<1x64x64xf32>
    %1 = vector.shape_cast %0 : vector<1x64x64xf32> to vector<64x64xf32>
    %c0_2 = arith.constant 0 : index
    %c0_3 = arith.constant 0 : index
    %c0_4 = arith.constant 0 : index
    %2 = vector.load %arg3[%c0_2, %c0_3, %c0_4] : memref<1x64x1xi32, #tpu.memory_space<vmem>>, vector<1x64x1xi32>
    %3 = vector.shape_cast %2 : vector<1x64x1xi32> to vector<64x1xi32>
    %c0_5 = arith.constant 0 : index
    %c0_6 = arith.constant 0 : index
    %c0_7 = arith.constant 0 : index
    %4 = vector.load %arg4[%c0_5, %c0_6, %c0_7] : memref<1x64x1xf32, #tpu.memory_space<vmem>>, vector<1x64x1xf32>
    %5 = vector.shape_cast %4 : vector<1x64x1xf32> to vector<64x1xf32>
    %6 = tpu.iota {dimensions = array<i32: 1>} : vector<64x64xi32>
    %7 = vector.broadcast %3 : vector<64x1xi32> to vector<64x64xi32>
    %8 = arith.cmpi eq, %6, %7 : vector<64x64xi32>
    %cst = arith.constant 0.000000e+00 : f32
    %9 = vector.broadcast %cst : f32 to vector<64x64xf32>
    %10 = arith.select %8, %1, %9 : vector<64x64xi1>, vector<64x64xf32>
    %cst_8 = arith.constant dense<0.000000e+00> : vector<64xf32>
    %11 = vector.multi_reduction <add>, %10, %cst_8 [1] : vector<64x64xf32> to vector<64xf32>
    %12 = vector.shape_cast %11 : vector<64xf32> to vector<64x1xf32>
    %cst_9 = arith.constant 9.99999996E-13 : f32
    %13 = vector.broadcast %cst_9 : f32 to vector<64x1xf32>
    %14 = arith.addf %12, %13 : vector<64x1xf32>
    %15 = math.log %14 : vector<64x1xf32>
    %cst_10 = arith.constant 0.000000e+00 : f32
    %16 = vector.broadcast %cst_10 : f32 to vector<64x1xf32>
    %17 = arith.subf %16, %15 : vector<64x1xf32>
    %18 = arith.mulf %5, %17 : vector<64x1xf32>
    %c0_11 = arith.constant 0 : index
    %c0_12 = arith.constant 0 : index
    %c0_13 = arith.constant 0 : index
    %19 = vector.load %arg5[%c0_11, %c0_12, %c0_13] : memref<1x64x1xf32, #tpu.memory_space<vmem>>, vector<1x64x1xf32>
    %20 = vector.shape_cast %19 : vector<1x64x1xf32> to vector<64x1xf32>
    %21 = vector.shape_cast %18 : vector<64x1xf32> to vector<1x64x1xf32>
    tpu.vector_store %arg5[%c0_11, %c0_12, %c0_13], %21 {strides = array<i32>} : memref<1x64x1xf32, #tpu.memory_space<vmem>>, vector<1x64x1xf32>,
    %cst_14 = arith.constant dense<0xFF800000> : vector<64xf32>
    %22 = vector.multi_reduction <maximumf>, %1, %cst_14 [1] : vector<64x64xf32> to vector<64xf32>
    %23 = vector.shape_cast %22 : vector<64xf32> to vector<64x1xf32>
    %24 = vector.broadcast %23 : vector<64x1xf32> to vector<64x64xf32>
    %25 = arith.cmpf oeq, %1, %24 : vector<64x64xf32>
    %c64_i32 = arith.constant 64 : i32
    %26 = vector.broadcast %c64_i32 : i32 to vector<64x64xi32>
    %27 = arith.select %25, %6, %26 : vector<64x64xi1>, vector<64x64xi32>
    %cst_15 = arith.constant dense<2147483647> : vector<64xi32>
    %28 = vector.multi_reduction <minsi>, %27, %cst_15 [1] : vector<64x64xi32> to vector<64xi32>
    %29 = vector.shape_cast %28 : vector<64xi32> to vector<64x1xi32>
    %30 = arith.cmpi eq, %29, %3 : vector<64x1xi32>
    %31 = arith.extui %30 : vector<64x1xi1> to vector<64x1xi32>
    %32 = arith.sitofp %31 : vector<64x1xi32> to vector<64x1xf32>
    %33 = arith.mulf %5, %32 : vector<64x1xf32>
    %c0_16 = arith.constant 0 : index
    %c0_17 = arith.constant 0 : index
    %c0_18 = arith.constant 0 : index
    %34 = vector.load %arg6[%c0_16, %c0_17, %c0_18] : memref<1x64x1xf32, #tpu.memory_space<vmem>>, vector<1x64x1xf32>
    %35 = vector.shape_cast %34 : vector<1x64x1xf32> to vector<64x1xf32>
    %36 = vector.shape_cast %33 : vector<64x1xf32> to vector<1x64x1xf32>
    tpu.vector_store %arg6[%c0_16, %c0_17, %c0_18], %36 {strides = array<i32>} : memref<1x64x1xf32, #tpu.memory_space<vmem>>, vector<1x64x1xf32>,
    return
  }
  func.func @transform_0(%arg0: i32, %arg1: i32) -> (i32, i32, i32) {
    %c0_i32 = arith.constant 0 : i32
    %c0_i32_0 = arith.constant 0 : i32
    return %arg0, %arg1, %c0_i32 : i32, i32, i32
  }
  func.func @transform_1(%arg0: i32, %arg1: i32) -> (i32, i32, i32) {
    %c0_i32 = arith.constant 0 : i32
    %c0_i32_0 = arith.constant 0 : i32
    return %arg0, %arg1, %c0_i32 : i32, i32, i32
  }
  func.func @transform_2(%arg0: i32, %arg1: i32) -> (i32, i32, i32) {
    %c0_i32 = arith.constant 0 : i32
    %c0_i32_0 = arith.constant 0 : i32
    return %arg0, %arg1, %c0_i32 : i32, i32, i32
  }
  func.func @transform_3(%arg0: i32, %arg1: i32) -> (i32, i32, i32) {
    %c0_i32 = arith.constant 0 : i32
    %c0_i32_0 = arith.constant 0 : i32
    return %arg0, %arg1, %c0_i32 : i32, i32, i32
  }
  func.func @transform_4(%arg0: i32, %arg1: i32) -> (i32, i32, i32) {
    %c0_i32 = arith.constant 0 : i32
    %c0_i32_0 = arith.constant 0 : i32
    return %arg0, %arg1, %c0_i32 : i32, i32, i32
  }
}

</mosaic_0001>

<llo_original>
// kernel: gmrw_forward.22
$region0: #{gmrw_forward.22}
  #allocation0 [shape = 'u32[]', space=smem, size = 0x4, offset = 0x4, fixed_abs, tag = 'smem constant byte address 0x4 - core index']
  #allocation1 [shape = 'u32[144,128]{1,0:T(1,128)}', space=vmem, size = 0x12000, scoped, tag = 'internal scratch']
  %s0 = inlined_call_operand.vmem [shape: bf16[512,192], index: 0, kind: input, shape index: {}]
  %s1 = inlined_call_operand.vmem [shape: bf16[192,32], index: 1, kind: input, shape index: {}]
  %s2 = inlined_call_operand.vmem [shape: f32[1,32], index: 2, kind: input, shape index: {}]
  %s3 = inlined_call_operand.vmem [shape: bf16[32,32], index: 3, kind: input, shape index: {}]
  %s4 = inlined_call_operand.vmem [shape: f32[1,32], index: 4, kind: input, shape index: {}]
  %s5 = inlined_call_operand.vmem [shape: bf16[512,32], index: 5, kind: output, shape index: {}]
  %s6 = sld [smem:[#allocation0]]
  $region53: #{gmrw_forward.22} parent=0
    _
  %s8 = ssub.s32 1, %s6
  %s9 = scalar_select 0, %s8, %s6
  loop: start=0, step=1, limit=6
  $region2: #{gmrw_forward.22} parent=0 // loop_pre_header
    _
  $region3: #{gmrw_forward.22} parent=0 // loop_header
    %s11 = sphi 0, %s15
    %p12 = scmp.ge.s32.totalorder %s11, 6
    %s21 = sphi 0, %s23
    %s24 = sphi 0, %s21
    %s25 = sphi 0, %s24
    %s41 = sphi 0, %s25
    %s45 = sphi 0, %s45
    %s47 = sphi 0, %s45
    %s48 = sphi 0, %s47
    %s62 = sphi 0, %s48
    %s66 = sphi 0, %s66
    %s68 = sphi 0, %s66
    %s69 = sphi 0, %s68
    %s83 = sphi 0, %s69
    %s87 = sphi 0, %s87
    %s89 = sphi 0, %s87
    %s90 = sphi 0, %s89
    %s104 = sphi 0, %s90
    %s108 = sphi 0, %s108
    %s110 = sphi 0, %s108
    %s111 = sphi 0, %s110
    %s125 = sphi 0, %s111
    %s131 = sphi 0, %s133
    %s134 = sphi 0, %s131
    %s135 = sphi 0, %s134
    %s151 = sphi 0, %s135
  $region4: #{gmrw_forward.22} parent=0 // loop_header_branch
    %14 = sbr.rel (%p12) target = $region8
  $region5: #{gmrw_forward.22} parent=0 // loop_body
    %s16 = ssub.s32 %s11, 1
    %s17 = ssub.s32 %s11, 2
    %s18 = sadd.s32 %s11, 1
    %s19 = ssub.s32 %s11, %s18
    %p20 = scmp.eq.s32.totalorder %s19, 0
    %s22 = sadd.s32 %s21, 1
    %s23 = scalar_select %p20, %s21, %s22
    %p26 = pneg %p20
    %p27 = scmp.eq.s32.totalorder %s11, 3
    %p28 = por %p26, %p27
    %p29 = scmp.ne.s32.totalorder %s21, %s24
    %p30 = scmp.eq.s32.totalorder %s11, 0
    %p31 = por %p29, %p30
    %p32 = scmp.ne.s32.totalorder %s21, %s24
    %p33 = scmp.eq.s32.totalorder %s16, 3
    %p34 = por %p32, %p33
    %p35 = scmp.ne.s32.totalorder %s24, %s25
    %p36 = scmp.eq.s32.totalorder %s16, 0
    %p37 = por %p35, %p36
    %p38 = scmp.ne.s32.totalorder %s24, %s25
    %p39 = scmp.eq.s32.totalorder %s17, 3
    %p40 = por %p38, %p39
    %p42 = scmp.ne.s32.totalorder %s25, %s41
    %p43 = scmp.eq.s32.totalorder %s17, 0
    %p44 = por %p42, %p43
    %s46 = sadd.s32 %s45, 1
    %p49 = scmp.eq.s32.totalorder %s11, 3
    %p50 = scmp.ne.s32.totalorder %s45, %s47
    %p51 = scmp.eq.s32.totalorder %s11, 0
    %p52 = por %p50, %p51
    %p53 = scmp.ne.s32.totalorder %s45, %s47
    %p54 = scmp.eq.s32.totalorder %s16, 3
    %p55 = por %p53, %p54
    %p56 = scmp.ne.s32.totalorder %s47, %s48
    %p57 = scmp.eq.s32.totalorder %s16, 0
    %p58 = por %p56, %p57
    %p59 = scmp.ne.s32.totalorder %s47, %s48
    %p60 = scmp.eq.s32.totalorder %s17, 3
    %p61 = por %p59, %p60
    %p63 = scmp.ne.s32.totalorder %s48, %s62
    %p64 = scmp.eq.s32.totalorder %s17, 0
    %p65 = por %p63, %p64
    %s67 = sadd.s32 %s66, 1
    %p70 = scmp.eq.s32.totalorder %s11, 3
    %p71 = scmp.ne.s32.totalorder %s66, %s68
    %p72 = scmp.eq.s32.totalorder %s11, 0
    %p73 = por %p71, %p72
    %p74 = scmp.ne.s32.totalorder %s66, %s68
    %p75 = scmp.eq.s32.totalorder %s16, 3
    %p76 = por %p74, %p75
    %p77 = scmp.ne.s32.totalorder %s68, %s69
    %p78 = scmp.eq.s32.totalorder %s16, 0
    %p79 = por %p77, %p78
    %p80 = scmp.ne.s32.totalorder %s68, %s69
    %p81 = scmp.eq.s32.totalorder %s17, 3
    %p82 = por %p80, %p81
    %p84 = scmp.ne.s32.totalorder %s69, %s83
    %p85 = scmp.eq.s32.totalorder %s17, 0
    %p86 = por %p84, %p85
    %s88 = sadd.s32 %s87, 1
    %p91 = scmp.eq.s32.totalorder %s11, 3
    %p92 = scmp.ne.s32.totalorder %s87, %s89
    %p93 = scmp.eq.s32.totalorder %s11, 0
    %p94 = por %p92, %p93
    %p95 = scmp.ne.s32.totalorder %s87, %s89
    %p96 = scmp.eq.s32.totalorder %s16, 3
    %p97 = por %p95, %p96
    %p98 = scmp.ne.s32.totalorder %s89, %s90
    %p99 = scmp.eq.s32.totalorder %s16, 0
    %p100 = por %p98, %p99
    %p101 = scmp.ne.s32.totalorder %s89, %s90
    %p102 = scmp.eq.s32.totalorder %s17, 3
    %p103 = por %p101, %p102
    %p105 = scmp.ne.s32.totalorder %s90, %s104
    %p106 = scmp.eq.s32.totalorder %s17, 0
    %p107 = por %p105, %p106
    %s109 = sadd.s32 %s108, 1
    %p112 = scmp.eq.s32.totalorder %s11, 3
    %p113 = scmp.ne.s32.totalorder %s108, %s110
    %p114 = scmp.eq.s32.totalorder %s11, 0
    %p115 = por %p113, %p114
    %p116 = scmp.ne.s32.totalorder %s108, %s110
    %p117 = scmp.eq.s32.totalorder %s16, 3
    %p118 = por %p116, %p117
    %p119 = scmp.ne.s32.totalorder %s110, %s111
    %p120 = scmp.eq.s32.totalorder %s16, 0
    %p121 = por %p119, %p120
    %p122 = scmp.ne.s32.totalorder %s110, %s111
    %p123 = scmp.eq.s32.totalorder %s17, 3
    %p124 = por %p122, %p123
    %p126 = scmp.ne.s32.totalorder %s111, %s125
    %p127 = scmp.eq.s32.totalorder %s17, 0
    %p128 = por %p126, %p127
    %s129 = ssub.s32 %s11, %s18
    %p130 = scmp.eq.s32.totalorder %s129, 0
    %s132 = sadd.s32 %s131, 1
    %s133 = scalar_select %p130, %s131, %s132
    %p136 = pneg %p130
    %p137 = scmp.eq.s32.totalorder %s11, 3
    %p138 = por %p136, %p137
    %p139 = scmp.ne.s32.totalorder %s131, %s134
    %p140 = scmp.eq.s32.totalorder %s11, 0
    %p141 = por %p139, %p140
    %p142 = scmp.ne.s32.totalorder %s131, %s134
    %p143 = scmp.eq.s32.totalorder %s16, 3
    %p144 = por %p142, %p143
    %p145 = scmp.ne.s32.totalorder %s134, %s135
    %p146 = scmp.eq.s32.totalorder %s16, 0
    %p147 = por %p145, %p146
    %p148 = scmp.ne.s32.totalorder %s134, %s135
    %p149 = scmp.eq.s32.totalorder %s17, 3
    %p150 = por %p148, %p149
    %p152 = scmp.ne.s32.totalorder %s135, %s151
    %p153 = scmp.eq.s32.totalorder %s17, 0
    %p154 = por %p152, %p153
    %p155 = scmp.le.s32.totalorder 1, %s11
    %p156 = scmp.lt.s32.totalorder %s11, 5
    %p157 = pnand %p155, %p156
    %p158 = pneg %p157
    // Predicated region
    $region9: #{gmrw_forward.22} parent=5 // pred_check
      _
    $region10: #{gmrw_forward.22} parent=5 // pred_check_branch
      %160 = sbr.rel (%p157) target = $region12
    $region11: #{gmrw_forward.22} parent=5 // pred_region
      %s161 = ssub.s32 %s11, 1
      // Predicated region
      $region13: #{gmrw_forward.22} parent=11 // pred_check
        %p162 = pneg %p58
      $region14: #{gmrw_forward.22} parent=11 // pred_check_branch
        %164 = sbr.rel (%p162) target = $region16
      $region15: #{gmrw_forward.22} parent=11 // pred_region
        _
      $region16: #{gmrw_forward.22} parent=11 // pred_fallthru
        _
      // Predicated region
      $region17: #{gmrw_forward.22} parent=11 // pred_check
        %p165 = pneg %p79
      $region18: #{gmrw_forward.22} parent=11 // pred_check_branch
        %167 = sbr.rel (%p165) target = $region20
      $region19: #{gmrw_forward.22} parent=11 // pred_region
        _
      $region20: #{gmrw_forward.22} parent=11 // pred_fallthru
        _
      // Predicated region
      $region21: #{gmrw_forward.22} parent=11 // pred_check
        %p168 = pneg %p100
      $region22: #{gmrw_forward.22} parent=11 // pred_check_branch
        %170 = sbr.rel (%p168) target = $region24
      $region23: #{gmrw_forward.22} parent=11 // pred_region
        _
      $region24: #{gmrw_forward.22} parent=11 // pred_fallthru
        _
      // Predicated region
      $region25: #{gmrw_forward.22} parent=11 // pred_check
        %p171 = pneg %p121
      $region26: #{gmrw_forward.22} parent=11 // pred_check_branch
        %173 = sbr.rel (%p171) target = $region28
      $region27: #{gmrw_forward.22} parent=11 // pred_region
        _
      $region28: #{gmrw_forward.22} parent=11 // pred_fallthru
        _
    $region12: #{gmrw_forward.22} parent=5 // pred_fallthru
      _
    %p174 = scmp.lt.s32.totalorder %s11, 4
    // Predicated region
    $region29: #{gmrw_forward.22} parent=5 // pred_check
      %p175 = pneg %p174
    $region30: #{gmrw_forward.22} parent=5 // pred_check_branch
      %177 = sbr.rel (%p175) target = $region32
    $region31: #{gmrw_forward.22} parent=5 // pred_region
      // Predicated region
      $region33: #{gmrw_forward.22} parent=31 // pred_check
        %p178 = pneg %p31
      $region34: #{gmrw_forward.22} parent=31 // pred_check_branch
        %180 = sbr.rel (%p178) target = $region36
      $region35: #{gmrw_forward.22} parent=31 // pred_region
        %s181 = smul.u32 16, %s11
        %p182 = scmp.lt.s32.totalorder %s181, 63
        %s183 = scalar_select %p182, %s181, 63
        %s184 = smul.addr %s183, 2
        %s185 = smul.addr %s184, 4
        %s186 = scalar_lea.vmem %s0, %s185
        %s187 = smul.u32 16, %s11
      $region36: #{gmrw_forward.22} parent=31 // pred_fallthru
        _
    $region32: #{gmrw_forward.22} parent=5 // pred_fallthru
      _
    %p188 = scmp.le.s32.totalorder 1, %s11
    %p189 = scmp.lt.s32.totalorder %s11, 5
    %p190 = pnand %p188, %p189
    %p191 = pneg %p190
    // Predicated region
    $region37: #{gmrw_forward.22} parent=5 // pred_check
      _
    $region38: #{gmrw_forward.22} parent=5 // pred_check_branch
      %193 = sbr.rel (%p190) target = $region40
    $region39: #{gmrw_forward.22} parent=5 // pred_region
      %s194 = ssub.s32 %s11, 1
      %s195 = smul.u32 16, %s16
      %p196 = scmp.lt.s32.totalorder %s195, 63
      %s197 = scalar_select %p196, %s195, 63
      %s198 = smul.addr %s197, 2
      %s199 = smul.addr %s198, 4
      %s200 = scalar_lea.vmem %s0, %s199
      %p201 = pneg %p37
      %p202 = pneg %p34
      %p203 = pneg %p58
      %p204 = pneg %p55
      %p205 = pneg %p79
      %p206 = pneg %p76
      %p207 = pneg %p100
      %p208 = pneg %p97
      %p209 = pneg %p121
      %p210 = pneg %p118
      %p211 = pneg %p147
      %p212 = pneg %p144
      %s213 = smul.u32 16, %s16
      %p214 = scmp.lt.s32.totalorder %s213, 63
      %s215 = scalar_select %p214, %s213, 63
      %s216 = smul.addr %s215, 4
      %s217 = scalar_lea.vmem %s5, %s216
      %s218 = smul.u32 16, %s16
      %p219 = scmp.lt.s32.totalorder %s218, 63
      %s220 = scalar_select %p219, %s218, 63
      %s221 = smul.addr %s220, 2
      %s222 = smul.addr %s221, 4
      %s223 = scalar_lea.vmem %s0, %s222
      %s224 = smul.u32 16, %s16
      %s225 = smul.u32 16, %s16
      %p226 = scmp.lt.s32.totalorder %s225, 63
      %s227 = scalar_select %p226, %s225, 63
      %s228 = smul.addr %s227, 4
      %s229 = scalar_lea.vmem %s5, %s228
      %s230 = smul.u32 16, %s16
      %v232 = vld [vmem:[%s223] sm:$0xff]
      %v233 = vld [vmem:[%s223 + $0x8] sm:$0xff]
      %v234 = vld [vmem:[%s223 + $0x10] sm:$0xff]
      %v235 = vld [vmem:[%s223 + $0x18] sm:$0xff]
      %v236 = vld [vmem:[%s223 + $0x20] sm:$0xff]
      %v237 = vld [vmem:[%s223 + $0x28] sm:$0xff]
      %v238 = vld [vmem:[%s223 + $0x30] sm:$0xff]
      %v239 = vld [vmem:[%s223 + $0x38] sm:$0xff]
      %v240 = vld [vmem:[%s223 + $0x40] sm:$0xff]
      %v241 = vld [vmem:[%s223 + $0x48] sm:$0xff]
      %v242 = vld [vmem:[%s223 + $0x50] sm:$0xff]
      %v243 = vld [vmem:[%s223 + $0x58] sm:$0xff]
      %v244 = vld [vmem:[%s223 + $0x60] sm:$0xff]
      %v245 = vld [vmem:[%s223 + $0x68] sm:$0xff]
      %v246 = vld [vmem:[%s223 + $0x70] sm:$0xff]
      %v247 = vld [vmem:[%s223 + $0x78] sm:$0xff]
      %v248 = vld [vmem:[%s1] sm:$0xf]
      %v249 = vld [vmem:[%s1 + $0x4] sm:$0xf]
      %v250 = vld [vmem:[%s1 + $0x8] sm:$0xf]
      %v251 = vld [vmem:[%s1 + $0xc] sm:$0xf]
      %v252 = vld [vmem:[%s1 + $0x10] sm:$0xf]
      %v253 = vld [vmem:[%s1 + $0x14] sm:$0xf]
      %v254 = vld [vmem:[%s1 + $0x18] sm:$0xf]
      %v255 = vld [vmem:[%s1 + $0x1c] sm:$0xf]
      %v256 = vld [vmem:[%s1 + $0x20] sm:$0xf]
      %v257 = vld [vmem:[%s1 + $0x24] sm:$0xf]
      %v258 = vld [vmem:[%s1 + $0x28] sm:$0xf]
      %v259 = vld [vmem:[%s1 + $0x2c] sm:$0xf]
      %v260 = vld [vmem:[%s1 + $0x30] sm:$0xf]
      %v261 = vld [vmem:[%s1 + $0x34] sm:$0xf]
      %v262 = vld [vmem:[%s1 + $0x38] sm:$0xf]
      %v263 = vld [vmem:[%s1 + $0x3c] sm:$0xf]
      %v264 = vld [vmem:[%s1 + $0x40] sm:$0xf]
      %v265 = vld [vmem:[%s1 + $0x44] sm:$0xf]
      %v266 = vld [vmem:[%s1 + $0x48] sm:$0xf]
      %v267 = vld [vmem:[%s1 + $0x4c] sm:$0xf]
      %v268 = vld [vmem:[%s1 + $0x50] sm:$0xf]
      %v269 = vld [vmem:[%s1 + $0x54] sm:$0xf]
      %v270 = vld [vmem:[%s1 + $0x58] sm:$0xf]
      %v271 = vld [vmem:[%s1 + $0x5c] sm:$0xf]
      %v272 = vld [vmem:[%s2] sm:$0x1]
      %v274 = vlaneseq
      %v275 = vshrl.u32 %v274, 7
      %v276 = vsub.s32 0, %v275
      %v277 = vrot.slane %v272, %v276
      %v295 = vunpack.c.l.b16 %v232
      %v296 = vunpack.c.h.b16 %v232
      %v297 = vunpack.c.l.b16 %v233
      %v298 = vunpack.c.h.b16 %v233
      %v299 = vunpack.c.l.b16 %v234
      %v300 = vunpack.c.h.b16 %v234
      %v301 = vunpack.c.l.b16 %v235
      %v302 = vunpack.c.h.b16 %v235
      %v303 = vunpack.c.l.b16 %v236
      %v304 = vunpack.c.h.b16 %v236
      %v305 = vunpack.c.l.b16 %v237
      %v306 = vunpack.c.h.b16 %v237
      %v307 = vunpack.c.l.b16 %v238
      %v308 = vunpack.c.h.b16 %v238
      %v309 = vunpack.c.l.b16 %v239
      %v310 = vunpack.c.h.b16 %v239
      %v311 = vunpack.c.l.b16 %v240
      %v312 = vunpack.c.h.b16 %v240
      %v313 = vunpack.c.l.b16 %v241
      %v314 = vunpack.c.h.b16 %v241
      %v315 = vunpack.c.l.b16 %v242
      %v316 = vunpack.c.h.b16 %v242
      %v317 = vunpack.c.l.b16 %v243
      %v318 = vunpack.c.h.b16 %v243
      %v319 = vunpack.c.l.b16 %v244
      %v320 = vunpack.c.h.b16 %v244
      %v321 = vunpack.c.l.b16 %v245
      %v322 = vunpack.c.h.b16 %v245
      %v323 = vunpack.c.l.b16 %v246
      %v324 = vunpack.c.h.b16 %v246
      %v325 = vunpack.c.l.b16 %v247
      %v326 = vunpack.c.h.b16 %v247
      %v327 = vpack.c.b16 %v297, %v295
      %v328 = vpack.c.b16 %v298, %v296
      %v329 = vpack.c.b16 %v301, %v299
      %v330 = vpack.c.b16 %v302, %v300
      %v331 = vpack.c.b16 %v305, %v303
      %v332 = vpack.c.b16 %v306, %v304
      %v333 = vpack.c.b16 %v309, %v307
      %v334 = vpack.c.b16 %v310, %v308
      %v335 = vpack.c.b16 %v313, %v311
      %v336 = vpack.c.b16 %v314, %v312
      %v337 = vpack.c.b16 %v317, %v315
      %v338 = vpack.c.b16 %v318, %v316
      %v339 = vpack.c.b16 %v321, %v319
      %v340 = vpack.c.b16 %v322, %v320
      %v341 = vpack.c.b16 %v325, %v323
      %v342 = vpack.c.b16 %v326, %v324
      %v375 = vunpack.c.l.b16 %v248
      %v376 = vunpack.c.l.b16 %v249
      %v377 = vunpack.c.l.b16 %v250
      %v378 = vunpack.c.l.b16 %v251
      %v379 = vunpack.c.l.b16 %v252
      %v380 = vunpack.c.l.b16 %v253
      %v381 = vunpack.c.l.b16 %v254
      %v382 = vunpack.c.l.b16 %v255
      %v383 = vunpack.c.l.b16 %v256
      %v384 = vunpack.c.l.b16 %v257
      %v385 = vunpack.c.l.b16 %v258
      %v386 = vunpack.c.l.b16 %v259
      %v387 = vunpack.c.l.b16 %v260
      %v388 = vunpack.c.l.b16 %v261
      %v389 = vunpack.c.l.b16 %v262
      %v390 = vunpack.c.l.b16 %v263
      %v391 = vunpack.c.l.b16 %v264
      %v392 = vunpack.c.l.b16 %v265
      %v393 = vunpack.c.l.b16 %v266
      %v394 = vunpack.c.l.b16 %v267
      %v395 = vunpack.c.l.b16 %v268
      %v396 = vunpack.c.l.b16 %v269
      %v397 = vunpack.c.l.b16 %v270
      %v398 = vunpack.c.l.b16 %v271
      %v399 = vpack.c.b16 %v376, %v375
      %v400 = vpack.c.b16 %v378, %v377
      %v401 = vpack.c.b16 %v380, %v379
      %v402 = vpack.c.b16 %v382, %v381
      %v403 = vpack.c.b16 %v384, %v383
      %v404 = vpack.c.b16 %v386, %v385
      %v405 = vpack.c.b16 %v388, %v387
      %v406 = vpack.c.b16 %v390, %v389
      %v407 = vpack.c.b16 %v392, %v391
      %v408 = vpack.c.b16 %v394, %v393
      %v409 = vpack.c.b16 %v396, %v395
      %v410 = vpack.c.b16 %v398, %v397
      %vm423 = vcmask 523264
      %v425 = vsel %vm423, %v328, 0
      %v428 = vsel %vm423, %v330, 0
      %v431 = vsel %vm423, %v332, 0
      %v434 = vsel %vm423, %v334, 0
      %v437 = vsel %vm423, %v336, 0
      %v440 = vsel %vm423, %v338, 0
      %v443 = vsel %vm423, %v340, 0
      %v446 = vsel %vm423, %v342, 0
      %448 = vmatprep.subr.bf16.mxu0 0
      %449 = vmatpush1.bf16.msra.mxu0 %v399
      %450 = vmatprep.subr.bf16.mxu0 0
      %451 = vmatpush1.bf16.msra.mxu0 %v400
      %452 = vmatprep.subr.bf16.mxu0 0
      %453 = vmatpush1.bf16.msra.mxu0 %v401
      %454 = vmatprep.subr.bf16.mxu0 0
      %455 = vmatpush1.bf16.msra.mxu0 %v402
      %456 = vmatprep.subr.bf16.mxu0 0
      %457 = vmatpush1.bf16.msra.mxu0 %v403
      %458 = vmatprep.subr.bf16.mxu0 0
      %459 = vmatpush1.bf16.msra.mxu0 %v404
      %460 = vmatprep.subr.bf16.mxu0 0
      %461 = vmatpush1.bf16.msra.mxu0 %v405
      %462 = vmatprep.subr.bf16.mxu0 0
      %463 = vmatpush1.bf16.msra.mxu0 %v406
      %464 = vmatprep.subr.bf16.mxu0 0
      %465 = vmatpush1.bf16.msra.mxu0 %v407
      %466 = vmatprep.subr.bf16.mxu0 0
      %467 = vmatpush1.bf16.msra.mxu0 %v408
      %468 = vmatprep.subr.bf16.mxu0 0
      %469 = vmatpush1.bf16.msra.mxu0 %v409
      %470 = vmatprep.subr.bf16.mxu0 0
      %471 = vmatpush1.bf16.msra.mxu0 %v410
      %472 = vmatprep.subr.bf16.mxu0 0
      %473 = vmatpush1.bf16.msra.mxu0 0
      %474 = vmatprep.subr.bf16.mxu0 0
      %475 = vmatpush1.bf16.msra.mxu0 0
      %476 = vmatprep.subr.bf16.mxu0 0
      %477 = vmatpush1.bf16.msra.mxu0 0
      %478 = vmatprep.subr.bf16.mxu0 0
      %479 = vmatpush1.bf16.msra.mxu0 0
      %480 = vmatprep.mubr.bf16.mxu0 %v425
      %481 = vmatmul.mubr.bf16.gmra.mrb[0].mxu0 %v327
      %v482 = vpop.f32.mrb[0].mxu0
      %v483 = vadd.f32 %v277, %v482
      %v484 = vpop.f32.mrb[0].mxu0
      %v485 = vpop.f32.mrb[0].mxu0
      %v486 = vadd.f32 %v277, %v485
      %v487 = vpop.f32.mrb[0].mxu0
      %488 = vmatprep.mubr.bf16.mxu0 %v428
      %489 = vmatmul.mubr.bf16.gmra.mrb[0].mxu0 %v329
      %v490 = vpop.f32.mrb[0].mxu0
      %v491 = vadd.f32 %v277, %v490
      %v492 = vpop.f32.mrb[0].mxu0
      %v493 = vpop.f32.mrb[0].mxu0
      %v494 = vadd.f32 %v277, %v493
      %v495 = vpop.f32.mrb[0].mxu0
      %496 = vmatprep.mubr.bf16.mxu0 %v431
      %497 = vmatmul.mubr.bf16.gmra.mrb[0].mxu0 %v331
      %v498 = vpop.f32.mrb[0].mxu0
      %v499 = vadd.f32 %v277, %v498
      %v500 = vpop.f32.mrb[0].mxu0
      %v501 = vpop.f32.mrb[0].mxu0
      %v502 = vadd.f32 %v277, %v501
      %v503 = vpop.f32.mrb[0].mxu0
      %504 = vmatprep.mubr.bf16.mxu0 %v434
      %505 = vmatmul.mubr.bf16.gmra.mrb[0].mxu0 %v333
      %v506 = vpop.f32.mrb[0].mxu0
      %v507 = vadd.f32 %v277, %v506
      %v508 = vpop.f32.mrb[0].mxu0
      %v509 = vpop.f32.mrb[0].mxu0
      %v510 = vadd.f32 %v277, %v509
      %v511 = vpop.f32.mrb[0].mxu0
      %512 = vmatprep.mubr.bf16.mxu0 %v437
      %513 = vmatmul.mubr.bf16.gmra.mrb[0].mxu0 %v335
      %v514 = vpop.f32.mrb[0].mxu0
      %v515 = vadd.f32 %v277, %v514
      %v516 = vpop.f32.mrb[0].mxu0
      %v517 = vpop.f32.mrb[0].mxu0
      %v518 = vadd.f32 %v277, %v517
      %v519 = vpop.f32.mrb[0].mxu0
      %520 = vmatprep.mubr.bf16.mxu0 %v440
      %521 = vmatmul.mubr.bf16.gmra.mrb[0].mxu0 %v337
      %v522 = vpop.f32.mrb[0].mxu0
      %v523 = vadd.f32 %v277, %v522
      %v524 = vpop.f32.mrb[0].mxu0
      %v525 = vpop.f32.mrb[0].mxu0
      %v526 = vadd.f32 %v277, %v525
      %v527 = vpop.f32.mrb[0].mxu0
      %528 = vmatprep.mubr.bf16.mxu0 %v443
      %529 = vmatmul.mubr.bf16.gmra.mrb[0].mxu0 %v339
      %v530 = vpop.f32.mrb[0].mxu0
      %v531 = vadd.f32 %v277, %v530
      %v532 = vpop.f32.mrb[0].mxu0
      %v533 = vpop.f32.mrb[0].mxu0
      %v534 = vadd.f32 %v277, %v533
      %v535 = vpop.f32.mrb[0].mxu0
      %536 = vmatprep.mubr.bf16.mxu0 %v446
      %537 = vmatmul.mubr.bf16.gmra.mrb[0].mxu0 %v341
      %v538 = vpop.f32.mrb[0].mxu0
      %v539 = vadd.f32 %v277, %v538
      %v540 = vpop.f32.mrb[0].mxu0
      %v541 = vpop.f32.mrb[0].mxu0
      %v542 = vadd.f32 %v277, %v541
      %v543 = vpop.f32.mrb[0].mxu0
      %544 = vdwg.mxu0
      %v545 = vmax.f32 %v483, 0.0
      %v546 = vmax.f32 %v486, 0.0
      %v547 = vmax.f32 %v491, 0.0
      %v548 = vmax.f32 %v494, 0.0
      %v549 = vmax.f32 %v499, 0.0
      %v550 = vmax.f32 %v502, 0.0
      %v551 = vmax.f32 %v507, 0.0
      %v552 = vmax.f32 %v510, 0.0
      %v553 = vmax.f32 %v515, 0.0
      %v554 = vmax.f32 %v518, 0.0
      %v555 = vmax.f32 %v523, 0.0
      %v556 = vmax.f32 %v526, 0.0
      %v557 = vmax.f32 %v531, 0.0
      %v558 = vmax.f32 %v534, 0.0
      %v559 = vmax.f32 %v539, 0.0
      %v560 = vmax.f32 %v542, 0.0
      %v561 = vpack.c.bf16 %v546, %v545
      %v562 = vpack.c.bf16 %v548, %v547
      %v563 = vpack.c.bf16 %v550, %v549
      %v564 = vpack.c.bf16 %v552, %v551
      %v565 = vpack.c.bf16 %v554, %v553
      %v566 = vpack.c.bf16 %v556, %v555
      %v567 = vpack.c.bf16 %v558, %v557
      %v568 = vpack.c.bf16 %v560, %v559
      %v569 = vld [vmem:[%s3] sm:$0xf]
      %v570 = vld [vmem:[%s3 + $0x4] sm:$0xf]
      %v571 = vld [vmem:[%s3 + $0x8] sm:$0xf]
      %v572 = vld [vmem:[%s3 + $0xc] sm:$0xf]
      %v573 = vld [vmem:[%s4] sm:$0x1]
      %v575 = vlaneseq
      %v576 = vshrl.u32 %v575, 7
      %v577 = vsub.s32 0, %v576
      %v578 = vrot.slane %v573, %v577
      %v584 = vunpack.c.l.b16 %v569
      %v585 = vunpack.c.l.b16 %v570
      %v586 = vunpack.c.l.b16 %v571
      %v587 = vunpack.c.l.b16 %v572
      %v588 = vpack.c.b16 %v585, %v584
      %v589 = vpack.c.b16 %v587, %v586
      %vm592 = vcmask 261120
      %v594 = vsel %vm592, %v561, 0
      %v597 = vsel %vm592, %v562, 0
      %v600 = vsel %vm592, %v563, 0
      %v603 = vsel %vm592, %v564, 0
      %v606 = vsel %vm592, %v565, 0
      %v609 = vsel %vm592, %v566, 0
      %v612 = vsel %vm592, %v567, 0
      %v615 = vsel %vm592, %v568, 0
      %617 = vmatprep.subr.bf16.mxu0 0
      %618 = vmatpush1.bf16.msra.mxu0 %v588
      %619 = vmatprep.subr.bf16.mxu0 0
      %620 = vmatpush1.bf16.msra.mxu0 %v589
      %621 = vmatprep.subr.bf16.mxu0 0
      %622 = vmatpush1.bf16.msra.mxu0 0
      %623 = vmatprep.subr.bf16.mxu0 0
      %624 = vmatpush1.bf16.msra.mxu0 0
      %625 = vmatprep.subr.bf16.mxu0 0
      %626 = vmatpush1.bf16.msra.mxu0 0
      %627 = vmatprep.subr.bf16.mxu0 0
      %628 = vmatpush1.bf16.msra.mxu0 0
      %629 = vmatprep.subr.bf16.mxu0 0
      %630 = vmatpush1.bf16.msra.mxu0 0
      %631 = vmatprep.subr.bf16.mxu0 0
      %632 = vmatpush1.bf16.msra.mxu0 0
      %633 = vmatprep.subr.bf16.mxu0 0
      %634 = vmatpush1.bf16.msra.mxu0 0
      %635 = vmatprep.subr.bf16.mxu0 0
      %636 = vmatpush1.bf16.msra.mxu0 0
      %637 = vmatprep.subr.bf16.mxu0 0
      %638 = vmatpush1.bf16.msra.mxu0 0
      %639 = vmatprep.subr.bf16.mxu0 0
      %640 = vmatpush1.bf16.msra.mxu0 0
      %641 = vmatprep.subr.bf16.mxu0 0
      %642 = vmatpush1.bf16.msra.mxu0 0
      %643 = vmatprep.subr.bf16.mxu0 0
      %644 = vmatpush1.bf16.msra.mxu0 0
      %645 = vmatprep.subr.bf16.mxu0 0
      %646 = vmatpush1.bf16.msra.mxu0 0
      %647 = vmatprep.subr.bf16.mxu0 0
      %648 = vmatpush1.bf16.msra.mxu0 0
      %649 = vmatprep.mubr.bf16.mxu0 0
      %650 = vmatmul.mubr.bf16.gmra.mrb[0].mxu0 %v594
      %v651 = vpop.f32.mrb[0].mxu0
      %v652 = vadd.f32 %v578, %v651
      %v653 = vpop.f32.mrb[0].mxu0
      %v654 = vpop.f32.mrb[0].mxu0
      %v655 = vadd.f32 %v578, %v654
      %v656 = vpop.f32.mrb[0].mxu0
      %657 = vmatprep.mubr.bf16.mxu0 0
      %658 = vmatmul.mubr.bf16.gmra.mrb[0].mxu0 %v597
      %v659 = vpop.f32.mrb[0].mxu0
      %v660 = vadd.f32 %v578, %v659
      %v661 = vpop.f32.mrb[0].mxu0
      %v662 = vpop.f32.mrb[0].mxu0
      %v663 = vadd.f32 %v578, %v662
      %v664 = vpop.f32.mrb[0].mxu0
      %665 = vmatprep.mubr.bf16.mxu0 0
      %666 = vmatmul.mubr.bf16.gmra.mrb[0].mxu0 %v600
      %v667 = vpop.f32.mrb[0].mxu0
      %v668 = vadd.f32 %v578, %v667
      %v669 = vpop.f32.mrb[0].mxu0
      %v670 = vpop.f32.mrb[0].mxu0
      %v671 = vadd.f32 %v578, %v670
      %v672 = vpop.f32.mrb[0].mxu0
      %673 = vmatprep.mubr.bf16.mxu0 0
      %674 = vmatmul.mubr.bf16.gmra.mrb[0].mxu0 %v603
      %v675 = vpop.f32.mrb[0].mxu0
      %v676 = vadd.f32 %v578, %v675
      %v677 = vpop.f32.mrb[0].mxu0
      %v678 = vpop.f32.mrb[0].mxu0
      %v679 = vadd.f32 %v578, %v678
      %v680 = vpop.f32.mrb[0].mxu0
      %681 = vmatprep.mubr.bf16.mxu0 0
      %682 = vmatmul.mubr.bf16.gmra.mrb[0].mxu0 %v606
      %v683 = vpop.f32.mrb[0].mxu0
      %v684 = vadd.f32 %v578, %v683
      %v685 = vpop.f32.mrb[0].mxu0
      %v686 = vpop.f32.mrb[0].mxu0
      %v687 = vadd.f32 %v578, %v686
      %v688 = vpop.f32.mrb[0].mxu0
      %689 = vmatprep.mubr.bf16.mxu0 0
      %690 = vmatmul.mubr.bf16.gmra.mrb[0].mxu0 %v609
      %v691 = vpop.f32.mrb[0].mxu0
      %v692 = vadd.f32 %v578, %v691
      %v693 = vpop.f32.mrb[0].mxu0
      %v694 = vpop.f32.mrb[0].mxu0
      %v695 = vadd.f32 %v578, %v694
      %v696 = vpop.f32.mrb[0].mxu0
      %697 = vmatprep.mubr.bf16.mxu0 0
      %698 = vmatmul.mubr.bf16.gmra.mrb[0].mxu0 %v612
      %v699 = vpop.f32.mrb[0].mxu0
      %v700 = vadd.f32 %v578, %v699
      %v701 = vpop.f32.mrb[0].mxu0
      %v702 = vpop.f32.mrb[0].mxu0
      %v703 = vadd.f32 %v578, %v702
      %v704 = vpop.f32.mrb[0].mxu0
      %705 = vmatprep.mubr.bf16.mxu0 0
      %706 = vmatmul.mubr.bf16.gmra.mrb[0].mxu0 %v615
      %v707 = vpop.f32.mrb[0].mxu0
      %v708 = vadd.f32 %v578, %v707
      %v709 = vpop.f32.mrb[0].mxu0
      %v710 = vpop.f32.mrb[0].mxu0
      %v711 = vadd.f32 %v578, %v710
      %v712 = vpop.f32.mrb[0].mxu0
      %713 = vdwg.mxu0
      %v714 = vpack.c.bf16 %v655, %v652
      %v715 = vpack.c.bf16 %v663, %v660
      %v716 = vpack.c.bf16 %v671, %v668
      %v717 = vpack.c.bf16 %v679, %v676
      %v718 = vpack.c.bf16 %v687, %v684
      %v719 = vpack.c.bf16 %v695, %v692
      %v720 = vpack.c.bf16 %v703, %v700
      %v721 = vpack.c.bf16 %v711, %v708
      %v730 = vunpack.c.l.b16 %v714
      %v731 = vunpack.c.h.b16 %v714
      %v732 = vunpack.c.l.b16 %v715
      %v733 = vunpack.c.h.b16 %v715
      %v734 = vunpack.c.l.b16 %v716
      %v735 = vunpack.c.h.b16 %v716
      %v736 = vunpack.c.l.b16 %v717
      %v737 = vunpack.c.h.b16 %v717
      %v738 = vunpack.c.l.b16 %v718
      %v739 = vunpack.c.h.b16 %v718
      %v740 = vunpack.c.l.b16 %v719
      %v741 = vunpack.c.h.b16 %v719
      %v742 = vunpack.c.l.b16 %v720
      %v743 = vunpack.c.h.b16 %v720
      %v744 = vunpack.c.l.b16 %v721
      %v745 = vunpack.c.h.b16 %v721
      %v746 = vpack.c.b16 %v730, %v730
      %v747 = vpack.c.b16 %v731, %v731
      %v748 = vpack.c.b16 %v732, %v732
      %v749 = vpack.c.b16 %v733, %v733
      %v750 = vpack.c.b16 %v734, %v734
      %v751 = vpack.c.b16 %v735, %v735
      %v752 = vpack.c.b16 %v736, %v736
      %v753 = vpack.c.b16 %v737, %v737
      %v754 = vpack.c.b16 %v738, %v738
      %v755 = vpack.c.b16 %v739, %v739
      %v756 = vpack.c.b16 %v740, %v740
      %v757 = vpack.c.b16 %v741, %v741
      %v758 = vpack.c.b16 %v742, %v742
      %v759 = vpack.c.b16 %v743, %v743
      %v760 = vpack.c.b16 %v744, %v744
      %v761 = vpack.c.b16 %v745, %v745
      %vm778 = vcmask 257024
      %779 = vst.msk [vmem:[%s229] sm:$0xf] %vm778, %v746
      %780 = vst.msk [vmem:[%s229 + $0x4] sm:$0xf] %vm778, %v747
      %781 = vst.msk [vmem:[%s229 + $0x8] sm:$0xf] %vm778, %v748
      %782 = vst.msk [vmem:[%s229 + $0xc] sm:$0xf] %vm778, %v749
      %783 = vst.msk [vmem:[%s229 + $0x10] sm:$0xf] %vm778, %v750
      %784 = vst.msk [vmem:[%s229 + $0x14] sm:$0xf] %vm778, %v751
      %785 = vst.msk [vmem:[%s229 + $0x18] sm:$0xf] %vm778, %v752
      %786 = vst.msk [vmem:[%s229 + $0x1c] sm:$0xf] %vm778, %v753
      %787 = vst.msk [vmem:[%s229 + $0x20] sm:$0xf] %vm778, %v754
      %788 = vst.msk [vmem:[%s229 + $0x24] sm:$0xf] %vm778, %v755
      %789 = vst.msk [vmem:[%s229 + $0x28] sm:$0xf] %vm778, %v756
      %790 = vst.msk [vmem:[%s229 + $0x2c] sm:$0xf] %vm778, %v757
      %791 = vst.msk [vmem:[%s229 + $0x30] sm:$0xf] %vm778, %v758
      %792 = vst.msk [vmem:[%s229 + $0x34] sm:$0xf] %vm778, %v759
      %793 = vst.msk [vmem:[%s229 + $0x38] sm:$0xf] %vm778, %v760
      %794 = vst.msk [vmem:[%s229 + $0x3c] sm:$0xf] %vm778, %v761
      %s795 = smul.u32 16, %s16
      %p796 = scmp.lt.s32.totalorder %s795, 63
      %s797 = scalar_select %p796, %s795, 63
      %s798 = smul.addr %s797, 4
      %s799 = scalar_lea.vmem %s5, %s798
      // Predicated region
      $region41: #{gmrw_forward.22} parent=39 // pred_check
        %p800 = pneg %p144
      $region42: #{gmrw_forward.22} parent=39 // pred_check_branch
        %802 = sbr.rel (%p800) target = $region44
      $region43: #{gmrw_forward.22} parent=39 // pred_region
        %s803 = smul.u32 16, %s16
      $region44: #{gmrw_forward.22} parent=39 // pred_fallthru
        _
    $region40: #{gmrw_forward.22} parent=5 // pred_fallthru
      _
    %p804 = scmp.le.s32.totalorder 2, %s11
    // Predicated region
    $region45: #{gmrw_forward.22} parent=5 // pred_check
      %p805 = pneg %p804
    $region46: #{gmrw_forward.22} parent=5 // pred_check_branch
      %807 = sbr.rel (%p805) target = $region48
    $region47: #{gmrw_forward.22} parent=5 // pred_region
      %s808 = ssub.s32 %s11, 2
      // Predicated region
      $region49: #{gmrw_forward.22} parent=47 // pred_check
        %p809 = pneg %p150
      $region50: #{gmrw_forward.22} parent=47 // pred_check_branch
        %811 = sbr.rel (%p809) target = $region52
      $region51: #{gmrw_forward.22} parent=47 // pred_region
        %s812 = smul.u32 16, %s17
        %p813 = scmp.lt.s32.totalorder %s812, 63
        %s814 = scalar_select %p813, %s812, 63
        %s815 = smul.addr %s814, 4
        %s816 = scalar_lea.vmem %s5, %s815
      $region52: #{gmrw_forward.22} parent=47 // pred_fallthru
        _
    $region48: #{gmrw_forward.22} parent=5 // pred_fallthru
      _
  $region6: #{gmrw_forward.22} parent=0 // loop_footer
    %s15 = sadd.s32 1, %s11
  $region7: #{gmrw_forward.22} parent=0 // loop_footer_branch
    %10 = sbr.rel target = $region3
  $region8: #{gmrw_forward.22} parent=0 // loop_exit
    _

// kernel: gmrw_forward.23
$region0: #{gmrw_forward.23}
  #allocation0 [shape = 'u32[]', space=smem, size = 0x4, offset = 0x4, fixed_abs, tag = 'smem constant byte address 0x4 - core index']
  #allocation1 [shape = 'u32[144,128]{1,0:T(1,128)}', space=vmem, size = 0x12000, scoped, tag = 'internal scratch']
  %s0 = inlined_call_operand.vmem [shape: bf16[512,32], index: 0, kind: input, shape index: {}]
  %s1 = inlined_call_operand.vmem [shape: bf16[32,32], index: 1, kind: input, shape index: {}]
  %s2 = inlined_call_operand.vmem [shape: bf16[32,32], index: 2, kind: input, shape index: {}]
  %s3 = inlined_call_operand.vmem [shape: bf16[32,32], index: 3, kind: input, shape index: {}]
  %s4 = inlined_call_operand.vmem [shape: f32[1,32], index: 4, kind: input, shape index: {}]
  %s5 = inlined_call_operand.vmem [shape: f32[1,32], index: 5, kind: input, shape index: {}]
  %s6 = inlined_call_operand.vmem [shape: f32[1,32], index: 6, kind: input, shape index: {}]
  %s7 = inlined_call_operand.vmem [shape: bf16[512,32], index: 7, kind: output, shape index: {0}]
  %s8 = inlined_call_operand.vmem [shape: bf16[512,32], index: 8, kind: output, shape index: {1}]
  %s9 = inlined_call_operand.vmem [shape: bf16[512,32], index: 9, kind: output, shape index: {2}]
  %10 = xla_tuple %s7, %s8, %s9
  %s11 = sld [smem:[#allocation0]]
  $region77: #{gmrw_forward.23} parent=0
    _
  %s13 = ssub.s32 1, %s11
  %s14 = scalar_select 0, %s13, %s11
  loop: start=0, step=1, limit=6
  $region2: #{gmrw_forward.23} parent=0 // loop_pre_header
    _
  $region3: #{gmrw_forward.23} parent=0 // loop_header
    %s16 = sphi 0, %s20
    %p17 = scmp.ge.s32.totalorder %s16, 6
    %s26 = sphi 0, %s28
    %s29 = sphi 0, %s26
    %s30 = sphi 0, %s29
    %s46 = sphi 0, %s30
    %s50 = sphi 0, %s50
    %s52 = sphi 0, %s50
    %s53 = sphi 0, %s52
    %s67 = sphi 0, %s53
    %s71 = sphi 0, %s71
    %s73 = sphi 0, %s71
    %s74 = sphi 0, %s73
    %s88 = sphi 0, %s74
    %s92 = sphi 0, %s92
    %s94 = sphi 0, %s92
    %s95 = sphi 0, %s94
    %s109 = sphi 0, %s95
    %s113 = sphi 0, %s113
    %s115 = sphi 0, %s113
    %s116 = sphi 0, %s115
    %s130 = sphi 0, %s116
    %s134 = sphi 0, %s134
    %s136 = sphi 0, %s134
    %s137 = sphi 0, %s136
    %s151 = sphi 0, %s137
    %s155 = sphi 0, %s155
    %s157 = sphi 0, %s155
    %s158 = sphi 0, %s157
    %s172 = sphi 0, %s158
    %s178 = sphi 0, %s180
    %s181 = sphi 0, %s178
    %s182 = sphi 0, %s181
    %s198 = sphi 0, %s182
    %s204 = sphi 0, %s206
    %s207 = sphi 0, %s204
    %s208 = sphi 0, %s207
    %s224 = sphi 0, %s208
    %s230 = sphi 0, %s232
    %s233 = sphi 0, %s230
    %s234 = sphi 0, %s233
    %s250 = sphi 0, %s234
  $region4: #{gmrw_forward.23} parent=0 // loop_header_branch
    %19 = sbr.rel (%p17) target = $region8
  $region5: #{gmrw_forward.23} parent=0 // loop_body
    %s21 = ssub.s32 %s16, 1
    %s22 = ssub.s32 %s16, 2
    %s23 = sadd.s32 %s16, 1
    %s24 = ssub.s32 %s16, %s23
    %p25 = scmp.eq.s32.totalorder %s24, 0
    %s27 = sadd.s32 %s26, 1
    %s28 = scalar_select %p25, %s26, %s27
    %p31 = pneg %p25
    %p32 = scmp.eq.s32.totalorder %s16, 3
    %p33 = por %p31, %p32
    %p34 = scmp.ne.s32.totalorder %s26, %s29
    %p35 = scmp.eq.s32.totalorder %s16, 0
    %p36 = por %p34, %p35
    %p37 = scmp.ne.s32.totalorder %s26, %s29
    %p38 = scmp.eq.s32.totalorder %s21, 3
    %p39 = por %p37, %p38
    %p40 = scmp.ne.s32.totalorder %s29, %s30
    %p41 = scmp.eq.s32.totalorder %s21, 0
    %p42 = por %p40, %p41
    %p43 = scmp.ne.s32.totalorder %s29, %s30
    %p44 = scmp.eq.s32.totalorder %s22, 3
    %p45 = por %p43, %p44
    %p47 = scmp.ne.s32.totalorder %s30, %s46
    %p48 = scmp.eq.s32.totalorder %s22, 0
    %p49 = por %p47, %p48
    %s51 = sadd.s32 %s50, 1
    %p54 = scmp.eq.s32.totalorder %s16, 3
    %p55 = scmp.ne.s32.totalorder %s50, %s52
    %p56 = scmp.eq.s32.totalorder %s16, 0
    %p57 = por %p55, %p56
    %p58 = scmp.ne.s32.totalorder %s50, %s52
    %p59 = scmp.eq.s32.totalorder %s21, 3
    %p60 = por %p58, %p59
    %p61 = scmp.ne.s32.totalorder %s52, %s53
    %p62 = scmp.eq.s32.totalorder %s21, 0
    %p63 = por %p61, %p62
    %p64 = scmp.ne.s32.totalorder %s52, %s53
    %p65 = scmp.eq.s32.totalorder %s22, 3
    %p66 = por %p64, %p65
    %p68 = scmp.ne.s32.totalorder %s53, %s67
    %p69 = scmp.eq.s32.totalorder %s22, 0
    %p70 = por %p68, %p69
    %s72 = sadd.s32 %s71, 1
    %p75 = scmp.eq.s32.totalorder %s16, 3
    %p76 = scmp.ne.s32.totalorder %s71, %s73
    %p77 = scmp.eq.s32.totalorder %s16, 0
    %p78 = por %p76, %p77
    %p79 = scmp.ne.s32.totalorder %s71, %s73
    %p80 = scmp.eq.s32.totalorder %s21, 3
    %p81 = por %p79, %p80
    %p82 = scmp.ne.s32.totalorder %s73, %s74
    %p83 = scmp.eq.s32.totalorder %s21, 0
    %p84 = por %p82, %p83
    %p85 = scmp.ne.s32.totalorder %s73, %s74
    %p86 = scmp.eq.s32.totalorder %s22, 3
    %p87 = por %p85, %p86
    %p89 = scmp.ne.s32.totalorder %s74, %s88
    %p90 = scmp.eq.s32.totalorder %s22, 0
    %p91 = por %p89, %p90
    %s93 = sadd.s32 %s92, 1
    %p96 = scmp.eq.s32.totalorder %s16, 3
    %p97 = scmp.ne.s32.totalorder %s92, %s94
    %p98 = scmp.eq.s32.totalorder %s16, 0
    %p99 = por %p97, %p98
    %p100 = scmp.ne.s32.totalorder %s92, %s94
    %p101 = scmp.eq.s32.totalorder %s21, 3
    %p102 = por %p100, %p101
    %p103 = scmp.ne.s32.totalorder %s94, %s95
    %p104 = scmp.eq.s32.totalorder %s21, 0
    %p105 = por %p103, %p104
    %p106 = scmp.ne.s32.totalorder %s94, %s95
    %p107 = scmp.eq.s32.totalorder %s22, 3
    %p108 = por %p106, %p107
    %p110 = scmp.ne.s32.totalorder %s95, %s109
    %p111 = scmp.eq.s32.totalorder %s22, 0
    %p112 = por %p110, %p111
    %s114 = sadd.s32 %s113, 1
    %p117 = scmp.eq.s32.totalorder %s16, 3
    %p118 = scmp.ne.s32.totalorder %s113, %s115
    %p119 = scmp.eq.s32.totalorder %s16, 0
    %p120 = por %p118, %p119
    %p121 = scmp.ne.s32.totalorder %s113, %s115
    %p122 = scmp.eq.s32.totalorder %s21, 3
    %p123 = por %p121, %p122
    %p124 = scmp.ne.s32.totalorder %s115, %s116
    %p125 = scmp.eq.s32.totalorder %s21, 0
    %p126 = por %p124, %p125
    %p127 = scmp.ne.s32.totalorder %s115, %s116
    %p128 = scmp.eq.s32.totalorder %s22, 3
    %p129 = por %p127, %p128
    %p131 = scmp.ne.s32.totalorder %s116, %s130
    %p132 = scmp.eq.s32.totalorder %s22, 0
    %p133 = por %p131, %p132
    %s135 = sadd.s32 %s134, 1
    %p138 = scmp.eq.s32.totalorder %s16, 3
    %p139 = scmp.ne.s32.totalorder %s134, %s136
    %p140 = scmp.eq.s32.totalorder %s16, 0
    %p141 = por %p139, %p140
    %p142 = scmp.ne.s32.totalorder %s134, %s136
    %p143 = scmp.eq.s32.totalorder %s21, 3
    %p144 = por %p142, %p143
    %p145 = scmp.ne.s32.totalorder %s136, %s137
    %p146 = scmp.eq.s32.totalorder %s21, 0
    %p147 = por %p145, %p146
    %p148 = scmp.ne.s32.totalorder %s136, %s137
    %p149 = scmp.eq.s32.totalorder %s22, 3
    %p150 = por %p148, %p149
    %p152 = scmp.ne.s32.totalorder %s137, %s151
    %p153 = scmp.eq.s32.totalorder %s22, 0
    %p154 = por %p152, %p153
    %s156 = sadd.s32 %s155, 1
    %p159 = scmp.eq.s32.totalorder %s16, 3
    %p160 = scmp.ne.s32.totalorder %s155, %s157
    %p161 = scmp.eq.s32.totalorder %s16, 0
    %p162 = por %p160, %p161
    %p163 = scmp.ne.s32.totalorder %s155, %s157
    %p164 = scmp.eq.s32.totalorder %s21, 3
    %p165 = por %p163, %p164
    %p166 = scmp.ne.s32.totalorder %s157, %s158
    %p167 = scmp.eq.s32.totalorder %s21, 0
    %p168 = por %p166, %p167
    %p169 = scmp.ne.s32.totalorder %s157, %s158
    %p170 = scmp.eq.s32.totalorder %s22, 3
    %p171 = por %p169, %p170
    %p173 = scmp.ne.s32.totalorder %s158, %s172
    %p174 = scmp.eq.s32.totalorder %s22, 0
    %p175 = por %p173, %p174
    %s176 = ssub.s32 %s16, %s23
    %p177 = scmp.eq.s32.totalorder %s176, 0
    %s179 = sadd.s32 %s178, 1
    %s180 = scalar_select %p177, %s178, %s179
    %p183 = pneg %p177
    %p184 = scmp.eq.s32.totalorder %s16, 3
    %p185 = por %p183, %p184
    %p186 = scmp.ne.s32.totalorder %s178, %s181
    %p187 = scmp.eq.s32.totalorder %s16, 0
    %p188 = por %p186, %p187
    %p189 = scmp.ne.s32.totalorder %s178, %s181
    %p190 = scmp.eq.s32.totalorder %s21, 3
    %p191 = por %p189, %p190
    %p192 = scmp.ne.s32.totalorder %s181, %s182
    %p193 = scmp.eq.s32.totalorder %s21, 0
    %p194 = por %p192, %p193
    %p195 = scmp.ne.s32.totalorder %s181, %s182
    %p196 = scmp.eq.s32.totalorder %s22, 3
    %p197 = por %p195, %p196
    %p199 = scmp.ne.s32.totalorder %s182, %s198
    %p200 = scmp.eq.s32.totalorder %s22, 0
    %p201 = por %p199, %p200
    %s202 = ssub.s32 %s16, %s23
    %p203 = scmp.eq.s32.totalorder %s202, 0
    %s205 = sadd.s32 %s204, 1
    %s206 = scalar_select %p203, %s204, %s205
    %p209 = pneg %p203
    %p210 = scmp.eq.s32.totalorder %s16, 3
    %p211 = por %p209, %p210
    %p212 = scmp.ne.s32.totalorder %s204, %s207
    %p213 = scmp.eq.s32.totalorder %s16, 0
    %p214 = por %p212, %p213
    %p215 = scmp.ne.s32.totalorder %s204, %s207
    %p216 = scmp.eq.s32.totalorder %s21, 3
    %p217 = por %p215, %p216
    %p218 = scmp.ne.s32.totalorder %s207, %s208
    %p219 = scmp.eq.s32.totalorder %s21, 0
    %p220 = por %p218, %p219
    %p221 = scmp.ne.s32.totalorder %s207, %s208
    %p222 = scmp.eq.s32.totalorder %s22, 3
    %p223 = por %p221, %p222
    %p225 = scmp.ne.s32.totalorder %s208, %s224
    %p226 = scmp.eq.s32.totalorder %s22, 0
    %p227 = por %p225, %p226
    %s228 = ssub.s32 %s16, %s23
    %p229 = scmp.eq.s32.totalorder %s228, 0
    %s231 = sadd.s32 %s230, 1
    %s232 = scalar_select %p229, %s230, %s231
    %p235 = pneg %p229
    %p236 = scmp.eq.s32.totalorder %s16, 3
    %p237 = por %p235, %p236
    %p238 = scmp.ne.s32.totalorder %s230, %s233
    %p239 = scmp.eq.s32.totalorder %s16, 0
    %p240 = por %p238, %p239
    %p241 = scmp.ne.s32.totalorder %s230, %s233
    %p242 = scmp.eq.s32.totalorder %s21, 3
    %p243 = por %p241, %p242
    %p244 = scmp.ne.s32.totalorder %s233, %s234
    %p245 = scmp.eq.s32.totalorder %s21, 0
    %p246 = por %p244, %p245
    %p247 = scmp.ne.s32.totalorder %s233, %s234
    %p248 = scmp.eq.s32.totalorder %s22, 3
    %p249 = por %p247, %p248
    %p251 = scmp.ne.s32.totalorder %s234, %s250
    %p252 = scmp.eq.s32.totalorder %s22, 0
    %p253 = por %p251, %p252
    %p254 = scmp.le.s32.totalorder 1, %s16
    %p255 = scmp.lt.s32.totalorder %s16, 5
    %p256 = pnand %p254, %p255
    %p257 = pneg %p256
    // Predicated region
    $region9: #{gmrw_forward.23} parent=5 // pred_check
      _
    $region10: #{gmrw_forward.23} parent=5 // pred_check_branch
      %259 = sbr.rel (%p256) target = $region12
    $region11: #{gmrw_forward.23} parent=5 // pred_region
      %s260 = ssub.s32 %s16, 1
      // Predicated region
      $region13: #{gmrw_forward.23} parent=11 // pred_check
        %p261 = pneg %p63
      $region14: #{gmrw_forward.23} parent=11 // pred_check_branch
        %263 = sbr.rel (%p261) target = $region16
      $region15: #{gmrw_forward.23} parent=11 // pred_region
        _
      $region16: #{gmrw_forward.23} parent=11 // pred_fallthru
        _
      // Predicated region
      $region17: #{gmrw_forward.23} parent=11 // pred_check
        %p264 = pneg %p84
      $region18: #{gmrw_forward.23} parent=11 // pred_check_branch
        %266 = sbr.rel (%p264) target = $region20
      $region19: #{gmrw_forward.23} parent=11 // pred_region
        _
      $region20: #{gmrw_forward.23} parent=11 // pred_fallthru
        _
      // Predicated region
      $region21: #{gmrw_forward.23} parent=11 // pred_check
        %p267 = pneg %p105
      $region22: #{gmrw_forward.23} parent=11 // pred_check_branch
        %269 = sbr.rel (%p267) target = $region24
      $region23: #{gmrw_forward.23} parent=11 // pred_region
        _
      $region24: #{gmrw_forward.23} parent=11 // pred_fallthru
        _
      // Predicated region
      $region25: #{gmrw_forward.23} parent=11 // pred_check
        %p270 = pneg %p126
      $region26: #{gmrw_forward.23} parent=11 // pred_check_branch
        %272 = sbr.rel (%p270) target = $region28
      $region27: #{gmrw_forward.23} parent=11 // pred_region
        _
      $region28: #{gmrw_forward.23} parent=11 // pred_fallthru
        _
      // Predicated region
      $region29: #{gmrw_forward.23} parent=11 // pred_check
        %p273 = pneg %p147
      $region30: #{gmrw_forward.23} parent=11 // pred_check_branch
        %275 = sbr.rel (%p273) target = $region32
      $region31: #{gmrw_forward.23} parent=11 // pred_region
        _
      $region32: #{gmrw_forward.23} parent=11 // pred_fallthru
        _
      // Predicated region
      $region33: #{gmrw_forward.23} parent=11 // pred_check
        %p276 = pneg %p168
      $region34: #{gmrw_forward.23} parent=11 // pred_check_branch
        %278 = sbr.rel (%p276) target = $region36
      $region35: #{gmrw_forward.23} parent=11 // pred_region
        _
      $region36: #{gmrw_forward.23} parent=11 // pred_fallthru
        _
    $region12: #{gmrw_forward.23} parent=5 // pred_fallthru
      _
    %p279 = scmp.lt.s32.totalorder %s16, 4
    // Predicated region
    $region37: #{gmrw_forward.23} parent=5 // pred_check
      %p280 = pneg %p279
    $region38: #{gmrw_forward.23} parent=5 // pred_check_branch
      %282 = sbr.rel (%p280) target = $region40
    $region39: #{gmrw_forward.23} parent=5 // pred_region
      // Predicated region
      $region41: #{gmrw_forward.23} parent=39 // pred_check
        %p283 = pneg %p36
      $region42: #{gmrw_forward.23} parent=39 // pred_check_branch
        %285 = sbr.rel (%p283) target = $region44
      $region43: #{gmrw_forward.23} parent=39 // pred_region
        %s286 = smul.u32 16, %s16
        %p287 = scmp.lt.s32.totalorder %s286, 63
        %s288 = scalar_select %p287, %s286, 63
        %s289 = smul.addr %s288, 4
        %s290 = scalar_lea.vmem %s0, %s289
        %s291 = smul.u32 16, %s16
      $region44: #{gmrw_forward.23} parent=39 // pred_fallthru
        _
    $region40: #{gmrw_forward.23} parent=5 // pred_fallthru
      _
    %p292 = scmp.le.s32.totalorder 1, %s16
    %p293 = scmp.lt.s32.totalorder %s16, 5
    %p294 = pnand %p292, %p293
    %p295 = pneg %p294
    // Predicated region
    $region45: #{gmrw_forward.23} parent=5 // pred_check
      _
    $region46: #{gmrw_forward.23} parent=5 // pred_check_branch
      %297 = sbr.rel (%p294) target = $region48
    $region47: #{gmrw_forward.23} parent=5 // pred_region
      %s298 = ssub.s32 %s16, 1
      %s299 = smul.u32 16, %s21
      %p300 = scmp.lt.s32.totalorder %s299, 63
      %s301 = scalar_select %p300, %s299, 63
      %s302 = smul.addr %s301, 4
      %s303 = scalar_lea.vmem %s0, %s302
      %p304 = pneg %p42
      %p305 = pneg %p39
      %p306 = pneg %p63
      %p307 = pneg %p60
      %p308 = pneg %p84
      %p309 = pneg %p81
      %p310 = pneg %p105
      %p311 = pneg %p102
      %p312 = pneg %p126
      %p313 = pneg %p123
      %p314 = pneg %p147
      %p315 = pneg %p144
      %p316 = pneg %p168
      %p317 = pneg %p165
      %p318 = pneg %p194
      %p319 = pneg %p191
      %s320 = smul.u32 16, %s21
      %p321 = scmp.lt.s32.totalorder %s320, 63
      %s322 = scalar_select %p321, %s320, 63
      %s323 = smul.addr %s322, 4
      %s324 = scalar_lea.vmem %s7, %s323
      %p325 = pneg %p220
      %p326 = pneg %p217
      %s327 = smul.u32 16, %s21
      %p328 = scmp.lt.s32.totalorder %s327, 63
      %s329 = scalar_select %p328, %s327, 63
      %s330 = smul.addr %s329, 4
      %s331 = scalar_lea.vmem %s8, %s330
      %p332 = pneg %p246
      %p333 = pneg %p243
      %s334 = smul.u32 16, %s21
      %p335 = scmp.lt.s32.totalorder %s334, 63
      %s336 = scalar_select %p335, %s334, 63
      %s337 = smul.addr %s336, 4
      %s338 = scalar_lea.vmem %s9, %s337
      %s339 = smul.u32 16, %s21
      %p340 = scmp.lt.s32.totalorder %s339, 63
      %s341 = scalar_select %p340, %s339, 63
      %s342 = smul.addr %s341, 4
      %s343 = scalar_lea.vmem %s0, %s342
      %s344 = smul.u32 16, %s21
      %s345 = smul.u32 16, %s21
      %p346 = scmp.lt.s32.totalorder %s345, 63
      %s347 = scalar_select %p346, %s345, 63
      %s348 = smul.addr %s347, 4
      %s349 = scalar_lea.vmem %s7, %s348
      %s350 = smul.u32 16, %s21
      %s351 = smul.u32 16, %s21
      %p352 = scmp.lt.s32.totalorder %s351, 63
      %s353 = scalar_select %p352, %s351, 63
      %s354 = smul.addr %s353, 4
      %s355 = scalar_lea.vmem %s8, %s354
      %s356 = smul.u32 16, %s21
      %s357 = smul.u32 16, %s21
      %p358 = scmp.lt.s32.totalorder %s357, 63
      %s359 = scalar_select %p358, %s357, 63
      %s360 = smul.addr %s359, 4
      %s361 = scalar_lea.vmem %s9, %s360
      %s362 = smul.u32 16, %s21
      %v364 = vld [vmem:[%s343] sm:$0xf]
      %v365 = vld [vmem:[%s343 + $0x4] sm:$0xf]
      %v366 = vld [vmem:[%s343 + $0x8] sm:$0xf]
      %v367 = vld [vmem:[%s343 + $0xc] sm:$0xf]
      %v368 = vld [vmem:[%s343 + $0x10] sm:$0xf]
      %v369 = vld [vmem:[%s343 + $0x14] sm:$0xf]
      %v370 = vld [vmem:[%s343 + $0x18] sm:$0xf]
      %v371 = vld [vmem:[%s343 + $0x1c] sm:$0xf]
      %v372 = vld [vmem:[%s343 + $0x20] sm:$0xf]
      %v373 = vld [vmem:[%s343 + $0x24] sm:$0xf]
      %v374 = vld [vmem:[%s343 + $0x28] sm:$0xf]
      %v375 = vld [vmem:[%s343 + $0x2c] sm:$0xf]
      %v376 = vld [vmem:[%s343 + $0x30] sm:$0xf]
      %v377 = vld [vmem:[%s343 + $0x34] sm:$0xf]
      %v378 = vld [vmem:[%s343 + $0x38] sm:$0xf]
      %v379 = vld [vmem:[%s343 + $0x3c] sm:$0xf]
      %v380 = vld [vmem:[%s1] sm:$0xf]
      %v381 = vld [vmem:[%s1 + $0x4] sm:$0xf]
      %v382 = vld [vmem:[%s1 + $0x8] sm:$0xf]
      %v383 = vld [vmem:[%s1 + $0xc] sm:$0xf]
      %v384 = vld [vmem:[%s4] sm:$0x1]
      %v386 = vlaneseq
      %v387 = vshrl.u32 %v386, 7
      %v388 = vsub.s32 0, %v387
      %v389 = vrot.slane %v384, %v388
      %v407 = vunpack.c.l.b16 %v364
      %v408 = vunpack.c.l.b16 %v365
      %v409 = vunpack.c.l.b16 %v366
      %v410 = vunpack.c.l.b16 %v367
      %v411 = vunpack.c.l.b16 %v368
      %v412 = vunpack.c.l.b16 %v369
      %v413 = vunpack.c.l.b16 %v370
      %v414 = vunpack.c.l.b16 %v371
      %v415 = vunpack.c.l.b16 %v372
      %v416 = vunpack.c.l.b16 %v373
      %v417 = vunpack.c.l.b16 %v374
      %v418 = vunpack.c.l.b16 %v375
      %v419 = vunpack.c.l.b16 %v376
      %v420 = vunpack.c.l.b16 %v377
      %v421 = vunpack.c.l.b16 %v378
      %v422 = vunpack.c.l.b16 %v379
      %v423 = vpack.c.b16 %v408, %v407
      %v424 = vpack.c.b16 %v410, %v409
      %v425 = vpack.c.b16 %v412, %v411
      %v426 = vpack.c.b16 %v414, %v413
      %v427 = vpack.c.b16 %v416, %v415
      %v428 = vpack.c.b16 %v418, %v417
      %v429 = vpack.c.b16 %v420, %v419
      %v430 = vpack.c.b16 %v422, %v421
      %v435 = vunpack.c.l.b16 %v380
      %v436 = vunpack.c.l.b16 %v381
      %v437 = vunpack.c.l.b16 %v382
      %v438 = vunpack.c.l.b16 %v383
      %v439 = vpack.c.b16 %v436, %v435
      %v440 = vpack.c.b16 %v438, %v437
      %vm443 = vcmask 261120
      %v445 = vsel %vm443, %v423, 0
      %v448 = vsel %vm443, %v424, 0
      %v451 = vsel %vm443, %v425, 0
      %v454 = vsel %vm443, %v426, 0
      %v457 = vsel %vm443, %v427, 0
      %v460 = vsel %vm443, %v428, 0
      %v463 = vsel %vm443, %v429, 0
      %v466 = vsel %vm443, %v430, 0
      %468 = vmatprep.subr.bf16.mxu0 0
      %469 = vmatpush1.bf16.msra.mxu0 %v439
      %470 = vmatprep.subr.bf16.mxu0 0
      %471 = vmatpush1.bf16.msra.mxu0 %v440
      %472 = vmatprep.subr.bf16.mxu0 0
      %473 = vmatpush1.bf16.msra.mxu0 0
      %474 = vmatprep.subr.bf16.mxu0 0
      %475 = vmatpush1.bf16.msra.mxu0 0
      %476 = vmatprep.subr.bf16.mxu0 0
      %477 = vmatpush1.bf16.msra.mxu0 0
      %478 = vmatprep.subr.bf16.mxu0 0
      %479 = vmatpush1.bf16.msra.mxu0 0
      %480 = vmatprep.subr.bf16.mxu0 0
      %481 = vmatpush1.bf16.msra.mxu0 0
      %482 = vmatprep.subr.bf16.mxu0 0
      %483 = vmatpush1.bf16.msra.mxu0 0
      %484 = vmatprep.subr.bf16.mxu0 0
      %485 = vmatpush1.bf16.msra.mxu0 0
      %486 = vmatprep.subr.bf16.mxu0 0
      %487 = vmatpush1.bf16.msra.mxu0 0
      %488 = vmatprep.subr.bf16.mxu0 0
      %489 = vmatpush1.bf16.msra.mxu0 0
      %490 = vmatprep.subr.bf16.mxu0 0
      %491 = vmatpush1.bf16.msra.mxu0 0
      %492 = vmatprep.subr.bf16.mxu0 0
      %493 = vmatpush1.bf16.msra.mxu0 0
      %494 = vmatprep.subr.bf16.mxu0 0
      %495 = vmatpush1.bf16.msra.mxu0 0
      %496 = vmatprep.subr.bf16.mxu0 0
      %497 = vmatpush1.bf16.msra.mxu0 0
      %498 = vmatprep.subr.bf16.mxu0 0
      %499 = vmatpush1.bf16.msra.mxu0 0
      %500 = vmatprep.mubr.bf16.mxu0 0
      %501 = vmatmul.mubr.bf16.gmra.mrb[0].mxu0 %v445
      %v502 = vpop.f32.mrb[0].mxu0
      %v503 = vadd.f32 %v389, %v502
      %v504 = vpop.f32.mrb[0].mxu0
      %v505 = vpop.f32.mrb[0].mxu0
      %v506 = vadd.f32 %v389, %v505
      %v507 = vpop.f32.mrb[0].mxu0
      %508 = vmatprep.mubr.bf16.mxu0 0
      %509 = vmatmul.mubr.bf16.gmra.mrb[0].mxu0 %v448
      %v510 = vpop.f32.mrb[0].mxu0
      %v511 = vadd.f32 %v389, %v510
      %v512 = vpop.f32.mrb[0].mxu0
      %v513 = vpop.f32.mrb[0].mxu0
      %v514 = vadd.f32 %v389, %v513
      %v515 = vpop.f32.mrb[0].mxu0
      %516 = vmatprep.mubr.bf16.mxu0 0
      %517 = vmatmul.mubr.bf16.gmra.mrb[0].mxu0 %v451
      %v518 = vpop.f32.mrb[0].mxu0
      %v519 = vadd.f32 %v389, %v518
      %v520 = vpop.f32.mrb[0].mxu0
      %v521 = vpop.f32.mrb[0].mxu0
      %v522 = vadd.f32 %v389, %v521
      %v523 = vpop.f32.mrb[0].mxu0
      %524 = vmatprep.mubr.bf16.mxu0 0
      %525 = vmatmul.mubr.bf16.gmra.mrb[0].mxu0 %v454
      %v526 = vpop.f32.mrb[0].mxu0
      %v527 = vadd.f32 %v389, %v526
      %v528 = vpop.f32.mrb[0].mxu0
      %v529 = vpop.f32.mrb[0].mxu0
      %v530 = vadd.f32 %v389, %v529
      %v531 = vpop.f32.mrb[0].mxu0
      %532 = vmatprep.mubr.bf16.mxu0 0
      %533 = vmatmul.mubr.bf16.gmra.mrb[0].mxu0 %v457
      %v534 = vpop.f32.mrb[0].mxu0
      %v535 = vadd.f32 %v389, %v534
      %v536 = vpop.f32.mrb[0].mxu0
      %v537 = vpop.f32.mrb[0].mxu0
      %v538 = vadd.f32 %v389, %v537
      %v539 = vpop.f32.mrb[0].mxu0
      %540 = vmatprep.mubr.bf16.mxu0 0
      %541 = vmatmul.mubr.bf16.gmra.mrb[0].mxu0 %v460
      %v542 = vpop.f32.mrb[0].mxu0
      %v543 = vadd.f32 %v389, %v542
      %v544 = vpop.f32.mrb[0].mxu0
      %v545 = vpop.f32.mrb[0].mxu0
      %v546 = vadd.f32 %v389, %v545
      %v547 = vpop.f32.mrb[0].mxu0
      %548 = vmatprep.mubr.bf16.mxu0 0
      %549 = vmatmul.mubr.bf16.gmra.mrb[0].mxu0 %v463
      %v550 = vpop.f32.mrb[0].mxu0
      %v551 = vadd.f32 %v389, %v550
      %v552 = vpop.f32.mrb[0].mxu0
      %v553 = vpop.f32.mrb[0].mxu0
      %v554 = vadd.f32 %v389, %v553
      %v555 = vpop.f32.mrb[0].mxu0
      %556 = vmatprep.mubr.bf16.mxu0 0
      %557 = vmatmul.mubr.bf16.gmra.mrb[0].mxu0 %v466
      %v558 = vpop.f32.mrb[0].mxu0
      %v559 = vadd.f32 %v389, %v558
      %v560 = vpop.f32.mrb[0].mxu0
      %v561 = vpop.f32.mrb[0].mxu0
      %v562 = vadd.f32 %v389, %v561
      %v563 = vpop.f32.mrb[0].mxu0
      %564 = vdwg.mxu0
      %v565 = vpack.c.bf16 %v506, %v503
      %v566 = vpack.c.bf16 %v514, %v511
      %v567 = vpack.c.bf16 %v522, %v519
      %v568 = vpack.c.bf16 %v530, %v527
      %v569 = vpack.c.bf16 %v538, %v535
      %v570 = vpack.c.bf16 %v546, %v543
      %v571 = vpack.c.bf16 %v554, %v551
      %v572 = vpack.c.bf16 %v562, %v559
      %v581 = vunpack.c.l.b16 %v565
      %v582 = vunpack.c.h.b16 %v565
      %v583 = vunpack.c.l.b16 %v566
      %v584 = vunpack.c.h.b16 %v566
      %v585 = vunpack.c.l.b16 %v567
      %v586 = vunpack.c.h.b16 %v567
      %v587 = vunpack.c.l.b16 %v568
      %v588 = vunpack.c.h.b16 %v568
      %v589 = vunpack.c.l.b16 %v569
      %v590 = vunpack.c.h.b16 %v569
      %v591 = vunpack.c.l.b16 %v570
      %v592 = vunpack.c.h.b16 %v570
      %v593 = vunpack.c.l.b16 %v571
      %v594 = vunpack.c.h.b16 %v571
      %v595 = vunpack.c.l.b16 %v572
      %v596 = vunpack.c.h.b16 %v572
      %v597 = vpack.c.b16 %v581, %v581
      %v598 = vpack.c.b16 %v582, %v582
      %v599 = vpack.c.b16 %v583, %v583
      %v600 = vpack.c.b16 %v584, %v584
      %v601 = vpack.c.b16 %v585, %v585
      %v602 = vpack.c.b16 %v586, %v586
      %v603 = vpack.c.b16 %v587, %v587
      %v604 = vpack.c.b16 %v588, %v588
      %v605 = vpack.c.b16 %v589, %v589
      %v606 = vpack.c.b16 %v590, %v590
      %v607 = vpack.c.b16 %v591, %v591
      %v608 = vpack.c.b16 %v592, %v592
      %v609 = vpack.c.b16 %v593, %v593
      %v610 = vpack.c.b16 %v594, %v594
      %v611 = vpack.c.b16 %v595, %v595
      %v612 = vpack.c.b16 %v596, %v596
      %vm629 = vcmask 257024
      %630 = vst.msk [vmem:[%s349] sm:$0xf] %vm629, %v597
      %631 = vst.msk [vmem:[%s349 + $0x4] sm:$0xf] %vm629, %v598
      %632 = vst.msk [vmem:[%s349 + $0x8] sm:$0xf] %vm629, %v599
      %633 = vst.msk [vmem:[%s349 + $0xc] sm:$0xf] %vm629, %v600
      %634 = vst.msk [vmem:[%s349 + $0x10] sm:$0xf] %vm629, %v601
      %635 = vst.msk [vmem:[%s349 + $0x14] sm:$0xf] %vm629, %v602
      %636 = vst.msk [vmem:[%s349 + $0x18] sm:$0xf] %vm629, %v603
      %637 = vst.msk [vmem:[%s349 + $0x1c] sm:$0xf] %vm629, %v604
      %638 = vst.msk [vmem:[%s349 + $0x20] sm:$0xf] %vm629, %v605
      %639 = vst.msk [vmem:[%s349 + $0x24] sm:$0xf] %vm629, %v606
      %640 = vst.msk [vmem:[%s349 + $0x28] sm:$0xf] %vm629, %v607
      %641 = vst.msk [vmem:[%s349 + $0x2c] sm:$0xf] %vm629, %v608
      %642 = vst.msk [vmem:[%s349 + $0x30] sm:$0xf] %vm629, %v609
      %643 = vst.msk [vmem:[%s349 + $0x34] sm:$0xf] %vm629, %v610
      %644 = vst.msk [vmem:[%s349 + $0x38] sm:$0xf] %vm629, %v611
      %645 = vst.msk [vmem:[%s349 + $0x3c] sm:$0xf] %vm629, %v612
      %v646 = vld [vmem:[%s2] sm:$0xf]
      %v647 = vld [vmem:[%s2 + $0x4] sm:$0xf]
      %v648 = vld [vmem:[%s2 + $0x8] sm:$0xf]
      %v649 = vld [vmem:[%s2 + $0xc] sm:$0xf]
      %v650 = vld [vmem:[%s5] sm:$0x1]
      %v652 = vlaneseq
      %v653 = vshrl.u32 %v652, 7
      %v654 = vsub.s32 0, %v653
      %v655 = vrot.slane %v650, %v654
      %v661 = vunpack.c.l.b16 %v646
      %v662 = vunpack.c.l.b16 %v647
      %v663 = vunpack.c.l.b16 %v648
      %v664 = vunpack.c.l.b16 %v649
      %v665 = vpack.c.b16 %v662, %v661
      %v666 = vpack.c.b16 %v664, %v663
      %669 = vmatprep.subr.bf16.mxu0 0
      %670 = vmatpush1.bf16.msra.mxu0 %v665
      %671 = vmatprep.subr.bf16.mxu0 0
      %672 = vmatpush1.bf16.msra.mxu0 %v666
      %673 = vmatprep.subr.bf16.mxu0 0
      %674 = vmatpush1.bf16.msra.mxu0 0
      %675 = vmatprep.subr.bf16.mxu0 0
      %676 = vmatpush1.bf16.msra.mxu0 0
      %677 = vmatprep.subr.bf16.mxu0 0
      %678 = vmatpush1.bf16.msra.mxu0 0
      %679 = vmatprep.subr.bf16.mxu0 0
      %680 = vmatpush1.bf16.msra.mxu0 0
      %681 = vmatprep.subr.bf16.mxu0 0
      %682 = vmatpush1.bf16.msra.mxu0 0
      %683 = vmatprep.subr.bf16.mxu0 0
      %684 = vmatpush1.bf16.msra.mxu0 0
      %685 = vmatprep.subr.bf16.mxu0 0
      %686 = vmatpush1.bf16.msra.mxu0 0
      %687 = vmatprep.subr.bf16.mxu0 0
      %688 = vmatpush1.bf16.msra.mxu0 0
      %689 = vmatprep.subr.bf16.mxu0 0
      %690 = vmatpush1.bf16.msra.mxu0 0
      %691 = vmatprep.subr.bf16.mxu0 0
      %692 = vmatpush1.bf16.msra.mxu0 0
      %693 = vmatprep.subr.bf16.mxu0 0
      %694 = vmatpush1.bf16.msra.mxu0 0
      %695 = vmatprep.subr.bf16.mxu0 0
      %696 = vmatpush1.bf16.msra.mxu0 0
      %697 = vmatprep.subr.bf16.mxu0 0
      %698 = vmatpush1.bf16.msra.mxu0 0
      %699 = vmatprep.subr.bf16.mxu0 0
      %700 = vmatpush1.bf16.msra.mxu0 0
      %701 = vmatprep.mubr.bf16.mxu0 0
      %702 = vmatmul.mubr.bf16.gmra.mrb[0].mxu0 %v445
      %v703 = vpop.f32.mrb[0].mxu0
      %v704 = vadd.f32 %v655, %v703
      %v705 = vpop.f32.mrb[0].mxu0
      %v706 = vpop.f32.mrb[0].mxu0
      %v707 = vadd.f32 %v655, %v706
      %v708 = vpop.f32.mrb[0].mxu0
      %709 = vmatprep.mubr.bf16.mxu0 0
      %710 = vmatmul.mubr.bf16.gmra.mrb[0].mxu0 %v448
      %v711 = vpop.f32.mrb[0].mxu0
      %v712 = vadd.f32 %v655, %v711
      %v713 = vpop.f32.mrb[0].mxu0
      %v714 = vpop.f32.mrb[0].mxu0
      %v715 = vadd.f32 %v655, %v714
      %v716 = vpop.f32.mrb[0].mxu0
      %717 = vmatprep.mubr.bf16.mxu0 0
      %718 = vmatmul.mubr.bf16.gmra.mrb[0].mxu0 %v451
      %v719 = vpop.f32.mrb[0].mxu0
      %v720 = vadd.f32 %v655, %v719
      %v721 = vpop.f32.mrb[0].mxu0
      %v722 = vpop.f32.mrb[0].mxu0
      %v723 = vadd.f32 %v655, %v722
      %v724 = vpop.f32.mrb[0].mxu0
      %725 = vmatprep.mubr.bf16.mxu0 0
      %726 = vmatmul.mubr.bf16.gmra.mrb[0].mxu0 %v454
      %v727 = vpop.f32.mrb[0].mxu0
      %v728 = vadd.f32 %v655, %v727
      %v729 = vpop.f32.mrb[0].mxu0
      %v730 = vpop.f32.mrb[0].mxu0
      %v731 = vadd.f32 %v655, %v730
      %v732 = vpop.f32.mrb[0].mxu0
      %733 = vmatprep.mubr.bf16.mxu0 0
      %734 = vmatmul.mubr.bf16.gmra.mrb[0].mxu0 %v457
      %v735 = vpop.f32.mrb[0].mxu0
      %v736 = vadd.f32 %v655, %v735
      %v737 = vpop.f32.mrb[0].mxu0
      %v738 = vpop.f32.mrb[0].mxu0
      %v739 = vadd.f32 %v655, %v738
      %v740 = vpop.f32.mrb[0].mxu0
      %741 = vmatprep.mubr.bf16.mxu0 0
      %742 = vmatmul.mubr.bf16.gmra.mrb[0].mxu0 %v460
      %v743 = vpop.f32.mrb[0].mxu0
      %v744 = vadd.f32 %v655, %v743
      %v745 = vpop.f32.mrb[0].mxu0
      %v746 = vpop.f32.mrb[0].mxu0
      %v747 = vadd.f32 %v655, %v746
      %v748 = vpop.f32.mrb[0].mxu0
      %749 = vmatprep.mubr.bf16.mxu0 0
      %750 = vmatmul.mubr.bf16.gmra.mrb[0].mxu0 %v463
      %v751 = vpop.f32.mrb[0].mxu0
      %v752 = vadd.f32 %v655, %v751
      %v753 = vpop.f32.mrb[0].mxu0
      %v754 = vpop.f32.mrb[0].mxu0
      %v755 = vadd.f32 %v655, %v754
      %v756 = vpop.f32.mrb[0].mxu0
      %757 = vmatprep.mubr.bf16.mxu0 0
      %758 = vmatmul.mubr.bf16.gmra.mrb[0].mxu0 %v466
      %v759 = vpop.f32.mrb[0].mxu0
      %v760 = vadd.f32 %v655, %v759
      %v761 = vpop.f32.mrb[0].mxu0
      %v762 = vpop.f32.mrb[0].mxu0
      %v763 = vadd.f32 %v655, %v762
      %v764 = vpop.f32.mrb[0].mxu0
      %765 = vdwg.mxu0
      %v766 = vpack.c.bf16 %v707, %v704
      %v767 = vpack.c.bf16 %v715, %v712
      %v768 = vpack.c.bf16 %v723, %v720
      %v769 = vpack.c.bf16 %v731, %v728
      %v770 = vpack.c.bf16 %v739, %v736
      %v771 = vpack.c.bf16 %v747, %v744
      %v772 = vpack.c.bf16 %v755, %v752
      %v773 = vpack.c.bf16 %v763, %v760
      %v782 = vunpack.c.l.b16 %v766
      %v783 = vunpack.c.h.b16 %v766
      %v784 = vunpack.c.l.b16 %v767
      %v785 = vunpack.c.h.b16 %v767
      %v786 = vunpack.c.l.b16 %v768
      %v787 = vunpack.c.h.b16 %v768
      %v788 = vunpack.c.l.b16 %v769
      %v789 = vunpack.c.h.b16 %v769
      %v790 = vunpack.c.l.b16 %v770
      %v791 = vunpack.c.h.b16 %v770
      %v792 = vunpack.c.l.b16 %v771
      %v793 = vunpack.c.h.b16 %v771
      %v794 = vunpack.c.l.b16 %v772
      %v795 = vunpack.c.h.b16 %v772
      %v796 = vunpack.c.l.b16 %v773
      %v797 = vunpack.c.h.b16 %v773
      %v798 = vpack.c.b16 %v782, %v782
      %v799 = vpack.c.b16 %v783, %v783
      %v800 = vpack.c.b16 %v784, %v784
      %v801 = vpack.c.b16 %v785, %v785
      %v802 = vpack.c.b16 %v786, %v786
      %v803 = vpack.c.b16 %v787, %v787
      %v804 = vpack.c.b16 %v788, %v788
      %v805 = vpack.c.b16 %v789, %v789
      %v806 = vpack.c.b16 %v790, %v790
      %v807 = vpack.c.b16 %v791, %v791
      %v808 = vpack.c.b16 %v792, %v792
      %v809 = vpack.c.b16 %v793, %v793
      %v810 = vpack.c.b16 %v794, %v794
      %v811 = vpack.c.b16 %v795, %v795
      %v812 = vpack.c.b16 %v796, %v796
      %v813 = vpack.c.b16 %v797, %v797
      %830 = vst.msk [vmem:[%s355] sm:$0xf] %vm629, %v798
      %831 = vst.msk [vmem:[%s355 + $0x4] sm:$0xf] %vm629, %v799
      %832 = vst.msk [vmem:[%s355 + $0x8] sm:$0xf] %vm629, %v800
      %833 = vst.msk [vmem:[%s355 + $0xc] sm:$0xf] %vm629, %v801
      %834 = vst.msk [vmem:[%s355 + $0x10] sm:$0xf] %vm629, %v802
      %835 = vst.msk [vmem:[%s355 + $0x14] sm:$0xf] %vm629, %v803
      %836 = vst.msk [vmem:[%s355 + $0x18] sm:$0xf] %vm629, %v804
      %837 = vst.msk [vmem:[%s355 + $0x1c] sm:$0xf] %vm629, %v805
      %838 = vst.msk [vmem:[%s355 + $0x20] sm:$0xf] %vm629, %v806
      %839 = vst.msk [vmem:[%s355 + $0x24] sm:$0xf] %vm629, %v807
      %840 = vst.msk [vmem:[%s355 + $0x28] sm:$0xf] %vm629, %v808
      %841 = vst.msk [vmem:[%s355 + $0x2c] sm:$0xf] %vm629, %v809
      %842 = vst.msk [vmem:[%s355 + $0x30] sm:$0xf] %vm629, %v810
      %843 = vst.msk [vmem:[%s355 + $0x34] sm:$0xf] %vm629, %v811
      %844 = vst.msk [vmem:[%s355 + $0x38] sm:$0xf] %vm629, %v812
      %845 = vst.msk [vmem:[%s355 + $0x3c] sm:$0xf] %vm629, %v813
      %v846 = vld [vmem:[%s3] sm:$0xf]
      %v847 = vld [vmem:[%s3 + $0x4] sm:$0xf]
      %v848 = vld [vmem:[%s3 + $0x8] sm:$0xf]
      %v849 = vld [vmem:[%s3 + $0xc] sm:$0xf]
      %v850 = vld [vmem:[%s6] sm:$0x1]
      %v852 = vlaneseq
      %v853 = vshrl.u32 %v852, 7
      %v854 = vsub.s32 0, %v853
      %v855 = vrot.slane %v850, %v854
      %v861 = vunpack.c.l.b16 %v846
      %v862 = vunpack.c.l.b16 %v847
      %v863 = vunpack.c.l.b16 %v848
      %v864 = vunpack.c.l.b16 %v849
      %v865 = vpack.c.b16 %v862, %v861
      %v866 = vpack.c.b16 %v864, %v863
      %869 = vmatprep.subr.bf16.mxu0 0
      %870 = vmatpush1.bf16.msra.mxu0 %v865
      %871 = vmatprep.subr.bf16.mxu0 0
      %872 = vmatpush1.bf16.msra.mxu0 %v866
      %873 = vmatprep.subr.bf16.mxu0 0
      %874 = vmatpush1.bf16.msra.mxu0 0
      %875 = vmatprep.subr.bf16.mxu0 0
      %876 = vmatpush1.bf16.msra.mxu0 0
      %877 = vmatprep.subr.bf16.mxu0 0
      %878 = vmatpush1.bf16.msra.mxu0 0
      %879 = vmatprep.subr.bf16.mxu0 0
      %880 = vmatpush1.bf16.msra.mxu0 0
      %881 = vmatprep.subr.bf16.mxu0 0
      %882 = vmatpush1.bf16.msra.mxu0 0
      %883 = vmatprep.subr.bf16.mxu0 0
      %884 = vmatpush1.bf16.msra.mxu0 0
      %885 = vmatprep.subr.bf16.mxu0 0
      %886 = vmatpush1.bf16.msra.mxu0 0
      %887 = vmatprep.subr.bf16.mxu0 0
      %888 = vmatpush1.bf16.msra.mxu0 0
      %889 = vmatprep.subr.bf16.mxu0 0
      %890 = vmatpush1.bf16.msra.mxu0 0
      %891 = vmatprep.subr.bf16.mxu0 0
      %892 = vmatpush1.bf16.msra.mxu0 0
      %893 = vmatprep.subr.bf16.mxu0 0
      %894 = vmatpush1.bf16.msra.mxu0 0
      %895 = vmatprep.subr.bf16.mxu0 0
      %896 = vmatpush1.bf16.msra.mxu0 0
      %897 = vmatprep.subr.bf16.mxu0 0
      %898 = vmatpush1.bf16.msra.mxu0 0
      %899 = vmatprep.subr.bf16.mxu0 0
      %900 = vmatpush1.bf16.msra.mxu0 0
      %901 = vmatprep.mubr.bf16.mxu0 0
      %902 = vmatmul.mubr.bf16.gmra.mrb[0].mxu0 %v445
      %v903 = vpop.f32.mrb[0].mxu0
      %v904 = vadd.f32 %v855, %v903
      %v905 = vpop.f32.mrb[0].mxu0
      %v906 = vpop.f32.mrb[0].mxu0
      %v907 = vadd.f32 %v855, %v906
      %v908 = vpop.f32.mrb[0].mxu0
      %909 = vmatprep.mubr.bf16.mxu0 0
      %910 = vmatmul.mubr.bf16.gmra.mrb[0].mxu0 %v448
      %v911 = vpop.f32.mrb[0].mxu0
      %v912 = vadd.f32 %v855, %v911
      %v913 = vpop.f32.mrb[0].mxu0
      %v914 = vpop.f32.mrb[0].mxu0
      %v915 = vadd.f32 %v855, %v914
      %v916 = vpop.f32.mrb[0].mxu0
      %917 = vmatprep.mubr.bf16.mxu0 0
      %918 = vmatmul.mubr.bf16.gmra.mrb[0].mxu0 %v451
      %v919 = vpop.f32.mrb[0].mxu0
      %v920 = vadd.f32 %v855, %v919
      %v921 = vpop.f32.mrb[0].mxu0
      %v922 = vpop.f32.mrb[0].mxu0
      %v923 = vadd.f32 %v855, %v922
      %v924 = vpop.f32.mrb[0].mxu0
      %925 = vmatprep.mubr.bf16.mxu0 0
      %926 = vmatmul.mubr.bf16.gmra.mrb[0].mxu0 %v454
      %v927 = vpop.f32.mrb[0].mxu0
      %v928 = vadd.f32 %v855, %v927
      %v929 = vpop.f32.mrb[0].mxu0
      %v930 = vpop.f32.mrb[0].mxu0
      %v931 = vadd.f32 %v855, %v930
      %v932 = vpop.f32.mrb[0].mxu0
      %933 = vmatprep.mubr.bf16.mxu0 0
      %934 = vmatmul.mubr.bf16.gmra.mrb[0].mxu0 %v457
      %v935 = vpop.f32.mrb[0].mxu0
      %v936 = vadd.f32 %v855, %v935
      %v937 = vpop.f32.mrb[0].mxu0
      %v938 = vpop.f32.mrb[0].mxu0
      %v939 = vadd.f32 %v855, %v938
      %v940 = vpop.f32.mrb[0].mxu0
      %941 = vmatprep.mubr.bf16.mxu0 0
      %942 = vmatmul.mubr.bf16.gmra.mrb[0].mxu0 %v460
      %v943 = vpop.f32.mrb[0].mxu0
      %v944 = vadd.f32 %v855, %v943
      %v945 = vpop.f32.mrb[0].mxu0
      %v946 = vpop.f32.mrb[0].mxu0
      %v947 = vadd.f32 %v855, %v946
      %v948 = vpop.f32.mrb[0].mxu0
      %949 = vmatprep.mubr.bf16.mxu0 0
      %950 = vmatmul.mubr.bf16.gmra.mrb[0].mxu0 %v463
      %v951 = vpop.f32.mrb[0].mxu0
      %v952 = vadd.f32 %v855, %v951
      %v953 = vpop.f32.mrb[0].mxu0
      %v954 = vpop.f32.mrb[0].mxu0
      %v955 = vadd.f32 %v855, %v954
      %v956 = vpop.f32.mrb[0].mxu0
      %957 = vmatprep.mubr.bf16.mxu0 0
      %958 = vmatmul.mubr.bf16.gmra.mrb[0].mxu0 %v466
      %v959 = vpop.f32.mrb[0].mxu0
      %v960 = vadd.f32 %v855, %v959
      %v961 = vpop.f32.mrb[0].mxu0
      %v962 = vpop.f32.mrb[0].mxu0
      %v963 = vadd.f32 %v855, %v962
      %v964 = vpop.f32.mrb[0].mxu0
      %965 = vdwg.mxu0
      %v966 = vpack.c.bf16 %v907, %v904
      %v967 = vpack.c.bf16 %v915, %v912
      %v968 = vpack.c.bf16 %v923, %v920
      %v969 = vpack.c.bf16 %v931, %v928
      %v970 = vpack.c.bf16 %v939, %v936
      %v971 = vpack.c.bf16 %v947, %v944
      %v972 = vpack.c.bf16 %v955, %v952
      %v973 = vpack.c.bf16 %v963, %v960
      %v982 = vunpack.c.l.b16 %v966
      %v983 = vunpack.c.h.b16 %v966
      %v984 = vunpack.c.l.b16 %v967
      %v985 = vunpack.c.h.b16 %v967
      %v986 = vunpack.c.l.b16 %v968
      %v987 = vunpack.c.h.b16 %v968
      %v988 = vunpack.c.l.b16 %v969
      %v989 = vunpack.c.h.b16 %v969
      %v990 = vunpack.c.l.b16 %v970
      %v991 = vunpack.c.h.b16 %v970
      %v992 = vunpack.c.l.b16 %v971
      %v993 = vunpack.c.h.b16 %v971
      %v994 = vunpack.c.l.b16 %v972
      %v995 = vunpack.c.h.b16 %v972
      %v996 = vunpack.c.l.b16 %v973
      %v997 = vunpack.c.h.b16 %v973
      %v998 = vpack.c.b16 %v982, %v982
      %v999 = vpack.c.b16 %v983, %v983
      %v1000 = vpack.c.b16 %v984, %v984
      %v1001 = vpack.c.b16 %v985, %v985
      %v1002 = vpack.c.b16 %v986, %v986
      %v1003 = vpack.c.b16 %v987, %v987
      %v1004 = vpack.c.b16 %v988, %v988
      %v1005 = vpack.c.b16 %v989, %v989
      %v1006 = vpack.c.b16 %v990, %v990
      %v1007 = vpack.c.b16 %v991, %v991
      %v1008 = vpack.c.b16 %v992, %v992
      %v1009 = vpack.c.b16 %v993, %v993
      %v1010 = vpack.c.b16 %v994, %v994
      %v1011 = vpack.c.b16 %v995, %v995
      %v1012 = vpack.c.b16 %v996, %v996
      %v1013 = vpack.c.b16 %v997, %v997
      %1030 = vst.msk [vmem:[%s361] sm:$0xf] %vm629, %v998
      %1031 = vst.msk [vmem:[%s361 + $0x4] sm:$0xf] %vm629, %v999
      %1032 = vst.msk [vmem:[%s361 + $0x8] sm:$0xf] %vm629, %v1000
      %1033 = vst.msk [vmem:[%s361 + $0xc] sm:$0xf] %vm629, %v1001
      %1034 = vst.msk [vmem:[%s361 + $0x10] sm:$0xf] %vm629, %v1002
      %1035 = vst.msk [vmem:[%s361 + $0x14] sm:$0xf] %vm629, %v1003
      %1036 = vst.msk [vmem:[%s361 + $0x18] sm:$0xf] %vm629, %v1004
      %1037 = vst.msk [vmem:[%s361 + $0x1c] sm:$0xf] %vm629, %v1005
      %1038 = vst.msk [vmem:[%s361 + $0x20] sm:$0xf] %vm629, %v1006
      %1039 = vst.msk [vmem:[%s361 + $0x24] sm:$0xf] %vm629, %v1007
      %1040 = vst.msk [vmem:[%s361 + $0x28] sm:$0xf] %vm629, %v1008
      %1041 = vst.msk [vmem:[%s361 + $0x2c] sm:$0xf] %vm629, %v1009
      %1042 = vst.msk [vmem:[%s361 + $0x30] sm:$0xf] %vm629, %v1010
      %1043 = vst.msk [vmem:[%s361 + $0x34] sm:$0xf] %vm629, %v1011
      %1044 = vst.msk [vmem:[%s361 + $0x38] sm:$0xf] %vm629, %v1012
      %1045 = vst.msk [vmem:[%s361 + $0x3c] sm:$0xf] %vm629, %v1013
      %s1046 = smul.u32 16, %s21
      %p1047 = scmp.lt.s32.totalorder %s1046, 63
      %s1048 = scalar_select %p1047, %s1046, 63
      %s1049 = smul.addr %s1048, 4
      %s1050 = scalar_lea.vmem %s7, %s1049
      %s1051 = smul.u32 16, %s21
      %p1052 = scmp.lt.s32.totalorder %s1051, 63
      %s1053 = scalar_select %p1052, %s1051, 63
      %s1054 = smul.addr %s1053, 4
      %s1055 = scalar_lea.vmem %s8, %s1054
      %s1056 = smul.u32 16, %s21
      %p1057 = scmp.lt.s32.totalorder %s1056, 63
      %s1058 = scalar_select %p1057, %s1056, 63
      %s1059 = smul.addr %s1058, 4
      %s1060 = scalar_lea.vmem %s9, %s1059
      // Predicated region
      $region49: #{gmrw_forward.23} parent=47 // pred_check
        %p1061 = pneg %p191
      $region50: #{gmrw_forward.23} parent=47 // pred_check_branch
        %1063 = sbr.rel (%p1061) target = $region52
      $region51: #{gmrw_forward.23} parent=47 // pred_region
        %s1064 = smul.u32 16, %s21
      $region52: #{gmrw_forward.23} parent=47 // pred_fallthru
        _
      // Predicated region
      $region53: #{gmrw_forward.23} parent=47 // pred_check
        %p1065 = pneg %p217
      $region54: #{gmrw_forward.23} parent=47 // pred_check_branch
        %1067 = sbr.rel (%p1065) target = $region56
      $region55: #{gmrw_forward.23} parent=47 // pred_region
        %s1068 = smul.u32 16, %s21
      $region56: #{gmrw_forward.23} parent=47 // pred_fallthru
        _
      // Predicated region
      $region57: #{gmrw_forward.23} parent=47 // pred_check
        %p1069 = pneg %p243
      $region58: #{gmrw_forward.23} parent=47 // pred_check_branch
        %1071 = sbr.rel (%p1069) target = $region60
      $region59: #{gmrw_forward.23} parent=47 // pred_region
        %s1072 = smul.u32 16, %s21
      $region60: #{gmrw_forward.23} parent=47 // pred_fallthru
        _
    $region48: #{gmrw_forward.23} parent=5 // pred_fallthru
      _
    %p1073 = scmp.le.s32.totalorder 2, %s16
    // Predicated region
    $region61: #{gmrw_forward.23} parent=5 // pred_check
      %p1074 = pneg %p1073
    $region62: #{gmrw_forward.23} parent=5 // pred_check_branch
      %1076 = sbr.rel (%p1074) target = $region64
    $region63: #{gmrw_forward.23} parent=5 // pred_region
      %s1077 = ssub.s32 %s16, 2
      // Predicated region
      $region65: #{gmrw_forward.23} parent=63 // pred_check
        %p1078 = pneg %p197
      $region66: #{gmrw_forward.23} parent=63 // pred_check_branch
        %1080 = sbr.rel (%p1078) target = $region68
      $region67: #{gmrw_forward.23} parent=63 // pred_region
        %s1081 = smul.u32 16, %s22
        %p1082 = scmp.lt.s32.totalorder %s1081, 63
        %s1083 = scalar_select %p1082, %s1081, 63
        %s1084 = smul.addr %s1083, 4
        %s1085 = scalar_lea.vmem %s7, %s1084
      $region68: #{gmrw_forward.23} parent=63 // pred_fallthru
        _
      // Predicated region
      $region69: #{gmrw_forward.23} parent=63 // pred_check
        %p1086 = pneg %p223
      $region70: #{gmrw_forward.23} parent=63 // pred_check_branch
        %1088 = sbr.rel (%p1086) target = $region72
      $region71: #{gmrw_forward.23} parent=63 // pred_region
        %s1089 = smul.u32 16, %s22
        %p1090 = scmp.lt.s32.totalorder %s1089, 63
        %s1091 = scalar_select %p1090, %s1089, 63
        %s1092 = smul.addr %s1091, 4
        %s1093 = scalar_lea.vmem %s8, %s1092
      $region72: #{gmrw_forward.23} parent=63 // pred_fallthru
        _
      // Predicated region
      $region73: #{gmrw_forward.23} parent=63 // pred_check
        %p1094 = pneg %p249
      $region74: #{gmrw_forward.23} parent=63 // pred_check_branch
        %1096 = sbr.rel (%p1094) target = $region76
      $region75: #{gmrw_forward.23} parent=63 // pred_region
        %s1097 = smul.u32 16, %s22
        %p1098 = scmp.lt.s32.totalorder %s1097, 63
        %s1099 = scalar_select %p1098, %s1097, 63
        %s1100 = smul.addr %s1099, 4
        %s1101 = scalar_lea.vmem %s9, %s1100
      $region76: #{gmrw_forward.23} parent=63 // pred_fallthru
        _
    $region64: #{gmrw_forward.23} parent=5 // pred_fallthru
      _
  $region6: #{gmrw_forward.23} parent=0 // loop_footer
    %s20 = sadd.s32 1, %s16
  $region7: #{gmrw_forward.23} parent=0 // loop_footer_branch
    %15 = sbr.rel target = $region3
  $region8: #{gmrw_forward.23} parent=0 // loop_exit
    _

// kernel: gmrw_forward.24
$region0: #{gmrw_forward.24}
  #allocation0 [shape = 'u32[]', space=smem, size = 0x4, offset = 0x4, fixed_abs, tag = 'smem constant byte address 0x4 - core index']
  #allocation1 [shape = 'u32[144,128]{1,0:T(1,128)}', space=vmem, size = 0x12000, scoped, tag = 'internal scratch']
  %s0 = inlined_call_operand.vmem [shape: bf16[32,16,32], index: 0, kind: input, shape index: {}]
  %s1 = inlined_call_operand.vmem [shape: bf16[32,16,32], index: 1, kind: input, shape index: {}]
  %s2 = inlined_call_operand.vmem [shape: bf16[32,16,32], index: 2, kind: input, shape index: {}]
  %s3 = inlined_call_operand.vmem [shape: bf16[32,16,32], index: 3, kind: output, shape index: {}]
  %s4 = sld [smem:[#allocation0]]
  $region45: #{gmrw_forward.24} parent=0
    _
  %s6 = ssub.s32 1, %s4
  %s7 = scalar_select 0, %s6, %s4
  loop: start=0, step=1, limit=6
  $region2: #{gmrw_forward.24} parent=0 // loop_pre_header
    _
  $region3: #{gmrw_forward.24} parent=0 // loop_header
    %s9 = sphi 0, %s13
    %p10 = scmp.ge.s32.totalorder %s9, 6
    %s19 = sphi 0, %s21
    %s22 = sphi 0, %s19
    %s23 = sphi 0, %s22
    %s39 = sphi 0, %s23
    %s45 = sphi 0, %s47
    %s48 = sphi 0, %s45
    %s49 = sphi 0, %s48
    %s65 = sphi 0, %s49
    %s71 = sphi 0, %s73
    %s74 = sphi 0, %s71
    %s75 = sphi 0, %s74
    %s91 = sphi 0, %s75
    %s97 = sphi 0, %s99
    %s100 = sphi 0, %s97
    %s101 = sphi 0, %s100
    %s117 = sphi 0, %s101
  $region4: #{gmrw_forward.24} parent=0 // loop_header_branch
    %12 = sbr.rel (%p10) target = $region8
  $region5: #{gmrw_forward.24} parent=0 // loop_body
    %s14 = ssub.s32 %s9, 1
    %s15 = ssub.s32 %s9, 2
    %s16 = sadd.s32 %s9, 1
    %s17 = ssub.s32 %s9, %s16
    %p18 = scmp.eq.s32.totalorder %s17, 0
    %s20 = sadd.s32 %s19, 1
    %s21 = scalar_select %p18, %s19, %s20
    %p24 = pneg %p18
    %p25 = scmp.eq.s32.totalorder %s9, 3
    %p26 = por %p24, %p25
    %p27 = scmp.ne.s32.totalorder %s19, %s22
    %p28 = scmp.eq.s32.totalorder %s9, 0
    %p29 = por %p27, %p28
    %p30 = scmp.ne.s32.totalorder %s19, %s22
    %p31 = scmp.eq.s32.totalorder %s14, 3
    %p32 = por %p30, %p31
    %p33 = scmp.ne.s32.totalorder %s22, %s23
    %p34 = scmp.eq.s32.totalorder %s14, 0
    %p35 = por %p33, %p34
    %p36 = scmp.ne.s32.totalorder %s22, %s23
    %p37 = scmp.eq.s32.totalorder %s15, 3
    %p38 = por %p36, %p37
    %p40 = scmp.ne.s32.totalorder %s23, %s39
    %p41 = scmp.eq.s32.totalorder %s15, 0
    %p42 = por %p40, %p41
    %s43 = ssub.s32 %s9, %s16
    %p44 = scmp.eq.s32.totalorder %s43, 0
    %s46 = sadd.s32 %s45, 1
    %s47 = scalar_select %p44, %s45, %s46
    %p50 = pneg %p44
    %p51 = scmp.eq.s32.totalorder %s9, 3
    %p52 = por %p50, %p51
    %p53 = scmp.ne.s32.totalorder %s45, %s48
    %p54 = scmp.eq.s32.totalorder %s9, 0
    %p55 = por %p53, %p54
    %p56 = scmp.ne.s32.totalorder %s45, %s48
    %p57 = scmp.eq.s32.totalorder %s14, 3
    %p58 = por %p56, %p57
    %p59 = scmp.ne.s32.totalorder %s48, %s49
    %p60 = scmp.eq.s32.totalorder %s14, 0
    %p61 = por %p59, %p60
    %p62 = scmp.ne.s32.totalorder %s48, %s49
    %p63 = scmp.eq.s32.totalorder %s15, 3
    %p64 = por %p62, %p63
    %p66 = scmp.ne.s32.totalorder %s49, %s65
    %p67 = scmp.eq.s32.totalorder %s15, 0
    %p68 = por %p66, %p67
    %s69 = ssub.s32 %s9, %s16
    %p70 = scmp.eq.s32.totalorder %s69, 0
    %s72 = sadd.s32 %s71, 1
    %s73 = scalar_select %p70, %s71, %s72
    %p76 = pneg %p70
    %p77 = scmp.eq.s32.totalorder %s9, 3
    %p78 = por %p76, %p77
    %p79 = scmp.ne.s32.totalorder %s71, %s74
    %p80 = scmp.eq.s32.totalorder %s9, 0
    %p81 = por %p79, %p80
    %p82 = scmp.ne.s32.totalorder %s71, %s74
    %p83 = scmp.eq.s32.totalorder %s14, 3
    %p84 = por %p82, %p83
    %p85 = scmp.ne.s32.totalorder %s74, %s75
    %p86 = scmp.eq.s32.totalorder %s14, 0
    %p87 = por %p85, %p86
    %p88 = scmp.ne.s32.totalorder %s74, %s75
    %p89 = scmp.eq.s32.totalorder %s15, 3
    %p90 = por %p88, %p89
    %p92 = scmp.ne.s32.totalorder %s75, %s91
    %p93 = scmp.eq.s32.totalorder %s15, 0
    %p94 = por %p92, %p93
    %s95 = ssub.s32 %s9, %s16
    %p96 = scmp.eq.s32.totalorder %s95, 0
    %s98 = sadd.s32 %s97, 1
    %s99 = scalar_select %p96, %s97, %s98
    %p102 = pneg %p96
    %p103 = scmp.eq.s32.totalorder %s9, 3
    %p104 = por %p102, %p103
    %p105 = scmp.ne.s32.totalorder %s97, %s100
    %p106 = scmp.eq.s32.totalorder %s9, 0
    %p107 = por %p105, %p106
    %p108 = scmp.ne.s32.totalorder %s97, %s100
    %p109 = scmp.eq.s32.totalorder %s14, 3
    %p110 = por %p108, %p109
    %p111 = scmp.ne.s32.totalorder %s100, %s101
    %p112 = scmp.eq.s32.totalorder %s14, 0
    %p113 = por %p111, %p112
    %p114 = scmp.ne.s32.totalorder %s100, %s101
    %p115 = scmp.eq.s32.totalorder %s15, 3
    %p116 = por %p114, %p115
    %p118 = scmp.ne.s32.totalorder %s101, %s117
    %p119 = scmp.eq.s32.totalorder %s15, 0
    %p120 = por %p118, %p119
    %p121 = scmp.le.s32.totalorder 1, %s9
    %p122 = scmp.lt.s32.totalorder %s9, 5
    %p123 = pnand %p121, %p122
    %p124 = pneg %p123
    // Predicated region
    $region9: #{gmrw_forward.24} parent=5 // pred_check
      _
    $region10: #{gmrw_forward.24} parent=5 // pred_check_branch
      %126 = sbr.rel (%p123) target = $region12
    $region11: #{gmrw_forward.24} parent=5 // pred_region
      %s127 = ssub.s32 %s9, 1
    $region12: #{gmrw_forward.24} parent=5 // pred_fallthru
      _
    %p128 = scmp.lt.s32.totalorder %s9, 4
    // Predicated region
    $region13: #{gmrw_forward.24} parent=5 // pred_check
      %p129 = pneg %p128
    $region14: #{gmrw_forward.24} parent=5 // pred_check_branch
      %131 = sbr.rel (%p129) target = $region16
    $region15: #{gmrw_forward.24} parent=5 // pred_region
      // Predicated region
      $region17: #{gmrw_forward.24} parent=15 // pred_check
        %p132 = pneg %p29
      $region18: #{gmrw_forward.24} parent=15 // pred_check_branch
        %134 = sbr.rel (%p132) target = $region20
      $region19: #{gmrw_forward.24} parent=15 // pred_region
        %s135 = smul.u32 8, %s9
        %p136 = scmp.lt.s32.totalorder %s135, 31
        %s137 = scalar_select %p136, %s135, 31
        %s138 = smul.addr %s137, 2
        %s139 = smul.addr %s138, 4
        %s140 = scalar_lea.vmem %s0, %s139
        %s141 = smul.u32 8, %s9
      $region20: #{gmrw_forward.24} parent=15 // pred_fallthru
        _
      // Predicated region
      $region21: #{gmrw_forward.24} parent=15 // pred_check
        %p142 = pneg %p55
      $region22: #{gmrw_forward.24} parent=15 // pred_check_branch
        %144 = sbr.rel (%p142) target = $region24
      $region23: #{gmrw_forward.24} parent=15 // pred_region
        %s145 = smul.u32 8, %s9
        %p146 = scmp.lt.s32.totalorder %s145, 31
        %s147 = scalar_select %p146, %s145, 31
        %s148 = smul.addr %s147, 2
        %s149 = smul.addr %s148, 4
        %s150 = scalar_lea.vmem %s1, %s149
        %s151 = smul.u32 8, %s9
      $region24: #{gmrw_forward.24} parent=15 // pred_fallthru
        _
      // Predicated region
      $region25: #{gmrw_forward.24} parent=15 // pred_check
        %p152 = pneg %p81
      $region26: #{gmrw_forward.24} parent=15 // pred_check_branch
        %154 = sbr.rel (%p152) target = $region28
      $region27: #{gmrw_forward.24} parent=15 // pred_region
        %s155 = smul.u32 8, %s9
        %p156 = scmp.lt.s32.totalorder %s155, 31
        %s157 = scalar_select %p156, %s155, 31
        %s158 = smul.addr %s157, 2
        %s159 = smul.addr %s158, 4
        %s160 = scalar_lea.vmem %s2, %s159
        %s161 = smul.u32 8, %s9
      $region28: #{gmrw_forward.24} parent=15 // pred_fallthru
        _
    $region16: #{gmrw_forward.24} parent=5 // pred_fallthru
      _
    %p162 = scmp.le.s32.totalorder 1, %s9
    %p163 = scmp.lt.s32.totalorder %s9, 5
    %p164 = pnand %p162, %p163
    %p165 = pneg %p164
    // Predicated region
    $region29: #{gmrw_forward.24} parent=5 // pred_check
      _
    $region30: #{gmrw_forward.24} parent=5 // pred_check_branch
      %167 = sbr.rel (%p164) target = $region32
    $region31: #{gmrw_forward.24} parent=5 // pred_region
      %s168 = ssub.s32 %s9, 1
      %s169 = smul.u32 8, %s14
      %p170 = scmp.lt.s32.totalorder %s169, 31
      %s171 = scalar_select %p170, %s169, 31
      %s172 = smul.addr %s171, 2
      %s173 = smul.addr %s172, 4
      %s174 = scalar_lea.vmem %s0, %s173
      %p175 = pneg %p35
      %p176 = pneg %p32
      %s177 = smul.u32 8, %s14
      %p178 = scmp.lt.s32.totalorder %s177, 31
      %s179 = scalar_select %p178, %s177, 31
      %s180 = smul.addr %s179, 2
      %s181 = smul.addr %s180, 4
      %s182 = scalar_lea.vmem %s1, %s181
      %p183 = pneg %p61
      %p184 = pneg %p58
      %s185 = smul.u32 8, %s14
      %p186 = scmp.lt.s32.totalorder %s185, 31
      %s187 = scalar_select %p186, %s185, 31
      %s188 = smul.addr %s187, 2
      %s189 = smul.addr %s188, 4
      %s190 = scalar_lea.vmem %s2, %s189
      %p191 = pneg %p87
      %p192 = pneg %p84
      %p193 = pneg %p113
      %p194 = pneg %p110
      %s195 = smul.u32 8, %s14
      %p196 = scmp.lt.s32.totalorder %s195, 31
      %s197 = scalar_select %p196, %s195, 31
      %s198 = smul.addr %s197, 2
      %s199 = smul.addr %s198, 4
      %s200 = scalar_lea.vmem %s3, %s199
      %s201 = smul.u32 8, %s14
      %p202 = scmp.lt.s32.totalorder %s201, 31
      %s203 = scalar_select %p202, %s201, 31
      %s204 = smul.addr %s203, 2
      %s205 = smul.addr %s204, 4
      %s206 = scalar_lea.vmem %s0, %s205
      %s207 = smul.u32 8, %s14
      %s208 = smul.u32 8, %s14
      %p209 = scmp.lt.s32.totalorder %s208, 31
      %s210 = scalar_select %p209, %s208, 31
      %s211 = smul.addr %s210, 2
      %s212 = smul.addr %s211, 4
      %s213 = scalar_lea.vmem %s1, %s212
      %s214 = smul.u32 8, %s14
      %s215 = smul.u32 8, %s14
      %p216 = scmp.lt.s32.totalorder %s215, 31
      %s217 = scalar_select %p216, %s215, 31
      %s218 = smul.addr %s217, 2
      %s219 = smul.addr %s218, 4
      %s220 = scalar_lea.vmem %s2, %s219
      %s221 = smul.u32 8, %s14
      %s222 = smul.u32 8, %s14
      %p223 = scmp.lt.s32.totalorder %s222, 31
      %s224 = scalar_select %p223, %s222, 31
      %s225 = smul.addr %s224, 2
      %s226 = smul.addr %s225, 4
      %s227 = scalar_lea.vmem %s3, %s226
      %s228 = smul.u32 8, %s14
      %v231 = vld [vmem:[%s206] sm:$0xf]
      %v232 = vld [vmem:[%s206 + $0x4] sm:$0xf]
      %v233 = vld [vmem:[%s206 + $0x8] sm:$0xf]
      %v234 = vld [vmem:[%s206 + $0xc] sm:$0xf]
      %v235 = vld [vmem:[%s206 + $0x10] sm:$0xf]
      %v236 = vld [vmem:[%s206 + $0x14] sm:$0xf]
      %v237 = vld [vmem:[%s206 + $0x18] sm:$0xf]
      %v238 = vld [vmem:[%s206 + $0x1c] sm:$0xf]
      %v239 = vld [vmem:[%s206 + $0x20] sm:$0xf]
      %v240 = vld [vmem:[%s206 + $0x24] sm:$0xf]
      %v241 = vld [vmem:[%s206 + $0x28] sm:$0xf]
      %v242 = vld [vmem:[%s206 + $0x2c] sm:$0xf]
      %v243 = vld [vmem:[%s206 + $0x30] sm:$0xf]
      %v244 = vld [vmem:[%s206 + $0x34] sm:$0xf]
      %v245 = vld [vmem:[%s206 + $0x38] sm:$0xf]
      %v246 = vld [vmem:[%s206 + $0x3c] sm:$0xf]
      %v247 = vmul.bf16 %v231, 1043676725
      %v248 = vmul.bf16 %v232, 1043676725
      %v249 = vmul.bf16 %v233, 1043676725
      %v250 = vmul.bf16 %v234, 1043676725
      %v251 = vmul.bf16 %v235, 1043676725
      %v252 = vmul.bf16 %v236, 1043676725
      %v253 = vmul.bf16 %v237, 1043676725
      %v254 = vmul.bf16 %v238, 1043676725
      %v255 = vmul.bf16 %v239, 1043676725
      %v256 = vmul.bf16 %v240, 1043676725
      %v257 = vmul.bf16 %v241, 1043676725
      %v258 = vmul.bf16 %v242, 1043676725
      %v259 = vmul.bf16 %v243, 1043676725
      %v260 = vmul.bf16 %v244, 1043676725
      %v261 = vmul.bf16 %v245, 1043676725
      %v262 = vmul.bf16 %v246, 1043676725
      %v263 = vld [vmem:[%s213] sm:$0xf]
      %v264 = vld [vmem:[%s213 + $0x4] sm:$0xf]
      %v265 = vld [vmem:[%s213 + $0x8] sm:$0xf]
      %v266 = vld [vmem:[%s213 + $0xc] sm:$0xf]
      %v267 = vld [vmem:[%s213 + $0x10] sm:$0xf]
      %v268 = vld [vmem:[%s213 + $0x14] sm:$0xf]
      %v269 = vld [vmem:[%s213 + $0x18] sm:$0xf]
      %v270 = vld [vmem:[%s213 + $0x1c] sm:$0xf]
      %v271 = vld [vmem:[%s213 + $0x20] sm:$0xf]
      %v272 = vld [vmem:[%s213 + $0x24] sm:$0xf]
      %v273 = vld [vmem:[%s213 + $0x28] sm:$0xf]
      %v274 = vld [vmem:[%s213 + $0x2c] sm:$0xf]
      %v275 = vld [vmem:[%s213 + $0x30] sm:$0xf]
      %v276 = vld [vmem:[%s213 + $0x34] sm:$0xf]
      %v277 = vld [vmem:[%s213 + $0x38] sm:$0xf]
      %v278 = vld [vmem:[%s213 + $0x3c] sm:$0xf]
      %v279 = vld [vmem:[%s220] sm:$0xf]
      %v280 = vld [vmem:[%s220 + $0x4] sm:$0xf]
      %v281 = vld [vmem:[%s220 + $0x8] sm:$0xf]
      %v282 = vld [vmem:[%s220 + $0xc] sm:$0xf]
      %v283 = vld [vmem:[%s220 + $0x10] sm:$0xf]
      %v284 = vld [vmem:[%s220 + $0x14] sm:$0xf]
      %v285 = vld [vmem:[%s220 + $0x18] sm:$0xf]
      %v286 = vld [vmem:[%s220 + $0x1c] sm:$0xf]
      %v287 = vld [vmem:[%s220 + $0x20] sm:$0xf]
      %v288 = vld [vmem:[%s220 + $0x24] sm:$0xf]
      %v289 = vld [vmem:[%s220 + $0x28] sm:$0xf]
      %v290 = vld [vmem:[%s220 + $0x2c] sm:$0xf]
      %v291 = vld [vmem:[%s220 + $0x30] sm:$0xf]
      %v292 = vld [vmem:[%s220 + $0x34] sm:$0xf]
      %v293 = vld [vmem:[%s220 + $0x38] sm:$0xf]
      %v294 = vld [vmem:[%s220 + $0x3c] sm:$0xf]
      %v297 = vunpack.c.l.b16 %v247
      %v298 = vunpack.c.l.b16 %v248
      %v299 = vpack.c.b16 %v298, %v297
      %v302 = vunpack.c.l.b16 %v263
      %v303 = vunpack.c.l.b16 %v264
      %v304 = vpack.c.b16 %v303, %v302
      %vm305 = vcmask 261120
      %v307 = vsel %vm305, %v299, 0
      %v310 = vsel %vm305, %v304, 0
      %312 = vmatprep.subr.bf16.mxu0 0
      %313 = vmatpush1.bf16.xpose.msra.mxu0 %v310
      %314 = vmatprep.subr.bf16.mxu0 0
      %315 = vmatpush1.bf16.xpose.msra.mxu0 0
      %316 = vmatprep.subr.bf16.mxu0 0
      %317 = vmatpush1.bf16.xpose.msra.mxu0 0
      %318 = vmatprep.subr.bf16.mxu0 0
      %319 = vmatpush1.bf16.xpose.msra.mxu0 0
      %320 = vmatprep.subr.bf16.mxu0 0
      %321 = vmatpush1.bf16.xpose.msra.mxu0 0
      %322 = vmatprep.subr.bf16.mxu0 0
      %323 = vmatpush1.bf16.xpose.msra.mxu0 0
      %324 = vmatprep.subr.bf16.mxu0 0
      %325 = vmatpush1.bf16.xpose.msra.mxu0 0
      %326 = vmatprep.subr.bf16.mxu0 0
      %327 = vmatpush1.bf16.xpose.msra.mxu0 0
      %328 = vmatprep.subr.bf16.mxu0 0
      %329 = vmatpush1.bf16.xpose.msra.mxu0 0
      %330 = vmatprep.subr.bf16.mxu0 0
      %331 = vmatpush1.bf16.xpose.msra.mxu0 0
      %332 = vmatprep.subr.bf16.mxu0 0
      %333 = vmatpush1.bf16.xpose.msra.mxu0 0
      %334 = vmatprep.subr.bf16.mxu0 0
      %335 = vmatpush1.bf16.xpose.msra.mxu0 0
      %336 = vmatprep.subr.bf16.mxu0 0
      %337 = vmatpush1.bf16.xpose.msra.mxu0 0
      %338 = vmatprep.subr.bf16.mxu0 0
      %339 = vmatpush1.bf16.xpose.msra.mxu0 0
      %340 = vmatprep.subr.bf16.mxu0 0
      %341 = vmatpush1.bf16.xpose.msra.mxu0 0
      %342 = vmatprep.subr.bf16.mxu0 0
      %343 = vmatpush1.bf16.xpose.msra.mxu0 0
      %344 = vmatprep.mubr.bf16.mxu0 0
      %345 = vmatmul.mubr.bf16.gmra.mrb[0].mxu0 %v307
      %v346 = vpop.f32.mrb[0].mxu0
      %v347 = vadd.f32 0.0, %v346
      %v348 = vpop.f32.mrb[0].mxu0
      %v349 = vpop.f32.mrb[0].mxu0
      %v350 = vadd.f32 0.0, %v349
      %v351 = vpop.f32.mrb[0].mxu0
      %352 = vdwg.mxu0
      %v355 = vunpack.c.l.b16 %v249
      %v356 = vunpack.c.l.b16 %v250
      %v357 = vpack.c.b16 %v356, %v355
      %v360 = vunpack.c.l.b16 %v265
      %v361 = vunpack.c.l.b16 %v266
      %v362 = vpack.c.b16 %v361, %v360
      %v364 = vsel %vm305, %v357, 0
      %v367 = vsel %vm305, %v362, 0
      %369 = vmatprep.subr.bf16.mxu0 0
      %370 = vmatpush1.bf16.xpose.msra.mxu0 %v367
      %371 = vmatprep.subr.bf16.mxu0 0
      %372 = vmatpush1.bf16.xpose.msra.mxu0 0
      %373 = vmatprep.subr.bf16.mxu0 0
      %374 = vmatpush1.bf16.xpose.msra.mxu0 0
      %375 = vmatprep.subr.bf16.mxu0 0
      %376 = vmatpush1.bf16.xpose.msra.mxu0 0
      %377 = vmatprep.subr.bf16.mxu0 0
      %378 = vmatpush1.bf16.xpose.msra.mxu0 0
      %379 = vmatprep.subr.bf16.mxu0 0
      %380 = vmatpush1.bf16.xpose.msra.mxu0 0
      %381 = vmatprep.subr.bf16.mxu0 0
      %382 = vmatpush1.bf16.xpose.msra.mxu0 0
      %383 = vmatprep.subr.bf16.mxu0 0
      %384 = vmatpush1.bf16.xpose.msra.mxu0 0
      %385 = vmatprep.subr.bf16.mxu0 0
      %386 = vmatpush1.bf16.xpose.msra.mxu0 0
      %387 = vmatprep.subr.bf16.mxu0 0
      %388 = vmatpush1.bf16.xpose.msra.mxu0 0
      %389 = vmatprep.subr.bf16.mxu0 0
      %390 = vmatpush1.bf16.xpose.msra.mxu0 0
      %391 = vmatprep.subr.bf16.mxu0 0
      %392 = vmatpush1.bf16.xpose.msra.mxu0 0
      %393 = vmatprep.subr.bf16.mxu0 0
      %394 = vmatpush1.bf16.xpose.msra.mxu0 0
      %395 = vmatprep.subr.bf16.mxu0 0
      %396 = vmatpush1.bf16.xpose.msra.mxu0 0
      %397 = vmatprep.subr.bf16.mxu0 0
      %398 = vmatpush1.bf16.xpose.msra.mxu0 0
      %399 = vmatprep.subr.bf16.mxu0 0
      %400 = vmatpush1.bf16.xpose.msra.mxu0 0
      %401 = vmatprep.mubr.bf16.mxu0 0
      %402 = vmatmul.mubr.bf16.gmra.mrb[0].mxu0 %v364
      %v403 = vpop.f32.mrb[0].mxu0
      %v404 = vadd.f32 0.0, %v403
      %v405 = vpop.f32.mrb[0].mxu0
      %v406 = vpop.f32.mrb[0].mxu0
      %v407 = vadd.f32 0.0, %v406
      %v408 = vpop.f32.mrb[0].mxu0
      %409 = vdwg.mxu0
      %v412 = vunpack.c.l.b16 %v251
      %v413 = vunpack.c.l.b16 %v252
      %v414 = vpack.c.b16 %v413, %v412
      %v417 = vunpack.c.l.b16 %v267
      %v418 = vunpack.c.l.b16 %v268
      %v419 = vpack.c.b16 %v418, %v417
      %v421 = vsel %vm305, %v414, 0
      %v424 = vsel %vm305, %v419, 0
      %426 = vmatprep.subr.bf16.mxu0 0
      %427 = vmatpush1.bf16.xpose.msra.mxu0 %v424
      %428 = vmatprep.subr.bf16.mxu0 0
      %429 = vmatpush1.bf16.xpose.msra.mxu0 0
      %430 = vmatprep.subr.bf16.mxu0 0
      %431 = vmatpush1.bf16.xpose.msra.mxu0 0
      %432 = vmatprep.subr.bf16.mxu0 0
      %433 = vmatpush1.bf16.xpose.msra.mxu0 0
      %434 = vmatprep.subr.bf16.mxu0 0
      %435 = vmatpush1.bf16.xpose.msra.mxu0 0
      %436 = vmatprep.subr.bf16.mxu0 0
      %437 = vmatpush1.bf16.xpose.msra.mxu0 0
      %438 = vmatprep.subr.bf16.mxu0 0
      %439 = vmatpush1.bf16.xpose.msra.mxu0 0
      %440 = vmatprep.subr.bf16.mxu0 0
      %441 = vmatpush1.bf16.xpose.msra.mxu0 0
      %442 = vmatprep.subr.bf16.mxu0 0
      %443 = vmatpush1.bf16.xpose.msra.mxu0 0
      %444 = vmatprep.subr.bf16.mxu0 0
      %445 = vmatpush1.bf16.xpose.msra.mxu0 0
      %446 = vmatprep.subr.bf16.mxu0 0
      %447 = vmatpush1.bf16.xpose.msra.mxu0 0
      %448 = vmatprep.subr.bf16.mxu0 0
      %449 = vmatpush1.bf16.xpose.msra.mxu0 0
      %450 = vmatprep.subr.bf16.mxu0 0
      %451 = vmatpush1.bf16.xpose.msra.mxu0 0
      %452 = vmatprep.subr.bf16.mxu0 0
      %453 = vmatpush1.bf16.xpose.msra.mxu0 0
      %454 = vmatprep.subr.bf16.mxu0 0
      %455 = vmatpush1.bf16.xpose.msra.mxu0 0
      %456 = vmatprep.subr.bf16.mxu0 0
      %457 = vmatpush1.bf16.xpose.msra.mxu0 0
      %458 = vmatprep.mubr.bf16.mxu0 0
      %459 = vmatmul.mubr.bf16.gmra.mrb[0].mxu0 %v421
      %v460 = vpop.f32.mrb[0].mxu0
      %v461 = vadd.f32 0.0, %v460
      %v462 = vpop.f32.mrb[0].mxu0
      %v463 = vpop.f32.mrb[0].mxu0
      %v464 = vadd.f32 0.0, %v463
      %v465 = vpop.f32.mrb[0].mxu0
      %466 = vdwg.mxu0
      %v469 = vunpack.c.l.b16 %v253
      %v470 = vunpack.c.l.b16 %v254
      %v471 = vpack.c.b16 %v470, %v469
      %v474 = vunpack.c.l.b16 %v269
      %v475 = vunpack.c.l.b16 %v270
      %v476 = vpack.c.b16 %v475, %v474
      %v478 = vsel %vm305, %v471, 0
      %v481 = vsel %vm305, %v476, 0
      %483 = vmatprep.subr.bf16.mxu0 0
      %484 = vmatpush1.bf16.xpose.msra.mxu0 %v481
      %485 = vmatprep.subr.bf16.mxu0 0
      %486 = vmatpush1.bf16.xpose.msra.mxu0 0
      %487 = vmatprep.subr.bf16.mxu0 0
      %488 = vmatpush1.bf16.xpose.msra.mxu0 0
      %489 = vmatprep.subr.bf16.mxu0 0
      %490 = vmatpush1.bf16.xpose.msra.mxu0 0
      %491 = vmatprep.subr.bf16.mxu0 0
      %492 = vmatpush1.bf16.xpose.msra.mxu0 0
      %493 = vmatprep.subr.bf16.mxu0 0
      %494 = vmatpush1.bf16.xpose.msra.mxu0 0
      %495 = vmatprep.subr.bf16.mxu0 0
      %496 = vmatpush1.bf16.xpose.msra.mxu0 0
      %497 = vmatprep.subr.bf16.mxu0 0
      %498 = vmatpush1.bf16.xpose.msra.mxu0 0
      %499 = vmatprep.subr.bf16.mxu0 0
      %500 = vmatpush1.bf16.xpose.msra.mxu0 0
      %501 = vmatprep.subr.bf16.mxu0 0
      %502 = vmatpush1.bf16.xpose.msra.mxu0 0
      %503 = vmatprep.subr.bf16.mxu0 0
      %504 = vmatpush1.bf16.xpose.msra.mxu0 0
      %505 = vmatprep.subr.bf16.mxu0 0
      %506 = vmatpush1.bf16.xpose.msra.mxu0 0
      %507 = vmatprep.subr.bf16.mxu0 0
      %508 = vmatpush1.bf16.xpose.msra.mxu0 0
      %509 = vmatprep.subr.bf16.mxu0 0
      %510 = vmatpush1.bf16.xpose.msra.mxu0 0
      %511 = vmatprep.subr.bf16.mxu0 0
      %512 = vmatpush1.bf16.xpose.msra.mxu0 0
      %513 = vmatprep.subr.bf16.mxu0 0
      %514 = vmatpush1.bf16.xpose.msra.mxu0 0
      %515 = vmatprep.mubr.bf16.mxu0 0
      %516 = vmatmul.mubr.bf16.gmra.mrb[0].mxu0 %v478
      %v517 = vpop.f32.mrb[0].mxu0
      %v518 = vadd.f32 0.0, %v517
      %v519 = vpop.f32.mrb[0].mxu0
      %v520 = vpop.f32.mrb[0].mxu0
      %v521 = vadd.f32 0.0, %v520
      %v522 = vpop.f32.mrb[0].mxu0
      %523 = vdwg.mxu0
      %v526 = vunpack.c.l.b16 %v255
      %v527 = vunpack.c.l.b16 %v256
      %v528 = vpack.c.b16 %v527, %v526
      %v531 = vunpack.c.l.b16 %v271
      %v532 = vunpack.c.l.b16 %v272
      %v533 = vpack.c.b16 %v532, %v531
      %v535 = vsel %vm305, %v528, 0
      %v538 = vsel %vm305, %v533, 0
      %540 = vmatprep.subr.bf16.mxu0 0
      %541 = vmatpush1.bf16.xpose.msra.mxu0 %v538
      %542 = vmatprep.subr.bf16.mxu0 0
      %543 = vmatpush1.bf16.xpose.msra.mxu0 0
      %544 = vmatprep.subr.bf16.mxu0 0
      %545 = vmatpush1.bf16.xpose.msra.mxu0 0
      %546 = vmatprep.subr.bf16.mxu0 0
      %547 = vmatpush1.bf16.xpose.msra.mxu0 0
      %548 = vmatprep.subr.bf16.mxu0 0
      %549 = vmatpush1.bf16.xpose.msra.mxu0 0
      %550 = vmatprep.subr.bf16.mxu0 0
      %551 = vmatpush1.bf16.xpose.msra.mxu0 0
      %552 = vmatprep.subr.bf16.mxu0 0
      %553 = vmatpush1.bf16.xpose.msra.mxu0 0
      %554 = vmatprep.subr.bf16.mxu0 0
      %555 = vmatpush1.bf16.xpose.msra.mxu0 0
      %556 = vmatprep.subr.bf16.mxu0 0
      %557 = vmatpush1.bf16.xpose.msra.mxu0 0
      %558 = vmatprep.subr.bf16.mxu0 0
      %559 = vmatpush1.bf16.xpose.msra.mxu0 0
      %560 = vmatprep.subr.bf16.mxu0 0
      %561 = vmatpush1.bf16.xpose.msra.mxu0 0
      %562 = vmatprep.subr.bf16.mxu0 0
      %563 = vmatpush1.bf16.xpose.msra.mxu0 0
      %564 = vmatprep.subr.bf16.mxu0 0
      %565 = vmatpush1.bf16.xpose.msra.mxu0 0
      %566 = vmatprep.subr.bf16.mxu0 0
      %567 = vmatpush1.bf16.xpose.msra.mxu0 0
      %568 = vmatprep.subr.bf16.mxu0 0
      %569 = vmatpush1.bf16.xpose.msra.mxu0 0
      %570 = vmatprep.subr.bf16.mxu0 0
      %571 = vmatpush1.bf16.xpose.msra.mxu0 0
      %572 = vmatprep.mubr.bf16.mxu0 0
      %573 = vmatmul.mubr.bf16.gmra.mrb[0].mxu0 %v535
      %v574 = vpop.f32.mrb[0].mxu0
      %v575 = vadd.f32 0.0, %v574
      %v576 = vpop.f32.mrb[0].mxu0
      %v577 = vpop.f32.mrb[0].mxu0
      %v578 = vadd.f32 0.0, %v577
      %v579 = vpop.f32.mrb[0].mxu0
      %580 = vdwg.mxu0
      %v583 = vunpack.c.l.b16 %v257
      %v584 = vunpack.c.l.b16 %v258
      %v585 = vpack.c.b16 %v584, %v583
      %v588 = vunpack.c.l.b16 %v273
      %v589 = vunpack.c.l.b16 %v274
      %v590 = vpack.c.b16 %v589, %v588
      %v592 = vsel %vm305, %v585, 0
      %v595 = vsel %vm305, %v590, 0
      %597 = vmatprep.subr.bf16.mxu0 0
      %598 = vmatpush1.bf16.xpose.msra.mxu0 %v595
      %599 = vmatprep.subr.bf16.mxu0 0
      %600 = vmatpush1.bf16.xpose.msra.mxu0 0
      %601 = vmatprep.subr.bf16.mxu0 0
      %602 = vmatpush1.bf16.xpose.msra.mxu0 0
      %603 = vmatprep.subr.bf16.mxu0 0
      %604 = vmatpush1.bf16.xpose.msra.mxu0 0
      %605 = vmatprep.subr.bf16.mxu0 0
      %606 = vmatpush1.bf16.xpose.msra.mxu0 0
      %607 = vmatprep.subr.bf16.mxu0 0
      %608 = vmatpush1.bf16.xpose.msra.mxu0 0
      %609 = vmatprep.subr.bf16.mxu0 0
      %610 = vmatpush1.bf16.xpose.msra.mxu0 0
      %611 = vmatprep.subr.bf16.mxu0 0
      %612 = vmatpush1.bf16.xpose.msra.mxu0 0
      %613 = vmatprep.subr.bf16.mxu0 0
      %614 = vmatpush1.bf16.xpose.msra.mxu0 0
      %615 = vmatprep.subr.bf16.mxu0 0
      %616 = vmatpush1.bf16.xpose.msra.mxu0 0
      %617 = vmatprep.subr.bf16.mxu0 0
      %618 = vmatpush1.bf16.xpose.msra.mxu0 0
      %619 = vmatprep.subr.bf16.mxu0 0
      %620 = vmatpush1.bf16.xpose.msra.mxu0 0
      %621 = vmatprep.subr.bf16.mxu0 0
      %622 = vmatpush1.bf16.xpose.msra.mxu0 0
      %623 = vmatprep.subr.bf16.mxu0 0
      %624 = vmatpush1.bf16.xpose.msra.mxu0 0
      %625 = vmatprep.subr.bf16.mxu0 0
      %626 = vmatpush1.bf16.xpose.msra.mxu0 0
      %627 = vmatprep.subr.bf16.mxu0 0
      %628 = vmatpush1.bf16.xpose.msra.mxu0 0
      %629 = vmatprep.mubr.bf16.mxu0 0
      %630 = vmatmul.mubr.bf16.gmra.mrb[0].mxu0 %v592
      %v631 = vpop.f32.mrb[0].mxu0
      %v632 = vadd.f32 0.0, %v631
      %v633 = vpop.f32.mrb[0].mxu0
      %v634 = vpop.f32.mrb[0].mxu0
      %v635 = vadd.f32 0.0, %v634
      %v636 = vpop.f32.mrb[0].mxu0
      %637 = vdwg.mxu0
      %v640 = vunpack.c.l.b16 %v259
      %v641 = vunpack.c.l.b16 %v260
      %v642 = vpack.c.b16 %v641, %v640
      %v645 = vunpack.c.l.b16 %v275
      %v646 = vunpack.c.l.b16 %v276
      %v647 = vpack.c.b16 %v646, %v645
      %v649 = vsel %vm305, %v642, 0
      %v652 = vsel %vm305, %v647, 0
      %654 = vmatprep.subr.bf16.mxu0 0
      %655 = vmatpush1.bf16.xpose.msra.mxu0 %v652
      %656 = vmatprep.subr.bf16.mxu0 0
      %657 = vmatpush1.bf16.xpose.msra.mxu0 0
      %658 = vmatprep.subr.bf16.mxu0 0
      %659 = vmatpush1.bf16.xpose.msra.mxu0 0
      %660 = vmatprep.subr.bf16.mxu0 0
      %661 = vmatpush1.bf16.xpose.msra.mxu0 0
      %662 = vmatprep.subr.bf16.mxu0 0
      %663 = vmatpush1.bf16.xpose.msra.mxu0 0
      %664 = vmatprep.subr.bf16.mxu0 0
      %665 = vmatpush1.bf16.xpose.msra.mxu0 0
      %666 = vmatprep.subr.bf16.mxu0 0
      %667 = vmatpush1.bf16.xpose.msra.mxu0 0
      %668 = vmatprep.subr.bf16.mxu0 0
      %669 = vmatpush1.bf16.xpose.msra.mxu0 0
      %670 = vmatprep.subr.bf16.mxu0 0
      %671 = vmatpush1.bf16.xpose.msra.mxu0 0
      %672 = vmatprep.subr.bf16.mxu0 0
      %673 = vmatpush1.bf16.xpose.msra.mxu0 0
      %674 = vmatprep.subr.bf16.mxu0 0
      %675 = vmatpush1.bf16.xpose.msra.mxu0 0
      %676 = vmatprep.subr.bf16.mxu0 0
      %677 = vmatpush1.bf16.xpose.msra.mxu0 0
      %678 = vmatprep.subr.bf16.mxu0 0
      %679 = vmatpush1.bf16.xpose.msra.mxu0 0
      %680 = vmatprep.subr.bf16.mxu0 0
      %681 = vmatpush1.bf16.xpose.msra.mxu0 0
      %682 = vmatprep.subr.bf16.mxu0 0
      %683 = vmatpush1.bf16.xpose.msra.mxu0 0
      %684 = vmatprep.subr.bf16.mxu0 0
      %685 = vmatpush1.bf16.xpose.msra.mxu0 0
      %686 = vmatprep.mubr.bf16.mxu0 0
      %687 = vmatmul.mubr.bf16.gmra.mrb[0].mxu0 %v649
      %v688 = vpop.f32.mrb[0].mxu0
      %v689 = vadd.f32 0.0, %v688
      %v690 = vpop.f32.mrb[0].mxu0
      %v691 = vpop.f32.mrb[0].mxu0
      %v692 = vadd.f32 0.0, %v691
      %v693 = vpop.f32.mrb[0].mxu0
      %694 = vdwg.mxu0
      %v697 = vunpack.c.l.b16 %v261
      %v698 = vunpack.c.l.b16 %v262
      %v699 = vpack.c.b16 %v698, %v697
      %v702 = vunpack.c.l.b16 %v277
      %v703 = vunpack.c.l.b16 %v278
      %v704 = vpack.c.b16 %v703, %v702
      %v706 = vsel %vm305, %v699, 0
      %v709 = vsel %vm305, %v704, 0
      %711 = vmatprep.subr.bf16.mxu0 0
      %712 = vmatpush1.bf16.xpose.msra.mxu0 %v709
      %713 = vmatprep.subr.bf16.mxu0 0
      %714 = vmatpush1.bf16.xpose.msra.mxu0 0
      %715 = vmatprep.subr.bf16.mxu0 0
      %716 = vmatpush1.bf16.xpose.msra.mxu0 0
      %717 = vmatprep.subr.bf16.mxu0 0
      %718 = vmatpush1.bf16.xpose.msra.mxu0 0
      %719 = vmatprep.subr.bf16.mxu0 0
      %720 = vmatpush1.bf16.xpose.msra.mxu0 0
      %721 = vmatprep.subr.bf16.mxu0 0
      %722 = vmatpush1.bf16.xpose.msra.mxu0 0
      %723 = vmatprep.subr.bf16.mxu0 0
      %724 = vmatpush1.bf16.xpose.msra.mxu0 0
      %725 = vmatprep.subr.bf16.mxu0 0
      %726 = vmatpush1.bf16.xpose.msra.mxu0 0
      %727 = vmatprep.subr.bf16.mxu0 0
      %728 = vmatpush1.bf16.xpose.msra.mxu0 0
      %729 = vmatprep.subr.bf16.mxu0 0
      %730 = vmatpush1.bf16.xpose.msra.mxu0 0
      %731 = vmatprep.subr.bf16.mxu0 0
      %732 = vmatpush1.bf16.xpose.msra.mxu0 0
      %733 = vmatprep.subr.bf16.mxu0 0
      %734 = vmatpush1.bf16.xpose.msra.mxu0 0
      %735 = vmatprep.subr.bf16.mxu0 0
      %736 = vmatpush1.bf16.xpose.msra.mxu0 0
      %737 = vmatprep.subr.bf16.mxu0 0
      %738 = vmatpush1.bf16.xpose.msra.mxu0 0
      %739 = vmatprep.subr.bf16.mxu0 0
      %740 = vmatpush1.bf16.xpose.msra.mxu0 0
      %741 = vmatprep.subr.bf16.mxu0 0
      %742 = vmatpush1.bf16.xpose.msra.mxu0 0
      %743 = vmatprep.mubr.bf16.mxu0 0
      %744 = vmatmul.mubr.bf16.gmra.mrb[0].mxu0 %v706
      %v745 = vpop.f32.mrb[0].mxu0
      %v746 = vadd.f32 0.0, %v745
      %v747 = vpop.f32.mrb[0].mxu0
      %v748 = vpop.f32.mrb[0].mxu0
      %v749 = vadd.f32 0.0, %v748
      %v750 = vpop.f32.mrb[0].mxu0
      %751 = vdwg.mxu0
      %vm752 = vcmask 130048
      %v753 = vsel %vm752, %v347, -inf
      %754 = vmax.xlane.f32.xlu0 %v753
      %v755 = vpop.xlane.xlu0 %754
      %v756 = vsel %vm752, %v350, -inf
      %757 = vmax.xlane.f32.xlu0 %v756
      %v758 = vpop.xlane.xlu0 %757
      %v759 = vsel %vm752, %v404, -inf
      %760 = vmax.xlane.f32.xlu0 %v759
      %v761 = vpop.xlane.xlu0 %760
      %v762 = vsel %vm752, %v407, -inf
      %763 = vmax.xlane.f32.xlu0 %v762
      %v764 = vpop.xlane.xlu0 %763
      %v765 = vsel %vm752, %v461, -inf
      %766 = vmax.xlane.f32.xlu0 %v765
      %v767 = vpop.xlane.xlu0 %766
      %v768 = vsel %vm752, %v464, -inf
      %769 = vmax.xlane.f32.xlu0 %v768
      %v770 = vpop.xlane.xlu0 %769
      %v771 = vsel %vm752, %v518, -inf
      %772 = vmax.xlane.f32.xlu0 %v771
      %v773 = vpop.xlane.xlu0 %772
      %v774 = vsel %vm752, %v521, -inf
      %775 = vmax.xlane.f32.xlu0 %v774
      %v776 = vpop.xlane.xlu0 %775
      %v777 = vsel %vm752, %v575, -inf
      %778 = vmax.xlane.f32.xlu0 %v777
      %v779 = vpop.xlane.xlu0 %778
      %v780 = vsel %vm752, %v578, -inf
      %781 = vmax.xlane.f32.xlu0 %v780
      %v782 = vpop.xlane.xlu0 %781
      %v783 = vsel %vm752, %v632, -inf
      %784 = vmax.xlane.f32.xlu0 %v783
      %v785 = vpop.xlane.xlu0 %784
      %v786 = vsel %vm752, %v635, -inf
      %787 = vmax.xlane.f32.xlu0 %v786
      %v788 = vpop.xlane.xlu0 %787
      %v789 = vsel %vm752, %v689, -inf
      %790 = vmax.xlane.f32.xlu0 %v789
      %v791 = vpop.xlane.xlu0 %790
      %v792 = vsel %vm752, %v692, -inf
      %793 = vmax.xlane.f32.xlu0 %v792
      %v794 = vpop.xlane.xlu0 %793
      %v795 = vsel %vm752, %v746, -inf
      %796 = vmax.xlane.f32.xlu0 %v795
      %v797 = vpop.xlane.xlu0 %796
      %v798 = vsel %vm752, %v749, -inf
      %799 = vmax.xlane.f32.xlu0 %v798
      %v800 = vpop.xlane.xlu0 %799
      %v801 = vsub.f32 %v347, %v755
      %v802 = vsub.f32 %v350, %v758
      %v803 = vsub.f32 %v404, %v761
      %v804 = vsub.f32 %v407, %v764
      %v805 = vsub.f32 %v461, %v767
      %v806 = vsub.f32 %v464, %v770
      %v807 = vsub.f32 %v518, %v773
      %v808 = vsub.f32 %v521, %v776
      %v809 = vsub.f32 %v575, %v779
      %v810 = vsub.f32 %v578, %v782
      %v811 = vsub.f32 %v632, %v785
      %v812 = vsub.f32 %v635, %v788
      %v813 = vsub.f32 %v689, %v791
      %v814 = vsub.f32 %v692, %v794
      %v815 = vsub.f32 %v746, %v797
      %v816 = vsub.f32 %v749, %v800
      %v817 = vmul.f32 %v801, 1.442695
      %v818 = vpow.pop %v817
      %v819 = vmul.f32 %v802, 1.442695
      %v820 = vpow.pop %v819
      %v821 = vmul.f32 %v803, 1.442695
      %v822 = vpow.pop %v821
      %v823 = vmul.f32 %v804, 1.442695
      %v824 = vpow.pop %v823
      %v825 = vmul.f32 %v805, 1.442695
      %v826 = vpow.pop %v825
      %v827 = vmul.f32 %v806, 1.442695
      %v828 = vpow.pop %v827
      %v829 = vmul.f32 %v807, 1.442695
      %v830 = vpow.pop %v829
      %v831 = vmul.f32 %v808, 1.442695
      %v832 = vpow.pop %v831
      %v833 = vmul.f32 %v809, 1.442695
      %v834 = vpow.pop %v833
      %v835 = vmul.f32 %v810, 1.442695
      %v836 = vpow.pop %v835
      %v837 = vmul.f32 %v811, 1.442695
      %v838 = vpow.pop %v837
      %v839 = vmul.f32 %v812, 1.442695
      %v840 = vpow.pop %v839
      %v841 = vmul.f32 %v813, 1.442695
      %v842 = vpow.pop %v841
      %v843 = vmul.f32 %v814, 1.442695
      %v844 = vpow.pop %v843
      %v845 = vmul.f32 %v815, 1.442695
      %v846 = vpow.pop %v845
      %v847 = vmul.f32 %v816, 1.442695
      %v848 = vpow.pop %v847
      %v849 = vsel %vm752, %v818, 0.0
      %850 = vadd.xlane.f32.xlu0 %v849
      %v851 = vpop.xlane.xlu0 %850
      %v852 = vsel %vm752, %v820, 0.0
      %853 = vadd.xlane.f32.xlu0 %v852
      %v854 = vpop.xlane.xlu0 %853
      %v855 = vsel %vm752, %v822, 0.0
      %856 = vadd.xlane.f32.xlu0 %v855
      %v857 = vpop.xlane.xlu0 %856
      %v858 = vsel %vm752, %v824, 0.0
      %859 = vadd.xlane.f32.xlu0 %v858
      %v860 = vpop.xlane.xlu0 %859
      %v861 = vsel %vm752, %v826, 0.0
      %862 = vadd.xlane.f32.xlu0 %v861
      %v863 = vpop.xlane.xlu0 %862
      %v864 = vsel %vm752, %v828, 0.0
      %865 = vadd.xlane.f32.xlu0 %v864
      %v866 = vpop.xlane.xlu0 %865
      %v867 = vsel %vm752, %v830, 0.0
      %868 = vadd.xlane.f32.xlu0 %v867
      %v869 = vpop.xlane.xlu0 %868
      %v870 = vsel %vm752, %v832, 0.0
      %871 = vadd.xlane.f32.xlu0 %v870
      %v872 = vpop.xlane.xlu0 %871
      %v873 = vsel %vm752, %v834, 0.0
      %874 = vadd.xlane.f32.xlu0 %v873
      %v875 = vpop.xlane.xlu0 %874
      %v876 = vsel %vm752, %v836, 0.0
      %877 = vadd.xlane.f32.xlu0 %v876
      %v878 = vpop.xlane.xlu0 %877
      %v879 = vsel %vm752, %v838, 0.0
      %880 = vadd.xlane.f32.xlu0 %v879
      %v881 = vpop.xlane.xlu0 %880
      %v882 = vsel %vm752, %v840, 0.0
      %883 = vadd.xlane.f32.xlu0 %v882
      %v884 = vpop.xlane.xlu0 %883
      %v885 = vsel %vm752, %v842, 0.0
      %886 = vadd.xlane.f32.xlu0 %v885
      %v887 = vpop.xlane.xlu0 %886
      %v888 = vsel %vm752, %v844, 0.0
      %889 = vadd.xlane.f32.xlu0 %v888
      %v890 = vpop.xlane.xlu0 %889
      %v891 = vsel %vm752, %v846, 0.0
      %892 = vadd.xlane.f32.xlu0 %v891
      %v893 = vpop.xlane.xlu0 %892
      %v894 = vsel %vm752, %v848, 0.0
      %895 = vadd.xlane.f32.xlu0 %v894
      %v896 = vpop.xlane.xlu0 %895
      %v897 = vrcp.pop %v851
      %v898 = vrcp.pop %v854
      %v899 = vrcp.pop %v857
      %v900 = vrcp.pop %v860
      %v901 = vrcp.pop %v863
      %v902 = vrcp.pop %v866
      %v903 = vrcp.pop %v869
      %v904 = vrcp.pop %v872
      %v905 = vrcp.pop %v875
      %v906 = vrcp.pop %v878
      %v907 = vrcp.pop %v881
      %v908 = vrcp.pop %v884
      %v909 = vrcp.pop %v887
      %v910 = vrcp.pop %v890
      %v911 = vrcp.pop %v893
      %v912 = vrcp.pop %v896
      %v913 = vmul.f32 %v818, %v897
      %v914 = vmul.f32 %v820, %v898
      %v915 = vmul.f32 %v822, %v899
      %v916 = vmul.f32 %v824, %v900
      %v917 = vmul.f32 %v826, %v901
      %v918 = vmul.f32 %v828, %v902
      %v919 = vmul.f32 %v830, %v903
      %v920 = vmul.f32 %v832, %v904
      %v921 = vmul.f32 %v834, %v905
      %v922 = vmul.f32 %v836, %v906
      %v923 = vmul.f32 %v838, %v907
      %v924 = vmul.f32 %v840, %v908
      %v925 = vmul.f32 %v842, %v909
      %v926 = vmul.f32 %v844, %v910
      %v927 = vmul.f32 %v846, %v911
      %v928 = vmul.f32 %v848, %v912
      %v929 = vpack.c.bf16 %v914, %v913
      %v930 = vpack.c.bf16 %v916, %v915
      %v931 = vpack.c.bf16 %v918, %v917
      %v932 = vpack.c.bf16 %v920, %v919
      %v933 = vpack.c.bf16 %v922, %v921
      %v934 = vpack.c.bf16 %v924, %v923
      %v935 = vpack.c.bf16 %v926, %v925
      %v936 = vpack.c.bf16 %v928, %v927
      %v939 = vunpack.c.l.b16 %v279
      %v940 = vunpack.c.l.b16 %v280
      %v941 = vpack.c.b16 %v940, %v939
      %v944 = vsel %vm752, %v929, 0
      %946 = vmatprep.subr.bf16.mxu0 0
      %947 = vmatpush1.bf16.msra.mxu0 %v941
      %948 = vmatprep.subr.bf16.mxu0 0
      %949 = vmatpush1.bf16.msra.mxu0 0
      %950 = vmatprep.subr.bf16.mxu0 0
      %951 = vmatpush1.bf16.msra.mxu0 0
      %952 = vmatprep.subr.bf16.mxu0 0
      %953 = vmatpush1.bf16.msra.mxu0 0
      %954 = vmatprep.subr.bf16.mxu0 0
      %955 = vmatpush1.bf16.msra.mxu0 0
      %956 = vmatprep.subr.bf16.mxu0 0
      %957 = vmatpush1.bf16.msra.mxu0 0
      %958 = vmatprep.subr.bf16.mxu0 0
      %959 = vmatpush1.bf16.msra.mxu0 0
      %960 = vmatprep.subr.bf16.mxu0 0
      %961 = vmatpush1.bf16.msra.mxu0 0
      %962 = vmatprep.subr.bf16.mxu0 0
      %963 = vmatpush1.bf16.msra.mxu0 0
      %964 = vmatprep.subr.bf16.mxu0 0
      %965 = vmatpush1.bf16.msra.mxu0 0
      %966 = vmatprep.subr.bf16.mxu0 0
      %967 = vmatpush1.bf16.msra.mxu0 0
      %968 = vmatprep.subr.bf16.mxu0 0
      %969 = vmatpush1.bf16.msra.mxu0 0
      %970 = vmatprep.subr.bf16.mxu0 0
      %971 = vmatpush1.bf16.msra.mxu0 0
      %972 = vmatprep.subr.bf16.mxu0 0
      %973 = vmatpush1.bf16.msra.mxu0 0
      %974 = vmatprep.subr.bf16.mxu0 0
      %975 = vmatpush1.bf16.msra.mxu0 0
      %976 = vmatprep.subr.bf16.mxu0 0
      %977 = vmatpush1.bf16.msra.mxu0 0
      %978 = vmatprep.mubr.bf16.mxu0 0
      %979 = vmatmul.mubr.bf16.gmra.mrb[0].mxu0 %v944
      %v980 = vpop.f32.mrb[0].mxu0
      %v981 = vadd.f32 0.0, %v980
      %v982 = vpop.f32.mrb[0].mxu0
      %v983 = vpop.f32.mrb[0].mxu0
      %v984 = vadd.f32 0.0, %v983
      %v985 = vpop.f32.mrb[0].mxu0
      %986 = vdwg.mxu0
      %v989 = vunpack.c.l.b16 %v281
      %v990 = vunpack.c.l.b16 %v282
      %v991 = vpack.c.b16 %v990, %v989
      %v994 = vsel %vm752, %v930, 0
      %996 = vmatprep.subr.bf16.mxu0 0
      %997 = vmatpush1.bf16.msra.mxu0 %v991
      %998 = vmatprep.subr.bf16.mxu0 0
      %999 = vmatpush1.bf16.msra.mxu0 0
      %1000 = vmatprep.subr.bf16.mxu0 0
      %1001 = vmatpush1.bf16.msra.mxu0 0
      %1002 = vmatprep.subr.bf16.mxu0 0
      %1003 = vmatpush1.bf16.msra.mxu0 0
      %1004 = vmatprep.subr.bf16.mxu0 0
      %1005 = vmatpush1.bf16.msra.mxu0 0
      %1006 = vmatprep.subr.bf16.mxu0 0
      %1007 = vmatpush1.bf16.msra.mxu0 0
      %1008 = vmatprep.subr.bf16.mxu0 0
      %1009 = vmatpush1.bf16.msra.mxu0 0
      %1010 = vmatprep.subr.bf16.mxu0 0
      %1011 = vmatpush1.bf16.msra.mxu0 0
      %1012 = vmatprep.subr.bf16.mxu0 0
      %1013 = vmatpush1.bf16.msra.mxu0 0
      %1014 = vmatprep.subr.bf16.mxu0 0
      %1015 = vmatpush1.bf16.msra.mxu0 0
      %1016 = vmatprep.subr.bf16.mxu0 0
      %1017 = vmatpush1.bf16.msra.mxu0 0
      %1018 = vmatprep.subr.bf16.mxu0 0
      %1019 = vmatpush1.bf16.msra.mxu0 0
      %1020 = vmatprep.subr.bf16.mxu0 0
      %1021 = vmatpush1.bf16.msra.mxu0 0
      %1022 = vmatprep.subr.bf16.mxu0 0
      %1023 = vmatpush1.bf16.msra.mxu0 0
      %1024 = vmatprep.subr.bf16.mxu0 0
      %1025 = vmatpush1.bf16.msra.mxu0 0
      %1026 = vmatprep.subr.bf16.mxu0 0
      %1027 = vmatpush1.bf16.msra.mxu0 0
      %1028 = vmatprep.mubr.bf16.mxu0 0
      %1029 = vmatmul.mubr.bf16.gmra.mrb[0].mxu0 %v994
      %v1030 = vpop.f32.mrb[0].mxu0
      %v1031 = vadd.f32 0.0, %v1030
      %v1032 = vpop.f32.mrb[0].mxu0
      %v1033 = vpop.f32.mrb[0].mxu0
      %v1034 = vadd.f32 0.0, %v1033
      %v1035 = vpop.f32.mrb[0].mxu0
      %1036 = vdwg.mxu0
      %v1039 = vunpack.c.l.b16 %v283
      %v1040 = vunpack.c.l.b16 %v284
      %v1041 = vpack.c.b16 %v1040, %v1039
      %v1044 = vsel %vm752, %v931, 0
      %1046 = vmatprep.subr.bf16.mxu0 0
      %1047 = vmatpush1.bf16.msra.mxu0 %v1041
      %1048 = vmatprep.subr.bf16.mxu0 0
      %1049 = vmatpush1.bf16.msra.mxu0 0
      %1050 = vmatprep.subr.bf16.mxu0 0
      %1051 = vmatpush1.bf16.msra.mxu0 0
      %1052 = vmatprep.subr.bf16.mxu0 0
      %1053 = vmatpush1.bf16.msra.mxu0 0
      %1054 = vmatprep.subr.bf16.mxu0 0
      %1055 = vmatpush1.bf16.msra.mxu0 0
      %1056 = vmatprep.subr.bf16.mxu0 0
      %1057 = vmatpush1.bf16.msra.mxu0 0
      %1058 = vmatprep.subr.bf16.mxu0 0
      %1059 = vmatpush1.bf16.msra.mxu0 0
      %1060 = vmatprep.subr.bf16.mxu0 0
      %1061 = vmatpush1.bf16.msra.mxu0 0
      %1062 = vmatprep.subr.bf16.mxu0 0
      %1063 = vmatpush1.bf16.msra.mxu0 0
      %1064 = vmatprep.subr.bf16.mxu0 0
      %1065 = vmatpush1.bf16.msra.mxu0 0
      %1066 = vmatprep.subr.bf16.mxu0 0
      %1067 = vmatpush1.bf16.msra.mxu0 0
      %1068 = vmatprep.subr.bf16.mxu0 0
      %1069 = vmatpush1.bf16.msra.mxu0 0
      %1070 = vmatprep.subr.bf16.mxu0 0
      %1071 = vmatpush1.bf16.msra.mxu0 0
      %1072 = vmatprep.subr.bf16.mxu0 0
      %1073 = vmatpush1.bf16.msra.mxu0 0
      %1074 = vmatprep.subr.bf16.mxu0 0
      %1075 = vmatpush1.bf16.msra.mxu0 0
      %1076 = vmatprep.subr.bf16.mxu0 0
      %1077 = vmatpush1.bf16.msra.mxu0 0
      %1078 = vmatprep.mubr.bf16.mxu0 0
      %1079 = vmatmul.mubr.bf16.gmra.mrb[0].mxu0 %v1044
      %v1080 = vpop.f32.mrb[0].mxu0
      %v1081 = vadd.f32 0.0, %v1080
      %v1082 = vpop.f32.mrb[0].mxu0
      %v1083 = vpop.f32.mrb[0].mxu0
      %v1084 = vadd.f32 0.0, %v1083
      %v1085 = vpop.f32.mrb[0].mxu0
      %1086 = vdwg.mxu0
      %v1089 = vunpack.c.l.b16 %v285
      %v1090 = vunpack.c.l.b16 %v286
      %v1091 = vpack.c.b16 %v1090, %v1089
      %v1094 = vsel %vm752, %v932, 0
      %1096 = vmatprep.subr.bf16.mxu0 0
      %1097 = vmatpush1.bf16.msra.mxu0 %v1091
      %1098 = vmatprep.subr.bf16.mxu0 0
      %1099 = vmatpush1.bf16.msra.mxu0 0
      %1100 = vmatprep.subr.bf16.mxu0 0
      %1101 = vmatpush1.bf16.msra.mxu0 0
      %1102 = vmatprep.subr.bf16.mxu0 0
      %1103 = vmatpush1.bf16.msra.mxu0 0
      %1104 = vmatprep.subr.bf16.mxu0 0
      %1105 = vmatpush1.bf16.msra.mxu0 0
      %1106 = vmatprep.subr.bf16.mxu0 0
      %1107 = vmatpush1.bf16.msra.mxu0 0
      %1108 = vmatprep.subr.bf16.mxu0 0
      %1109 = vmatpush1.bf16.msra.mxu0 0
      %1110 = vmatprep.subr.bf16.mxu0 0
      %1111 = vmatpush1.bf16.msra.mxu0 0
      %1112 = vmatprep.subr.bf16.mxu0 0
      %1113 = vmatpush1.bf16.msra.mxu0 0
      %1114 = vmatprep.subr.bf16.mxu0 0
      %1115 = vmatpush1.bf16.msra.mxu0 0
      %1116 = vmatprep.subr.bf16.mxu0 0
      %1117 = vmatpush1.bf16.msra.mxu0 0
      %1118 = vmatprep.subr.bf16.mxu0 0
      %1119 = vmatpush1.bf16.msra.mxu0 0
      %1120 = vmatprep.subr.bf16.mxu0 0
      %1121 = vmatpush1.bf16.msra.mxu0 0
      %1122 = vmatprep.subr.bf16.mxu0 0
      %1123 = vmatpush1.bf16.msra.mxu0 0
      %1124 = vmatprep.subr.bf16.mxu0 0
      %1125 = vmatpush1.bf16.msra.mxu0 0
      %1126 = vmatprep.subr.bf16.mxu0 0
      %1127 = vmatpush1.bf16.msra.mxu0 0
      %1128 = vmatprep.mubr.bf16.mxu0 0
      %1129 = vmatmul.mubr.bf16.gmra.mrb[0].mxu0 %v1094
      %v1130 = vpop.f32.mrb[0].mxu0
      %v1131 = vadd.f32 0.0, %v1130
      %v1132 = vpop.f32.mrb[0].mxu0
      %v1133 = vpop.f32.mrb[0].mxu0
      %v1134 = vadd.f32 0.0, %v1133
      %v1135 = vpop.f32.mrb[0].mxu0
      %1136 = vdwg.mxu0
      %v1139 = vunpack.c.l.b16 %v287
      %v1140 = vunpack.c.l.b16 %v288
      %v1141 = vpack.c.b16 %v1140, %v1139
      %v1144 = vsel %vm752, %v933, 0
      %1146 = vmatprep.subr.bf16.mxu0 0
      %1147 = vmatpush1.bf16.msra.mxu0 %v1141
      %1148 = vmatprep.subr.bf16.mxu0 0
      %1149 = vmatpush1.bf16.msra.mxu0 0
      %1150 = vmatprep.subr.bf16.mxu0 0
      %1151 = vmatpush1.bf16.msra.mxu0 0
      %1152 = vmatprep.subr.bf16.mxu0 0
      %1153 = vmatpush1.bf16.msra.mxu0 0
      %1154 = vmatprep.subr.bf16.mxu0 0
      %1155 = vmatpush1.bf16.msra.mxu0 0
      %1156 = vmatprep.subr.bf16.mxu0 0
      %1157 = vmatpush1.bf16.msra.mxu0 0
      %1158 = vmatprep.subr.bf16.mxu0 0
      %1159 = vmatpush1.bf16.msra.mxu0 0
      %1160 = vmatprep.subr.bf16.mxu0 0
      %1161 = vmatpush1.bf16.msra.mxu0 0
      %1162 = vmatprep.subr.bf16.mxu0 0
      %1163 = vmatpush1.bf16.msra.mxu0 0
      %1164 = vmatprep.subr.bf16.mxu0 0
      %1165 = vmatpush1.bf16.msra.mxu0 0
      %1166 = vmatprep.subr.bf16.mxu0 0
      %1167 = vmatpush1.bf16.msra.mxu0 0
      %1168 = vmatprep.subr.bf16.mxu0 0
      %1169 = vmatpush1.bf16.msra.mxu0 0
      %1170 = vmatprep.subr.bf16.mxu0 0
      %1171 = vmatpush1.bf16.msra.mxu0 0
      %1172 = vmatprep.subr.bf16.mxu0 0
      %1173 = vmatpush1.bf16.msra.mxu0 0
      %1174 = vmatprep.subr.bf16.mxu0 0
      %1175 = vmatpush1.bf16.msra.mxu0 0
      %1176 = vmatprep.subr.bf16.mxu0 0
      %1177 = vmatpush1.bf16.msra.mxu0 0
      %1178 = vmatprep.mubr.bf16.mxu0 0
      %1179 = vmatmul.mubr.bf16.gmra.mrb[0].mxu0 %v1144
      %v1180 = vpop.f32.mrb[0].mxu0
      %v1181 = vadd.f32 0.0, %v1180
      %v1182 = vpop.f32.mrb[0].mxu0
      %v1183 = vpop.f32.mrb[0].mxu0
      %v1184 = vadd.f32 0.0, %v1183
      %v1185 = vpop.f32.mrb[0].mxu0
      %1186 = vdwg.mxu0
      %v1189 = vunpack.c.l.b16 %v289
      %v1190 = vunpack.c.l.b16 %v290
      %v1191 = vpack.c.b16 %v1190, %v1189
      %v1194 = vsel %vm752, %v934, 0
      %1196 = vmatprep.subr.bf16.mxu0 0
      %1197 = vmatpush1.bf16.msra.mxu0 %v1191
      %1198 = vmatprep.subr.bf16.mxu0 0
      %1199 = vmatpush1.bf16.msra.mxu0 0
      %1200 = vmatprep.subr.bf16.mxu0 0
      %1201 = vmatpush1.bf16.msra.mxu0 0
      %1202 = vmatprep.subr.bf16.mxu0 0
      %1203 = vmatpush1.bf16.msra.mxu0 0
      %1204 = vmatprep.subr.bf16.mxu0 0
      %1205 = vmatpush1.bf16.msra.mxu0 0
      %1206 = vmatprep.subr.bf16.mxu0 0
      %1207 = vmatpush1.bf16.msra.mxu0 0
      %1208 = vmatprep.subr.bf16.mxu0 0
      %1209 = vmatpush1.bf16.msra.mxu0 0
      %1210 = vmatprep.subr.bf16.mxu0 0
      %1211 = vmatpush1.bf16.msra.mxu0 0
      %1212 = vmatprep.subr.bf16.mxu0 0
      %1213 = vmatpush1.bf16.msra.mxu0 0
      %1214 = vmatprep.subr.bf16.mxu0 0
      %1215 = vmatpush1.bf16.msra.mxu0 0
      %1216 = vmatprep.subr.bf16.mxu0 0
      %1217 = vmatpush1.bf16.msra.mxu0 0
      %1218 = vmatprep.subr.bf16.mxu0 0
      %1219 = vmatpush1.bf16.msra.mxu0 0
      %1220 = vmatprep.subr.bf16.mxu0 0
      %1221 = vmatpush1.bf16.msra.mxu0 0
      %1222 = vmatprep.subr.bf16.mxu0 0
      %1223 = vmatpush1.bf16.msra.mxu0 0
      %1224 = vmatprep.subr.bf16.mxu0 0
      %1225 = vmatpush1.bf16.msra.mxu0 0
      %1226 = vmatprep.subr.bf16.mxu0 0
      %1227 = vmatpush1.bf16.msra.mxu0 0
      %1228 = vmatprep.mubr.bf16.mxu0 0
      %1229 = vmatmul.mubr.bf16.gmra.mrb[0].mxu0 %v1194
      %v1230 = vpop.f32.mrb[0].mxu0
      %v1231 = vadd.f32 0.0, %v1230
      %v1232 = vpop.f32.mrb[0].mxu0
      %v1233 = vpop.f32.mrb[0].mxu0
      %v1234 = vadd.f32 0.0, %v1233
      %v1235 = vpop.f32.mrb[0].mxu0
      %1236 = vdwg.mxu0
      %v1239 = vunpack.c.l.b16 %v291
      %v1240 = vunpack.c.l.b16 %v292
      %v1241 = vpack.c.b16 %v1240, %v1239
      %v1244 = vsel %vm752, %v935, 0
      %1246 = vmatprep.subr.bf16.mxu0 0
      %1247 = vmatpush1.bf16.msra.mxu0 %v1241
      %1248 = vmatprep.subr.bf16.mxu0 0
      %1249 = vmatpush1.bf16.msra.mxu0 0
      %1250 = vmatprep.subr.bf16.mxu0 0
      %1251 = vmatpush1.bf16.msra.mxu0 0
      %1252 = vmatprep.subr.bf16.mxu0 0
      %1253 = vmatpush1.bf16.msra.mxu0 0
      %1254 = vmatprep.subr.bf16.mxu0 0
      %1255 = vmatpush1.bf16.msra.mxu0 0
      %1256 = vmatprep.subr.bf16.mxu0 0
      %1257 = vmatpush1.bf16.msra.mxu0 0
      %1258 = vmatprep.subr.bf16.mxu0 0
      %1259 = vmatpush1.bf16.msra.mxu0 0
      %1260 = vmatprep.subr.bf16.mxu0 0
      %1261 = vmatpush1.bf16.msra.mxu0 0
      %1262 = vmatprep.subr.bf16.mxu0 0
      %1263 = vmatpush1.bf16.msra.mxu0 0
      %1264 = vmatprep.subr.bf16.mxu0 0
      %1265 = vmatpush1.bf16.msra.mxu0 0
      %1266 = vmatprep.subr.bf16.mxu0 0
      %1267 = vmatpush1.bf16.msra.mxu0 0
      %1268 = vmatprep.subr.bf16.mxu0 0
      %1269 = vmatpush1.bf16.msra.mxu0 0
      %1270 = vmatprep.subr.bf16.mxu0 0
      %1271 = vmatpush1.bf16.msra.mxu0 0
      %1272 = vmatprep.subr.bf16.mxu0 0
      %1273 = vmatpush1.bf16.msra.mxu0 0
      %1274 = vmatprep.subr.bf16.mxu0 0
      %1275 = vmatpush1.bf16.msra.mxu0 0
      %1276 = vmatprep.subr.bf16.mxu0 0
      %1277 = vmatpush1.bf16.msra.mxu0 0
      %1278 = vmatprep.mubr.bf16.mxu0 0
      %1279 = vmatmul.mubr.bf16.gmra.mrb[0].mxu0 %v1244
      %v1280 = vpop.f32.mrb[0].mxu0
      %v1281 = vadd.f32 0.0, %v1280
      %v1282 = vpop.f32.mrb[0].mxu0
      %v1283 = vpop.f32.mrb[0].mxu0
      %v1284 = vadd.f32 0.0, %v1283
      %v1285 = vpop.f32.mrb[0].mxu0
      %1286 = vdwg.mxu0
      %v1289 = vunpack.c.l.b16 %v293
      %v1290 = vunpack.c.l.b16 %v294
      %v1291 = vpack.c.b16 %v1290, %v1289
      %v1294 = vsel %vm752, %v936, 0
      %1296 = vmatprep.subr.bf16.mxu0 0
      %1297 = vmatpush1.bf16.msra.mxu0 %v1291
      %1298 = vmatprep.subr.bf16.mxu0 0
      %1299 = vmatpush1.bf16.msra.mxu0 0
      %1300 = vmatprep.subr.bf16.mxu0 0
      %1301 = vmatpush1.bf16.msra.mxu0 0
      %1302 = vmatprep.subr.bf16.mxu0 0
      %1303 = vmatpush1.bf16.msra.mxu0 0
      %1304 = vmatprep.subr.bf16.mxu0 0
      %1305 = vmatpush1.bf16.msra.mxu0 0
      %1306 = vmatprep.subr.bf16.mxu0 0
      %1307 = vmatpush1.bf16.msra.mxu0 0
      %1308 = vmatprep.subr.bf16.mxu0 0
      %1309 = vmatpush1.bf16.msra.mxu0 0
      %1310 = vmatprep.subr.bf16.mxu0 0
      %1311 = vmatpush1.bf16.msra.mxu0 0
      %1312 = vmatprep.subr.bf16.mxu0 0
      %1313 = vmatpush1.bf16.msra.mxu0 0
      %1314 = vmatprep.subr.bf16.mxu0 0
      %1315 = vmatpush1.bf16.msra.mxu0 0
      %1316 = vmatprep.subr.bf16.mxu0 0
      %1317 = vmatpush1.bf16.msra.mxu0 0
      %1318 = vmatprep.subr.bf16.mxu0 0
      %1319 = vmatpush1.bf16.msra.mxu0 0
      %1320 = vmatprep.subr.bf16.mxu0 0
      %1321 = vmatpush1.bf16.msra.mxu0 0
      %1322 = vmatprep.subr.bf16.mxu0 0
      %1323 = vmatpush1.bf16.msra.mxu0 0
      %1324 = vmatprep.subr.bf16.mxu0 0
      %1325 = vmatpush1.bf16.msra.mxu0 0
      %1326 = vmatprep.subr.bf16.mxu0 0
      %1327 = vmatpush1.bf16.msra.mxu0 0
      %1328 = vmatprep.mubr.bf16.mxu0 0
      %1329 = vmatmul.mubr.bf16.gmra.mrb[0].mxu0 %v1294
      %v1330 = vpop.f32.mrb[0].mxu0
      %v1331 = vadd.f32 0.0, %v1330
      %v1332 = vpop.f32.mrb[0].mxu0
      %v1333 = vpop.f32.mrb[0].mxu0
      %v1334 = vadd.f32 0.0, %v1333
      %v1335 = vpop.f32.mrb[0].mxu0
      %1336 = vdwg.mxu0
      %v1337 = vpack.c.bf16 %v984, %v981
      %v1338 = vpack.c.bf16 %v1034, %v1031
      %v1339 = vpack.c.bf16 %v1084, %v1081
      %v1340 = vpack.c.bf16 %v1134, %v1131
      %v1341 = vpack.c.bf16 %v1184, %v1181
      %v1342 = vpack.c.bf16 %v1234, %v1231
      %v1343 = vpack.c.bf16 %v1284, %v1281
      %v1344 = vpack.c.bf16 %v1334, %v1331
      %v1353 = vunpack.c.l.b16 %v1337
      %v1354 = vunpack.c.h.b16 %v1337
      %v1355 = vunpack.c.l.b16 %v1338
      %v1356 = vunpack.c.h.b16 %v1338
      %v1357 = vunpack.c.l.b16 %v1339
      %v1358 = vunpack.c.h.b16 %v1339
      %v1359 = vunpack.c.l.b16 %v1340
      %v1360 = vunpack.c.h.b16 %v1340
      %v1361 = vunpack.c.l.b16 %v1341
      %v1362 = vunpack.c.h.b16 %v1341
      %v1363 = vunpack.c.l.b16 %v1342
      %v1364 = vunpack.c.h.b16 %v1342
      %v1365 = vunpack.c.l.b16 %v1343
      %v1366 = vunpack.c.h.b16 %v1343
      %v1367 = vunpack.c.l.b16 %v1344
      %v1368 = vunpack.c.h.b16 %v1344
      %v1369 = vpack.c.b16 %v1353, %v1353
      %v1370 = vpack.c.b16 %v1354, %v1354
      %v1371 = vpack.c.b16 %v1355, %v1355
      %v1372 = vpack.c.b16 %v1356, %v1356
      %v1373 = vpack.c.b16 %v1357, %v1357
      %v1374 = vpack.c.b16 %v1358, %v1358
      %v1375 = vpack.c.b16 %v1359, %v1359
      %v1376 = vpack.c.b16 %v1360, %v1360
      %v1377 = vpack.c.b16 %v1361, %v1361
      %v1378 = vpack.c.b16 %v1362, %v1362
      %v1379 = vpack.c.b16 %v1363, %v1363
      %v1380 = vpack.c.b16 %v1364, %v1364
      %v1381 = vpack.c.b16 %v1365, %v1365
      %v1382 = vpack.c.b16 %v1366, %v1366
      %v1383 = vpack.c.b16 %v1367, %v1367
      %v1384 = vpack.c.b16 %v1368, %v1368
      %vm1401 = vcmask 257024
      %1402 = vst.msk [vmem:[%s227] sm:$0xf] %vm1401, %v1369
      %1403 = vst.msk [vmem:[%s227 + $0x4] sm:$0xf] %vm1401, %v1370
      %1404 = vst.msk [vmem:[%s227 + $0x8] sm:$0xf] %vm1401, %v1371
      %1405 = vst.msk [vmem:[%s227 + $0xc] sm:$0xf] %vm1401, %v1372
      %1406 = vst.msk [vmem:[%s227 + $0x10] sm:$0xf] %vm1401, %v1373
      %1407 = vst.msk [vmem:[%s227 + $0x14] sm:$0xf] %vm1401, %v1374
      %1408 = vst.msk [vmem:[%s227 + $0x18] sm:$0xf] %vm1401, %v1375
      %1409 = vst.msk [vmem:[%s227 + $0x1c] sm:$0xf] %vm1401, %v1376
      %1410 = vst.msk [vmem:[%s227 + $0x20] sm:$0xf] %vm1401, %v1377
      %1411 = vst.msk [vmem:[%s227 + $0x24] sm:$0xf] %vm1401, %v1378
      %1412 = vst.msk [vmem:[%s227 + $0x28] sm:$0xf] %vm1401, %v1379
      %1413 = vst.msk [vmem:[%s227 + $0x2c] sm:$0xf] %vm1401, %v1380
      %1414 = vst.msk [vmem:[%s227 + $0x30] sm:$0xf] %vm1401, %v1381
      %1415 = vst.msk [vmem:[%s227 + $0x34] sm:$0xf] %vm1401, %v1382
      %1416 = vst.msk [vmem:[%s227 + $0x38] sm:$0xf] %vm1401, %v1383
      %1417 = vst.msk [vmem:[%s227 + $0x3c] sm:$0xf] %vm1401, %v1384
      %s1418 = smul.u32 8, %s14
      %p1419 = scmp.lt.s32.totalorder %s1418, 31
      %s1420 = scalar_select %p1419, %s1418, 31
      %s1421 = smul.addr %s1420, 2
      %s1422 = smul.addr %s1421, 4
      %s1423 = scalar_lea.vmem %s3, %s1422
      // Predicated region
      $region33: #{gmrw_forward.24} parent=31 // pred_check
        %p1424 = pneg %p110
      $region34: #{gmrw_forward.24} parent=31 // pred_check_branch
        %1426 = sbr.rel (%p1424) target = $region36
      $region35: #{gmrw_forward.24} parent=31 // pred_region
        %s1427 = smul.u32 8, %s14
      $region36: #{gmrw_forward.24} parent=31 // pred_fallthru
        _
    $region32: #{gmrw_forward.24} parent=5 // pred_fallthru
      _
    %p1428 = scmp.le.s32.totalorder 2, %s9
    // Predicated region
    $region37: #{gmrw_forward.24} parent=5 // pred_check
      %p1429 = pneg %p1428
    $region38: #{gmrw_forward.24} parent=5 // pred_check_branch
      %1431 = sbr.rel (%p1429) target = $region40
    $region39: #{gmrw_forward.24} parent=5 // pred_region
      %s1432 = ssub.s32 %s9, 2
      // Predicated region
      $region41: #{gmrw_forward.24} parent=39 // pred_check
        %p1433 = pneg %p116
      $region42: #{gmrw_forward.24} parent=39 // pred_check_branch
        %1435 = sbr.rel (%p1433) target = $region44
      $region43: #{gmrw_forward.24} parent=39 // pred_region
        %s1436 = smul.u32 8, %s15
        %p1437 = scmp.lt.s32.totalorder %s1436, 31
        %s1438 = scalar_select %p1437, %s1436, 31
        %s1439 = smul.addr %s1438, 2
        %s1440 = smul.addr %s1439, 4
        %s1441 = scalar_lea.vmem %s3, %s1440
      $region44: #{gmrw_forward.24} parent=39 // pred_fallthru
        _
    $region40: #{gmrw_forward.24} parent=5 // pred_fallthru
      _
  $region6: #{gmrw_forward.24} parent=0 // loop_footer
    %s13 = sadd.s32 1, %s9
  $region7: #{gmrw_forward.24} parent=0 // loop_footer_branch
    %8 = sbr.rel target = $region3
  $region8: #{gmrw_forward.24} parent=0 // loop_exit
    _

// kernel: gmrw_forward.25
$region0: #{gmrw_forward.25}
  #allocation0 [shape = 'u32[]', space=smem, size = 0x4, offset = 0x4, fixed_abs, tag = 'smem constant byte address 0x4 - core index']
  #allocation1 [shape = 'u32[144,128]{1,0:T(1,128)}', space=vmem, size = 0x12000, scoped, tag = 'internal scratch']
  %s0 = inlined_call_operand.vmem [shape: bf16[512,32], index: 0, kind: input, shape index: {}]
  %s1 = inlined_call_operand.vmem [shape: bf16[32,32], index: 1, kind: input, shape index: {}]
  %s2 = inlined_call_operand.vmem [shape: f32[1,32], index: 2, kind: input, shape index: {}]
  %s3 = inlined_call_operand.vmem [shape: f32[1,32], index: 3, kind: input, shape index: {}]
  %s4 = inlined_call_operand.vmem [shape: f32[1,32], index: 4, kind: input, shape index: {}]
  %s5 = inlined_call_operand.vmem [shape: bf16[512,32], index: 5, kind: output, shape index: {}]
  %s6 = sld [smem:[#allocation0]]
  $region53: #{gmrw_forward.25} parent=0
    _
  %s8 = ssub.s32 1, %s6
  %s9 = scalar_select 0, %s8, %s6
  loop: start=0, step=1, limit=6
  $region2: #{gmrw_forward.25} parent=0 // loop_pre_header
    _
  $region3: #{gmrw_forward.25} parent=0 // loop_header
    %s11 = sphi 0, %s15
    %p12 = scmp.ge.s32.totalorder %s11, 6
    %s21 = sphi 0, %s23
    %s24 = sphi 0, %s21
    %s25 = sphi 0, %s24
    %s41 = sphi 0, %s25
    %s45 = sphi 0, %s45
    %s47 = sphi 0, %s45
    %s48 = sphi 0, %s47
    %s62 = sphi 0, %s48
    %s66 = sphi 0, %s66
    %s68 = sphi 0, %s66
    %s69 = sphi 0, %s68
    %s83 = sphi 0, %s69
    %s87 = sphi 0, %s87
    %s89 = sphi 0, %s87
    %s90 = sphi 0, %s89
    %s104 = sphi 0, %s90
    %s108 = sphi 0, %s108
    %s110 = sphi 0, %s108
    %s111 = sphi 0, %s110
    %s125 = sphi 0, %s111
    %s131 = sphi 0, %s133
    %s134 = sphi 0, %s131
    %s135 = sphi 0, %s134
    %s151 = sphi 0, %s135
  $region4: #{gmrw_forward.25} parent=0 // loop_header_branch
    %14 = sbr.rel (%p12) target = $region8
  $region5: #{gmrw_forward.25} parent=0 // loop_body
    %s16 = ssub.s32 %s11, 1
    %s17 = ssub.s32 %s11, 2
    %s18 = sadd.s32 %s11, 1
    %s19 = ssub.s32 %s11, %s18
    %p20 = scmp.eq.s32.totalorder %s19, 0
    %s22 = sadd.s32 %s21, 1
    %s23 = scalar_select %p20, %s21, %s22
    %p26 = pneg %p20
    %p27 = scmp.eq.s32.totalorder %s11, 3
    %p28 = por %p26, %p27
    %p29 = scmp.ne.s32.totalorder %s21, %s24
    %p30 = scmp.eq.s32.totalorder %s11, 0
    %p31 = por %p29, %p30
    %p32 = scmp.ne.s32.totalorder %s21, %s24
    %p33 = scmp.eq.s32.totalorder %s16, 3
    %p34 = por %p32, %p33
    %p35 = scmp.ne.s32.totalorder %s24, %s25
    %p36 = scmp.eq.s32.totalorder %s16, 0
    %p37 = por %p35, %p36
    %p38 = scmp.ne.s32.totalorder %s24, %s25
    %p39 = scmp.eq.s32.totalorder %s17, 3
    %p40 = por %p38, %p39
    %p42 = scmp.ne.s32.totalorder %s25, %s41
    %p43 = scmp.eq.s32.totalorder %s17, 0
    %p44 = por %p42, %p43
    %s46 = sadd.s32 %s45, 1
    %p49 = scmp.eq.s32.totalorder %s11, 3
    %p50 = scmp.ne.s32.totalorder %s45, %s47
    %p51 = scmp.eq.s32.totalorder %s11, 0
    %p52 = por %p50, %p51
    %p53 = scmp.ne.s32.totalorder %s45, %s47
    %p54 = scmp.eq.s32.totalorder %s16, 3
    %p55 = por %p53, %p54
    %p56 = scmp.ne.s32.totalorder %s47, %s48
    %p57 = scmp.eq.s32.totalorder %s16, 0
    %p58 = por %p56, %p57
    %p59 = scmp.ne.s32.totalorder %s47, %s48
    %p60 = scmp.eq.s32.totalorder %s17, 3
    %p61 = por %p59, %p60
    %p63 = scmp.ne.s32.totalorder %s48, %s62
    %p64 = scmp.eq.s32.totalorder %s17, 0
    %p65 = por %p63, %p64
    %s67 = sadd.s32 %s66, 1
    %p70 = scmp.eq.s32.totalorder %s11, 3
    %p71 = scmp.ne.s32.totalorder %s66, %s68
    %p72 = scmp.eq.s32.totalorder %s11, 0
    %p73 = por %p71, %p72
    %p74 = scmp.ne.s32.totalorder %s66, %s68
    %p75 = scmp.eq.s32.totalorder %s16, 3
    %p76 = por %p74, %p75
    %p77 = scmp.ne.s32.totalorder %s68, %s69
    %p78 = scmp.eq.s32.totalorder %s16, 0
    %p79 = por %p77, %p78
    %p80 = scmp.ne.s32.totalorder %s68, %s69
    %p81 = scmp.eq.s32.totalorder %s17, 3
    %p82 = por %p80, %p81
    %p84 = scmp.ne.s32.totalorder %s69, %s83
    %p85 = scmp.eq.s32.totalorder %s17, 0
    %p86 = por %p84, %p85
    %s88 = sadd.s32 %s87, 1
    %p91 = scmp.eq.s32.totalorder %s11, 3
    %p92 = scmp.ne.s32.totalorder %s87, %s89
    %p93 = scmp.eq.s32.totalorder %s11, 0
    %p94 = por %p92, %p93
    %p95 = scmp.ne.s32.totalorder %s87, %s89
    %p96 = scmp.eq.s32.totalorder %s16, 3
    %p97 = por %p95, %p96
    %p98 = scmp.ne.s32.totalorder %s89, %s90
    %p99 = scmp.eq.s32.totalorder %s16, 0
    %p100 = por %p98, %p99
    %p101 = scmp.ne.s32.totalorder %s89, %s90
    %p102 = scmp.eq.s32.totalorder %s17, 3
    %p103 = por %p101, %p102
    %p105 = scmp.ne.s32.totalorder %s90, %s104
    %p106 = scmp.eq.s32.totalorder %s17, 0
    %p107 = por %p105, %p106
    %s109 = sadd.s32 %s108, 1
    %p112 = scmp.eq.s32.totalorder %s11, 3
    %p113 = scmp.ne.s32.totalorder %s108, %s110
    %p114 = scmp.eq.s32.totalorder %s11, 0
    %p115 = por %p113, %p114
    %p116 = scmp.ne.s32.totalorder %s108, %s110
    %p117 = scmp.eq.s32.totalorder %s16, 3
    %p118 = por %p116, %p117
    %p119 = scmp.ne.s32.totalorder %s110, %s111
    %p120 = scmp.eq.s32.totalorder %s16, 0
    %p121 = por %p119, %p120
    %p122 = scmp.ne.s32.totalorder %s110, %s111
    %p123 = scmp.eq.s32.totalorder %s17, 3
    %p124 = por %p122, %p123
    %p126 = scmp.ne.s32.totalorder %s111, %s125
    %p127 = scmp.eq.s32.totalorder %s17, 0
    %p128 = por %p126, %p127
    %s129 = ssub.s32 %s11, %s18
    %p130 = scmp.eq.s32.totalorder %s129, 0
    %s132 = sadd.s32 %s131, 1
    %s133 = scalar_select %p130, %s131, %s132
    %p136 = pneg %p130
    %p137 = scmp.eq.s32.totalorder %s11, 3
    %p138 = por %p136, %p137
    %p139 = scmp.ne.s32.totalorder %s131, %s134
    %p140 = scmp.eq.s32.totalorder %s11, 0
    %p141 = por %p139, %p140
    %p142 = scmp.ne.s32.totalorder %s131, %s134
    %p143 = scmp.eq.s32.totalorder %s16, 3
    %p144 = por %p142, %p143
    %p145 = scmp.ne.s32.totalorder %s134, %s135
    %p146 = scmp.eq.s32.totalorder %s16, 0
    %p147 = por %p145, %p146
    %p148 = scmp.ne.s32.totalorder %s134, %s135
    %p149 = scmp.eq.s32.totalorder %s17, 3
    %p150 = por %p148, %p149
    %p152 = scmp.ne.s32.totalorder %s135, %s151
    %p153 = scmp.eq.s32.totalorder %s17, 0
    %p154 = por %p152, %p153
    %p155 = scmp.le.s32.totalorder 1, %s11
    %p156 = scmp.lt.s32.totalorder %s11, 5
    %p157 = pnand %p155, %p156
    %p158 = pneg %p157
    // Predicated region
    $region9: #{gmrw_forward.25} parent=5 // pred_check
      _
    $region10: #{gmrw_forward.25} parent=5 // pred_check_branch
      %160 = sbr.rel (%p157) target = $region12
    $region11: #{gmrw_forward.25} parent=5 // pred_region
      %s161 = ssub.s32 %s11, 1
      // Predicated region
      $region13: #{gmrw_forward.25} parent=11 // pred_check
        %p162 = pneg %p58
      $region14: #{gmrw_forward.25} parent=11 // pred_check_branch
        %164 = sbr.rel (%p162) target = $region16
      $region15: #{gmrw_forward.25} parent=11 // pred_region
        _
      $region16: #{gmrw_forward.25} parent=11 // pred_fallthru
        _
      // Predicated region
      $region17: #{gmrw_forward.25} parent=11 // pred_check
        %p165 = pneg %p79
      $region18: #{gmrw_forward.25} parent=11 // pred_check_branch
        %167 = sbr.rel (%p165) target = $region20
      $region19: #{gmrw_forward.25} parent=11 // pred_region
        _
      $region20: #{gmrw_forward.25} parent=11 // pred_fallthru
        _
      // Predicated region
      $region21: #{gmrw_forward.25} parent=11 // pred_check
        %p168 = pneg %p100
      $region22: #{gmrw_forward.25} parent=11 // pred_check_branch
        %170 = sbr.rel (%p168) target = $region24
      $region23: #{gmrw_forward.25} parent=11 // pred_region
        _
      $region24: #{gmrw_forward.25} parent=11 // pred_fallthru
        _
      // Predicated region
      $region25: #{gmrw_forward.25} parent=11 // pred_check
        %p171 = pneg %p121
      $region26: #{gmrw_forward.25} parent=11 // pred_check_branch
        %173 = sbr.rel (%p171) target = $region28
      $region27: #{gmrw_forward.25} parent=11 // pred_region
        _
      $region28: #{gmrw_forward.25} parent=11 // pred_fallthru
        _
    $region12: #{gmrw_forward.25} parent=5 // pred_fallthru
      _
    %p174 = scmp.lt.s32.totalorder %s11, 4
    // Predicated region
    $region29: #{gmrw_forward.25} parent=5 // pred_check
      %p175 = pneg %p174
    $region30: #{gmrw_forward.25} parent=5 // pred_check_branch
      %177 = sbr.rel (%p175) target = $region32
    $region31: #{gmrw_forward.25} parent=5 // pred_region
      // Predicated region
      $region33: #{gmrw_forward.25} parent=31 // pred_check
        %p178 = pneg %p31
      $region34: #{gmrw_forward.25} parent=31 // pred_check_branch
        %180 = sbr.rel (%p178) target = $region36
      $region35: #{gmrw_forward.25} parent=31 // pred_region
        %s181 = smul.u32 16, %s11
        %p182 = scmp.lt.s32.totalorder %s181, 63
        %s183 = scalar_select %p182, %s181, 63
        %s184 = smul.addr %s183, 4
        %s185 = scalar_lea.vmem %s0, %s184
        %s186 = smul.u32 16, %s11
      $region36: #{gmrw_forward.25} parent=31 // pred_fallthru
        _
    $region32: #{gmrw_forward.25} parent=5 // pred_fallthru
      _
    %p187 = scmp.le.s32.totalorder 1, %s11
    %p188 = scmp.lt.s32.totalorder %s11, 5
    %p189 = pnand %p187, %p188
    %p190 = pneg %p189
    // Predicated region
    $region37: #{gmrw_forward.25} parent=5 // pred_check
      _
    $region38: #{gmrw_forward.25} parent=5 // pred_check_branch
      %192 = sbr.rel (%p189) target = $region40
    $region39: #{gmrw_forward.25} parent=5 // pred_region
      %s193 = ssub.s32 %s11, 1
      %s194 = smul.u32 16, %s16
      %p195 = scmp.lt.s32.totalorder %s194, 63
      %s196 = scalar_select %p195, %s194, 63
      %s197 = smul.addr %s196, 4
      %s198 = scalar_lea.vmem %s0, %s197
      %p199 = pneg %p37
      %p200 = pneg %p34
      %p201 = pneg %p58
      %p202 = pneg %p55
      %p203 = pneg %p79
      %p204 = pneg %p76
      %p205 = pneg %p100
      %p206 = pneg %p97
      %p207 = pneg %p121
      %p208 = pneg %p118
      %p209 = pneg %p147
      %p210 = pneg %p144
      %s211 = smul.u32 16, %s16
      %p212 = scmp.lt.s32.totalorder %s211, 63
      %s213 = scalar_select %p212, %s211, 63
      %s214 = smul.addr %s213, 4
      %s215 = scalar_lea.vmem %s5, %s214
      %s216 = smul.u32 16, %s16
      %p217 = scmp.lt.s32.totalorder %s216, 63
      %s218 = scalar_select %p217, %s216, 63
      %s219 = smul.addr %s218, 4
      %s220 = scalar_lea.vmem %s0, %s219
      %s221 = smul.u32 16, %s16
      %s222 = smul.u32 16, %s16
      %p223 = scmp.lt.s32.totalorder %s222, 63
      %s224 = scalar_select %p223, %s222, 63
      %s225 = smul.addr %s224, 4
      %s226 = scalar_lea.vmem %s5, %s225
      %s227 = smul.u32 16, %s16
      %v229 = vld [vmem:[%s220] sm:$0xf]
      %v230 = vld [vmem:[%s220 + $0x4] sm:$0xf]
      %v231 = vld [vmem:[%s220 + $0x8] sm:$0xf]
      %v232 = vld [vmem:[%s220 + $0xc] sm:$0xf]
      %v233 = vld [vmem:[%s220 + $0x10] sm:$0xf]
      %v234 = vld [vmem:[%s220 + $0x14] sm:$0xf]
      %v235 = vld [vmem:[%s220 + $0x18] sm:$0xf]
      %v236 = vld [vmem:[%s220 + $0x1c] sm:$0xf]
      %v237 = vld [vmem:[%s220 + $0x20] sm:$0xf]
      %v238 = vld [vmem:[%s220 + $0x24] sm:$0xf]
      %v239 = vld [vmem:[%s220 + $0x28] sm:$0xf]
      %v240 = vld [vmem:[%s220 + $0x2c] sm:$0xf]
      %v241 = vld [vmem:[%s220 + $0x30] sm:$0xf]
      %v242 = vld [vmem:[%s220 + $0x34] sm:$0xf]
      %v243 = vld [vmem:[%s220 + $0x38] sm:$0xf]
      %v244 = vld [vmem:[%s220 + $0x3c] sm:$0xf]
      %v245 = vld [vmem:[%s1] sm:$0xf]
      %v246 = vld [vmem:[%s1 + $0x4] sm:$0xf]
      %v247 = vld [vmem:[%s1 + $0x8] sm:$0xf]
      %v248 = vld [vmem:[%s1 + $0xc] sm:$0xf]
      %v249 = vld [vmem:[%s2] sm:$0x1]
      %v251 = vlaneseq
      %v252 = vshrl.u32 %v251, 7
      %v253 = vsub.s32 0, %v252
      %v254 = vrot.slane %v249, %v253
      %v272 = vunpack.c.l.b16 %v229
      %v273 = vunpack.c.l.b16 %v230
      %v274 = vunpack.c.l.b16 %v231
      %v275 = vunpack.c.l.b16 %v232
      %v276 = vunpack.c.l.b16 %v233
      %v277 = vunpack.c.l.b16 %v234
      %v278 = vunpack.c.l.b16 %v235
      %v279 = vunpack.c.l.b16 %v236
      %v280 = vunpack.c.l.b16 %v237
      %v281 = vunpack.c.l.b16 %v238
      %v282 = vunpack.c.l.b16 %v239
      %v283 = vunpack.c.l.b16 %v240
      %v284 = vunpack.c.l.b16 %v241
      %v285 = vunpack.c.l.b16 %v242
      %v286 = vunpack.c.l.b16 %v243
      %v287 = vunpack.c.l.b16 %v244
      %v288 = vpack.c.b16 %v273, %v272
      %v289 = vpack.c.b16 %v275, %v274
      %v290 = vpack.c.b16 %v277, %v276
      %v291 = vpack.c.b16 %v279, %v278
      %v292 = vpack.c.b16 %v281, %v280
      %v293 = vpack.c.b16 %v283, %v282
      %v294 = vpack.c.b16 %v285, %v284
      %v295 = vpack.c.b16 %v287, %v286
      %v300 = vunpack.c.l.b16 %v245
      %v301 = vunpack.c.l.b16 %v246
      %v302 = vunpack.c.l.b16 %v247
      %v303 = vunpack.c.l.b16 %v248
      %v304 = vpack.c.b16 %v301, %v300
      %v305 = vpack.c.b16 %v303, %v302
      %vm308 = vcmask 261120
      %v310 = vsel %vm308, %v288, 0
      %v313 = vsel %vm308, %v289, 0
      %v316 = vsel %vm308, %v290, 0
      %v319 = vsel %vm308, %v291, 0
      %v322 = vsel %vm308, %v292, 0
      %v325 = vsel %vm308, %v293, 0
      %v328 = vsel %vm308, %v294, 0
      %v331 = vsel %vm308, %v295, 0
      %333 = vmatprep.subr.bf16.mxu0 0
      %334 = vmatpush1.bf16.msra.mxu0 %v304
      %335 = vmatprep.subr.bf16.mxu0 0
      %336 = vmatpush1.bf16.msra.mxu0 %v305
      %337 = vmatprep.subr.bf16.mxu0 0
      %338 = vmatpush1.bf16.msra.mxu0 0
      %339 = vmatprep.subr.bf16.mxu0 0
      %340 = vmatpush1.bf16.msra.mxu0 0
      %341 = vmatprep.subr.bf16.mxu0 0
      %342 = vmatpush1.bf16.msra.mxu0 0
      %343 = vmatprep.subr.bf16.mxu0 0
      %344 = vmatpush1.bf16.msra.mxu0 0
      %345 = vmatprep.subr.bf16.mxu0 0
      %346 = vmatpush1.bf16.msra.mxu0 0
      %347 = vmatprep.subr.bf16.mxu0 0
      %348 = vmatpush1.bf16.msra.mxu0 0
      %349 = vmatprep.subr.bf16.mxu0 0
      %350 = vmatpush1.bf16.msra.mxu0 0
      %351 = vmatprep.subr.bf16.mxu0 0
      %352 = vmatpush1.bf16.msra.mxu0 0
      %353 = vmatprep.subr.bf16.mxu0 0
      %354 = vmatpush1.bf16.msra.mxu0 0
      %355 = vmatprep.subr.bf16.mxu0 0
      %356 = vmatpush1.bf16.msra.mxu0 0
      %357 = vmatprep.subr.bf16.mxu0 0
      %358 = vmatpush1.bf16.msra.mxu0 0
      %359 = vmatprep.subr.bf16.mxu0 0
      %360 = vmatpush1.bf16.msra.mxu0 0
      %361 = vmatprep.subr.bf16.mxu0 0
      %362 = vmatpush1.bf16.msra.mxu0 0
      %363 = vmatprep.subr.bf16.mxu0 0
      %364 = vmatpush1.bf16.msra.mxu0 0
      %365 = vmatprep.mubr.bf16.mxu0 0
      %366 = vmatmul.mubr.bf16.gmra.mrb[0].mxu0 %v310
      %v367 = vpop.f32.mrb[0].mxu0
      %v368 = vadd.f32 %v254, %v367
      %v369 = vpop.f32.mrb[0].mxu0
      %v370 = vpop.f32.mrb[0].mxu0
      %v371 = vadd.f32 %v254, %v370
      %v372 = vpop.f32.mrb[0].mxu0
      %373 = vmatprep.mubr.bf16.mxu0 0
      %374 = vmatmul.mubr.bf16.gmra.mrb[0].mxu0 %v313
      %v375 = vpop.f32.mrb[0].mxu0
      %v376 = vadd.f32 %v254, %v375
      %v377 = vpop.f32.mrb[0].mxu0
      %v378 = vpop.f32.mrb[0].mxu0
      %v379 = vadd.f32 %v254, %v378
      %v380 = vpop.f32.mrb[0].mxu0
      %381 = vmatprep.mubr.bf16.mxu0 0
      %382 = vmatmul.mubr.bf16.gmra.mrb[0].mxu0 %v316
      %v383 = vpop.f32.mrb[0].mxu0
      %v384 = vadd.f32 %v254, %v383
      %v385 = vpop.f32.mrb[0].mxu0
      %v386 = vpop.f32.mrb[0].mxu0
      %v387 = vadd.f32 %v254, %v386
      %v388 = vpop.f32.mrb[0].mxu0
      %389 = vmatprep.mubr.bf16.mxu0 0
      %390 = vmatmul.mubr.bf16.gmra.mrb[0].mxu0 %v319
      %v391 = vpop.f32.mrb[0].mxu0
      %v392 = vadd.f32 %v254, %v391
      %v393 = vpop.f32.mrb[0].mxu0
      %v394 = vpop.f32.mrb[0].mxu0
      %v395 = vadd.f32 %v254, %v394
      %v396 = vpop.f32.mrb[0].mxu0
      %397 = vmatprep.mubr.bf16.mxu0 0
      %398 = vmatmul.mubr.bf16.gmra.mrb[0].mxu0 %v322
      %v399 = vpop.f32.mrb[0].mxu0
      %v400 = vadd.f32 %v254, %v399
      %v401 = vpop.f32.mrb[0].mxu0
      %v402 = vpop.f32.mrb[0].mxu0
      %v403 = vadd.f32 %v254, %v402
      %v404 = vpop.f32.mrb[0].mxu0
      %405 = vmatprep.mubr.bf16.mxu0 0
      %406 = vmatmul.mubr.bf16.gmra.mrb[0].mxu0 %v325
      %v407 = vpop.f32.mrb[0].mxu0
      %v408 = vadd.f32 %v254, %v407
      %v409 = vpop.f32.mrb[0].mxu0
      %v410 = vpop.f32.mrb[0].mxu0
      %v411 = vadd.f32 %v254, %v410
      %v412 = vpop.f32.mrb[0].mxu0
      %413 = vmatprep.mubr.bf16.mxu0 0
      %414 = vmatmul.mubr.bf16.gmra.mrb[0].mxu0 %v328
      %v415 = vpop.f32.mrb[0].mxu0
      %v416 = vadd.f32 %v254, %v415
      %v417 = vpop.f32.mrb[0].mxu0
      %v418 = vpop.f32.mrb[0].mxu0
      %v419 = vadd.f32 %v254, %v418
      %v420 = vpop.f32.mrb[0].mxu0
      %421 = vmatprep.mubr.bf16.mxu0 0
      %422 = vmatmul.mubr.bf16.gmra.mrb[0].mxu0 %v331
      %v423 = vpop.f32.mrb[0].mxu0
      %v424 = vadd.f32 %v254, %v423
      %v425 = vpop.f32.mrb[0].mxu0
      %v426 = vpop.f32.mrb[0].mxu0
      %v427 = vadd.f32 %v254, %v426
      %v428 = vpop.f32.mrb[0].mxu0
      %429 = vdwg.mxu0
      %v430 = vsel %vm308, %v368, 0.0
      %431 = vadd.xlane.f32.xlu0 %v430
      %v432 = vpop.xlane.xlu0 %431
      %v433 = vsel %vm308, %v371, 0.0
      %434 = vadd.xlane.f32.xlu0 %v433
      %v435 = vpop.xlane.xlu0 %434
      %v436 = vsel %vm308, %v376, 0.0
      %437 = vadd.xlane.f32.xlu0 %v436
      %v438 = vpop.xlane.xlu0 %437
      %v439 = vsel %vm308, %v379, 0.0
      %440 = vadd.xlane.f32.xlu0 %v439
      %v441 = vpop.xlane.xlu0 %440
      %v442 = vsel %vm308, %v384, 0.0
      %443 = vadd.xlane.f32.xlu0 %v442
      %v444 = vpop.xlane.xlu0 %443
      %v445 = vsel %vm308, %v387, 0.0
      %446 = vadd.xlane.f32.xlu0 %v445
      %v447 = vpop.xlane.xlu0 %446
      %v448 = vsel %vm308, %v392, 0.0
      %449 = vadd.xlane.f32.xlu0 %v448
      %v450 = vpop.xlane.xlu0 %449
      %v451 = vsel %vm308, %v395, 0.0
      %452 = vadd.xlane.f32.xlu0 %v451
      %v453 = vpop.xlane.xlu0 %452
      %v454 = vsel %vm308, %v400, 0.0
      %455 = vadd.xlane.f32.xlu0 %v454
      %v456 = vpop.xlane.xlu0 %455
      %v457 = vsel %vm308, %v403, 0.0
      %458 = vadd.xlane.f32.xlu0 %v457
      %v459 = vpop.xlane.xlu0 %458
      %v460 = vsel %vm308, %v408, 0.0
      %461 = vadd.xlane.f32.xlu0 %v460
      %v462 = vpop.xlane.xlu0 %461
      %v463 = vsel %vm308, %v411, 0.0
      %464 = vadd.xlane.f32.xlu0 %v463
      %v465 = vpop.xlane.xlu0 %464
      %v466 = vsel %vm308, %v416, 0.0
      %467 = vadd.xlane.f32.xlu0 %v466
      %v468 = vpop.xlane.xlu0 %467
      %v469 = vsel %vm308, %v419, 0.0
      %470 = vadd.xlane.f32.xlu0 %v469
      %v471 = vpop.xlane.xlu0 %470
      %v472 = vsel %vm308, %v424, 0.0
      %473 = vadd.xlane.f32.xlu0 %v472
      %v474 = vpop.xlane.xlu0 %473
      %v475 = vsel %vm308, %v427, 0.0
      %476 = vadd.xlane.f32.xlu0 %v475
      %v477 = vpop.xlane.xlu0 %476
      %v478 = vrcp.pop 32.0
      %v479 = vmul.f32 %v432, %v478
      %v480 = vmul.f32 %v435, %v478
      %v481 = vmul.f32 %v438, %v478
      %v482 = vmul.f32 %v441, %v478
      %v483 = vmul.f32 %v444, %v478
      %v484 = vmul.f32 %v447, %v478
      %v485 = vmul.f32 %v450, %v478
      %v486 = vmul.f32 %v453, %v478
      %v487 = vmul.f32 %v456, %v478
      %v488 = vmul.f32 %v459, %v478
      %v489 = vmul.f32 %v462, %v478
      %v490 = vmul.f32 %v465, %v478
      %v491 = vmul.f32 %v468, %v478
      %v492 = vmul.f32 %v471, %v478
      %v493 = vmul.f32 %v474, %v478
      %v494 = vmul.f32 %v477, %v478
      %v495 = vsub.f32 %v368, %v479
      %v496 = vsub.f32 %v371, %v480
      %v497 = vsub.f32 %v376, %v481
      %v498 = vsub.f32 %v379, %v482
      %v499 = vsub.f32 %v384, %v483
      %v500 = vsub.f32 %v387, %v484
      %v501 = vsub.f32 %v392, %v485
      %v502 = vsub.f32 %v395, %v486
      %v503 = vsub.f32 %v400, %v487
      %v504 = vsub.f32 %v403, %v488
      %v505 = vsub.f32 %v408, %v489
      %v506 = vsub.f32 %v411, %v490
      %v507 = vsub.f32 %v416, %v491
      %v508 = vsub.f32 %v419, %v492
      %v509 = vsub.f32 %v424, %v493
      %v510 = vsub.f32 %v427, %v494
      %v511 = vmul.f32 %v495, %v495
      %v512 = vmul.f32 %v496, %v496
      %v513 = vmul.f32 %v497, %v497
      %v514 = vmul.f32 %v498, %v498
      %v515 = vmul.f32 %v499, %v499
      %v516 = vmul.f32 %v500, %v500
      %v517 = vmul.f32 %v501, %v501
      %v518 = vmul.f32 %v502, %v502
      %v519 = vmul.f32 %v503, %v503
      %v520 = vmul.f32 %v504, %v504
      %v521 = vmul.f32 %v505, %v505
      %v522 = vmul.f32 %v506, %v506
      %v523 = vmul.f32 %v507, %v507
      %v524 = vmul.f32 %v508, %v508
      %v525 = vmul.f32 %v509, %v509
      %v526 = vmul.f32 %v510, %v510
      %v527 = vsel %vm308, %v511, 0.0
      %528 = vadd.xlane.f32.xlu0 %v527
      %v529 = vpop.xlane.xlu0 %528
      %v530 = vsel %vm308, %v512, 0.0
      %531 = vadd.xlane.f32.xlu0 %v530
      %v532 = vpop.xlane.xlu0 %531
      %v533 = vsel %vm308, %v513, 0.0
      %534 = vadd.xlane.f32.xlu0 %v533
      %v535 = vpop.xlane.xlu0 %534
      %v536 = vsel %vm308, %v514, 0.0
      %537 = vadd.xlane.f32.xlu0 %v536
      %v538 = vpop.xlane.xlu0 %537
      %v539 = vsel %vm308, %v515, 0.0
      %540 = vadd.xlane.f32.xlu0 %v539
      %v541 = vpop.xlane.xlu0 %540
      %v542 = vsel %vm308, %v516, 0.0
      %543 = vadd.xlane.f32.xlu0 %v542
      %v544 = vpop.xlane.xlu0 %543
      %v545 = vsel %vm308, %v517, 0.0
      %546 = vadd.xlane.f32.xlu0 %v545
      %v547 = vpop.xlane.xlu0 %546
      %v548 = vsel %vm308, %v518, 0.0
      %549 = vadd.xlane.f32.xlu0 %v548
      %v550 = vpop.xlane.xlu0 %549
      %v551 = vsel %vm308, %v519, 0.0
      %552 = vadd.xlane.f32.xlu0 %v551
      %v553 = vpop.xlane.xlu0 %552
      %v554 = vsel %vm308, %v520, 0.0
      %555 = vadd.xlane.f32.xlu0 %v554
      %v556 = vpop.xlane.xlu0 %555
      %v557 = vsel %vm308, %v521, 0.0
      %558 = vadd.xlane.f32.xlu0 %v557
      %v559 = vpop.xlane.xlu0 %558
      %v560 = vsel %vm308, %v522, 0.0
      %561 = vadd.xlane.f32.xlu0 %v560
      %v562 = vpop.xlane.xlu0 %561
      %v563 = vsel %vm308, %v523, 0.0
      %564 = vadd.xlane.f32.xlu0 %v563
      %v565 = vpop.xlane.xlu0 %564
      %v566 = vsel %vm308, %v524, 0.0
      %567 = vadd.xlane.f32.xlu0 %v566
      %v568 = vpop.xlane.xlu0 %567
      %v569 = vsel %vm308, %v525, 0.0
      %570 = vadd.xlane.f32.xlu0 %v569
      %v571 = vpop.xlane.xlu0 %570
      %v572 = vsel %vm308, %v526, 0.0
      %573 = vadd.xlane.f32.xlu0 %v572
      %v574 = vpop.xlane.xlu0 %573
      %v575 = vmul.f32 %v529, %v478
      %v576 = vmul.f32 %v532, %v478
      %v577 = vmul.f32 %v535, %v478
      %v578 = vmul.f32 %v538, %v478
      %v579 = vmul.f32 %v541, %v478
      %v580 = vmul.f32 %v544, %v478
      %v581 = vmul.f32 %v547, %v478
      %v582 = vmul.f32 %v550, %v478
      %v583 = vmul.f32 %v553, %v478
      %v584 = vmul.f32 %v556, %v478
      %v585 = vmul.f32 %v559, %v478
      %v586 = vmul.f32 %v562, %v478
      %v587 = vmul.f32 %v565, %v478
      %v588 = vmul.f32 %v568, %v478
      %v589 = vmul.f32 %v571, %v478
      %v590 = vmul.f32 %v574, %v478
      %v591 = vadd.f32 %v575, 1e-05
      %v592 = vadd.f32 %v576, 1e-05
      %v593 = vadd.f32 %v577, 1e-05
      %v594 = vadd.f32 %v578, 1e-05
      %v595 = vadd.f32 %v579, 1e-05
      %v596 = vadd.f32 %v580, 1e-05
      %v597 = vadd.f32 %v581, 1e-05
      %v598 = vadd.f32 %v582, 1e-05
      %v599 = vadd.f32 %v583, 1e-05
      %v600 = vadd.f32 %v584, 1e-05
      %v601 = vadd.f32 %v585, 1e-05
      %v602 = vadd.f32 %v586, 1e-05
      %v603 = vadd.f32 %v587, 1e-05
      %v604 = vadd.f32 %v588, 1e-05
      %v605 = vadd.f32 %v589, 1e-05
      %v606 = vadd.f32 %v590, 1e-05
      %v607 = vrsqrt.pop %v591
      %v608 = vrsqrt.pop %v592
      %v609 = vrsqrt.pop %v593
      %v610 = vrsqrt.pop %v594
      %v611 = vrsqrt.pop %v595
      %v612 = vrsqrt.pop %v596
      %v613 = vrsqrt.pop %v597
      %v614 = vrsqrt.pop %v598
      %v615 = vrsqrt.pop %v599
      %v616 = vrsqrt.pop %v600
      %v617 = vrsqrt.pop %v601
      %v618 = vrsqrt.pop %v602
      %v619 = vrsqrt.pop %v603
      %v620 = vrsqrt.pop %v604
      %v621 = vrsqrt.pop %v605
      %v622 = vrsqrt.pop %v606
      %v623 = vmul.f32 %v495, %v607
      %v624 = vmul.f32 %v496, %v608
      %v625 = vmul.f32 %v497, %v609
      %v626 = vmul.f32 %v498, %v610
      %v627 = vmul.f32 %v499, %v611
      %v628 = vmul.f32 %v500, %v612
      %v629 = vmul.f32 %v501, %v613
      %v630 = vmul.f32 %v502, %v614
      %v631 = vmul.f32 %v503, %v615
      %v632 = vmul.f32 %v504, %v616
      %v633 = vmul.f32 %v505, %v617
      %v634 = vmul.f32 %v506, %v618
      %v635 = vmul.f32 %v507, %v619
      %v636 = vmul.f32 %v508, %v620
      %v637 = vmul.f32 %v509, %v621
      %v638 = vmul.f32 %v510, %v622
      %v639 = vld [vmem:[%s3] sm:$0x1]
      %v641 = vlaneseq
      %v642 = vshrl.u32 %v641, 7
      %v643 = vsub.s32 0, %v642
      %v644 = vrot.slane %v639, %v643
      %v646 = vmul.f32 %v623, %v644
      %v647 = vmul.f32 %v624, %v644
      %v648 = vmul.f32 %v625, %v644
      %v649 = vmul.f32 %v626, %v644
      %v650 = vmul.f32 %v627, %v644
      %v651 = vmul.f32 %v628, %v644
      %v652 = vmul.f32 %v629, %v644
      %v653 = vmul.f32 %v630, %v644
      %v654 = vmul.f32 %v631, %v644
      %v655 = vmul.f32 %v632, %v644
      %v656 = vmul.f32 %v633, %v644
      %v657 = vmul.f32 %v634, %v644
      %v658 = vmul.f32 %v635, %v644
      %v659 = vmul.f32 %v636, %v644
      %v660 = vmul.f32 %v637, %v644
      %v661 = vmul.f32 %v638, %v644
      %v662 = vld [vmem:[%s4] sm:$0x1]
      %v664 = vlaneseq
      %v665 = vshrl.u32 %v664, 7
      %v666 = vsub.s32 0, %v665
      %v667 = vrot.slane %v662, %v666
      %v669 = vadd.f32 %v646, %v667
      %v670 = vadd.f32 %v647, %v667
      %v671 = vadd.f32 %v648, %v667
      %v672 = vadd.f32 %v649, %v667
      %v673 = vadd.f32 %v650, %v667
      %v674 = vadd.f32 %v651, %v667
      %v675 = vadd.f32 %v652, %v667
      %v676 = vadd.f32 %v653, %v667
      %v677 = vadd.f32 %v654, %v667
      %v678 = vadd.f32 %v655, %v667
      %v679 = vadd.f32 %v656, %v667
      %v680 = vadd.f32 %v657, %v667
      %v681 = vadd.f32 %v658, %v667
      %v682 = vadd.f32 %v659, %v667
      %v683 = vadd.f32 %v660, %v667
      %v684 = vadd.f32 %v661, %v667
      %v685 = vpack.c.bf16 %v670, %v669
      %v686 = vpack.c.bf16 %v672, %v671
      %v687 = vpack.c.bf16 %v674, %v673
      %v688 = vpack.c.bf16 %v676, %v675
      %v689 = vpack.c.bf16 %v678, %v677
      %v690 = vpack.c.bf16 %v680, %v679
      %v691 = vpack.c.bf16 %v682, %v681
      %v692 = vpack.c.bf16 %v684, %v683
      %v701 = vunpack.c.l.b16 %v685
      %v702 = vunpack.c.h.b16 %v685
      %v703 = vunpack.c.l.b16 %v686
      %v704 = vunpack.c.h.b16 %v686
      %v705 = vunpack.c.l.b16 %v687
      %v706 = vunpack.c.h.b16 %v687
      %v707 = vunpack.c.l.b16 %v688
      %v708 = vunpack.c.h.b16 %v688
      %v709 = vunpack.c.l.b16 %v689
      %v710 = vunpack.c.h.b16 %v689
      %v711 = vunpack.c.l.b16 %v690
      %v712 = vunpack.c.h.b16 %v690
      %v713 = vunpack.c.l.b16 %v691
      %v714 = vunpack.c.h.b16 %v691
      %v715 = vunpack.c.l.b16 %v692
      %v716 = vunpack.c.h.b16 %v692
      %v717 = vpack.c.b16 %v701, %v701
      %v718 = vpack.c.b16 %v702, %v702
      %v719 = vpack.c.b16 %v703, %v703
      %v720 = vpack.c.b16 %v704, %v704
      %v721 = vpack.c.b16 %v705, %v705
      %v722 = vpack.c.b16 %v706, %v706
      %v723 = vpack.c.b16 %v707, %v707
      %v724 = vpack.c.b16 %v708, %v708
      %v725 = vpack.c.b16 %v709, %v709
      %v726 = vpack.c.b16 %v710, %v710
      %v727 = vpack.c.b16 %v711, %v711
      %v728 = vpack.c.b16 %v712, %v712
      %v729 = vpack.c.b16 %v713, %v713
      %v730 = vpack.c.b16 %v714, %v714
      %v731 = vpack.c.b16 %v715, %v715
      %v732 = vpack.c.b16 %v716, %v716
      %vm749 = vcmask 257024
      %750 = vst.msk [vmem:[%s226] sm:$0xf] %vm749, %v717
      %751 = vst.msk [vmem:[%s226 + $0x4] sm:$0xf] %vm749, %v718
      %752 = vst.msk [vmem:[%s226 + $0x8] sm:$0xf] %vm749, %v719
      %753 = vst.msk [vmem:[%s226 + $0xc] sm:$0xf] %vm749, %v720
      %754 = vst.msk [vmem:[%s226 + $0x10] sm:$0xf] %vm749, %v721
      %755 = vst.msk [vmem:[%s226 + $0x14] sm:$0xf] %vm749, %v722
      %756 = vst.msk [vmem:[%s226 + $0x18] sm:$0xf] %vm749, %v723
      %757 = vst.msk [vmem:[%s226 + $0x1c] sm:$0xf] %vm749, %v724
      %758 = vst.msk [vmem:[%s226 + $0x20] sm:$0xf] %vm749, %v725
      %759 = vst.msk [vmem:[%s226 + $0x24] sm:$0xf] %vm749, %v726
      %760 = vst.msk [vmem:[%s226 + $0x28] sm:$0xf] %vm749, %v727
      %761 = vst.msk [vmem:[%s226 + $0x2c] sm:$0xf] %vm749, %v728
      %762 = vst.msk [vmem:[%s226 + $0x30] sm:$0xf] %vm749, %v729
      %763 = vst.msk [vmem:[%s226 + $0x34] sm:$0xf] %vm749, %v730
      %764 = vst.msk [vmem:[%s226 + $0x38] sm:$0xf] %vm749, %v731
      %765 = vst.msk [vmem:[%s226 + $0x3c] sm:$0xf] %vm749, %v732
      %s766 = smul.u32 16, %s16
      %p767 = scmp.lt.s32.totalorder %s766, 63
      %s768 = scalar_select %p767, %s766, 63
      %s769 = smul.addr %s768, 4
      %s770 = scalar_lea.vmem %s5, %s769
      // Predicated region
      $region41: #{gmrw_forward.25} parent=39 // pred_check
        %p771 = pneg %p144
      $region42: #{gmrw_forward.25} parent=39 // pred_check_branch
        %773 = sbr.rel (%p771) target = $region44
      $region43: #{gmrw_forward.25} parent=39 // pred_region
        %s774 = smul.u32 16, %s16
      $region44: #{gmrw_forward.25} parent=39 // pred_fallthru
        _
    $region40: #{gmrw_forward.25} parent=5 // pred_fallthru
      _
    %p775 = scmp.le.s32.totalorder 2, %s11
    // Predicated region
    $region45: #{gmrw_forward.25} parent=5 // pred_check
      %p776 = pneg %p775
    $region46: #{gmrw_forward.25} parent=5 // pred_check_branch
      %778 = sbr.rel (%p776) target = $region48
    $region47: #{gmrw_forward.25} parent=5 // pred_region
      %s779 = ssub.s32 %s11, 2
      // Predicated region
      $region49: #{gmrw_forward.25} parent=47 // pred_check
        %p780 = pneg %p150
      $region50: #{gmrw_forward.25} parent=47 // pred_check_branch
        %782 = sbr.rel (%p780) target = $region52
      $region51: #{gmrw_forward.25} parent=47 // pred_region
        %s783 = smul.u32 16, %s17
        %p784 = scmp.lt.s32.totalorder %s783, 63
        %s785 = scalar_select %p784, %s783, 63
        %s786 = smul.addr %s785, 4
        %s787 = scalar_lea.vmem %s5, %s786
      $region52: #{gmrw_forward.25} parent=47 // pred_fallthru
        _
    $region48: #{gmrw_forward.25} parent=5 // pred_fallthru
      _
  $region6: #{gmrw_forward.25} parent=0 // loop_footer
    %s15 = sadd.s32 1, %s11
  $region7: #{gmrw_forward.25} parent=0 // loop_footer_branch
    %10 = sbr.rel target = $region3
  $region8: #{gmrw_forward.25} parent=0 // loop_exit
    _

// kernel: gmrw_forward.26
$region0: #{gmrw_forward.26}
  #allocation0 [shape = 'u32[]', space=smem, size = 0x4, offset = 0x4, fixed_abs, tag = 'smem constant byte address 0x4 - core index']
  #allocation1 [shape = 'u32[144,128]{1,0:T(1,128)}', space=vmem, size = 0x12000, scoped, tag = 'internal scratch']
  %s0 = inlined_call_operand.vmem [shape: bf16[512,32], index: 0, kind: input, shape index: {}]
  %s1 = inlined_call_operand.vmem [shape: bf16[512,32], index: 1, kind: input, shape index: {}]
  %s2 = inlined_call_operand.vmem [shape: bf16[32,256], index: 2, kind: input, shape index: {}]
  %s3 = inlined_call_operand.vmem [shape: bf16[32,256], index: 3, kind: input, shape index: {}]
  %s4 = inlined_call_operand.vmem [shape: f32[1,256], index: 4, kind: input, shape index: {}]
  %s5 = inlined_call_operand.vmem [shape: bf16[256,32], index: 5, kind: input, shape index: {}]
  %s6 = inlined_call_operand.vmem [shape: f32[1,32], index: 6, kind: input, shape index: {}]
  %s7 = inlined_call_operand.vmem [shape: f32[1,32], index: 7, kind: input, shape index: {}]
  %s8 = inlined_call_operand.vmem [shape: f32[1,32], index: 8, kind: input, shape index: {}]
  %s9 = inlined_call_operand.vmem [shape: bf16[512,32], index: 9, kind: output, shape index: {}]
  %s10 = sld [smem:[#allocation0]]
  $region69: #{gmrw_forward.26} parent=0
    _
  %s12 = ssub.s32 1, %s10
  %s13 = scalar_select 0, %s12, %s10
  loop: start=0, step=1, limit=6
  $region2: #{gmrw_forward.26} parent=0 // loop_pre_header
    _
  $region3: #{gmrw_forward.26} parent=0 // loop_header
    %s15 = sphi 0, %s19
    %p16 = scmp.ge.s32.totalorder %s15, 6
    %s25 = sphi 0, %s27
    %s28 = sphi 0, %s25
    %s29 = sphi 0, %s28
    %s45 = sphi 0, %s29
    %s51 = sphi 0, %s53
    %s54 = sphi 0, %s51
    %s55 = sphi 0, %s54
    %s71 = sphi 0, %s55
    %s75 = sphi 0, %s75
    %s77 = sphi 0, %s75
    %s78 = sphi 0, %s77
    %s92 = sphi 0, %s78
    %s96 = sphi 0, %s96
    %s98 = sphi 0, %s96
    %s99 = sphi 0, %s98
    %s113 = sphi 0, %s99
    %s117 = sphi 0, %s117
    %s119 = sphi 0, %s117
    %s120 = sphi 0, %s119
    %s134 = sphi 0, %s120
    %s138 = sphi 0, %s138
    %s140 = sphi 0, %s138
    %s141 = sphi 0, %s140
    %s155 = sphi 0, %s141
    %s159 = sphi 0, %s159
    %s161 = sphi 0, %s159
    %s162 = sphi 0, %s161
    %s176 = sphi 0, %s162
    %s180 = sphi 0, %s180
    %s182 = sphi 0, %s180
    %s183 = sphi 0, %s182
    %s197 = sphi 0, %s183
    %s201 = sphi 0, %s201
    %s203 = sphi 0, %s201
    %s204 = sphi 0, %s203
    %s218 = sphi 0, %s204
    %s224 = sphi 0, %s226
    %s227 = sphi 0, %s224
    %s228 = sphi 0, %s227
    %s244 = sphi 0, %s228
  $region4: #{gmrw_forward.26} parent=0 // loop_header_branch
    %18 = sbr.rel (%p16) target = $region8
  $region5: #{gmrw_forward.26} parent=0 // loop_body
    %s20 = ssub.s32 %s15, 1
    %s21 = ssub.s32 %s15, 2
    %s22 = sadd.s32 %s15, 1
    %s23 = ssub.s32 %s15, %s22
    %p24 = scmp.eq.s32.totalorder %s23, 0
    %s26 = sadd.s32 %s25, 1
    %s27 = scalar_select %p24, %s25, %s26
    %p30 = pneg %p24
    %p31 = scmp.eq.s32.totalorder %s15, 3
    %p32 = por %p30, %p31
    %p33 = scmp.ne.s32.totalorder %s25, %s28
    %p34 = scmp.eq.s32.totalorder %s15, 0
    %p35 = por %p33, %p34
    %p36 = scmp.ne.s32.totalorder %s25, %s28
    %p37 = scmp.eq.s32.totalorder %s20, 3
    %p38 = por %p36, %p37
    %p39 = scmp.ne.s32.totalorder %s28, %s29
    %p40 = scmp.eq.s32.totalorder %s20, 0
    %p41 = por %p39, %p40
    %p42 = scmp.ne.s32.totalorder %s28, %s29
    %p43 = scmp.eq.s32.totalorder %s21, 3
    %p44 = por %p42, %p43
    %p46 = scmp.ne.s32.totalorder %s29, %s45
    %p47 = scmp.eq.s32.totalorder %s21, 0
    %p48 = por %p46, %p47
    %s49 = ssub.s32 %s15, %s22
    %p50 = scmp.eq.s32.totalorder %s49, 0
    %s52 = sadd.s32 %s51, 1
    %s53 = scalar_select %p50, %s51, %s52
    %p56 = pneg %p50
    %p57 = scmp.eq.s32.totalorder %s15, 3
    %p58 = por %p56, %p57
    %p59 = scmp.ne.s32.totalorder %s51, %s54
    %p60 = scmp.eq.s32.totalorder %s15, 0
    %p61 = por %p59, %p60
    %p62 = scmp.ne.s32.totalorder %s51, %s54
    %p63 = scmp.eq.s32.totalorder %s20, 3
    %p64 = por %p62, %p63
    %p65 = scmp.ne.s32.totalorder %s54, %s55
    %p66 = scmp.eq.s32.totalorder %s20, 0
    %p67 = por %p65, %p66
    %p68 = scmp.ne.s32.totalorder %s54, %s55
    %p69 = scmp.eq.s32.totalorder %s21, 3
    %p70 = por %p68, %p69
    %p72 = scmp.ne.s32.totalorder %s55, %s71
    %p73 = scmp.eq.s32.totalorder %s21, 0
    %p74 = por %p72, %p73
    %s76 = sadd.s32 %s75, 1
    %p79 = scmp.eq.s32.totalorder %s15, 3
    %p80 = scmp.ne.s32.totalorder %s75, %s77
    %p81 = scmp.eq.s32.totalorder %s15, 0
    %p82 = por %p80, %p81
    %p83 = scmp.ne.s32.totalorder %s75, %s77
    %p84 = scmp.eq.s32.totalorder %s20, 3
    %p85 = por %p83, %p84
    %p86 = scmp.ne.s32.totalorder %s77, %s78
    %p87 = scmp.eq.s32.totalorder %s20, 0
    %p88 = por %p86, %p87
    %p89 = scmp.ne.s32.totalorder %s77, %s78
    %p90 = scmp.eq.s32.totalorder %s21, 3
    %p91 = por %p89, %p90
    %p93 = scmp.ne.s32.totalorder %s78, %s92
    %p94 = scmp.eq.s32.totalorder %s21, 0
    %p95 = por %p93, %p94
    %s97 = sadd.s32 %s96, 1
    %p100 = scmp.eq.s32.totalorder %s15, 3
    %p101 = scmp.ne.s32.totalorder %s96, %s98
    %p102 = scmp.eq.s32.totalorder %s15, 0
    %p103 = por %p101, %p102
    %p104 = scmp.ne.s32.totalorder %s96, %s98
    %p105 = scmp.eq.s32.totalorder %s20, 3
    %p106 = por %p104, %p105
    %p107 = scmp.ne.s32.totalorder %s98, %s99
    %p108 = scmp.eq.s32.totalorder %s20, 0
    %p109 = por %p107, %p108
    %p110 = scmp.ne.s32.totalorder %s98, %s99
    %p111 = scmp.eq.s32.totalorder %s21, 3
    %p112 = por %p110, %p111
    %p114 = scmp.ne.s32.totalorder %s99, %s113
    %p115 = scmp.eq.s32.totalorder %s21, 0
    %p116 = por %p114, %p115
    %s118 = sadd.s32 %s117, 1
    %p121 = scmp.eq.s32.totalorder %s15, 3
    %p122 = scmp.ne.s32.totalorder %s117, %s119
    %p123 = scmp.eq.s32.totalorder %s15, 0
    %p124 = por %p122, %p123
    %p125 = scmp.ne.s32.totalorder %s117, %s119
    %p126 = scmp.eq.s32.totalorder %s20, 3
    %p127 = por %p125, %p126
    %p128 = scmp.ne.s32.totalorder %s119, %s120
    %p129 = scmp.eq.s32.totalorder %s20, 0
    %p130 = por %p128, %p129
    %p131 = scmp.ne.s32.totalorder %s119, %s120
    %p132 = scmp.eq.s32.totalorder %s21, 3
    %p133 = por %p131, %p132
    %p135 = scmp.ne.s32.totalorder %s120, %s134
    %p136 = scmp.eq.s32.totalorder %s21, 0
    %p137 = por %p135, %p136
    %s139 = sadd.s32 %s138, 1
    %p142 = scmp.eq.s32.totalorder %s15, 3
    %p143 = scmp.ne.s32.totalorder %s138, %s140
    %p144 = scmp.eq.s32.totalorder %s15, 0
    %p145 = por %p143, %p144
    %p146 = scmp.ne.s32.totalorder %s138, %s140
    %p147 = scmp.eq.s32.totalorder %s20, 3
    %p148 = por %p146, %p147
    %p149 = scmp.ne.s32.totalorder %s140, %s141
    %p150 = scmp.eq.s32.totalorder %s20, 0
    %p151 = por %p149, %p150
    %p152 = scmp.ne.s32.totalorder %s140, %s141
    %p153 = scmp.eq.s32.totalorder %s21, 3
    %p154 = por %p152, %p153
    %p156 = scmp.ne.s32.totalorder %s141, %s155
    %p157 = scmp.eq.s32.totalorder %s21, 0
    %p158 = por %p156, %p157
    %s160 = sadd.s32 %s159, 1
    %p163 = scmp.eq.s32.totalorder %s15, 3
    %p164 = scmp.ne.s32.totalorder %s159, %s161
    %p165 = scmp.eq.s32.totalorder %s15, 0
    %p166 = por %p164, %p165
    %p167 = scmp.ne.s32.totalorder %s159, %s161
    %p168 = scmp.eq.s32.totalorder %s20, 3
    %p169 = por %p167, %p168
    %p170 = scmp.ne.s32.totalorder %s161, %s162
    %p171 = scmp.eq.s32.totalorder %s20, 0
    %p172 = por %p170, %p171
    %p173 = scmp.ne.s32.totalorder %s161, %s162
    %p174 = scmp.eq.s32.totalorder %s21, 3
    %p175 = por %p173, %p174
    %p177 = scmp.ne.s32.totalorder %s162, %s176
    %p178 = scmp.eq.s32.totalorder %s21, 0
    %p179 = por %p177, %p178
    %s181 = sadd.s32 %s180, 1
    %p184 = scmp.eq.s32.totalorder %s15, 3
    %p185 = scmp.ne.s32.totalorder %s180, %s182
    %p186 = scmp.eq.s32.totalorder %s15, 0
    %p187 = por %p185, %p186
    %p188 = scmp.ne.s32.totalorder %s180, %s182
    %p189 = scmp.eq.s32.totalorder %s20, 3
    %p190 = por %p188, %p189
    %p191 = scmp.ne.s32.totalorder %s182, %s183
    %p192 = scmp.eq.s32.totalorder %s20, 0
    %p193 = por %p191, %p192
    %p194 = scmp.ne.s32.totalorder %s182, %s183
    %p195 = scmp.eq.s32.totalorder %s21, 3
    %p196 = por %p194, %p195
    %p198 = scmp.ne.s32.totalorder %s183, %s197
    %p199 = scmp.eq.s32.totalorder %s21, 0
    %p200 = por %p198, %p199
    %s202 = sadd.s32 %s201, 1
    %p205 = scmp.eq.s32.totalorder %s15, 3
    %p206 = scmp.ne.s32.totalorder %s201, %s203
    %p207 = scmp.eq.s32.totalorder %s15, 0
    %p208 = por %p206, %p207
    %p209 = scmp.ne.s32.totalorder %s201, %s203
    %p210 = scmp.eq.s32.totalorder %s20, 3
    %p211 = por %p209, %p210
    %p212 = scmp.ne.s32.totalorder %s203, %s204
    %p213 = scmp.eq.s32.totalorder %s20, 0
    %p214 = por %p212, %p213
    %p215 = scmp.ne.s32.totalorder %s203, %s204
    %p216 = scmp.eq.s32.totalorder %s21, 3
    %p217 = por %p215, %p216
    %p219 = scmp.ne.s32.totalorder %s204, %s218
    %p220 = scmp.eq.s32.totalorder %s21, 0
    %p221 = por %p219, %p220
    %s222 = ssub.s32 %s15, %s22
    %p223 = scmp.eq.s32.totalorder %s222, 0
    %s225 = sadd.s32 %s224, 1
    %s226 = scalar_select %p223, %s224, %s225
    %p229 = pneg %p223
    %p230 = scmp.eq.s32.totalorder %s15, 3
    %p231 = por %p229, %p230
    %p232 = scmp.ne.s32.totalorder %s224, %s227
    %p233 = scmp.eq.s32.totalorder %s15, 0
    %p234 = por %p232, %p233
    %p235 = scmp.ne.s32.totalorder %s224, %s227
    %p236 = scmp.eq.s32.totalorder %s20, 3
    %p237 = por %p235, %p236
    %p238 = scmp.ne.s32.totalorder %s227, %s228
    %p239 = scmp.eq.s32.totalorder %s20, 0
    %p240 = por %p238, %p239
    %p241 = scmp.ne.s32.totalorder %s227, %s228
    %p242 = scmp.eq.s32.totalorder %s21, 3
    %p243 = por %p241, %p242
    %p245 = scmp.ne.s32.totalorder %s228, %s244
    %p246 = scmp.eq.s32.totalorder %s21, 0
    %p247 = por %p245, %p246
    %p248 = scmp.le.s32.totalorder 1, %s15
    %p249 = scmp.lt.s32.totalorder %s15, 5
    %p250 = pnand %p248, %p249
    %p251 = pneg %p250
    // Predicated region
    $region9: #{gmrw_forward.26} parent=5 // pred_check
      _
    $region10: #{gmrw_forward.26} parent=5 // pred_check_branch
      %253 = sbr.rel (%p250) target = $region12
    $region11: #{gmrw_forward.26} parent=5 // pred_region
      %s254 = ssub.s32 %s15, 1
      // Predicated region
      $region13: #{gmrw_forward.26} parent=11 // pred_check
        %p255 = pneg %p88
      $region14: #{gmrw_forward.26} parent=11 // pred_check_branch
        %257 = sbr.rel (%p255) target = $region16
      $region15: #{gmrw_forward.26} parent=11 // pred_region
        _
      $region16: #{gmrw_forward.26} parent=11 // pred_fallthru
        _
      // Predicated region
      $region17: #{gmrw_forward.26} parent=11 // pred_check
        %p258 = pneg %p109
      $region18: #{gmrw_forward.26} parent=11 // pred_check_branch
        %260 = sbr.rel (%p258) target = $region20
      $region19: #{gmrw_forward.26} parent=11 // pred_region
        _
      $region20: #{gmrw_forward.26} parent=11 // pred_fallthru
        _
      // Predicated region
      $region21: #{gmrw_forward.26} parent=11 // pred_check
        %p261 = pneg %p130
      $region22: #{gmrw_forward.26} parent=11 // pred_check_branch
        %263 = sbr.rel (%p261) target = $region24
      $region23: #{gmrw_forward.26} parent=11 // pred_region
        _
      $region24: #{gmrw_forward.26} parent=11 // pred_fallthru
        _
      // Predicated region
      $region25: #{gmrw_forward.26} parent=11 // pred_check
        %p264 = pneg %p151
      $region26: #{gmrw_forward.26} parent=11 // pred_check_branch
        %266 = sbr.rel (%p264) target = $region28
      $region27: #{gmrw_forward.26} parent=11 // pred_region
        _
      $region28: #{gmrw_forward.26} parent=11 // pred_fallthru
        _
      // Predicated region
      $region29: #{gmrw_forward.26} parent=11 // pred_check
        %p267 = pneg %p172
      $region30: #{gmrw_forward.26} parent=11 // pred_check_branch
        %269 = sbr.rel (%p267) target = $region32
      $region31: #{gmrw_forward.26} parent=11 // pred_region
        _
      $region32: #{gmrw_forward.26} parent=11 // pred_fallthru
        _
      // Predicated region
      $region33: #{gmrw_forward.26} parent=11 // pred_check
        %p270 = pneg %p193
      $region34: #{gmrw_forward.26} parent=11 // pred_check_branch
        %272 = sbr.rel (%p270) target = $region36
      $region35: #{gmrw_forward.26} parent=11 // pred_region
        _
      $region36: #{gmrw_forward.26} parent=11 // pred_fallthru
        _
      // Predicated region
      $region37: #{gmrw_forward.26} parent=11 // pred_check
        %p273 = pneg %p214
      $region38: #{gmrw_forward.26} parent=11 // pred_check_branch
        %275 = sbr.rel (%p273) target = $region40
      $region39: #{gmrw_forward.26} parent=11 // pred_region
        _
      $region40: #{gmrw_forward.26} parent=11 // pred_fallthru
        _
    $region12: #{gmrw_forward.26} parent=5 // pred_fallthru
      _
    %p276 = scmp.lt.s32.totalorder %s15, 4
    // Predicated region
    $region41: #{gmrw_forward.26} parent=5 // pred_check
      %p277 = pneg %p276
    $region42: #{gmrw_forward.26} parent=5 // pred_check_branch
      %279 = sbr.rel (%p277) target = $region44
    $region43: #{gmrw_forward.26} parent=5 // pred_region
      // Predicated region
      $region45: #{gmrw_forward.26} parent=43 // pred_check
        %p280 = pneg %p35
      $region46: #{gmrw_forward.26} parent=43 // pred_check_branch
        %282 = sbr.rel (%p280) target = $region48
      $region47: #{gmrw_forward.26} parent=43 // pred_region
        %s283 = smul.u32 16, %s15
        %p284 = scmp.lt.s32.totalorder %s283, 63
        %s285 = scalar_select %p284, %s283, 63
        %s286 = smul.addr %s285, 4
        %s287 = scalar_lea.vmem %s0, %s286
        %s288 = smul.u32 16, %s15
      $region48: #{gmrw_forward.26} parent=43 // pred_fallthru
        _
      // Predicated region
      $region49: #{gmrw_forward.26} parent=43 // pred_check
        %p289 = pneg %p61
      $region50: #{gmrw_forward.26} parent=43 // pred_check_branch
        %291 = sbr.rel (%p289) target = $region52
      $region51: #{gmrw_forward.26} parent=43 // pred_region
        %s292 = smul.u32 16, %s15
        %p293 = scmp.lt.s32.totalorder %s292, 63
        %s294 = scalar_select %p293, %s292, 63
        %s295 = smul.addr %s294, 4
        %s296 = scalar_lea.vmem %s1, %s295
        %s297 = smul.u32 16, %s15
      $region52: #{gmrw_forward.26} parent=43 // pred_fallthru
        _
    $region44: #{gmrw_forward.26} parent=5 // pred_fallthru
      _
    %p298 = scmp.le.s32.totalorder 1, %s15
    %p299 = scmp.lt.s32.totalorder %s15, 5
    %p300 = pnand %p298, %p299
    %p301 = pneg %p300
    // Predicated region
    $region53: #{gmrw_forward.26} parent=5 // pred_check
      _
    $region54: #{gmrw_forward.26} parent=5 // pred_check_branch
      %303 = sbr.rel (%p300) target = $region56
    $region55: #{gmrw_forward.26} parent=5 // pred_region
      %s304 = ssub.s32 %s15, 1
      %s305 = smul.u32 16, %s20
      %p306 = scmp.lt.s32.totalorder %s305, 63
      %s307 = scalar_select %p306, %s305, 63
      %s308 = smul.addr %s307, 4
      %s309 = scalar_lea.vmem %s0, %s308
      %p310 = pneg %p41
      %p311 = pneg %p38
      %s312 = smul.u32 16, %s20
      %p313 = scmp.lt.s32.totalorder %s312, 63
      %s314 = scalar_select %p313, %s312, 63
      %s315 = smul.addr %s314, 4
      %s316 = scalar_lea.vmem %s1, %s315
      %p317 = pneg %p67
      %p318 = pneg %p64
      %p319 = pneg %p88
      %p320 = pneg %p85
      %p321 = pneg %p109
      %p322 = pneg %p106
      %p323 = pneg %p130
      %p324 = pneg %p127
      %p325 = pneg %p151
      %p326 = pneg %p148
      %p327 = pneg %p172
      %p328 = pneg %p169
      %p329 = pneg %p193
      %p330 = pneg %p190
      %p331 = pneg %p214
      %p332 = pneg %p211
      %p333 = pneg %p240
      %p334 = pneg %p237
      %s335 = smul.u32 16, %s20
      %p336 = scmp.lt.s32.totalorder %s335, 63
      %s337 = scalar_select %p336, %s335, 63
      %s338 = smul.addr %s337, 4
      %s339 = scalar_lea.vmem %s9, %s338
      %s340 = smul.u32 16, %s20
      %p341 = scmp.lt.s32.totalorder %s340, 63
      %s342 = scalar_select %p341, %s340, 63
      %s343 = smul.addr %s342, 4
      %s344 = scalar_lea.vmem %s0, %s343
      %s345 = smul.u32 16, %s20
      %s346 = smul.u32 16, %s20
      %p347 = scmp.lt.s32.totalorder %s346, 63
      %s348 = scalar_select %p347, %s346, 63
      %s349 = smul.addr %s348, 4
      %s350 = scalar_lea.vmem %s1, %s349
      %s351 = smul.u32 16, %s20
      %s352 = smul.u32 16, %s20
      %p353 = scmp.lt.s32.totalorder %s352, 63
      %s354 = scalar_select %p353, %s352, 63
      %s355 = smul.addr %s354, 4
      %s356 = scalar_lea.vmem %s9, %s355
      %s357 = smul.u32 16, %s20
      %v359 = vld [vmem:[%s344] sm:$0xf]
      %v360 = vld [vmem:[%s344 + $0x4] sm:$0xf]
      %v361 = vld [vmem:[%s344 + $0x8] sm:$0xf]
      %v362 = vld [vmem:[%s344 + $0xc] sm:$0xf]
      %v363 = vld [vmem:[%s344 + $0x10] sm:$0xf]
      %v364 = vld [vmem:[%s344 + $0x14] sm:$0xf]
      %v365 = vld [vmem:[%s344 + $0x18] sm:$0xf]
      %v366 = vld [vmem:[%s344 + $0x1c] sm:$0xf]
      %v367 = vld [vmem:[%s344 + $0x20] sm:$0xf]
      %v368 = vld [vmem:[%s344 + $0x24] sm:$0xf]
      %v369 = vld [vmem:[%s344 + $0x28] sm:$0xf]
      %v370 = vld [vmem:[%s344 + $0x2c] sm:$0xf]
      %v371 = vld [vmem:[%s344 + $0x30] sm:$0xf]
      %v372 = vld [vmem:[%s344 + $0x34] sm:$0xf]
      %v373 = vld [vmem:[%s344 + $0x38] sm:$0xf]
      %v374 = vld [vmem:[%s344 + $0x3c] sm:$0xf]
      %v375 = vld [vmem:[%s2] sm:$0xff]
      %v376 = vld [vmem:[%s2 + $0x8] sm:$0xff]
      %v377 = vld [vmem:[%s2 + $0x10] sm:$0xff]
      %v378 = vld [vmem:[%s2 + $0x18] sm:$0xff]
      %v379 = vld [vmem:[%s350] sm:$0xf]
      %v380 = vld [vmem:[%s350 + $0x4] sm:$0xf]
      %v381 = vld [vmem:[%s350 + $0x8] sm:$0xf]
      %v382 = vld [vmem:[%s350 + $0xc] sm:$0xf]
      %v383 = vld [vmem:[%s350 + $0x10] sm:$0xf]
      %v384 = vld [vmem:[%s350 + $0x14] sm:$0xf]
      %v385 = vld [vmem:[%s350 + $0x18] sm:$0xf]
      %v386 = vld [vmem:[%s350 + $0x1c] sm:$0xf]
      %v387 = vld [vmem:[%s350 + $0x20] sm:$0xf]
      %v388 = vld [vmem:[%s350 + $0x24] sm:$0xf]
      %v389 = vld [vmem:[%s350 + $0x28] sm:$0xf]
      %v390 = vld [vmem:[%s350 + $0x2c] sm:$0xf]
      %v391 = vld [vmem:[%s350 + $0x30] sm:$0xf]
      %v392 = vld [vmem:[%s350 + $0x34] sm:$0xf]
      %v393 = vld [vmem:[%s350 + $0x38] sm:$0xf]
      %v394 = vld [vmem:[%s350 + $0x3c] sm:$0xf]
      %v395 = vld [vmem:[%s3] sm:$0xff]
      %v396 = vld [vmem:[%s3 + $0x8] sm:$0xff]
      %v397 = vld [vmem:[%s3 + $0x10] sm:$0xff]
      %v398 = vld [vmem:[%s3 + $0x18] sm:$0xff]
      %v415 = vunpack.c.l.b16 %v379
      %v416 = vunpack.c.l.b16 %v380
      %v417 = vunpack.c.l.b16 %v381
      %v418 = vunpack.c.l.b16 %v382
      %v419 = vunpack.c.l.b16 %v383
      %v420 = vunpack.c.l.b16 %v384
      %v421 = vunpack.c.l.b16 %v385
      %v422 = vunpack.c.l.b16 %v386
      %v423 = vunpack.c.l.b16 %v387
      %v424 = vunpack.c.l.b16 %v388
      %v425 = vunpack.c.l.b16 %v389
      %v426 = vunpack.c.l.b16 %v390
      %v427 = vunpack.c.l.b16 %v391
      %v428 = vunpack.c.l.b16 %v392
      %v429 = vunpack.c.l.b16 %v393
      %v430 = vunpack.c.l.b16 %v394
      %v431 = vpack.c.b16 %v416, %v415
      %v432 = vpack.c.b16 %v418, %v417
      %v433 = vpack.c.b16 %v420, %v419
      %v434 = vpack.c.b16 %v422, %v421
      %v435 = vpack.c.b16 %v424, %v423
      %v436 = vpack.c.b16 %v426, %v425
      %v437 = vpack.c.b16 %v428, %v427
      %v438 = vpack.c.b16 %v430, %v429
      %v443 = vunpack.c.l.b16 %v395
      %v444 = vunpack.c.h.b16 %v395
      %v445 = vunpack.c.l.b16 %v396
      %v446 = vunpack.c.h.b16 %v396
      %v447 = vunpack.c.l.b16 %v397
      %v448 = vunpack.c.h.b16 %v397
      %v449 = vunpack.c.l.b16 %v398
      %v450 = vunpack.c.h.b16 %v398
      %v451 = vpack.c.b16 %v445, %v443
      %v452 = vpack.c.b16 %v446, %v444
      %v453 = vpack.c.b16 %v449, %v447
      %v454 = vpack.c.b16 %v450, %v448
      %vm459 = vcmask 261120
      %v461 = vsel %vm459, %v431, 0
      %v464 = vsel %vm459, %v432, 0
      %v467 = vsel %vm459, %v433, 0
      %v470 = vsel %vm459, %v434, 0
      %v473 = vsel %vm459, %v435, 0
      %v476 = vsel %vm459, %v436, 0
      %v479 = vsel %vm459, %v437, 0
      %v482 = vsel %vm459, %v438, 0
      %484 = vmatprep.subr.bf16.mxu0 %v452
      %485 = vmatpush1.bf16.msra.mxu0 %v451
      %486 = vmatprep.subr.bf16.mxu0 %v454
      %487 = vmatpush1.bf16.msra.mxu0 %v453
      %488 = vmatprep.subr.bf16.mxu0 0
      %489 = vmatpush1.bf16.msra.mxu0 0
      %490 = vmatprep.subr.bf16.mxu0 0
      %491 = vmatpush1.bf16.msra.mxu0 0
      %492 = vmatprep.subr.bf16.mxu0 0
      %493 = vmatpush1.bf16.msra.mxu0 0
      %494 = vmatprep.subr.bf16.mxu0 0
      %495 = vmatpush1.bf16.msra.mxu0 0
      %496 = vmatprep.subr.bf16.mxu0 0
      %497 = vmatpush1.bf16.msra.mxu0 0
      %498 = vmatprep.subr.bf16.mxu0 0
      %499 = vmatpush1.bf16.msra.mxu0 0
      %500 = vmatprep.subr.bf16.mxu0 0
      %501 = vmatpush1.bf16.msra.mxu0 0
      %502 = vmatprep.subr.bf16.mxu0 0
      %503 = vmatpush1.bf16.msra.mxu0 0
      %504 = vmatprep.subr.bf16.mxu0 0
      %505 = vmatpush1.bf16.msra.mxu0 0
      %506 = vmatprep.subr.bf16.mxu0 0
      %507 = vmatpush1.bf16.msra.mxu0 0
      %508 = vmatprep.subr.bf16.mxu0 0
      %509 = vmatpush1.bf16.msra.mxu0 0
      %510 = vmatprep.subr.bf16.mxu0 0
      %511 = vmatpush1.bf16.msra.mxu0 0
      %512 = vmatprep.subr.bf16.mxu0 0
      %513 = vmatpush1.bf16.msra.mxu0 0
      %514 = vmatprep.subr.bf16.mxu0 0
      %515 = vmatpush1.bf16.msra.mxu0 0
      %516 = vmatprep.mubr.bf16.mxu0 0
      %517 = vmatmul.mubr.bf16.gmra.mrb[0].mxu0 %v461
      %v518 = vpop.f32.mrb[0].mxu0
      %v519 = vadd.f32 0.0, %v518
      %v520 = vpop.f32.mrb[0].mxu0
      %v521 = vadd.f32 0.0, %v520
      %v522 = vpop.f32.mrb[0].mxu0
      %v523 = vadd.f32 0.0, %v522
      %v524 = vpop.f32.mrb[0].mxu0
      %v525 = vadd.f32 0.0, %v524
      %526 = vmatprep.mubr.bf16.mxu0 0
      %527 = vmatmul.mubr.bf16.gmra.mrb[0].mxu0 %v464
      %v528 = vpop.f32.mrb[0].mxu0
      %v529 = vadd.f32 0.0, %v528
      %v530 = vpop.f32.mrb[0].mxu0
      %v531 = vadd.f32 0.0, %v530
      %v532 = vpop.f32.mrb[0].mxu0
      %v533 = vadd.f32 0.0, %v532
      %v534 = vpop.f32.mrb[0].mxu0
      %v535 = vadd.f32 0.0, %v534
      %536 = vmatprep.mubr.bf16.mxu0 0
      %537 = vmatmul.mubr.bf16.gmra.mrb[0].mxu0 %v467
      %v538 = vpop.f32.mrb[0].mxu0
      %v539 = vadd.f32 0.0, %v538
      %v540 = vpop.f32.mrb[0].mxu0
      %v541 = vadd.f32 0.0, %v540
      %v542 = vpop.f32.mrb[0].mxu0
      %v543 = vadd.f32 0.0, %v542
      %v544 = vpop.f32.mrb[0].mxu0
      %v545 = vadd.f32 0.0, %v544
      %546 = vmatprep.mubr.bf16.mxu0 0
      %547 = vmatmul.mubr.bf16.gmra.mrb[0].mxu0 %v470
      %v548 = vpop.f32.mrb[0].mxu0
      %v549 = vadd.f32 0.0, %v548
      %v550 = vpop.f32.mrb[0].mxu0
      %v551 = vadd.f32 0.0, %v550
      %v552 = vpop.f32.mrb[0].mxu0
      %v553 = vadd.f32 0.0, %v552
      %v554 = vpop.f32.mrb[0].mxu0
      %v555 = vadd.f32 0.0, %v554
      %556 = vmatprep.mubr.bf16.mxu0 0
      %557 = vmatmul.mubr.bf16.gmra.mrb[0].mxu0 %v473
      %v558 = vpop.f32.mrb[0].mxu0
      %v559 = vadd.f32 0.0, %v558
      %v560 = vpop.f32.mrb[0].mxu0
      %v561 = vadd.f32 0.0, %v560
      %v562 = vpop.f32.mrb[0].mxu0
      %v563 = vadd.f32 0.0, %v562
      %v564 = vpop.f32.mrb[0].mxu0
      %v565 = vadd.f32 0.0, %v564
      %566 = vmatprep.mubr.bf16.mxu0 0
      %567 = vmatmul.mubr.bf16.gmra.mrb[0].mxu0 %v476
      %v568 = vpop.f32.mrb[0].mxu0
      %v569 = vadd.f32 0.0, %v568
      %v570 = vpop.f32.mrb[0].mxu0
      %v571 = vadd.f32 0.0, %v570
      %v572 = vpop.f32.mrb[0].mxu0
      %v573 = vadd.f32 0.0, %v572
      %v574 = vpop.f32.mrb[0].mxu0
      %v575 = vadd.f32 0.0, %v574
      %576 = vmatprep.mubr.bf16.mxu0 0
      %577 = vmatmul.mubr.bf16.gmra.mrb[0].mxu0 %v479
      %v578 = vpop.f32.mrb[0].mxu0
      %v579 = vadd.f32 0.0, %v578
      %v580 = vpop.f32.mrb[0].mxu0
      %v581 = vadd.f32 0.0, %v580
      %v582 = vpop.f32.mrb[0].mxu0
      %v583 = vadd.f32 0.0, %v582
      %v584 = vpop.f32.mrb[0].mxu0
      %v585 = vadd.f32 0.0, %v584
      %586 = vmatprep.mubr.bf16.mxu0 0
      %587 = vmatmul.mubr.bf16.gmra.mrb[0].mxu0 %v482
      %v588 = vpop.f32.mrb[0].mxu0
      %v589 = vadd.f32 0.0, %v588
      %v590 = vpop.f32.mrb[0].mxu0
      %v591 = vadd.f32 0.0, %v590
      %v592 = vpop.f32.mrb[0].mxu0
      %v593 = vadd.f32 0.0, %v592
      %v594 = vpop.f32.mrb[0].mxu0
      %v595 = vadd.f32 0.0, %v594
      %596 = vdwg.mxu0
      %v613 = vunpack.c.l.b16 %v359
      %v614 = vunpack.c.l.b16 %v360
      %v615 = vunpack.c.l.b16 %v361
      %v616 = vunpack.c.l.b16 %v362
      %v617 = vunpack.c.l.b16 %v363
      %v618 = vunpack.c.l.b16 %v364
      %v619 = vunpack.c.l.b16 %v365
      %v620 = vunpack.c.l.b16 %v366
      %v621 = vunpack.c.l.b16 %v367
      %v622 = vunpack.c.l.b16 %v368
      %v623 = vunpack.c.l.b16 %v369
      %v624 = vunpack.c.l.b16 %v370
      %v625 = vunpack.c.l.b16 %v371
      %v626 = vunpack.c.l.b16 %v372
      %v627 = vunpack.c.l.b16 %v373
      %v628 = vunpack.c.l.b16 %v374
      %v629 = vpack.c.b16 %v614, %v613
      %v630 = vpack.c.b16 %v616, %v615
      %v631 = vpack.c.b16 %v618, %v617
      %v632 = vpack.c.b16 %v620, %v619
      %v633 = vpack.c.b16 %v622, %v621
      %v634 = vpack.c.b16 %v624, %v623
      %v635 = vpack.c.b16 %v626, %v625
      %v636 = vpack.c.b16 %v628, %v627
      %v641 = vunpack.c.l.b16 %v375
      %v642 = vunpack.c.h.b16 %v375
      %v643 = vunpack.c.l.b16 %v376
      %v644 = vunpack.c.h.b16 %v376
      %v645 = vunpack.c.l.b16 %v377
      %v646 = vunpack.c.h.b16 %v377
      %v647 = vunpack.c.l.b16 %v378
      %v648 = vunpack.c.h.b16 %v378
      %v649 = vpack.c.b16 %v643, %v641
      %v650 = vpack.c.b16 %v644, %v642
      %v651 = vpack.c.b16 %v647, %v645
      %v652 = vpack.c.b16 %v648, %v646
      %v658 = vsel %vm459, %v629, 0
      %v661 = vsel %vm459, %v630, 0
      %v664 = vsel %vm459, %v631, 0
      %v667 = vsel %vm459, %v632, 0
      %v670 = vsel %vm459, %v633, 0
      %v673 = vsel %vm459, %v634, 0
      %v676 = vsel %vm459, %v635, 0
      %v679 = vsel %vm459, %v636, 0
      %681 = vmatprep.subr.bf16.mxu0 %v650
      %682 = vmatpush1.bf16.msra.mxu0 %v649
      %683 = vmatprep.subr.bf16.mxu0 %v652
      %684 = vmatpush1.bf16.msra.mxu0 %v651
      %685 = vmatprep.subr.bf16.mxu0 0
      %686 = vmatpush1.bf16.msra.mxu0 0
      %687 = vmatprep.subr.bf16.mxu0 0
      %688 = vmatpush1.bf16.msra.mxu0 0
      %689 = vmatprep.subr.bf16.mxu0 0
      %690 = vmatpush1.bf16.msra.mxu0 0
      %691 = vmatprep.subr.bf16.mxu0 0
      %692 = vmatpush1.bf16.msra.mxu0 0
      %693 = vmatprep.subr.bf16.mxu0 0
      %694 = vmatpush1.bf16.msra.mxu0 0
      %695 = vmatprep.subr.bf16.mxu0 0
      %696 = vmatpush1.bf16.msra.mxu0 0
      %697 = vmatprep.subr.bf16.mxu0 0
      %698 = vmatpush1.bf16.msra.mxu0 0
      %699 = vmatprep.subr.bf16.mxu0 0
      %700 = vmatpush1.bf16.msra.mxu0 0
      %701 = vmatprep.subr.bf16.mxu0 0
      %702 = vmatpush1.bf16.msra.mxu0 0
      %703 = vmatprep.subr.bf16.mxu0 0
      %704 = vmatpush1.bf16.msra.mxu0 0
      %705 = vmatprep.subr.bf16.mxu0 0
      %706 = vmatpush1.bf16.msra.mxu0 0
      %707 = vmatprep.subr.bf16.mxu0 0
      %708 = vmatpush1.bf16.msra.mxu0 0
      %709 = vmatprep.subr.bf16.mxu0 0
      %710 = vmatpush1.bf16.msra.mxu0 0
      %711 = vmatprep.subr.bf16.mxu0 0
      %712 = vmatpush1.bf16.msra.mxu0 0
      %713 = vmatprep.mubr.bf16.mxu0 0
      %714 = vmatmul.mubr.bf16.gmra.mrb[0].mxu0 %v658
      %v715 = vpop.f32.mrb[0].mxu0
      %v716 = vadd.f32 %v519, %v715
      %v717 = vpop.f32.mrb[0].mxu0
      %v718 = vadd.f32 %v521, %v717
      %v719 = vpop.f32.mrb[0].mxu0
      %v720 = vadd.f32 %v523, %v719
      %v721 = vpop.f32.mrb[0].mxu0
      %v722 = vadd.f32 %v525, %v721
      %723 = vmatprep.mubr.bf16.mxu0 0
      %724 = vmatmul.mubr.bf16.gmra.mrb[0].mxu0 %v661
      %v725 = vpop.f32.mrb[0].mxu0
      %v726 = vadd.f32 %v529, %v725
      %v727 = vpop.f32.mrb[0].mxu0
      %v728 = vadd.f32 %v531, %v727
      %v729 = vpop.f32.mrb[0].mxu0
      %v730 = vadd.f32 %v533, %v729
      %v731 = vpop.f32.mrb[0].mxu0
      %v732 = vadd.f32 %v535, %v731
      %733 = vmatprep.mubr.bf16.mxu0 0
      %734 = vmatmul.mubr.bf16.gmra.mrb[0].mxu0 %v664
      %v735 = vpop.f32.mrb[0].mxu0
      %v736 = vadd.f32 %v539, %v735
      %v737 = vpop.f32.mrb[0].mxu0
      %v738 = vadd.f32 %v541, %v737
      %v739 = vpop.f32.mrb[0].mxu0
      %v740 = vadd.f32 %v543, %v739
      %v741 = vpop.f32.mrb[0].mxu0
      %v742 = vadd.f32 %v545, %v741
      %743 = vmatprep.mubr.bf16.mxu0 0
      %744 = vmatmul.mubr.bf16.gmra.mrb[0].mxu0 %v667
      %v745 = vpop.f32.mrb[0].mxu0
      %v746 = vadd.f32 %v549, %v745
      %v747 = vpop.f32.mrb[0].mxu0
      %v748 = vadd.f32 %v551, %v747
      %v749 = vpop.f32.mrb[0].mxu0
      %v750 = vadd.f32 %v553, %v749
      %v751 = vpop.f32.mrb[0].mxu0
      %v752 = vadd.f32 %v555, %v751
      %753 = vmatprep.mubr.bf16.mxu0 0
      %754 = vmatmul.mubr.bf16.gmra.mrb[0].mxu0 %v670
      %v755 = vpop.f32.mrb[0].mxu0
      %v756 = vadd.f32 %v559, %v755
      %v757 = vpop.f32.mrb[0].mxu0
      %v758 = vadd.f32 %v561, %v757
      %v759 = vpop.f32.mrb[0].mxu0
      %v760 = vadd.f32 %v563, %v759
      %v761 = vpop.f32.mrb[0].mxu0
      %v762 = vadd.f32 %v565, %v761
      %763 = vmatprep.mubr.bf16.mxu0 0
      %764 = vmatmul.mubr.bf16.gmra.mrb[0].mxu0 %v673
      %v765 = vpop.f32.mrb[0].mxu0
      %v766 = vadd.f32 %v569, %v765
      %v767 = vpop.f32.mrb[0].mxu0
      %v768 = vadd.f32 %v571, %v767
      %v769 = vpop.f32.mrb[0].mxu0
      %v770 = vadd.f32 %v573, %v769
      %v771 = vpop.f32.mrb[0].mxu0
      %v772 = vadd.f32 %v575, %v771
      %773 = vmatprep.mubr.bf16.mxu0 0
      %774 = vmatmul.mubr.bf16.gmra.mrb[0].mxu0 %v676
      %v775 = vpop.f32.mrb[0].mxu0
      %v776 = vadd.f32 %v579, %v775
      %v777 = vpop.f32.mrb[0].mxu0
      %v778 = vadd.f32 %v581, %v777
      %v779 = vpop.f32.mrb[0].mxu0
      %v780 = vadd.f32 %v583, %v779
      %v781 = vpop.f32.mrb[0].mxu0
      %v782 = vadd.f32 %v585, %v781
      %783 = vmatprep.mubr.bf16.mxu0 0
      %784 = vmatmul.mubr.bf16.gmra.mrb[0].mxu0 %v679
      %v785 = vpop.f32.mrb[0].mxu0
      %v786 = vadd.f32 %v589, %v785
      %v787 = vpop.f32.mrb[0].mxu0
      %v788 = vadd.f32 %v591, %v787
      %v789 = vpop.f32.mrb[0].mxu0
      %v790 = vadd.f32 %v593, %v789
      %v791 = vpop.f32.mrb[0].mxu0
      %v792 = vadd.f32 %v595, %v791
      %793 = vdwg.mxu0
      %v794 = vld [vmem:[%s4] sm:$0x3]
      %v796 = vlaneseq
      %v797 = vshrl.u32 %v796, 7
      %v798 = vsub.s32 0, %v797
      %v799 = vrot.slane %v794, %v798
      %v800 = vlaneseq
      %v801 = vshrl.u32 %v800, 7
      %v802 = vsub.s32 1, %v801
      %v803 = vrot.slane %v794, %v802
      %v806 = vadd.f32 %v716, %v799
      %v807 = vadd.f32 %v718, %v803
      %v808 = vadd.f32 %v720, %v799
      %v809 = vadd.f32 %v722, %v803
      %v810 = vadd.f32 %v726, %v799
      %v811 = vadd.f32 %v728, %v803
      %v812 = vadd.f32 %v730, %v799
      %v813 = vadd.f32 %v732, %v803
      %v814 = vadd.f32 %v736, %v799
      %v815 = vadd.f32 %v738, %v803
      %v816 = vadd.f32 %v740, %v799
      %v817 = vadd.f32 %v742, %v803
      %v818 = vadd.f32 %v746, %v799
      %v819 = vadd.f32 %v748, %v803
      %v820 = vadd.f32 %v750, %v799
      %v821 = vadd.f32 %v752, %v803
      %v822 = vadd.f32 %v756, %v799
      %v823 = vadd.f32 %v758, %v803
      %v824 = vadd.f32 %v760, %v799
      %v825 = vadd.f32 %v762, %v803
      %v826 = vadd.f32 %v766, %v799
      %v827 = vadd.f32 %v768, %v803
      %v828 = vadd.f32 %v770, %v799
      %v829 = vadd.f32 %v772, %v803
      %v830 = vadd.f32 %v776, %v799
      %v831 = vadd.f32 %v778, %v803
      %v832 = vadd.f32 %v780, %v799
      %v833 = vadd.f32 %v782, %v803
      %v834 = vadd.f32 %v786, %v799
      %v835 = vadd.f32 %v788, %v803
      %v836 = vadd.f32 %v790, %v799
      %v837 = vadd.f32 %v792, %v803
      %v838 = vmul.f32 %v806, %v806
      %v839 = vmul.f32 %v807, %v807
      %v840 = vmul.f32 %v808, %v808
      %v841 = vmul.f32 %v809, %v809
      %v842 = vmul.f32 %v810, %v810
      %v843 = vmul.f32 %v811, %v811
      %v844 = vmul.f32 %v812, %v812
      %v845 = vmul.f32 %v813, %v813
      %v846 = vmul.f32 %v814, %v814
      %v847 = vmul.f32 %v815, %v815
      %v848 = vmul.f32 %v816, %v816
      %v849 = vmul.f32 %v817, %v817
      %v850 = vmul.f32 %v818, %v818
      %v851 = vmul.f32 %v819, %v819
      %v852 = vmul.f32 %v820, %v820
      %v853 = vmul.f32 %v821, %v821
      %v854 = vmul.f32 %v822, %v822
      %v855 = vmul.f32 %v823, %v823
      %v856 = vmul.f32 %v824, %v824
      %v857 = vmul.f32 %v825, %v825
      %v858 = vmul.f32 %v826, %v826
      %v859 = vmul.f32 %v827, %v827
      %v860 = vmul.f32 %v828, %v828
      %v861 = vmul.f32 %v829, %v829
      %v862 = vmul.f32 %v830, %v830
      %v863 = vmul.f32 %v831, %v831
      %v864 = vmul.f32 %v832, %v832
      %v865 = vmul.f32 %v833, %v833
      %v866 = vmul.f32 %v834, %v834
      %v867 = vmul.f32 %v835, %v835
      %v868 = vmul.f32 %v836, %v836
      %v869 = vmul.f32 %v837, %v837
      %v870 = vmul.f32 %v806, %v838
      %v871 = vmul.f32 %v807, %v839
      %v872 = vmul.f32 %v808, %v840
      %v873 = vmul.f32 %v809, %v841
      %v874 = vmul.f32 %v810, %v842
      %v875 = vmul.f32 %v811, %v843
      %v876 = vmul.f32 %v812, %v844
      %v877 = vmul.f32 %v813, %v845
      %v878 = vmul.f32 %v814, %v846
      %v879 = vmul.f32 %v815, %v847
      %v880 = vmul.f32 %v816, %v848
      %v881 = vmul.f32 %v817, %v849
      %v882 = vmul.f32 %v818, %v850
      %v883 = vmul.f32 %v819, %v851
      %v884 = vmul.f32 %v820, %v852
      %v885 = vmul.f32 %v821, %v853
      %v886 = vmul.f32 %v822, %v854
      %v887 = vmul.f32 %v823, %v855
      %v888 = vmul.f32 %v824, %v856
      %v889 = vmul.f32 %v825, %v857
      %v890 = vmul.f32 %v826, %v858
      %v891 = vmul.f32 %v827, %v859
      %v892 = vmul.f32 %v828, %v860
      %v893 = vmul.f32 %v829, %v861
      %v894 = vmul.f32 %v830, %v862
      %v895 = vmul.f32 %v831, %v863
      %v896 = vmul.f32 %v832, %v864
      %v897 = vmul.f32 %v833, %v865
      %v898 = vmul.f32 %v834, %v866
      %v899 = vmul.f32 %v835, %v867
      %v900 = vmul.f32 %v836, %v868
      %v901 = vmul.f32 %v837, %v869
      %v902 = vmul.f32 %v870, 0.044715
      %v903 = vmul.f32 %v871, 0.044715
      %v904 = vmul.f32 %v872, 0.044715
      %v905 = vmul.f32 %v873, 0.044715
      %v906 = vmul.f32 %v874, 0.044715
      %v907 = vmul.f32 %v875, 0.044715
      %v908 = vmul.f32 %v876, 0.044715
      %v909 = vmul.f32 %v877, 0.044715
      %v910 = vmul.f32 %v878, 0.044715
      %v911 = vmul.f32 %v879, 0.044715
      %v912 = vmul.f32 %v880, 0.044715
      %v913 = vmul.f32 %v881, 0.044715
      %v914 = vmul.f32 %v882, 0.044715
      %v915 = vmul.f32 %v883, 0.044715
      %v916 = vmul.f32 %v884, 0.044715
      %v917 = vmul.f32 %v885, 0.044715
      %v918 = vmul.f32 %v886, 0.044715
      %v919 = vmul.f32 %v887, 0.044715
      %v920 = vmul.f32 %v888, 0.044715
      %v921 = vmul.f32 %v889, 0.044715
      %v922 = vmul.f32 %v890, 0.044715
      %v923 = vmul.f32 %v891, 0.044715
      %v924 = vmul.f32 %v892, 0.044715
      %v925 = vmul.f32 %v893, 0.044715
      %v926 = vmul.f32 %v894, 0.044715
      %v927 = vmul.f32 %v895, 0.044715
      %v928 = vmul.f32 %v896, 0.044715
      %v929 = vmul.f32 %v897, 0.044715
      %v930 = vmul.f32 %v898, 0.044715
      %v931 = vmul.f32 %v899, 0.044715
      %v932 = vmul.f32 %v900, 0.044715
      %v933 = vmul.f32 %v901, 0.044715
      %v934 = vadd.f32 %v806, %v902
      %v935 = vadd.f32 %v807, %v903
      %v936 = vadd.f32 %v808, %v904
      %v937 = vadd.f32 %v809, %v905
      %v938 = vadd.f32 %v810, %v906
      %v939 = vadd.f32 %v811, %v907
      %v940 = vadd.f32 %v812, %v908
      %v941 = vadd.f32 %v813, %v909
      %v942 = vadd.f32 %v814, %v910
      %v943 = vadd.f32 %v815, %v911
      %v944 = vadd.f32 %v816, %v912
      %v945 = vadd.f32 %v817, %v913
      %v946 = vadd.f32 %v818, %v914
      %v947 = vadd.f32 %v819, %v915
      %v948 = vadd.f32 %v820, %v916
      %v949 = vadd.f32 %v821, %v917
      %v950 = vadd.f32 %v822, %v918
      %v951 = vadd.f32 %v823, %v919
      %v952 = vadd.f32 %v824, %v920
      %v953 = vadd.f32 %v825, %v921
      %v954 = vadd.f32 %v826, %v922
      %v955 = vadd.f32 %v827, %v923
      %v956 = vadd.f32 %v828, %v924
      %v957 = vadd.f32 %v829, %v925
      %v958 = vadd.f32 %v830, %v926
      %v959 = vadd.f32 %v831, %v927
      %v960 = vadd.f32 %v832, %v928
      %v961 = vadd.f32 %v833, %v929
      %v962 = vadd.f32 %v834, %v930
      %v963 = vadd.f32 %v835, %v931
      %v964 = vadd.f32 %v836, %v932
      %v965 = vadd.f32 %v837, %v933
      %v966 = vmul.f32 %v934, 0.7978846
      %v967 = vmul.f32 %v935, 0.7978846
      %v968 = vmul.f32 %v936, 0.7978846
      %v969 = vmul.f32 %v937, 0.7978846
      %v970 = vmul.f32 %v938, 0.7978846
      %v971 = vmul.f32 %v939, 0.7978846
      %v972 = vmul.f32 %v940, 0.7978846
      %v973 = vmul.f32 %v941, 0.7978846
      %v974 = vmul.f32 %v942, 0.7978846
      %v975 = vmul.f32 %v943, 0.7978846
      %v976 = vmul.f32 %v944, 0.7978846
      %v977 = vmul.f32 %v945, 0.7978846
      %v978 = vmul.f32 %v946, 0.7978846
      %v979 = vmul.f32 %v947, 0.7978846
      %v980 = vmul.f32 %v948, 0.7978846
      %v981 = vmul.f32 %v949, 0.7978846
      %v982 = vmul.f32 %v950, 0.7978846
      %v983 = vmul.f32 %v951, 0.7978846
      %v984 = vmul.f32 %v952, 0.7978846
      %v985 = vmul.f32 %v953, 0.7978846
      %v986 = vmul.f32 %v954, 0.7978846
      %v987 = vmul.f32 %v955, 0.7978846
      %v988 = vmul.f32 %v956, 0.7978846
      %v989 = vmul.f32 %v957, 0.7978846
      %v990 = vmul.f32 %v958, 0.7978846
      %v991 = vmul.f32 %v959, 0.7978846
      %v992 = vmul.f32 %v960, 0.7978846
      %v993 = vmul.f32 %v961, 0.7978846
      %v994 = vmul.f32 %v962, 0.7978846
      %v995 = vmul.f32 %v963, 0.7978846
      %v996 = vmul.f32 %v964, 0.7978846
      %v997 = vmul.f32 %v965, 0.7978846
      %v998 = vtanh.pop %v966
      %v999 = vtanh.pop %v967
      %v1000 = vtanh.pop %v968
      %v1001 = vtanh.pop %v969
      %v1002 = vtanh.pop %v970
      %v1003 = vtanh.pop %v971
      %v1004 = vtanh.pop %v972
      %v1005 = vtanh.pop %v973
      %v1006 = vtanh.pop %v974
      %v1007 = vtanh.pop %v975
      %v1008 = vtanh.pop %v976
      %v1009 = vtanh.pop %v977
      %v1010 = vtanh.pop %v978
      %v1011 = vtanh.pop %v979
      %v1012 = vtanh.pop %v980
      %v1013 = vtanh.pop %v981
      %v1014 = vtanh.pop %v982
      %v1015 = vtanh.pop %v983
      %v1016 = vtanh.pop %v984
      %v1017 = vtanh.pop %v985
      %v1018 = vtanh.pop %v986
      %v1019 = vtanh.pop %v987
      %v1020 = vtanh.pop %v988
      %v1021 = vtanh.pop %v989
      %v1022 = vtanh.pop %v990
      %v1023 = vtanh.pop %v991
      %v1024 = vtanh.pop %v992
      %v1025 = vtanh.pop %v993
      %v1026 = vtanh.pop %v994
      %v1027 = vtanh.pop %v995
      %v1028 = vtanh.pop %v996
      %v1029 = vtanh.pop %v997
      %v1030 = vadd.f32 %v998, 1.0
      %v1031 = vadd.f32 %v999, 1.0
      %v1032 = vadd.f32 %v1000, 1.0
      %v1033 = vadd.f32 %v1001, 1.0
      %v1034 = vadd.f32 %v1002, 1.0
      %v1035 = vadd.f32 %v1003, 1.0
      %v1036 = vadd.f32 %v1004, 1.0
      %v1037 = vadd.f32 %v1005, 1.0
      %v1038 = vadd.f32 %v1006, 1.0
      %v1039 = vadd.f32 %v1007, 1.0
      %v1040 = vadd.f32 %v1008, 1.0
      %v1041 = vadd.f32 %v1009, 1.0
      %v1042 = vadd.f32 %v1010, 1.0
      %v1043 = vadd.f32 %v1011, 1.0
      %v1044 = vadd.f32 %v1012, 1.0
      %v1045 = vadd.f32 %v1013, 1.0
      %v1046 = vadd.f32 %v1014, 1.0
      %v1047 = vadd.f32 %v1015, 1.0
      %v1048 = vadd.f32 %v1016, 1.0
      %v1049 = vadd.f32 %v1017, 1.0
      %v1050 = vadd.f32 %v1018, 1.0
      %v1051 = vadd.f32 %v1019, 1.0
      %v1052 = vadd.f32 %v1020, 1.0
      %v1053 = vadd.f32 %v1021, 1.0
      %v1054 = vadd.f32 %v1022, 1.0
      %v1055 = vadd.f32 %v1023, 1.0
      %v1056 = vadd.f32 %v1024, 1.0
      %v1057 = vadd.f32 %v1025, 1.0
      %v1058 = vadd.f32 %v1026, 1.0
      %v1059 = vadd.f32 %v1027, 1.0
      %v1060 = vadd.f32 %v1028, 1.0
      %v1061 = vadd.f32 %v1029, 1.0
      %v1062 = vmul.f32 %v1030, 0.5
      %v1063 = vmul.f32 %v1031, 0.5
      %v1064 = vmul.f32 %v1032, 0.5
      %v1065 = vmul.f32 %v1033, 0.5
      %v1066 = vmul.f32 %v1034, 0.5
      %v1067 = vmul.f32 %v1035, 0.5
      %v1068 = vmul.f32 %v1036, 0.5
      %v1069 = vmul.f32 %v1037, 0.5
      %v1070 = vmul.f32 %v1038, 0.5
      %v1071 = vmul.f32 %v1039, 0.5
      %v1072 = vmul.f32 %v1040, 0.5
      %v1073 = vmul.f32 %v1041, 0.5
      %v1074 = vmul.f32 %v1042, 0.5
      %v1075 = vmul.f32 %v1043, 0.5
      %v1076 = vmul.f32 %v1044, 0.5
      %v1077 = vmul.f32 %v1045, 0.5
      %v1078 = vmul.f32 %v1046, 0.5
      %v1079 = vmul.f32 %v1047, 0.5
      %v1080 = vmul.f32 %v1048, 0.5
      %v1081 = vmul.f32 %v1049, 0.5
      %v1082 = vmul.f32 %v1050, 0.5
      %v1083 = vmul.f32 %v1051, 0.5
      %v1084 = vmul.f32 %v1052, 0.5
      %v1085 = vmul.f32 %v1053, 0.5
      %v1086 = vmul.f32 %v1054, 0.5
      %v1087 = vmul.f32 %v1055, 0.5
      %v1088 = vmul.f32 %v1056, 0.5
      %v1089 = vmul.f32 %v1057, 0.5
      %v1090 = vmul.f32 %v1058, 0.5
      %v1091 = vmul.f32 %v1059, 0.5
      %v1092 = vmul.f32 %v1060, 0.5
      %v1093 = vmul.f32 %v1061, 0.5
      %v1094 = vmul.f32 %v806, %v1062
      %v1095 = vmul.f32 %v807, %v1063
      %v1096 = vmul.f32 %v808, %v1064
      %v1097 = vmul.f32 %v809, %v1065
      %v1098 = vmul.f32 %v810, %v1066
      %v1099 = vmul.f32 %v811, %v1067
      %v1100 = vmul.f32 %v812, %v1068
      %v1101 = vmul.f32 %v813, %v1069
      %v1102 = vmul.f32 %v814, %v1070
      %v1103 = vmul.f32 %v815, %v1071
      %v1104 = vmul.f32 %v816, %v1072
      %v1105 = vmul.f32 %v817, %v1073
      %v1106 = vmul.f32 %v818, %v1074
      %v1107 = vmul.f32 %v819, %v1075
      %v1108 = vmul.f32 %v820, %v1076
      %v1109 = vmul.f32 %v821, %v1077
      %v1110 = vmul.f32 %v822, %v1078
      %v1111 = vmul.f32 %v823, %v1079
      %v1112 = vmul.f32 %v824, %v1080
      %v1113 = vmul.f32 %v825, %v1081
      %v1114 = vmul.f32 %v826, %v1082
      %v1115 = vmul.f32 %v827, %v1083
      %v1116 = vmul.f32 %v828, %v1084
      %v1117 = vmul.f32 %v829, %v1085
      %v1118 = vmul.f32 %v830, %v1086
      %v1119 = vmul.f32 %v831, %v1087
      %v1120 = vmul.f32 %v832, %v1088
      %v1121 = vmul.f32 %v833, %v1089
      %v1122 = vmul.f32 %v834, %v1090
      %v1123 = vmul.f32 %v835, %v1091
      %v1124 = vmul.f32 %v836, %v1092
      %v1125 = vmul.f32 %v837, %v1093
      %v1126 = vpack.c.bf16 %v1096, %v1094
      %v1127 = vpack.c.bf16 %v1097, %v1095
      %v1128 = vpack.c.bf16 %v1100, %v1098
      %v1129 = vpack.c.bf16 %v1101, %v1099
      %v1130 = vpack.c.bf16 %v1104, %v1102
      %v1131 = vpack.c.bf16 %v1105, %v1103
      %v1132 = vpack.c.bf16 %v1108, %v1106
      %v1133 = vpack.c.bf16 %v1109, %v1107
      %v1134 = vpack.c.bf16 %v1112, %v1110
      %v1135 = vpack.c.bf16 %v1113, %v1111
      %v1136 = vpack.c.bf16 %v1116, %v1114
      %v1137 = vpack.c.bf16 %v1117, %v1115
      %v1138 = vpack.c.bf16 %v1120, %v1118
      %v1139 = vpack.c.bf16 %v1121, %v1119
      %v1140 = vpack.c.bf16 %v1124, %v1122
      %v1141 = vpack.c.bf16 %v1125, %v1123
      %v1142 = vld [vmem:[%s5] sm:$0xf]
      %v1143 = vld [vmem:[%s5 + $0x4] sm:$0xf]
      %v1144 = vld [vmem:[%s5 + $0x8] sm:$0xf]
      %v1145 = vld [vmem:[%s5 + $0xc] sm:$0xf]
      %v1146 = vld [vmem:[%s5 + $0x10] sm:$0xf]
      %v1147 = vld [vmem:[%s5 + $0x14] sm:$0xf]
      %v1148 = vld [vmem:[%s5 + $0x18] sm:$0xf]
      %v1149 = vld [vmem:[%s5 + $0x1c] sm:$0xf]
      %v1150 = vld [vmem:[%s5 + $0x20] sm:$0xf]
      %v1151 = vld [vmem:[%s5 + $0x24] sm:$0xf]
      %v1152 = vld [vmem:[%s5 + $0x28] sm:$0xf]
      %v1153 = vld [vmem:[%s5 + $0x2c] sm:$0xf]
      %v1154 = vld [vmem:[%s5 + $0x30] sm:$0xf]
      %v1155 = vld [vmem:[%s5 + $0x34] sm:$0xf]
      %v1156 = vld [vmem:[%s5 + $0x38] sm:$0xf]
      %v1157 = vld [vmem:[%s5 + $0x3c] sm:$0xf]
      %v1158 = vld [vmem:[%s5 + $0x40] sm:$0xf]
      %v1159 = vld [vmem:[%s5 + $0x44] sm:$0xf]
      %v1160 = vld [vmem:[%s5 + $0x48] sm:$0xf]
      %v1161 = vld [vmem:[%s5 + $0x4c] sm:$0xf]
      %v1162 = vld [vmem:[%s5 + $0x50] sm:$0xf]
      %v1163 = vld [vmem:[%s5 + $0x54] sm:$0xf]
      %v1164 = vld [vmem:[%s5 + $0x58] sm:$0xf]
      %v1165 = vld [vmem:[%s5 + $0x5c] sm:$0xf]
      %v1166 = vld [vmem:[%s5 + $0x60] sm:$0xf]
      %v1167 = vld [vmem:[%s5 + $0x64] sm:$0xf]
      %v1168 = vld [vmem:[%s5 + $0x68] sm:$0xf]
      %v1169 = vld [vmem:[%s5 + $0x6c] sm:$0xf]
      %v1170 = vld [vmem:[%s5 + $0x70] sm:$0xf]
      %v1171 = vld [vmem:[%s5 + $0x74] sm:$0xf]
      %v1172 = vld [vmem:[%s5 + $0x78] sm:$0xf]
      %v1173 = vld [vmem:[%s5 + $0x7c] sm:$0xf]
      %v1174 = vld [vmem:[%s6] sm:$0x1]
      %v1176 = vlaneseq
      %v1177 = vshrl.u32 %v1176, 7
      %v1178 = vsub.s32 0, %v1177
      %v1179 = vrot.slane %v1174, %v1178
      %v1213 = vunpack.c.l.b16 %v1142
      %v1214 = vunpack.c.l.b16 %v1143
      %v1215 = vunpack.c.l.b16 %v1144
      %v1216 = vunpack.c.l.b16 %v1145
      %v1217 = vunpack.c.l.b16 %v1146
      %v1218 = vunpack.c.l.b16 %v1147
      %v1219 = vunpack.c.l.b16 %v1148
      %v1220 = vunpack.c.l.b16 %v1149
      %v1221 = vunpack.c.l.b16 %v1150
      %v1222 = vunpack.c.l.b16 %v1151
      %v1223 = vunpack.c.l.b16 %v1152
      %v1224 = vunpack.c.l.b16 %v1153
      %v1225 = vunpack.c.l.b16 %v1154
      %v1226 = vunpack.c.l.b16 %v1155
      %v1227 = vunpack.c.l.b16 %v1156
      %v1228 = vunpack.c.l.b16 %v1157
      %v1229 = vunpack.c.l.b16 %v1158
      %v1230 = vunpack.c.l.b16 %v1159
      %v1231 = vunpack.c.l.b16 %v1160
      %v1232 = vunpack.c.l.b16 %v1161
      %v1233 = vunpack.c.l.b16 %v1162
      %v1234 = vunpack.c.l.b16 %v1163
      %v1235 = vunpack.c.l.b16 %v1164
      %v1236 = vunpack.c.l.b16 %v1165
      %v1237 = vunpack.c.l.b16 %v1166
      %v1238 = vunpack.c.l.b16 %v1167
      %v1239 = vunpack.c.l.b16 %v1168
      %v1240 = vunpack.c.l.b16 %v1169
      %v1241 = vunpack.c.l.b16 %v1170
      %v1242 = vunpack.c.l.b16 %v1171
      %v1243 = vunpack.c.l.b16 %v1172
      %v1244 = vunpack.c.l.b16 %v1173
      %v1245 = vpack.c.b16 %v1214, %v1213
      %v1246 = vpack.c.b16 %v1216, %v1215
      %v1247 = vpack.c.b16 %v1218, %v1217
      %v1248 = vpack.c.b16 %v1220, %v1219
      %v1249 = vpack.c.b16 %v1222, %v1221
      %v1250 = vpack.c.b16 %v1224, %v1223
      %v1251 = vpack.c.b16 %v1226, %v1225
      %v1252 = vpack.c.b16 %v1228, %v1227
      %v1253 = vpack.c.b16 %v1230, %v1229
      %v1254 = vpack.c.b16 %v1232, %v1231
      %v1255 = vpack.c.b16 %v1234, %v1233
      %v1256 = vpack.c.b16 %v1236, %v1235
      %v1257 = vpack.c.b16 %v1238, %v1237
      %v1258 = vpack.c.b16 %v1240, %v1239
      %v1259 = vpack.c.b16 %v1242, %v1241
      %v1260 = vpack.c.b16 %v1244, %v1243
      %1277 = vmatprep.subr.bf16.mxu0 0
      %1278 = vmatpush1.bf16.msra.mxu0 %v1245
      %1279 = vmatprep.subr.bf16.mxu0 0
      %1280 = vmatpush1.bf16.msra.mxu0 %v1246
      %1281 = vmatprep.subr.bf16.mxu0 0
      %1282 = vmatpush1.bf16.msra.mxu0 %v1247
      %1283 = vmatprep.subr.bf16.mxu0 0
      %1284 = vmatpush1.bf16.msra.mxu0 %v1248
      %1285 = vmatprep.subr.bf16.mxu0 0
      %1286 = vmatpush1.bf16.msra.mxu0 %v1249
      %1287 = vmatprep.subr.bf16.mxu0 0
      %1288 = vmatpush1.bf16.msra.mxu0 %v1250
      %1289 = vmatprep.subr.bf16.mxu0 0
      %1290 = vmatpush1.bf16.msra.mxu0 %v1251
      %1291 = vmatprep.subr.bf16.mxu0 0
      %1292 = vmatpush1.bf16.msra.mxu0 %v1252
      %1293 = vmatprep.subr.bf16.mxu0 0
      %1294 = vmatpush1.bf16.msra.mxu0 %v1253
      %1295 = vmatprep.subr.bf16.mxu0 0
      %1296 = vmatpush1.bf16.msra.mxu0 %v1254
      %1297 = vmatprep.subr.bf16.mxu0 0
      %1298 = vmatpush1.bf16.msra.mxu0 %v1255
      %1299 = vmatprep.subr.bf16.mxu0 0
      %1300 = vmatpush1.bf16.msra.mxu0 %v1256
      %1301 = vmatprep.subr.bf16.mxu0 0
      %1302 = vmatpush1.bf16.msra.mxu0 %v1257
      %1303 = vmatprep.subr.bf16.mxu0 0
      %1304 = vmatpush1.bf16.msra.mxu0 %v1258
      %1305 = vmatprep.subr.bf16.mxu0 0
      %1306 = vmatpush1.bf16.msra.mxu0 %v1259
      %1307 = vmatprep.subr.bf16.mxu0 0
      %1308 = vmatpush1.bf16.msra.mxu0 %v1260
      %1309 = vmatprep.mubr.bf16.mxu0 %v1127
      %1310 = vmatmul.mubr.bf16.gmra.mrb[0].mxu0 %v1126
      %v1311 = vpop.f32.mrb[0].mxu0
      %v1312 = vadd.f32 %v1179, %v1311
      %v1313 = vpop.f32.mrb[0].mxu0
      %v1314 = vpop.f32.mrb[0].mxu0
      %v1315 = vadd.f32 %v1179, %v1314
      %v1316 = vpop.f32.mrb[0].mxu0
      %1317 = vmatprep.mubr.bf16.mxu0 %v1129
      %1318 = vmatmul.mubr.bf16.gmra.mrb[0].mxu0 %v1128
      %v1319 = vpop.f32.mrb[0].mxu0
      %v1320 = vadd.f32 %v1179, %v1319
      %v1321 = vpop.f32.mrb[0].mxu0
      %v1322 = vpop.f32.mrb[0].mxu0
      %v1323 = vadd.f32 %v1179, %v1322
      %v1324 = vpop.f32.mrb[0].mxu0
      %1325 = vmatprep.mubr.bf16.mxu0 %v1131
      %1326 = vmatmul.mubr.bf16.gmra.mrb[0].mxu0 %v1130
      %v1327 = vpop.f32.mrb[0].mxu0
      %v1328 = vadd.f32 %v1179, %v1327
      %v1329 = vpop.f32.mrb[0].mxu0
      %v1330 = vpop.f32.mrb[0].mxu0
      %v1331 = vadd.f32 %v1179, %v1330
      %v1332 = vpop.f32.mrb[0].mxu0
      %1333 = vmatprep.mubr.bf16.mxu0 %v1133
      %1334 = vmatmul.mubr.bf16.gmra.mrb[0].mxu0 %v1132
      %v1335 = vpop.f32.mrb[0].mxu0
      %v1336 = vadd.f32 %v1179, %v1335
      %v1337 = vpop.f32.mrb[0].mxu0
      %v1338 = vpop.f32.mrb[0].mxu0
      %v1339 = vadd.f32 %v1179, %v1338
      %v1340 = vpop.f32.mrb[0].mxu0
      %1341 = vmatprep.mubr.bf16.mxu0 %v1135
      %1342 = vmatmul.mubr.bf16.gmra.mrb[0].mxu0 %v1134
      %v1343 = vpop.f32.mrb[0].mxu0
      %v1344 = vadd.f32 %v1179, %v1343
      %v1345 = vpop.f32.mrb[0].mxu0
      %v1346 = vpop.f32.mrb[0].mxu0
      %v1347 = vadd.f32 %v1179, %v1346
      %v1348 = vpop.f32.mrb[0].mxu0
      %1349 = vmatprep.mubr.bf16.mxu0 %v1137
      %1350 = vmatmul.mubr.bf16.gmra.mrb[0].mxu0 %v1136
      %v1351 = vpop.f32.mrb[0].mxu0
      %v1352 = vadd.f32 %v1179, %v1351
      %v1353 = vpop.f32.mrb[0].mxu0
      %v1354 = vpop.f32.mrb[0].mxu0
      %v1355 = vadd.f32 %v1179, %v1354
      %v1356 = vpop.f32.mrb[0].mxu0
      %1357 = vmatprep.mubr.bf16.mxu0 %v1139
      %1358 = vmatmul.mubr.bf16.gmra.mrb[0].mxu0 %v1138
      %v1359 = vpop.f32.mrb[0].mxu0
      %v1360 = vadd.f32 %v1179, %v1359
      %v1361 = vpop.f32.mrb[0].mxu0
      %v1362 = vpop.f32.mrb[0].mxu0
      %v1363 = vadd.f32 %v1179, %v1362
      %v1364 = vpop.f32.mrb[0].mxu0
      %1365 = vmatprep.mubr.bf16.mxu0 %v1141
      %1366 = vmatmul.mubr.bf16.gmra.mrb[0].mxu0 %v1140
      %v1367 = vpop.f32.mrb[0].mxu0
      %v1368 = vadd.f32 %v1179, %v1367
      %v1369 = vpop.f32.mrb[0].mxu0
      %v1370 = vpop.f32.mrb[0].mxu0
      %v1371 = vadd.f32 %v1179, %v1370
      %v1372 = vpop.f32.mrb[0].mxu0
      %1373 = vdwg.mxu0
      %v1374 = vsel %vm459, %v1312, 0.0
      %1375 = vadd.xlane.f32.xlu0 %v1374
      %v1376 = vpop.xlane.xlu0 %1375
      %v1377 = vsel %vm459, %v1315, 0.0
      %1378 = vadd.xlane.f32.xlu0 %v1377
      %v1379 = vpop.xlane.xlu0 %1378
      %v1380 = vsel %vm459, %v1320, 0.0
      %1381 = vadd.xlane.f32.xlu0 %v1380
      %v1382 = vpop.xlane.xlu0 %1381
      %v1383 = vsel %vm459, %v1323, 0.0
      %1384 = vadd.xlane.f32.xlu0 %v1383
      %v1385 = vpop.xlane.xlu0 %1384
      %v1386 = vsel %vm459, %v1328, 0.0
      %1387 = vadd.xlane.f32.xlu0 %v1386
      %v1388 = vpop.xlane.xlu0 %1387
      %v1389 = vsel %vm459, %v1331, 0.0
      %1390 = vadd.xlane.f32.xlu0 %v1389
      %v1391 = vpop.xlane.xlu0 %1390
      %v1392 = vsel %vm459, %v1336, 0.0
      %1393 = vadd.xlane.f32.xlu0 %v1392
      %v1394 = vpop.xlane.xlu0 %1393
      %v1395 = vsel %vm459, %v1339, 0.0
      %1396 = vadd.xlane.f32.xlu0 %v1395
      %v1397 = vpop.xlane.xlu0 %1396
      %v1398 = vsel %vm459, %v1344, 0.0
      %1399 = vadd.xlane.f32.xlu0 %v1398
      %v1400 = vpop.xlane.xlu0 %1399
      %v1401 = vsel %vm459, %v1347, 0.0
      %1402 = vadd.xlane.f32.xlu0 %v1401
      %v1403 = vpop.xlane.xlu0 %1402
      %v1404 = vsel %vm459, %v1352, 0.0
      %1405 = vadd.xlane.f32.xlu0 %v1404
      %v1406 = vpop.xlane.xlu0 %1405
      %v1407 = vsel %vm459, %v1355, 0.0
      %1408 = vadd.xlane.f32.xlu0 %v1407
      %v1409 = vpop.xlane.xlu0 %1408
      %v1410 = vsel %vm459, %v1360, 0.0
      %1411 = vadd.xlane.f32.xlu0 %v1410
      %v1412 = vpop.xlane.xlu0 %1411
      %v1413 = vsel %vm459, %v1363, 0.0
      %1414 = vadd.xlane.f32.xlu0 %v1413
      %v1415 = vpop.xlane.xlu0 %1414
      %v1416 = vsel %vm459, %v1368, 0.0
      %1417 = vadd.xlane.f32.xlu0 %v1416
      %v1418 = vpop.xlane.xlu0 %1417
      %v1419 = vsel %vm459, %v1371, 0.0
      %1420 = vadd.xlane.f32.xlu0 %v1419
      %v1421 = vpop.xlane.xlu0 %1420
      %v1422 = vrcp.pop 32.0
      %v1423 = vmul.f32 %v1376, %v1422
      %v1424 = vmul.f32 %v1379, %v1422
      %v1425 = vmul.f32 %v1382, %v1422
      %v1426 = vmul.f32 %v1385, %v1422
      %v1427 = vmul.f32 %v1388, %v1422
      %v1428 = vmul.f32 %v1391, %v1422
      %v1429 = vmul.f32 %v1394, %v1422
      %v1430 = vmul.f32 %v1397, %v1422
      %v1431 = vmul.f32 %v1400, %v1422
      %v1432 = vmul.f32 %v1403, %v1422
      %v1433 = vmul.f32 %v1406, %v1422
      %v1434 = vmul.f32 %v1409, %v1422
      %v1435 = vmul.f32 %v1412, %v1422
      %v1436 = vmul.f32 %v1415, %v1422
      %v1437 = vmul.f32 %v1418, %v1422
      %v1438 = vmul.f32 %v1421, %v1422
      %v1439 = vsub.f32 %v1312, %v1423
      %v1440 = vsub.f32 %v1315, %v1424
      %v1441 = vsub.f32 %v1320, %v1425
      %v1442 = vsub.f32 %v1323, %v1426
      %v1443 = vsub.f32 %v1328, %v1427
      %v1444 = vsub.f32 %v1331, %v1428
      %v1445 = vsub.f32 %v1336, %v1429
      %v1446 = vsub.f32 %v1339, %v1430
      %v1447 = vsub.f32 %v1344, %v1431
      %v1448 = vsub.f32 %v1347, %v1432
      %v1449 = vsub.f32 %v1352, %v1433
      %v1450 = vsub.f32 %v1355, %v1434
      %v1451 = vsub.f32 %v1360, %v1435
      %v1452 = vsub.f32 %v1363, %v1436
      %v1453 = vsub.f32 %v1368, %v1437
      %v1454 = vsub.f32 %v1371, %v1438
      %v1455 = vmul.f32 %v1439, %v1439
      %v1456 = vmul.f32 %v1440, %v1440
      %v1457 = vmul.f32 %v1441, %v1441
      %v1458 = vmul.f32 %v1442, %v1442
      %v1459 = vmul.f32 %v1443, %v1443
      %v1460 = vmul.f32 %v1444, %v1444
      %v1461 = vmul.f32 %v1445, %v1445
      %v1462 = vmul.f32 %v1446, %v1446
      %v1463 = vmul.f32 %v1447, %v1447
      %v1464 = vmul.f32 %v1448, %v1448
      %v1465 = vmul.f32 %v1449, %v1449
      %v1466 = vmul.f32 %v1450, %v1450
      %v1467 = vmul.f32 %v1451, %v1451
      %v1468 = vmul.f32 %v1452, %v1452
      %v1469 = vmul.f32 %v1453, %v1453
      %v1470 = vmul.f32 %v1454, %v1454
      %v1471 = vsel %vm459, %v1455, 0.0
      %1472 = vadd.xlane.f32.xlu0 %v1471
      %v1473 = vpop.xlane.xlu0 %1472
      %v1474 = vsel %vm459, %v1456, 0.0
      %1475 = vadd.xlane.f32.xlu0 %v1474
      %v1476 = vpop.xlane.xlu0 %1475
      %v1477 = vsel %vm459, %v1457, 0.0
      %1478 = vadd.xlane.f32.xlu0 %v1477
      %v1479 = vpop.xlane.xlu0 %1478
      %v1480 = vsel %vm459, %v1458, 0.0
      %1481 = vadd.xlane.f32.xlu0 %v1480
      %v1482 = vpop.xlane.xlu0 %1481
      %v1483 = vsel %vm459, %v1459, 0.0
      %1484 = vadd.xlane.f32.xlu0 %v1483
      %v1485 = vpop.xlane.xlu0 %1484
      %v1486 = vsel %vm459, %v1460, 0.0
      %1487 = vadd.xlane.f32.xlu0 %v1486
      %v1488 = vpop.xlane.xlu0 %1487
      %v1489 = vsel %vm459, %v1461, 0.0
      %1490 = vadd.xlane.f32.xlu0 %v1489
      %v1491 = vpop.xlane.xlu0 %1490
      %v1492 = vsel %vm459, %v1462, 0.0
      %1493 = vadd.xlane.f32.xlu0 %v1492
      %v1494 = vpop.xlane.xlu0 %1493
      %v1495 = vsel %vm459, %v1463, 0.0
      %1496 = vadd.xlane.f32.xlu0 %v1495
      %v1497 = vpop.xlane.xlu0 %1496
      %v1498 = vsel %vm459, %v1464, 0.0
      %1499 = vadd.xlane.f32.xlu0 %v1498
      %v1500 = vpop.xlane.xlu0 %1499
      %v1501 = vsel %vm459, %v1465, 0.0
      %1502 = vadd.xlane.f32.xlu0 %v1501
      %v1503 = vpop.xlane.xlu0 %1502
      %v1504 = vsel %vm459, %v1466, 0.0
      %1505 = vadd.xlane.f32.xlu0 %v1504
      %v1506 = vpop.xlane.xlu0 %1505
      %v1507 = vsel %vm459, %v1467, 0.0
      %1508 = vadd.xlane.f32.xlu0 %v1507
      %v1509 = vpop.xlane.xlu0 %1508
      %v1510 = vsel %vm459, %v1468, 0.0
      %1511 = vadd.xlane.f32.xlu0 %v1510
      %v1512 = vpop.xlane.xlu0 %1511
      %v1513 = vsel %vm459, %v1469, 0.0
      %1514 = vadd.xlane.f32.xlu0 %v1513
      %v1515 = vpop.xlane.xlu0 %1514
      %v1516 = vsel %vm459, %v1470, 0.0
      %1517 = vadd.xlane.f32.xlu0 %v1516
      %v1518 = vpop.xlane.xlu0 %1517
      %v1519 = vmul.f32 %v1473, %v1422
      %v1520 = vmul.f32 %v1476, %v1422
      %v1521 = vmul.f32 %v1479, %v1422
      %v1522 = vmul.f32 %v1482, %v1422
      %v1523 = vmul.f32 %v1485, %v1422
      %v1524 = vmul.f32 %v1488, %v1422
      %v1525 = vmul.f32 %v1491, %v1422
      %v1526 = vmul.f32 %v1494, %v1422
      %v1527 = vmul.f32 %v1497, %v1422
      %v1528 = vmul.f32 %v1500, %v1422
      %v1529 = vmul.f32 %v1503, %v1422
      %v1530 = vmul.f32 %v1506, %v1422
      %v1531 = vmul.f32 %v1509, %v1422
      %v1532 = vmul.f32 %v1512, %v1422
      %v1533 = vmul.f32 %v1515, %v1422
      %v1534 = vmul.f32 %v1518, %v1422
      %v1535 = vadd.f32 %v1519, 1e-05
      %v1536 = vadd.f32 %v1520, 1e-05
      %v1537 = vadd.f32 %v1521, 1e-05
      %v1538 = vadd.f32 %v1522, 1e-05
      %v1539 = vadd.f32 %v1523, 1e-05
      %v1540 = vadd.f32 %v1524, 1e-05
      %v1541 = vadd.f32 %v1525, 1e-05
      %v1542 = vadd.f32 %v1526, 1e-05
      %v1543 = vadd.f32 %v1527, 1e-05
      %v1544 = vadd.f32 %v1528, 1e-05
      %v1545 = vadd.f32 %v1529, 1e-05
      %v1546 = vadd.f32 %v1530, 1e-05
      %v1547 = vadd.f32 %v1531, 1e-05
      %v1548 = vadd.f32 %v1532, 1e-05
      %v1549 = vadd.f32 %v1533, 1e-05
      %v1550 = vadd.f32 %v1534, 1e-05
      %v1551 = vrsqrt.pop %v1535
      %v1552 = vrsqrt.pop %v1536
      %v1553 = vrsqrt.pop %v1537
      %v1554 = vrsqrt.pop %v1538
      %v1555 = vrsqrt.pop %v1539
      %v1556 = vrsqrt.pop %v1540
      %v1557 = vrsqrt.pop %v1541
      %v1558 = vrsqrt.pop %v1542
      %v1559 = vrsqrt.pop %v1543
      %v1560 = vrsqrt.pop %v1544
      %v1561 = vrsqrt.pop %v1545
      %v1562 = vrsqrt.pop %v1546
      %v1563 = vrsqrt.pop %v1547
      %v1564 = vrsqrt.pop %v1548
      %v1565 = vrsqrt.pop %v1549
      %v1566 = vrsqrt.pop %v1550
      %v1567 = vmul.f32 %v1439, %v1551
      %v1568 = vmul.f32 %v1440, %v1552
      %v1569 = vmul.f32 %v1441, %v1553
      %v1570 = vmul.f32 %v1442, %v1554
      %v1571 = vmul.f32 %v1443, %v1555
      %v1572 = vmul.f32 %v1444, %v1556
      %v1573 = vmul.f32 %v1445, %v1557
      %v1574 = vmul.f32 %v1446, %v1558
      %v1575 = vmul.f32 %v1447, %v1559
      %v1576 = vmul.f32 %v1448, %v1560
      %v1577 = vmul.f32 %v1449, %v1561
      %v1578 = vmul.f32 %v1450, %v1562
      %v1579 = vmul.f32 %v1451, %v1563
      %v1580 = vmul.f32 %v1452, %v1564
      %v1581 = vmul.f32 %v1453, %v1565
      %v1582 = vmul.f32 %v1454, %v1566
      %v1583 = vunpack.c.l.bf16 %v359
      %v1584 = vunpack.c.l.bf16 %v360
      %v1585 = vunpack.c.l.bf16 %v361
      %v1586 = vunpack.c.l.bf16 %v362
      %v1587 = vunpack.c.l.bf16 %v363
      %v1588 = vunpack.c.l.bf16 %v364
      %v1589 = vunpack.c.l.bf16 %v365
      %v1590 = vunpack.c.l.bf16 %v366
      %v1591 = vunpack.c.l.bf16 %v367
      %v1592 = vunpack.c.l.bf16 %v368
      %v1593 = vunpack.c.l.bf16 %v369
      %v1594 = vunpack.c.l.bf16 %v370
      %v1595 = vunpack.c.l.bf16 %v371
      %v1596 = vunpack.c.l.bf16 %v372
      %v1597 = vunpack.c.l.bf16 %v373
      %v1598 = vunpack.c.l.bf16 %v374
      %v1599 = vld [vmem:[%s7] sm:$0x1]
      %v1601 = vlaneseq
      %v1602 = vshrl.u32 %v1601, 7
      %v1603 = vsub.s32 0, %v1602
      %v1604 = vrot.slane %v1599, %v1603
      %v1606 = vmul.f32 %v1567, %v1604
      %v1607 = vmul.f32 %v1568, %v1604
      %v1608 = vmul.f32 %v1569, %v1604
      %v1609 = vmul.f32 %v1570, %v1604
      %v1610 = vmul.f32 %v1571, %v1604
      %v1611 = vmul.f32 %v1572, %v1604
      %v1612 = vmul.f32 %v1573, %v1604
      %v1613 = vmul.f32 %v1574, %v1604
      %v1614 = vmul.f32 %v1575, %v1604
      %v1615 = vmul.f32 %v1576, %v1604
      %v1616 = vmul.f32 %v1577, %v1604
      %v1617 = vmul.f32 %v1578, %v1604
      %v1618 = vmul.f32 %v1579, %v1604
      %v1619 = vmul.f32 %v1580, %v1604
      %v1620 = vmul.f32 %v1581, %v1604
      %v1621 = vmul.f32 %v1582, %v1604
      %v1622 = vadd.f32 %v1583, %v1606
      %v1623 = vadd.f32 %v1584, %v1607
      %v1624 = vadd.f32 %v1585, %v1608
      %v1625 = vadd.f32 %v1586, %v1609
      %v1626 = vadd.f32 %v1587, %v1610
      %v1627 = vadd.f32 %v1588, %v1611
      %v1628 = vadd.f32 %v1589, %v1612
      %v1629 = vadd.f32 %v1590, %v1613
      %v1630 = vadd.f32 %v1591, %v1614
      %v1631 = vadd.f32 %v1592, %v1615
      %v1632 = vadd.f32 %v1593, %v1616
      %v1633 = vadd.f32 %v1594, %v1617
      %v1634 = vadd.f32 %v1595, %v1618
      %v1635 = vadd.f32 %v1596, %v1619
      %v1636 = vadd.f32 %v1597, %v1620
      %v1637 = vadd.f32 %v1598, %v1621
      %v1638 = vld [vmem:[%s8] sm:$0x1]
      %v1640 = vlaneseq
      %v1641 = vshrl.u32 %v1640, 7
      %v1642 = vsub.s32 0, %v1641
      %v1643 = vrot.slane %v1638, %v1642
      %v1645 = vadd.f32 %v1622, %v1643
      %v1646 = vadd.f32 %v1623, %v1643
      %v1647 = vadd.f32 %v1624, %v1643
      %v1648 = vadd.f32 %v1625, %v1643
      %v1649 = vadd.f32 %v1626, %v1643
      %v1650 = vadd.f32 %v1627, %v1643
      %v1651 = vadd.f32 %v1628, %v1643
      %v1652 = vadd.f32 %v1629, %v1643
      %v1653 = vadd.f32 %v1630, %v1643
      %v1654 = vadd.f32 %v1631, %v1643
      %v1655 = vadd.f32 %v1632, %v1643
      %v1656 = vadd.f32 %v1633, %v1643
      %v1657 = vadd.f32 %v1634, %v1643
      %v1658 = vadd.f32 %v1635, %v1643
      %v1659 = vadd.f32 %v1636, %v1643
      %v1660 = vadd.f32 %v1637, %v1643
      %v1661 = vpack.c.bf16 %v1646, %v1645
      %v1662 = vpack.c.bf16 %v1648, %v1647
      %v1663 = vpack.c.bf16 %v1650, %v1649
      %v1664 = vpack.c.bf16 %v1652, %v1651
      %v1665 = vpack.c.bf16 %v1654, %v1653
      %v1666 = vpack.c.bf16 %v1656, %v1655
      %v1667 = vpack.c.bf16 %v1658, %v1657
      %v1668 = vpack.c.bf16 %v1660, %v1659
      %v1677 = vunpack.c.l.b16 %v1661
      %v1678 = vunpack.c.h.b16 %v1661
      %v1679 = vunpack.c.l.b16 %v1662
      %v1680 = vunpack.c.h.b16 %v1662
      %v1681 = vunpack.c.l.b16 %v1663
      %v1682 = vunpack.c.h.b16 %v1663
      %v1683 = vunpack.c.l.b16 %v1664
      %v1684 = vunpack.c.h.b16 %v1664
      %v1685 = vunpack.c.l.b16 %v1665
      %v1686 = vunpack.c.h.b16 %v1665
      %v1687 = vunpack.c.l.b16 %v1666
      %v1688 = vunpack.c.h.b16 %v1666
      %v1689 = vunpack.c.l.b16 %v1667
      %v1690 = vunpack.c.h.b16 %v1667
      %v1691 = vunpack.c.l.b16 %v1668
      %v1692 = vunpack.c.h.b16 %v1668
      %v1693 = vpack.c.b16 %v1677, %v1677
      %v1694 = vpack.c.b16 %v1678, %v1678
      %v1695 = vpack.c.b16 %v1679, %v1679
      %v1696 = vpack.c.b16 %v1680, %v1680
      %v1697 = vpack.c.b16 %v1681, %v1681
      %v1698 = vpack.c.b16 %v1682, %v1682
      %v1699 = vpack.c.b16 %v1683, %v1683
      %v1700 = vpack.c.b16 %v1684, %v1684
      %v1701 = vpack.c.b16 %v1685, %v1685
      %v1702 = vpack.c.b16 %v1686, %v1686
      %v1703 = vpack.c.b16 %v1687, %v1687
      %v1704 = vpack.c.b16 %v1688, %v1688
      %v1705 = vpack.c.b16 %v1689, %v1689
      %v1706 = vpack.c.b16 %v1690, %v1690
      %v1707 = vpack.c.b16 %v1691, %v1691
      %v1708 = vpack.c.b16 %v1692, %v1692
      %vm1725 = vcmask 257024
      %1726 = vst.msk [vmem:[%s356] sm:$0xf] %vm1725, %v1693
      %1727 = vst.msk [vmem:[%s356 + $0x4] sm:$0xf] %vm1725, %v1694
      %1728 = vst.msk [vmem:[%s356 + $0x8] sm:$0xf] %vm1725, %v1695
      %1729 = vst.msk [vmem:[%s356 + $0xc] sm:$0xf] %vm1725, %v1696
      %1730 = vst.msk [vmem:[%s356 + $0x10] sm:$0xf] %vm1725, %v1697
      %1731 = vst.msk [vmem:[%s356 + $0x14] sm:$0xf] %vm1725, %v1698
      %1732 = vst.msk [vmem:[%s356 + $0x18] sm:$0xf] %vm1725, %v1699
      %1733 = vst.msk [vmem:[%s356 + $0x1c] sm:$0xf] %vm1725, %v1700
      %1734 = vst.msk [vmem:[%s356 + $0x20] sm:$0xf] %vm1725, %v1701
      %1735 = vst.msk [vmem:[%s356 + $0x24] sm:$0xf] %vm1725, %v1702
      %1736 = vst.msk [vmem:[%s356 + $0x28] sm:$0xf] %vm1725, %v1703
      %1737 = vst.msk [vmem:[%s356 + $0x2c] sm:$0xf] %vm1725, %v1704
      %1738 = vst.msk [vmem:[%s356 + $0x30] sm:$0xf] %vm1725, %v1705
      %1739 = vst.msk [vmem:[%s356 + $0x34] sm:$0xf] %vm1725, %v1706
      %1740 = vst.msk [vmem:[%s356 + $0x38] sm:$0xf] %vm1725, %v1707
      %1741 = vst.msk [vmem:[%s356 + $0x3c] sm:$0xf] %vm1725, %v1708
      %s1742 = smul.u32 16, %s20
      %p1743 = scmp.lt.s32.totalorder %s1742, 63
      %s1744 = scalar_select %p1743, %s1742, 63
      %s1745 = smul.addr %s1744, 4
      %s1746 = scalar_lea.vmem %s9, %s1745
      // Predicated region
      $region57: #{gmrw_forward.26} parent=55 // pred_check
        %p1747 = pneg %p237
      $region58: #{gmrw_forward.26} parent=55 // pred_check_branch
        %1749 = sbr.rel (%p1747) target = $region60
      $region59: #{gmrw_forward.26} parent=55 // pred_region
        %s1750 = smul.u32 16, %s20
      $region60: #{gmrw_forward.26} parent=55 // pred_fallthru
        _
    $region56: #{gmrw_forward.26} parent=5 // pred_fallthru
      _
    %p1751 = scmp.le.s32.totalorder 2, %s15
    // Predicated region
    $region61: #{gmrw_forward.26} parent=5 // pred_check
      %p1752 = pneg %p1751
    $region62: #{gmrw_forward.26} parent=5 // pred_check_branch
      %1754 = sbr.rel (%p1752) target = $region64
    $region63: #{gmrw_forward.26} parent=5 // pred_region
      %s1755 = ssub.s32 %s15, 2
      // Predicated region
      $region65: #{gmrw_forward.26} parent=63 // pred_check
        %p1756 = pneg %p243
      $region66: #{gmrw_forward.26} parent=63 // pred_check_branch
        %1758 = sbr.rel (%p1756) target = $region68
      $region67: #{gmrw_forward.26} parent=63 // pred_region
        %s1759 = smul.u32 16, %s21
        %p1760 = scmp.lt.s32.totalorder %s1759, 63
        %s1761 = scalar_select %p1760, %s1759, 63
        %s1762 = smul.addr %s1761, 4
        %s1763 = scalar_lea.vmem %s9, %s1762
      $region68: #{gmrw_forward.26} parent=63 // pred_fallthru
        _
    $region64: #{gmrw_forward.26} parent=5 // pred_fallthru
      _
  $region6: #{gmrw_forward.26} parent=0 // loop_footer
    %s19 = sadd.s32 1, %s15
  $region7: #{gmrw_forward.26} parent=0 // loop_footer_branch
    %14 = sbr.rel target = $region3
  $region8: #{gmrw_forward.26} parent=0 // loop_exit
    _

// kernel: gmrw_forward.27
$region0: #{gmrw_forward.27}
  #allocation0 [shape = 'u32[]', space=smem, size = 0x4, offset = 0x4, fixed_abs, tag = 'smem constant byte address 0x4 - core index']
  #allocation1 [shape = 'u32[144,128]{1,0:T(1,128)}', space=vmem, size = 0x12000, scoped, tag = 'internal scratch']
  %s0 = inlined_call_operand.vmem [shape: bf16[512,32], index: 0, kind: input, shape index: {}]
  %s1 = inlined_call_operand.vmem [shape: bf16[32,32], index: 1, kind: input, shape index: {}]
  %s2 = inlined_call_operand.vmem [shape: f32[1,32], index: 2, kind: input, shape index: {}]
  %s3 = inlined_call_operand.vmem [shape: bf16[512,32], index: 3, kind: output, shape index: {}]
  %s4 = sld [smem:[#allocation0]]
  $region45: #{gmrw_forward.27} parent=0
    _
  %s6 = ssub.s32 1, %s4
  %s7 = scalar_select 0, %s6, %s4
  loop: start=0, step=1, limit=6
  $region2: #{gmrw_forward.27} parent=0 // loop_pre_header
    _
  $region3: #{gmrw_forward.27} parent=0 // loop_header
    %s9 = sphi 0, %s13
    %p10 = scmp.ge.s32.totalorder %s9, 6
    %s19 = sphi 0, %s21
    %s22 = sphi 0, %s19
    %s23 = sphi 0, %s22
    %s39 = sphi 0, %s23
    %s43 = sphi 0, %s43
    %s45 = sphi 0, %s43
    %s46 = sphi 0, %s45
    %s60 = sphi 0, %s46
    %s64 = sphi 0, %s64
    %s66 = sphi 0, %s64
    %s67 = sphi 0, %s66
    %s81 = sphi 0, %s67
    %s87 = sphi 0, %s89
    %s90 = sphi 0, %s87
    %s91 = sphi 0, %s90
    %s107 = sphi 0, %s91
  $region4: #{gmrw_forward.27} parent=0 // loop_header_branch
    %12 = sbr.rel (%p10) target = $region8
  $region5: #{gmrw_forward.27} parent=0 // loop_body
    %s14 = ssub.s32 %s9, 1
    %s15 = ssub.s32 %s9, 2
    %s16 = sadd.s32 %s9, 1
    %s17 = ssub.s32 %s9, %s16
    %p18 = scmp.eq.s32.totalorder %s17, 0
    %s20 = sadd.s32 %s19, 1
    %s21 = scalar_select %p18, %s19, %s20
    %p24 = pneg %p18
    %p25 = scmp.eq.s32.totalorder %s9, 3
    %p26 = por %p24, %p25
    %p27 = scmp.ne.s32.totalorder %s19, %s22
    %p28 = scmp.eq.s32.totalorder %s9, 0
    %p29 = por %p27, %p28
    %p30 = scmp.ne.s32.totalorder %s19, %s22
    %p31 = scmp.eq.s32.totalorder %s14, 3
    %p32 = por %p30, %p31
    %p33 = scmp.ne.s32.totalorder %s22, %s23
    %p34 = scmp.eq.s32.totalorder %s14, 0
    %p35 = por %p33, %p34
    %p36 = scmp.ne.s32.totalorder %s22, %s23
    %p37 = scmp.eq.s32.totalorder %s15, 3
    %p38 = por %p36, %p37
    %p40 = scmp.ne.s32.totalorder %s23, %s39
    %p41 = scmp.eq.s32.totalorder %s15, 0
    %p42 = por %p40, %p41
    %s44 = sadd.s32 %s43, 1
    %p47 = scmp.eq.s32.totalorder %s9, 3
    %p48 = scmp.ne.s32.totalorder %s43, %s45
    %p49 = scmp.eq.s32.totalorder %s9, 0
    %p50 = por %p48, %p49
    %p51 = scmp.ne.s32.totalorder %s43, %s45
    %p52 = scmp.eq.s32.totalorder %s14, 3
    %p53 = por %p51, %p52
    %p54 = scmp.ne.s32.totalorder %s45, %s46
    %p55 = scmp.eq.s32.totalorder %s14, 0
    %p56 = por %p54, %p55
    %p57 = scmp.ne.s32.totalorder %s45, %s46
    %p58 = scmp.eq.s32.totalorder %s15, 3
    %p59 = por %p57, %p58
    %p61 = scmp.ne.s32.totalorder %s46, %s60
    %p62 = scmp.eq.s32.totalorder %s15, 0
    %p63 = por %p61, %p62
    %s65 = sadd.s32 %s64, 1
    %p68 = scmp.eq.s32.totalorder %s9, 3
    %p69 = scmp.ne.s32.totalorder %s64, %s66
    %p70 = scmp.eq.s32.totalorder %s9, 0
    %p71 = por %p69, %p70
    %p72 = scmp.ne.s32.totalorder %s64, %s66
    %p73 = scmp.eq.s32.totalorder %s14, 3
    %p74 = por %p72, %p73
    %p75 = scmp.ne.s32.totalorder %s66, %s67
    %p76 = scmp.eq.s32.totalorder %s14, 0
    %p77 = por %p75, %p76
    %p78 = scmp.ne.s32.totalorder %s66, %s67
    %p79 = scmp.eq.s32.totalorder %s15, 3
    %p80 = por %p78, %p79
    %p82 = scmp.ne.s32.totalorder %s67, %s81
    %p83 = scmp.eq.s32.totalorder %s15, 0
    %p84 = por %p82, %p83
    %s85 = ssub.s32 %s9, %s16
    %p86 = scmp.eq.s32.totalorder %s85, 0
    %s88 = sadd.s32 %s87, 1
    %s89 = scalar_select %p86, %s87, %s88
    %p92 = pneg %p86
    %p93 = scmp.eq.s32.totalorder %s9, 3
    %p94 = por %p92, %p93
    %p95 = scmp.ne.s32.totalorder %s87, %s90
    %p96 = scmp.eq.s32.totalorder %s9, 0
    %p97 = por %p95, %p96
    %p98 = scmp.ne.s32.totalorder %s87, %s90
    %p99 = scmp.eq.s32.totalorder %s14, 3
    %p100 = por %p98, %p99
    %p101 = scmp.ne.s32.totalorder %s90, %s91
    %p102 = scmp.eq.s32.totalorder %s14, 0
    %p103 = por %p101, %p102
    %p104 = scmp.ne.s32.totalorder %s90, %s91
    %p105 = scmp.eq.s32.totalorder %s15, 3
    %p106 = por %p104, %p105
    %p108 = scmp.ne.s32.totalorder %s91, %s107
    %p109 = scmp.eq.s32.totalorder %s15, 0
    %p110 = por %p108, %p109
    %p111 = scmp.le.s32.totalorder 1, %s9
    %p112 = scmp.lt.s32.totalorder %s9, 5
    %p113 = pnand %p111, %p112
    %p114 = pneg %p113
    // Predicated region
    $region9: #{gmrw_forward.27} parent=5 // pred_check
      _
    $region10: #{gmrw_forward.27} parent=5 // pred_check_branch
      %116 = sbr.rel (%p113) target = $region12
    $region11: #{gmrw_forward.27} parent=5 // pred_region
      %s117 = ssub.s32 %s9, 1
      // Predicated region
      $region13: #{gmrw_forward.27} parent=11 // pred_check
        %p118 = pneg %p56
      $region14: #{gmrw_forward.27} parent=11 // pred_check_branch
        %120 = sbr.rel (%p118) target = $region16
      $region15: #{gmrw_forward.27} parent=11 // pred_region
        _
      $region16: #{gmrw_forward.27} parent=11 // pred_fallthru
        _
      // Predicated region
      $region17: #{gmrw_forward.27} parent=11 // pred_check
        %p121 = pneg %p77
      $region18: #{gmrw_forward.27} parent=11 // pred_check_branch
        %123 = sbr.rel (%p121) target = $region20
      $region19: #{gmrw_forward.27} parent=11 // pred_region
        _
      $region20: #{gmrw_forward.27} parent=11 // pred_fallthru
        _
    $region12: #{gmrw_forward.27} parent=5 // pred_fallthru
      _
    %p124 = scmp.lt.s32.totalorder %s9, 4
    // Predicated region
    $region21: #{gmrw_forward.27} parent=5 // pred_check
      %p125 = pneg %p124
    $region22: #{gmrw_forward.27} parent=5 // pred_check_branch
      %127 = sbr.rel (%p125) target = $region24
    $region23: #{gmrw_forward.27} parent=5 // pred_region
      // Predicated region
      $region25: #{gmrw_forward.27} parent=23 // pred_check
        %p128 = pneg %p29
      $region26: #{gmrw_forward.27} parent=23 // pred_check_branch
        %130 = sbr.rel (%p128) target = $region28
      $region27: #{gmrw_forward.27} parent=23 // pred_region
        %s131 = smul.u32 16, %s9
        %p132 = scmp.lt.s32.totalorder %s131, 63
        %s133 = scalar_select %p132, %s131, 63
        %s134 = smul.addr %s133, 4
        %s135 = scalar_lea.vmem %s0, %s134
        %s136 = smul.u32 16, %s9
      $region28: #{gmrw_forward.27} parent=23 // pred_fallthru
        _
    $region24: #{gmrw_forward.27} parent=5 // pred_fallthru
      _
    %p137 = scmp.le.s32.totalorder 1, %s9
    %p138 = scmp.lt.s32.totalorder %s9, 5
    %p139 = pnand %p137, %p138
    %p140 = pneg %p139
    // Predicated region
    $region29: #{gmrw_forward.27} parent=5 // pred_check
      _
    $region30: #{gmrw_forward.27} parent=5 // pred_check_branch
      %142 = sbr.rel (%p139) target = $region32
    $region31: #{gmrw_forward.27} parent=5 // pred_region
      %s143 = ssub.s32 %s9, 1
      %s144 = smul.u32 16, %s14
      %p145 = scmp.lt.s32.totalorder %s144, 63
      %s146 = scalar_select %p145, %s144, 63
      %s147 = smul.addr %s146, 4
      %s148 = scalar_lea.vmem %s0, %s147
      %p149 = pneg %p35
      %p150 = pneg %p32
      %p151 = pneg %p56
      %p152 = pneg %p53
      %p153 = pneg %p77
      %p154 = pneg %p74
      %p155 = pneg %p103
      %p156 = pneg %p100
      %s157 = smul.u32 16, %s14
      %p158 = scmp.lt.s32.totalorder %s157, 63
      %s159 = scalar_select %p158, %s157, 63
      %s160 = smul.addr %s159, 4
      %s161 = scalar_lea.vmem %s3, %s160
      %s162 = smul.u32 16, %s14
      %p163 = scmp.lt.s32.totalorder %s162, 63
      %s164 = scalar_select %p163, %s162, 63
      %s165 = smul.addr %s164, 4
      %s166 = scalar_lea.vmem %s0, %s165
      %s167 = smul.u32 16, %s14
      %s168 = smul.u32 16, %s14
      %p169 = scmp.lt.s32.totalorder %s168, 63
      %s170 = scalar_select %p169, %s168, 63
      %s171 = smul.addr %s170, 4
      %s172 = scalar_lea.vmem %s3, %s171
      %s173 = smul.u32 16, %s14
      %v175 = vld [vmem:[%s166] sm:$0xf]
      %v176 = vld [vmem:[%s166 + $0x4] sm:$0xf]
      %v177 = vld [vmem:[%s166 + $0x8] sm:$0xf]
      %v178 = vld [vmem:[%s166 + $0xc] sm:$0xf]
      %v179 = vld [vmem:[%s166 + $0x10] sm:$0xf]
      %v180 = vld [vmem:[%s166 + $0x14] sm:$0xf]
      %v181 = vld [vmem:[%s166 + $0x18] sm:$0xf]
      %v182 = vld [vmem:[%s166 + $0x1c] sm:$0xf]
      %v183 = vld [vmem:[%s166 + $0x20] sm:$0xf]
      %v184 = vld [vmem:[%s166 + $0x24] sm:$0xf]
      %v185 = vld [vmem:[%s166 + $0x28] sm:$0xf]
      %v186 = vld [vmem:[%s166 + $0x2c] sm:$0xf]
      %v187 = vld [vmem:[%s166 + $0x30] sm:$0xf]
      %v188 = vld [vmem:[%s166 + $0x34] sm:$0xf]
      %v189 = vld [vmem:[%s166 + $0x38] sm:$0xf]
      %v190 = vld [vmem:[%s166 + $0x3c] sm:$0xf]
      %v191 = vld [vmem:[%s1] sm:$0xf]
      %v192 = vld [vmem:[%s1 + $0x4] sm:$0xf]
      %v193 = vld [vmem:[%s1 + $0x8] sm:$0xf]
      %v194 = vld [vmem:[%s1 + $0xc] sm:$0xf]
      %v195 = vld [vmem:[%s2] sm:$0x1]
      %v197 = vlaneseq
      %v198 = vshrl.u32 %v197, 7
      %v199 = vsub.s32 0, %v198
      %v200 = vrot.slane %v195, %v199
      %v218 = vunpack.c.l.b16 %v175
      %v219 = vunpack.c.l.b16 %v176
      %v220 = vunpack.c.l.b16 %v177
      %v221 = vunpack.c.l.b16 %v178
      %v222 = vunpack.c.l.b16 %v179
      %v223 = vunpack.c.l.b16 %v180
      %v224 = vunpack.c.l.b16 %v181
      %v225 = vunpack.c.l.b16 %v182
      %v226 = vunpack.c.l.b16 %v183
      %v227 = vunpack.c.l.b16 %v184
      %v228 = vunpack.c.l.b16 %v185
      %v229 = vunpack.c.l.b16 %v186
      %v230 = vunpack.c.l.b16 %v187
      %v231 = vunpack.c.l.b16 %v188
      %v232 = vunpack.c.l.b16 %v189
      %v233 = vunpack.c.l.b16 %v190
      %v234 = vpack.c.b16 %v219, %v218
      %v235 = vpack.c.b16 %v221, %v220
      %v236 = vpack.c.b16 %v223, %v222
      %v237 = vpack.c.b16 %v225, %v224
      %v238 = vpack.c.b16 %v227, %v226
      %v239 = vpack.c.b16 %v229, %v228
      %v240 = vpack.c.b16 %v231, %v230
      %v241 = vpack.c.b16 %v233, %v232
      %v246 = vunpack.c.l.b16 %v191
      %v247 = vunpack.c.l.b16 %v192
      %v248 = vunpack.c.l.b16 %v193
      %v249 = vunpack.c.l.b16 %v194
      %v250 = vpack.c.b16 %v247, %v246
      %v251 = vpack.c.b16 %v249, %v248
      %vm254 = vcmask 261120
      %v256 = vsel %vm254, %v234, 0
      %v259 = vsel %vm254, %v235, 0
      %v262 = vsel %vm254, %v236, 0
      %v265 = vsel %vm254, %v237, 0
      %v268 = vsel %vm254, %v238, 0
      %v271 = vsel %vm254, %v239, 0
      %v274 = vsel %vm254, %v240, 0
      %v277 = vsel %vm254, %v241, 0
      %279 = vmatprep.subr.bf16.mxu0 0
      %280 = vmatpush1.bf16.msra.mxu0 %v250
      %281 = vmatprep.subr.bf16.mxu0 0
      %282 = vmatpush1.bf16.msra.mxu0 %v251
      %283 = vmatprep.subr.bf16.mxu0 0
      %284 = vmatpush1.bf16.msra.mxu0 0
      %285 = vmatprep.subr.bf16.mxu0 0
      %286 = vmatpush1.bf16.msra.mxu0 0
      %287 = vmatprep.subr.bf16.mxu0 0
      %288 = vmatpush1.bf16.msra.mxu0 0
      %289 = vmatprep.subr.bf16.mxu0 0
      %290 = vmatpush1.bf16.msra.mxu0 0
      %291 = vmatprep.subr.bf16.mxu0 0
      %292 = vmatpush1.bf16.msra.mxu0 0
      %293 = vmatprep.subr.bf16.mxu0 0
      %294 = vmatpush1.bf16.msra.mxu0 0
      %295 = vmatprep.subr.bf16.mxu0 0
      %296 = vmatpush1.bf16.msra.mxu0 0
      %297 = vmatprep.subr.bf16.mxu0 0
      %298 = vmatpush1.bf16.msra.mxu0 0
      %299 = vmatprep.subr.bf16.mxu0 0
      %300 = vmatpush1.bf16.msra.mxu0 0
      %301 = vmatprep.subr.bf16.mxu0 0
      %302 = vmatpush1.bf16.msra.mxu0 0
      %303 = vmatprep.subr.bf16.mxu0 0
      %304 = vmatpush1.bf16.msra.mxu0 0
      %305 = vmatprep.subr.bf16.mxu0 0
      %306 = vmatpush1.bf16.msra.mxu0 0
      %307 = vmatprep.subr.bf16.mxu0 0
      %308 = vmatpush1.bf16.msra.mxu0 0
      %309 = vmatprep.subr.bf16.mxu0 0
      %310 = vmatpush1.bf16.msra.mxu0 0
      %311 = vmatprep.mubr.bf16.mxu0 0
      %312 = vmatmul.mubr.bf16.gmra.mrb[0].mxu0 %v256
      %v313 = vpop.f32.mrb[0].mxu0
      %v314 = vadd.f32 %v200, %v313
      %v315 = vpop.f32.mrb[0].mxu0
      %v316 = vpop.f32.mrb[0].mxu0
      %v317 = vadd.f32 %v200, %v316
      %v318 = vpop.f32.mrb[0].mxu0
      %319 = vmatprep.mubr.bf16.mxu0 0
      %320 = vmatmul.mubr.bf16.gmra.mrb[0].mxu0 %v259
      %v321 = vpop.f32.mrb[0].mxu0
      %v322 = vadd.f32 %v200, %v321
      %v323 = vpop.f32.mrb[0].mxu0
      %v324 = vpop.f32.mrb[0].mxu0
      %v325 = vadd.f32 %v200, %v324
      %v326 = vpop.f32.mrb[0].mxu0
      %327 = vmatprep.mubr.bf16.mxu0 0
      %328 = vmatmul.mubr.bf16.gmra.mrb[0].mxu0 %v262
      %v329 = vpop.f32.mrb[0].mxu0
      %v330 = vadd.f32 %v200, %v329
      %v331 = vpop.f32.mrb[0].mxu0
      %v332 = vpop.f32.mrb[0].mxu0
      %v333 = vadd.f32 %v200, %v332
      %v334 = vpop.f32.mrb[0].mxu0
      %335 = vmatprep.mubr.bf16.mxu0 0
      %336 = vmatmul.mubr.bf16.gmra.mrb[0].mxu0 %v265
      %v337 = vpop.f32.mrb[0].mxu0
      %v338 = vadd.f32 %v200, %v337
      %v339 = vpop.f32.mrb[0].mxu0
      %v340 = vpop.f32.mrb[0].mxu0
      %v341 = vadd.f32 %v200, %v340
      %v342 = vpop.f32.mrb[0].mxu0
      %343 = vmatprep.mubr.bf16.mxu0 0
      %344 = vmatmul.mubr.bf16.gmra.mrb[0].mxu0 %v268
      %v345 = vpop.f32.mrb[0].mxu0
      %v346 = vadd.f32 %v200, %v345
      %v347 = vpop.f32.mrb[0].mxu0
      %v348 = vpop.f32.mrb[0].mxu0
      %v349 = vadd.f32 %v200, %v348
      %v350 = vpop.f32.mrb[0].mxu0
      %351 = vmatprep.mubr.bf16.mxu0 0
      %352 = vmatmul.mubr.bf16.gmra.mrb[0].mxu0 %v271
      %v353 = vpop.f32.mrb[0].mxu0
      %v354 = vadd.f32 %v200, %v353
      %v355 = vpop.f32.mrb[0].mxu0
      %v356 = vpop.f32.mrb[0].mxu0
      %v357 = vadd.f32 %v200, %v356
      %v358 = vpop.f32.mrb[0].mxu0
      %359 = vmatprep.mubr.bf16.mxu0 0
      %360 = vmatmul.mubr.bf16.gmra.mrb[0].mxu0 %v274
      %v361 = vpop.f32.mrb[0].mxu0
      %v362 = vadd.f32 %v200, %v361
      %v363 = vpop.f32.mrb[0].mxu0
      %v364 = vpop.f32.mrb[0].mxu0
      %v365 = vadd.f32 %v200, %v364
      %v366 = vpop.f32.mrb[0].mxu0
      %367 = vmatprep.mubr.bf16.mxu0 0
      %368 = vmatmul.mubr.bf16.gmra.mrb[0].mxu0 %v277
      %v369 = vpop.f32.mrb[0].mxu0
      %v370 = vadd.f32 %v200, %v369
      %v371 = vpop.f32.mrb[0].mxu0
      %v372 = vpop.f32.mrb[0].mxu0
      %v373 = vadd.f32 %v200, %v372
      %v374 = vpop.f32.mrb[0].mxu0
      %375 = vdwg.mxu0
      %v376 = vpack.c.bf16 %v317, %v314
      %v377 = vpack.c.bf16 %v325, %v322
      %v378 = vpack.c.bf16 %v333, %v330
      %v379 = vpack.c.bf16 %v341, %v338
      %v380 = vpack.c.bf16 %v349, %v346
      %v381 = vpack.c.bf16 %v357, %v354
      %v382 = vpack.c.bf16 %v365, %v362
      %v383 = vpack.c.bf16 %v373, %v370
      %v392 = vunpack.c.l.b16 %v376
      %v393 = vunpack.c.h.b16 %v376
      %v394 = vunpack.c.l.b16 %v377
      %v395 = vunpack.c.h.b16 %v377
      %v396 = vunpack.c.l.b16 %v378
      %v397 = vunpack.c.h.b16 %v378
      %v398 = vunpack.c.l.b16 %v379
      %v399 = vunpack.c.h.b16 %v379
      %v400 = vunpack.c.l.b16 %v380
      %v401 = vunpack.c.h.b16 %v380
      %v402 = vunpack.c.l.b16 %v381
      %v403 = vunpack.c.h.b16 %v381
      %v404 = vunpack.c.l.b16 %v382
      %v405 = vunpack.c.h.b16 %v382
      %v406 = vunpack.c.l.b16 %v383
      %v407 = vunpack.c.h.b16 %v383
      %v408 = vpack.c.b16 %v392, %v392
      %v409 = vpack.c.b16 %v393, %v393
      %v410 = vpack.c.b16 %v394, %v394
      %v411 = vpack.c.b16 %v395, %v395
      %v412 = vpack.c.b16 %v396, %v396
      %v413 = vpack.c.b16 %v397, %v397
      %v414 = vpack.c.b16 %v398, %v398
      %v415 = vpack.c.b16 %v399, %v399
      %v416 = vpack.c.b16 %v400, %v400
      %v417 = vpack.c.b16 %v401, %v401
      %v418 = vpack.c.b16 %v402, %v402
      %v419 = vpack.c.b16 %v403, %v403
      %v420 = vpack.c.b16 %v404, %v404
      %v421 = vpack.c.b16 %v405, %v405
      %v422 = vpack.c.b16 %v406, %v406
      %v423 = vpack.c.b16 %v407, %v407
      %vm440 = vcmask 257024
      %441 = vst.msk [vmem:[%s172] sm:$0xf] %vm440, %v408
      %442 = vst.msk [vmem:[%s172 + $0x4] sm:$0xf] %vm440, %v409
      %443 = vst.msk [vmem:[%s172 + $0x8] sm:$0xf] %vm440, %v410
      %444 = vst.msk [vmem:[%s172 + $0xc] sm:$0xf] %vm440, %v411
      %445 = vst.msk [vmem:[%s172 + $0x10] sm:$0xf] %vm440, %v412
      %446 = vst.msk [vmem:[%s172 + $0x14] sm:$0xf] %vm440, %v413
      %447 = vst.msk [vmem:[%s172 + $0x18] sm:$0xf] %vm440, %v414
      %448 = vst.msk [vmem:[%s172 + $0x1c] sm:$0xf] %vm440, %v415
      %449 = vst.msk [vmem:[%s172 + $0x20] sm:$0xf] %vm440, %v416
      %450 = vst.msk [vmem:[%s172 + $0x24] sm:$0xf] %vm440, %v417
      %451 = vst.msk [vmem:[%s172 + $0x28] sm:$0xf] %vm440, %v418
      %452 = vst.msk [vmem:[%s172 + $0x2c] sm:$0xf] %vm440, %v419
      %453 = vst.msk [vmem:[%s172 + $0x30] sm:$0xf] %vm440, %v420
      %454 = vst.msk [vmem:[%s172 + $0x34] sm:$0xf] %vm440, %v421
      %455 = vst.msk [vmem:[%s172 + $0x38] sm:$0xf] %vm440, %v422
      %456 = vst.msk [vmem:[%s172 + $0x3c] sm:$0xf] %vm440, %v423
      %s457 = smul.u32 16, %s14
      %p458 = scmp.lt.s32.totalorder %s457, 63
      %s459 = scalar_select %p458, %s457, 63
      %s460 = smul.addr %s459, 4
      %s461 = scalar_lea.vmem %s3, %s460
      // Predicated region
      $region33: #{gmrw_forward.27} parent=31 // pred_check
        %p462 = pneg %p100
      $region34: #{gmrw_forward.27} parent=31 // pred_check_branch
        %464 = sbr.rel (%p462) target = $region36
      $region35: #{gmrw_forward.27} parent=31 // pred_region
        %s465 = smul.u32 16, %s14
      $region36: #{gmrw_forward.27} parent=31 // pred_fallthru
        _
    $region32: #{gmrw_forward.27} parent=5 // pred_fallthru
      _
    %p466 = scmp.le.s32.totalorder 2, %s9
    // Predicated region
    $region37: #{gmrw_forward.27} parent=5 // pred_check
      %p467 = pneg %p466
    $region38: #{gmrw_forward.27} parent=5 // pred_check_branch
      %469 = sbr.rel (%p467) target = $region40
    $region39: #{gmrw_forward.27} parent=5 // pred_region
      %s470 = ssub.s32 %s9, 2
      // Predicated region
      $region41: #{gmrw_forward.27} parent=39 // pred_check
        %p471 = pneg %p106
      $region42: #{gmrw_forward.27} parent=39 // pred_check_branch
        %473 = sbr.rel (%p471) target = $region44
      $region43: #{gmrw_forward.27} parent=39 // pred_region
        %s474 = smul.u32 16, %s15
        %p475 = scmp.lt.s32.totalorder %s474, 63
        %s476 = scalar_select %p475, %s474, 63
        %s477 = smul.addr %s476, 4
        %s478 = scalar_lea.vmem %s3, %s477
      $region44: #{gmrw_forward.27} parent=39 // pred_fallthru
        _
    $region40: #{gmrw_forward.27} parent=5 // pred_fallthru
      _
  $region6: #{gmrw_forward.27} parent=0 // loop_footer
    %s13 = sadd.s32 1, %s9
  $region7: #{gmrw_forward.27} parent=0 // loop_footer_branch
    %8 = sbr.rel target = $region3
  $region8: #{gmrw_forward.27} parent=0 // loop_exit
    _

// kernel: gmrw_forward.28
$region0: #{gmrw_forward.28}
  #allocation0 [shape = 'u32[]', space=smem, size = 0x4, offset = 0x4, fixed_abs, tag = 'smem constant byte address 0x4 - core index']
  #allocation1 [shape = 'u32[144,128]{1,0:T(1,128)}', space=vmem, size = 0x12000, scoped, tag = 'internal scratch']
  %s0 = inlined_call_operand.vmem [shape: bf16[512,32], index: 0, kind: input, shape index: {}]
  %s1 = inlined_call_operand.vmem [shape: bf16[32,32], index: 1, kind: input, shape index: {}]
  %s2 = inlined_call_operand.vmem [shape: bf16[32,32], index: 2, kind: input, shape index: {}]
  %s3 = inlined_call_operand.vmem [shape: f32[1,32], index: 3, kind: input, shape index: {}]
  %s4 = inlined_call_operand.vmem [shape: f32[1,32], index: 4, kind: input, shape index: {}]
  %s5 = inlined_call_operand.vmem [shape: bf16[512,32], index: 5, kind: output, shape index: {0}]
  %s6 = inlined_call_operand.vmem [shape: bf16[512,32], index: 6, kind: output, shape index: {1}]
  %7 = xla_tuple %s5, %s6
  %s8 = sld [smem:[#allocation0]]
  $region61: #{gmrw_forward.28} parent=0
    _
  %s10 = ssub.s32 1, %s8
  %s11 = scalar_select 0, %s10, %s8
  loop: start=0, step=1, limit=6
  $region2: #{gmrw_forward.28} parent=0 // loop_pre_header
    _
  $region3: #{gmrw_forward.28} parent=0 // loop_header
    %s13 = sphi 0, %s17
    %p14 = scmp.ge.s32.totalorder %s13, 6
    %s23 = sphi 0, %s25
    %s26 = sphi 0, %s23
    %s27 = sphi 0, %s26
    %s43 = sphi 0, %s27
    %s47 = sphi 0, %s47
    %s49 = sphi 0, %s47
    %s50 = sphi 0, %s49
    %s64 = sphi 0, %s50
    %s68 = sphi 0, %s68
    %s70 = sphi 0, %s68
    %s71 = sphi 0, %s70
    %s85 = sphi 0, %s71
    %s89 = sphi 0, %s89
    %s91 = sphi 0, %s89
    %s92 = sphi 0, %s91
    %s106 = sphi 0, %s92
    %s110 = sphi 0, %s110
    %s112 = sphi 0, %s110
    %s113 = sphi 0, %s112
    %s127 = sphi 0, %s113
    %s133 = sphi 0, %s135
    %s136 = sphi 0, %s133
    %s137 = sphi 0, %s136
    %s153 = sphi 0, %s137
    %s159 = sphi 0, %s161
    %s162 = sphi 0, %s159
    %s163 = sphi 0, %s162
    %s179 = sphi 0, %s163
  $region4: #{gmrw_forward.28} parent=0 // loop_header_branch
    %16 = sbr.rel (%p14) target = $region8
  $region5: #{gmrw_forward.28} parent=0 // loop_body
    %s18 = ssub.s32 %s13, 1
    %s19 = ssub.s32 %s13, 2
    %s20 = sadd.s32 %s13, 1
    %s21 = ssub.s32 %s13, %s20
    %p22 = scmp.eq.s32.totalorder %s21, 0
    %s24 = sadd.s32 %s23, 1
    %s25 = scalar_select %p22, %s23, %s24
    %p28 = pneg %p22
    %p29 = scmp.eq.s32.totalorder %s13, 3
    %p30 = por %p28, %p29
    %p31 = scmp.ne.s32.totalorder %s23, %s26
    %p32 = scmp.eq.s32.totalorder %s13, 0
    %p33 = por %p31, %p32
    %p34 = scmp.ne.s32.totalorder %s23, %s26
    %p35 = scmp.eq.s32.totalorder %s18, 3
    %p36 = por %p34, %p35
    %p37 = scmp.ne.s32.totalorder %s26, %s27
    %p38 = scmp.eq.s32.totalorder %s18, 0
    %p39 = por %p37, %p38
    %p40 = scmp.ne.s32.totalorder %s26, %s27
    %p41 = scmp.eq.s32.totalorder %s19, 3
    %p42 = por %p40, %p41
    %p44 = scmp.ne.s32.totalorder %s27, %s43
    %p45 = scmp.eq.s32.totalorder %s19, 0
    %p46 = por %p44, %p45
    %s48 = sadd.s32 %s47, 1
    %p51 = scmp.eq.s32.totalorder %s13, 3
    %p52 = scmp.ne.s32.totalorder %s47, %s49
    %p53 = scmp.eq.s32.totalorder %s13, 0
    %p54 = por %p52, %p53
    %p55 = scmp.ne.s32.totalorder %s47, %s49
    %p56 = scmp.eq.s32.totalorder %s18, 3
    %p57 = por %p55, %p56
    %p58 = scmp.ne.s32.totalorder %s49, %s50
    %p59 = scmp.eq.s32.totalorder %s18, 0
    %p60 = por %p58, %p59
    %p61 = scmp.ne.s32.totalorder %s49, %s50
    %p62 = scmp.eq.s32.totalorder %s19, 3
    %p63 = por %p61, %p62
    %p65 = scmp.ne.s32.totalorder %s50, %s64
    %p66 = scmp.eq.s32.totalorder %s19, 0
    %p67 = por %p65, %p66
    %s69 = sadd.s32 %s68, 1
    %p72 = scmp.eq.s32.totalorder %s13, 3
    %p73 = scmp.ne.s32.totalorder %s68, %s70
    %p74 = scmp.eq.s32.totalorder %s13, 0
    %p75 = por %p73, %p74
    %p76 = scmp.ne.s32.totalorder %s68, %s70
    %p77 = scmp.eq.s32.totalorder %s18, 3
    %p78 = por %p76, %p77
    %p79 = scmp.ne.s32.totalorder %s70, %s71
    %p80 = scmp.eq.s32.totalorder %s18, 0
    %p81 = por %p79, %p80
    %p82 = scmp.ne.s32.totalorder %s70, %s71
    %p83 = scmp.eq.s32.totalorder %s19, 3
    %p84 = por %p82, %p83
    %p86 = scmp.ne.s32.totalorder %s71, %s85
    %p87 = scmp.eq.s32.totalorder %s19, 0
    %p88 = por %p86, %p87
    %s90 = sadd.s32 %s89, 1
    %p93 = scmp.eq.s32.totalorder %s13, 3
    %p94 = scmp.ne.s32.totalorder %s89, %s91
    %p95 = scmp.eq.s32.totalorder %s13, 0
    %p96 = por %p94, %p95
    %p97 = scmp.ne.s32.totalorder %s89, %s91
    %p98 = scmp.eq.s32.totalorder %s18, 3
    %p99 = por %p97, %p98
    %p100 = scmp.ne.s32.totalorder %s91, %s92
    %p101 = scmp.eq.s32.totalorder %s18, 0
    %p102 = por %p100, %p101
    %p103 = scmp.ne.s32.totalorder %s91, %s92
    %p104 = scmp.eq.s32.totalorder %s19, 3
    %p105 = por %p103, %p104
    %p107 = scmp.ne.s32.totalorder %s92, %s106
    %p108 = scmp.eq.s32.totalorder %s19, 0
    %p109 = por %p107, %p108
    %s111 = sadd.s32 %s110, 1
    %p114 = scmp.eq.s32.totalorder %s13, 3
    %p115 = scmp.ne.s32.totalorder %s110, %s112
    %p116 = scmp.eq.s32.totalorder %s13, 0
    %p117 = por %p115, %p116
    %p118 = scmp.ne.s32.totalorder %s110, %s112
    %p119 = scmp.eq.s32.totalorder %s18, 3
    %p120 = por %p118, %p119
    %p121 = scmp.ne.s32.totalorder %s112, %s113
    %p122 = scmp.eq.s32.totalorder %s18, 0
    %p123 = por %p121, %p122
    %p124 = scmp.ne.s32.totalorder %s112, %s113
    %p125 = scmp.eq.s32.totalorder %s19, 3
    %p126 = por %p124, %p125
    %p128 = scmp.ne.s32.totalorder %s113, %s127
    %p129 = scmp.eq.s32.totalorder %s19, 0
    %p130 = por %p128, %p129
    %s131 = ssub.s32 %s13, %s20
    %p132 = scmp.eq.s32.totalorder %s131, 0
    %s134 = sadd.s32 %s133, 1
    %s135 = scalar_select %p132, %s133, %s134
    %p138 = pneg %p132
    %p139 = scmp.eq.s32.totalorder %s13, 3
    %p140 = por %p138, %p139
    %p141 = scmp.ne.s32.totalorder %s133, %s136
    %p142 = scmp.eq.s32.totalorder %s13, 0
    %p143 = por %p141, %p142
    %p144 = scmp.ne.s32.totalorder %s133, %s136
    %p145 = scmp.eq.s32.totalorder %s18, 3
    %p146 = por %p144, %p145
    %p147 = scmp.ne.s32.totalorder %s136, %s137
    %p148 = scmp.eq.s32.totalorder %s18, 0
    %p149 = por %p147, %p148
    %p150 = scmp.ne.s32.totalorder %s136, %s137
    %p151 = scmp.eq.s32.totalorder %s19, 3
    %p152 = por %p150, %p151
    %p154 = scmp.ne.s32.totalorder %s137, %s153
    %p155 = scmp.eq.s32.totalorder %s19, 0
    %p156 = por %p154, %p155
    %s157 = ssub.s32 %s13, %s20
    %p158 = scmp.eq.s32.totalorder %s157, 0
    %s160 = sadd.s32 %s159, 1
    %s161 = scalar_select %p158, %s159, %s160
    %p164 = pneg %p158
    %p165 = scmp.eq.s32.totalorder %s13, 3
    %p166 = por %p164, %p165
    %p167 = scmp.ne.s32.totalorder %s159, %s162
    %p168 = scmp.eq.s32.totalorder %s13, 0
    %p169 = por %p167, %p168
    %p170 = scmp.ne.s32.totalorder %s159, %s162
    %p171 = scmp.eq.s32.totalorder %s18, 3
    %p172 = por %p170, %p171
    %p173 = scmp.ne.s32.totalorder %s162, %s163
    %p174 = scmp.eq.s32.totalorder %s18, 0
    %p175 = por %p173, %p174
    %p176 = scmp.ne.s32.totalorder %s162, %s163
    %p177 = scmp.eq.s32.totalorder %s19, 3
    %p178 = por %p176, %p177
    %p180 = scmp.ne.s32.totalorder %s163, %s179
    %p181 = scmp.eq.s32.totalorder %s19, 0
    %p182 = por %p180, %p181
    %p183 = scmp.le.s32.totalorder 1, %s13
    %p184 = scmp.lt.s32.totalorder %s13, 5
    %p185 = pnand %p183, %p184
    %p186 = pneg %p185
    // Predicated region
    $region9: #{gmrw_forward.28} parent=5 // pred_check
      _
    $region10: #{gmrw_forward.28} parent=5 // pred_check_branch
      %188 = sbr.rel (%p185) target = $region12
    $region11: #{gmrw_forward.28} parent=5 // pred_region
      %s189 = ssub.s32 %s13, 1
      // Predicated region
      $region13: #{gmrw_forward.28} parent=11 // pred_check
        %p190 = pneg %p60
      $region14: #{gmrw_forward.28} parent=11 // pred_check_branch
        %192 = sbr.rel (%p190) target = $region16
      $region15: #{gmrw_forward.28} parent=11 // pred_region
        _
      $region16: #{gmrw_forward.28} parent=11 // pred_fallthru
        _
      // Predicated region
      $region17: #{gmrw_forward.28} parent=11 // pred_check
        %p193 = pneg %p81
      $region18: #{gmrw_forward.28} parent=11 // pred_check_branch
        %195 = sbr.rel (%p193) target = $region20
      $region19: #{gmrw_forward.28} parent=11 // pred_region
        _
      $region20: #{gmrw_forward.28} parent=11 // pred_fallthru
        _
      // Predicated region
      $region21: #{gmrw_forward.28} parent=11 // pred_check
        %p196 = pneg %p102
      $region22: #{gmrw_forward.28} parent=11 // pred_check_branch
        %198 = sbr.rel (%p196) target = $region24
      $region23: #{gmrw_forward.28} parent=11 // pred_region
        _
      $region24: #{gmrw_forward.28} parent=11 // pred_fallthru
        _
      // Predicated region
      $region25: #{gmrw_forward.28} parent=11 // pred_check
        %p199 = pneg %p123
      $region26: #{gmrw_forward.28} parent=11 // pred_check_branch
        %201 = sbr.rel (%p199) target = $region28
      $region27: #{gmrw_forward.28} parent=11 // pred_region
        _
      $region28: #{gmrw_forward.28} parent=11 // pred_fallthru
        _
    $region12: #{gmrw_forward.28} parent=5 // pred_fallthru
      _
    %p202 = scmp.lt.s32.totalorder %s13, 4
    // Predicated region
    $region29: #{gmrw_forward.28} parent=5 // pred_check
      %p203 = pneg %p202
    $region30: #{gmrw_forward.28} parent=5 // pred_check_branch
      %205 = sbr.rel (%p203) target = $region32
    $region31: #{gmrw_forward.28} parent=5 // pred_region
      // Predicated region
      $region33: #{gmrw_forward.28} parent=31 // pred_check
        %p206 = pneg %p33
      $region34: #{gmrw_forward.28} parent=31 // pred_check_branch
        %208 = sbr.rel (%p206) target = $region36
      $region35: #{gmrw_forward.28} parent=31 // pred_region
        %s209 = smul.u32 16, %s13
        %p210 = scmp.lt.s32.totalorder %s209, 63
        %s211 = scalar_select %p210, %s209, 63
        %s212 = smul.addr %s211, 4
        %s213 = scalar_lea.vmem %s0, %s212
        %s214 = smul.u32 16, %s13
      $region36: #{gmrw_forward.28} parent=31 // pred_fallthru
        _
    $region32: #{gmrw_forward.28} parent=5 // pred_fallthru
      _
    %p215 = scmp.le.s32.totalorder 1, %s13
    %p216 = scmp.lt.s32.totalorder %s13, 5
    %p217 = pnand %p215, %p216
    %p218 = pneg %p217
    // Predicated region
    $region37: #{gmrw_forward.28} parent=5 // pred_check
      _
    $region38: #{gmrw_forward.28} parent=5 // pred_check_branch
      %220 = sbr.rel (%p217) target = $region40
    $region39: #{gmrw_forward.28} parent=5 // pred_region
      %s221 = ssub.s32 %s13, 1
      %s222 = smul.u32 16, %s18
      %p223 = scmp.lt.s32.totalorder %s222, 63
      %s224 = scalar_select %p223, %s222, 63
      %s225 = smul.addr %s224, 4
      %s226 = scalar_lea.vmem %s0, %s225
      %p227 = pneg %p39
      %p228 = pneg %p36
      %p229 = pneg %p60
      %p230 = pneg %p57
      %p231 = pneg %p81
      %p232 = pneg %p78
      %p233 = pneg %p102
      %p234 = pneg %p99
      %p235 = pneg %p123
      %p236 = pneg %p120
      %p237 = pneg %p149
      %p238 = pneg %p146
      %s239 = smul.u32 16, %s18
      %p240 = scmp.lt.s32.totalorder %s239, 63
      %s241 = scalar_select %p240, %s239, 63
      %s242 = smul.addr %s241, 4
      %s243 = scalar_lea.vmem %s5, %s242
      %p244 = pneg %p175
      %p245 = pneg %p172
      %s246 = smul.u32 16, %s18
      %p247 = scmp.lt.s32.totalorder %s246, 63
      %s248 = scalar_select %p247, %s246, 63
      %s249 = smul.addr %s248, 4
      %s250 = scalar_lea.vmem %s6, %s249
      %s251 = smul.u32 16, %s18
      %p252 = scmp.lt.s32.totalorder %s251, 63
      %s253 = scalar_select %p252, %s251, 63
      %s254 = smul.addr %s253, 4
      %s255 = scalar_lea.vmem %s0, %s254
      %s256 = smul.u32 16, %s18
      %s257 = smul.u32 16, %s18
      %p258 = scmp.lt.s32.totalorder %s257, 63
      %s259 = scalar_select %p258, %s257, 63
      %s260 = smul.addr %s259, 4
      %s261 = scalar_lea.vmem %s5, %s260
      %s262 = smul.u32 16, %s18
      %s263 = smul.u32 16, %s18
      %p264 = scmp.lt.s32.totalorder %s263, 63
      %s265 = scalar_select %p264, %s263, 63
      %s266 = smul.addr %s265, 4
      %s267 = scalar_lea.vmem %s6, %s266
      %s268 = smul.u32 16, %s18
      %v270 = vld [vmem:[%s255] sm:$0xf]
      %v271 = vld [vmem:[%s255 + $0x4] sm:$0xf]
      %v272 = vld [vmem:[%s255 + $0x8] sm:$0xf]
      %v273 = vld [vmem:[%s255 + $0xc] sm:$0xf]
      %v274 = vld [vmem:[%s255 + $0x10] sm:$0xf]
      %v275 = vld [vmem:[%s255 + $0x14] sm:$0xf]
      %v276 = vld [vmem:[%s255 + $0x18] sm:$0xf]
      %v277 = vld [vmem:[%s255 + $0x1c] sm:$0xf]
      %v278 = vld [vmem:[%s255 + $0x20] sm:$0xf]
      %v279 = vld [vmem:[%s255 + $0x24] sm:$0xf]
      %v280 = vld [vmem:[%s255 + $0x28] sm:$0xf]
      %v281 = vld [vmem:[%s255 + $0x2c] sm:$0xf]
      %v282 = vld [vmem:[%s255 + $0x30] sm:$0xf]
      %v283 = vld [vmem:[%s255 + $0x34] sm:$0xf]
      %v284 = vld [vmem:[%s255 + $0x38] sm:$0xf]
      %v285 = vld [vmem:[%s255 + $0x3c] sm:$0xf]
      %v286 = vld [vmem:[%s1] sm:$0xf]
      %v287 = vld [vmem:[%s1 + $0x4] sm:$0xf]
      %v288 = vld [vmem:[%s1 + $0x8] sm:$0xf]
      %v289 = vld [vmem:[%s1 + $0xc] sm:$0xf]
      %v290 = vld [vmem:[%s3] sm:$0x1]
      %v292 = vlaneseq
      %v293 = vshrl.u32 %v292, 7
      %v294 = vsub.s32 0, %v293
      %v295 = vrot.slane %v290, %v294
      %v313 = vunpack.c.l.b16 %v270
      %v314 = vunpack.c.l.b16 %v271
      %v315 = vunpack.c.l.b16 %v272
      %v316 = vunpack.c.l.b16 %v273
      %v317 = vunpack.c.l.b16 %v274
      %v318 = vunpack.c.l.b16 %v275
      %v319 = vunpack.c.l.b16 %v276
      %v320 = vunpack.c.l.b16 %v277
      %v321 = vunpack.c.l.b16 %v278
      %v322 = vunpack.c.l.b16 %v279
      %v323 = vunpack.c.l.b16 %v280
      %v324 = vunpack.c.l.b16 %v281
      %v325 = vunpack.c.l.b16 %v282
      %v326 = vunpack.c.l.b16 %v283
      %v327 = vunpack.c.l.b16 %v284
      %v328 = vunpack.c.l.b16 %v285
      %v329 = vpack.c.b16 %v314, %v313
      %v330 = vpack.c.b16 %v316, %v315
      %v331 = vpack.c.b16 %v318, %v317
      %v332 = vpack.c.b16 %v320, %v319
      %v333 = vpack.c.b16 %v322, %v321
      %v334 = vpack.c.b16 %v324, %v323
      %v335 = vpack.c.b16 %v326, %v325
      %v336 = vpack.c.b16 %v328, %v327
      %v341 = vunpack.c.l.b16 %v286
      %v342 = vunpack.c.l.b16 %v287
      %v343 = vunpack.c.l.b16 %v288
      %v344 = vunpack.c.l.b16 %v289
      %v345 = vpack.c.b16 %v342, %v341
      %v346 = vpack.c.b16 %v344, %v343
      %vm349 = vcmask 261120
      %v351 = vsel %vm349, %v329, 0
      %v354 = vsel %vm349, %v330, 0
      %v357 = vsel %vm349, %v331, 0
      %v360 = vsel %vm349, %v332, 0
      %v363 = vsel %vm349, %v333, 0
      %v366 = vsel %vm349, %v334, 0
      %v369 = vsel %vm349, %v335, 0
      %v372 = vsel %vm349, %v336, 0
      %374 = vmatprep.subr.bf16.mxu0 0
      %375 = vmatpush1.bf16.msra.mxu0 %v345
      %376 = vmatprep.subr.bf16.mxu0 0
      %377 = vmatpush1.bf16.msra.mxu0 %v346
      %378 = vmatprep.subr.bf16.mxu0 0
      %379 = vmatpush1.bf16.msra.mxu0 0
      %380 = vmatprep.subr.bf16.mxu0 0
      %381 = vmatpush1.bf16.msra.mxu0 0
      %382 = vmatprep.subr.bf16.mxu0 0
      %383 = vmatpush1.bf16.msra.mxu0 0
      %384 = vmatprep.subr.bf16.mxu0 0
      %385 = vmatpush1.bf16.msra.mxu0 0
      %386 = vmatprep.subr.bf16.mxu0 0
      %387 = vmatpush1.bf16.msra.mxu0 0
      %388 = vmatprep.subr.bf16.mxu0 0
      %389 = vmatpush1.bf16.msra.mxu0 0
      %390 = vmatprep.subr.bf16.mxu0 0
      %391 = vmatpush1.bf16.msra.mxu0 0
      %392 = vmatprep.subr.bf16.mxu0 0
      %393 = vmatpush1.bf16.msra.mxu0 0
      %394 = vmatprep.subr.bf16.mxu0 0
      %395 = vmatpush1.bf16.msra.mxu0 0
      %396 = vmatprep.subr.bf16.mxu0 0
      %397 = vmatpush1.bf16.msra.mxu0 0
      %398 = vmatprep.subr.bf16.mxu0 0
      %399 = vmatpush1.bf16.msra.mxu0 0
      %400 = vmatprep.subr.bf16.mxu0 0
      %401 = vmatpush1.bf16.msra.mxu0 0
      %402 = vmatprep.subr.bf16.mxu0 0
      %403 = vmatpush1.bf16.msra.mxu0 0
      %404 = vmatprep.subr.bf16.mxu0 0
      %405 = vmatpush1.bf16.msra.mxu0 0
      %406 = vmatprep.mubr.bf16.mxu0 0
      %407 = vmatmul.mubr.bf16.gmra.mrb[0].mxu0 %v351
      %v408 = vpop.f32.mrb[0].mxu0
      %v409 = vadd.f32 %v295, %v408
      %v410 = vpop.f32.mrb[0].mxu0
      %v411 = vpop.f32.mrb[0].mxu0
      %v412 = vadd.f32 %v295, %v411
      %v413 = vpop.f32.mrb[0].mxu0
      %414 = vmatprep.mubr.bf16.mxu0 0
      %415 = vmatmul.mubr.bf16.gmra.mrb[0].mxu0 %v354
      %v416 = vpop.f32.mrb[0].mxu0
      %v417 = vadd.f32 %v295, %v416
      %v418 = vpop.f32.mrb[0].mxu0
      %v419 = vpop.f32.mrb[0].mxu0
      %v420 = vadd.f32 %v295, %v419
      %v421 = vpop.f32.mrb[0].mxu0
      %422 = vmatprep.mubr.bf16.mxu0 0
      %423 = vmatmul.mubr.bf16.gmra.mrb[0].mxu0 %v357
      %v424 = vpop.f32.mrb[0].mxu0
      %v425 = vadd.f32 %v295, %v424
      %v426 = vpop.f32.mrb[0].mxu0
      %v427 = vpop.f32.mrb[0].mxu0
      %v428 = vadd.f32 %v295, %v427
      %v429 = vpop.f32.mrb[0].mxu0
      %430 = vmatprep.mubr.bf16.mxu0 0
      %431 = vmatmul.mubr.bf16.gmra.mrb[0].mxu0 %v360
      %v432 = vpop.f32.mrb[0].mxu0
      %v433 = vadd.f32 %v295, %v432
      %v434 = vpop.f32.mrb[0].mxu0
      %v435 = vpop.f32.mrb[0].mxu0
      %v436 = vadd.f32 %v295, %v435
      %v437 = vpop.f32.mrb[0].mxu0
      %438 = vmatprep.mubr.bf16.mxu0 0
      %439 = vmatmul.mubr.bf16.gmra.mrb[0].mxu0 %v363
      %v440 = vpop.f32.mrb[0].mxu0
      %v441 = vadd.f32 %v295, %v440
      %v442 = vpop.f32.mrb[0].mxu0
      %v443 = vpop.f32.mrb[0].mxu0
      %v444 = vadd.f32 %v295, %v443
      %v445 = vpop.f32.mrb[0].mxu0
      %446 = vmatprep.mubr.bf16.mxu0 0
      %447 = vmatmul.mubr.bf16.gmra.mrb[0].mxu0 %v366
      %v448 = vpop.f32.mrb[0].mxu0
      %v449 = vadd.f32 %v295, %v448
      %v450 = vpop.f32.mrb[0].mxu0
      %v451 = vpop.f32.mrb[0].mxu0
      %v452 = vadd.f32 %v295, %v451
      %v453 = vpop.f32.mrb[0].mxu0
      %454 = vmatprep.mubr.bf16.mxu0 0
      %455 = vmatmul.mubr.bf16.gmra.mrb[0].mxu0 %v369
      %v456 = vpop.f32.mrb[0].mxu0
      %v457 = vadd.f32 %v295, %v456
      %v458 = vpop.f32.mrb[0].mxu0
      %v459 = vpop.f32.mrb[0].mxu0
      %v460 = vadd.f32 %v295, %v459
      %v461 = vpop.f32.mrb[0].mxu0
      %462 = vmatprep.mubr.bf16.mxu0 0
      %463 = vmatmul.mubr.bf16.gmra.mrb[0].mxu0 %v372
      %v464 = vpop.f32.mrb[0].mxu0
      %v465 = vadd.f32 %v295, %v464
      %v466 = vpop.f32.mrb[0].mxu0
      %v467 = vpop.f32.mrb[0].mxu0
      %v468 = vadd.f32 %v295, %v467
      %v469 = vpop.f32.mrb[0].mxu0
      %470 = vdwg.mxu0
      %v471 = vpack.c.bf16 %v412, %v409
      %v472 = vpack.c.bf16 %v420, %v417
      %v473 = vpack.c.bf16 %v428, %v425
      %v474 = vpack.c.bf16 %v436, %v433
      %v475 = vpack.c.bf16 %v444, %v441
      %v476 = vpack.c.bf16 %v452, %v449
      %v477 = vpack.c.bf16 %v460, %v457
      %v478 = vpack.c.bf16 %v468, %v465
      %v487 = vunpack.c.l.b16 %v471
      %v488 = vunpack.c.h.b16 %v471
      %v489 = vunpack.c.l.b16 %v472
      %v490 = vunpack.c.h.b16 %v472
      %v491 = vunpack.c.l.b16 %v473
      %v492 = vunpack.c.h.b16 %v473
      %v493 = vunpack.c.l.b16 %v474
      %v494 = vunpack.c.h.b16 %v474
      %v495 = vunpack.c.l.b16 %v475
      %v496 = vunpack.c.h.b16 %v475
      %v497 = vunpack.c.l.b16 %v476
      %v498 = vunpack.c.h.b16 %v476
      %v499 = vunpack.c.l.b16 %v477
      %v500 = vunpack.c.h.b16 %v477
      %v501 = vunpack.c.l.b16 %v478
      %v502 = vunpack.c.h.b16 %v478
      %v503 = vpack.c.b16 %v487, %v487
      %v504 = vpack.c.b16 %v488, %v488
      %v505 = vpack.c.b16 %v489, %v489
      %v506 = vpack.c.b16 %v490, %v490
      %v507 = vpack.c.b16 %v491, %v491
      %v508 = vpack.c.b16 %v492, %v492
      %v509 = vpack.c.b16 %v493, %v493
      %v510 = vpack.c.b16 %v494, %v494
      %v511 = vpack.c.b16 %v495, %v495
      %v512 = vpack.c.b16 %v496, %v496
      %v513 = vpack.c.b16 %v497, %v497
      %v514 = vpack.c.b16 %v498, %v498
      %v515 = vpack.c.b16 %v499, %v499
      %v516 = vpack.c.b16 %v500, %v500
      %v517 = vpack.c.b16 %v501, %v501
      %v518 = vpack.c.b16 %v502, %v502
      %vm535 = vcmask 257024
      %536 = vst.msk [vmem:[%s261] sm:$0xf] %vm535, %v503
      %537 = vst.msk [vmem:[%s261 + $0x4] sm:$0xf] %vm535, %v504
      %538 = vst.msk [vmem:[%s261 + $0x8] sm:$0xf] %vm535, %v505
      %539 = vst.msk [vmem:[%s261 + $0xc] sm:$0xf] %vm535, %v506
      %540 = vst.msk [vmem:[%s261 + $0x10] sm:$0xf] %vm535, %v507
      %541 = vst.msk [vmem:[%s261 + $0x14] sm:$0xf] %vm535, %v508
      %542 = vst.msk [vmem:[%s261 + $0x18] sm:$0xf] %vm535, %v509
      %543 = vst.msk [vmem:[%s261 + $0x1c] sm:$0xf] %vm535, %v510
      %544 = vst.msk [vmem:[%s261 + $0x20] sm:$0xf] %vm535, %v511
      %545 = vst.msk [vmem:[%s261 + $0x24] sm:$0xf] %vm535, %v512
      %546 = vst.msk [vmem:[%s261 + $0x28] sm:$0xf] %vm535, %v513
      %547 = vst.msk [vmem:[%s261 + $0x2c] sm:$0xf] %vm535, %v514
      %548 = vst.msk [vmem:[%s261 + $0x30] sm:$0xf] %vm535, %v515
      %549 = vst.msk [vmem:[%s261 + $0x34] sm:$0xf] %vm535, %v516
      %550 = vst.msk [vmem:[%s261 + $0x38] sm:$0xf] %vm535, %v517
      %551 = vst.msk [vmem:[%s261 + $0x3c] sm:$0xf] %vm535, %v518
      %v552 = vld [vmem:[%s2] sm:$0xf]
      %v553 = vld [vmem:[%s2 + $0x4] sm:$0xf]
      %v554 = vld [vmem:[%s2 + $0x8] sm:$0xf]
      %v555 = vld [vmem:[%s2 + $0xc] sm:$0xf]
      %v556 = vld [vmem:[%s4] sm:$0x1]
      %v558 = vlaneseq
      %v559 = vshrl.u32 %v558, 7
      %v560 = vsub.s32 0, %v559
      %v561 = vrot.slane %v556, %v560
      %v567 = vunpack.c.l.b16 %v552
      %v568 = vunpack.c.l.b16 %v553
      %v569 = vunpack.c.l.b16 %v554
      %v570 = vunpack.c.l.b16 %v555
      %v571 = vpack.c.b16 %v568, %v567
      %v572 = vpack.c.b16 %v570, %v569
      %575 = vmatprep.subr.bf16.mxu0 0
      %576 = vmatpush1.bf16.msra.mxu0 %v571
      %577 = vmatprep.subr.bf16.mxu0 0
      %578 = vmatpush1.bf16.msra.mxu0 %v572
      %579 = vmatprep.subr.bf16.mxu0 0
      %580 = vmatpush1.bf16.msra.mxu0 0
      %581 = vmatprep.subr.bf16.mxu0 0
      %582 = vmatpush1.bf16.msra.mxu0 0
      %583 = vmatprep.subr.bf16.mxu0 0
      %584 = vmatpush1.bf16.msra.mxu0 0
      %585 = vmatprep.subr.bf16.mxu0 0
      %586 = vmatpush1.bf16.msra.mxu0 0
      %587 = vmatprep.subr.bf16.mxu0 0
      %588 = vmatpush1.bf16.msra.mxu0 0
      %589 = vmatprep.subr.bf16.mxu0 0
      %590 = vmatpush1.bf16.msra.mxu0 0
      %591 = vmatprep.subr.bf16.mxu0 0
      %592 = vmatpush1.bf16.msra.mxu0 0
      %593 = vmatprep.subr.bf16.mxu0 0
      %594 = vmatpush1.bf16.msra.mxu0 0
      %595 = vmatprep.subr.bf16.mxu0 0
      %596 = vmatpush1.bf16.msra.mxu0 0
      %597 = vmatprep.subr.bf16.mxu0 0
      %598 = vmatpush1.bf16.msra.mxu0 0
      %599 = vmatprep.subr.bf16.mxu0 0
      %600 = vmatpush1.bf16.msra.mxu0 0
      %601 = vmatprep.subr.bf16.mxu0 0
      %602 = vmatpush1.bf16.msra.mxu0 0
      %603 = vmatprep.subr.bf16.mxu0 0
      %604 = vmatpush1.bf16.msra.mxu0 0
      %605 = vmatprep.subr.bf16.mxu0 0
      %606 = vmatpush1.bf16.msra.mxu0 0
      %607 = vmatprep.mubr.bf16.mxu0 0
      %608 = vmatmul.mubr.bf16.gmra.mrb[0].mxu0 %v351
      %v609 = vpop.f32.mrb[0].mxu0
      %v610 = vadd.f32 %v561, %v609
      %v611 = vpop.f32.mrb[0].mxu0
      %v612 = vpop.f32.mrb[0].mxu0
      %v613 = vadd.f32 %v561, %v612
      %v614 = vpop.f32.mrb[0].mxu0
      %615 = vmatprep.mubr.bf16.mxu0 0
      %616 = vmatmul.mubr.bf16.gmra.mrb[0].mxu0 %v354
      %v617 = vpop.f32.mrb[0].mxu0
      %v618 = vadd.f32 %v561, %v617
      %v619 = vpop.f32.mrb[0].mxu0
      %v620 = vpop.f32.mrb[0].mxu0
      %v621 = vadd.f32 %v561, %v620
      %v622 = vpop.f32.mrb[0].mxu0
      %623 = vmatprep.mubr.bf16.mxu0 0
      %624 = vmatmul.mubr.bf16.gmra.mrb[0].mxu0 %v357
      %v625 = vpop.f32.mrb[0].mxu0
      %v626 = vadd.f32 %v561, %v625
      %v627 = vpop.f32.mrb[0].mxu0
      %v628 = vpop.f32.mrb[0].mxu0
      %v629 = vadd.f32 %v561, %v628
      %v630 = vpop.f32.mrb[0].mxu0
      %631 = vmatprep.mubr.bf16.mxu0 0
      %632 = vmatmul.mubr.bf16.gmra.mrb[0].mxu0 %v360
      %v633 = vpop.f32.mrb[0].mxu0
      %v634 = vadd.f32 %v561, %v633
      %v635 = vpop.f32.mrb[0].mxu0
      %v636 = vpop.f32.mrb[0].mxu0
      %v637 = vadd.f32 %v561, %v636
      %v638 = vpop.f32.mrb[0].mxu0
      %639 = vmatprep.mubr.bf16.mxu0 0
      %640 = vmatmul.mubr.bf16.gmra.mrb[0].mxu0 %v363
      %v641 = vpop.f32.mrb[0].mxu0
      %v642 = vadd.f32 %v561, %v641
      %v643 = vpop.f32.mrb[0].mxu0
      %v644 = vpop.f32.mrb[0].mxu0
      %v645 = vadd.f32 %v561, %v644
      %v646 = vpop.f32.mrb[0].mxu0
      %647 = vmatprep.mubr.bf16.mxu0 0
      %648 = vmatmul.mubr.bf16.gmra.mrb[0].mxu0 %v366
      %v649 = vpop.f32.mrb[0].mxu0
      %v650 = vadd.f32 %v561, %v649
      %v651 = vpop.f32.mrb[0].mxu0
      %v652 = vpop.f32.mrb[0].mxu0
      %v653 = vadd.f32 %v561, %v652
      %v654 = vpop.f32.mrb[0].mxu0
      %655 = vmatprep.mubr.bf16.mxu0 0
      %656 = vmatmul.mubr.bf16.gmra.mrb[0].mxu0 %v369
      %v657 = vpop.f32.mrb[0].mxu0
      %v658 = vadd.f32 %v561, %v657
      %v659 = vpop.f32.mrb[0].mxu0
      %v660 = vpop.f32.mrb[0].mxu0
      %v661 = vadd.f32 %v561, %v660
      %v662 = vpop.f32.mrb[0].mxu0
      %663 = vmatprep.mubr.bf16.mxu0 0
      %664 = vmatmul.mubr.bf16.gmra.mrb[0].mxu0 %v372
      %v665 = vpop.f32.mrb[0].mxu0
      %v666 = vadd.f32 %v561, %v665
      %v667 = vpop.f32.mrb[0].mxu0
      %v668 = vpop.f32.mrb[0].mxu0
      %v669 = vadd.f32 %v561, %v668
      %v670 = vpop.f32.mrb[0].mxu0
      %671 = vdwg.mxu0
      %v672 = vpack.c.bf16 %v613, %v610
      %v673 = vpack.c.bf16 %v621, %v618
      %v674 = vpack.c.bf16 %v629, %v626
      %v675 = vpack.c.bf16 %v637, %v634
      %v676 = vpack.c.bf16 %v645, %v642
      %v677 = vpack.c.bf16 %v653, %v650
      %v678 = vpack.c.bf16 %v661, %v658
      %v679 = vpack.c.bf16 %v669, %v666
      %v688 = vunpack.c.l.b16 %v672
      %v689 = vunpack.c.h.b16 %v672
      %v690 = vunpack.c.l.b16 %v673
      %v691 = vunpack.c.h.b16 %v673
      %v692 = vunpack.c.l.b16 %v674
      %v693 = vunpack.c.h.b16 %v674
      %v694 = vunpack.c.l.b16 %v675
      %v695 = vunpack.c.h.b16 %v675
      %v696 = vunpack.c.l.b16 %v676
      %v697 = vunpack.c.h.b16 %v676
      %v698 = vunpack.c.l.b16 %v677
      %v699 = vunpack.c.h.b16 %v677
      %v700 = vunpack.c.l.b16 %v678
      %v701 = vunpack.c.h.b16 %v678
      %v702 = vunpack.c.l.b16 %v679
      %v703 = vunpack.c.h.b16 %v679
      %v704 = vpack.c.b16 %v688, %v688
      %v705 = vpack.c.b16 %v689, %v689
      %v706 = vpack.c.b16 %v690, %v690
      %v707 = vpack.c.b16 %v691, %v691
      %v708 = vpack.c.b16 %v692, %v692
      %v709 = vpack.c.b16 %v693, %v693
      %v710 = vpack.c.b16 %v694, %v694
      %v711 = vpack.c.b16 %v695, %v695
      %v712 = vpack.c.b16 %v696, %v696
      %v713 = vpack.c.b16 %v697, %v697
      %v714 = vpack.c.b16 %v698, %v698
      %v715 = vpack.c.b16 %v699, %v699
      %v716 = vpack.c.b16 %v700, %v700
      %v717 = vpack.c.b16 %v701, %v701
      %v718 = vpack.c.b16 %v702, %v702
      %v719 = vpack.c.b16 %v703, %v703
      %736 = vst.msk [vmem:[%s267] sm:$0xf] %vm535, %v704
      %737 = vst.msk [vmem:[%s267 + $0x4] sm:$0xf] %vm535, %v705
      %738 = vst.msk [vmem:[%s267 + $0x8] sm:$0xf] %vm535, %v706
      %739 = vst.msk [vmem:[%s267 + $0xc] sm:$0xf] %vm535, %v707
      %740 = vst.msk [vmem:[%s267 + $0x10] sm:$0xf] %vm535, %v708
      %741 = vst.msk [vmem:[%s267 + $0x14] sm:$0xf] %vm535, %v709
      %742 = vst.msk [vmem:[%s267 + $0x18] sm:$0xf] %vm535, %v710
      %743 = vst.msk [vmem:[%s267 + $0x1c] sm:$0xf] %vm535, %v711
      %744 = vst.msk [vmem:[%s267 + $0x20] sm:$0xf] %vm535, %v712
      %745 = vst.msk [vmem:[%s267 + $0x24] sm:$0xf] %vm535, %v713
      %746 = vst.msk [vmem:[%s267 + $0x28] sm:$0xf] %vm535, %v714
      %747 = vst.msk [vmem:[%s267 + $0x2c] sm:$0xf] %vm535, %v715
      %748 = vst.msk [vmem:[%s267 + $0x30] sm:$0xf] %vm535, %v716
      %749 = vst.msk [vmem:[%s267 + $0x34] sm:$0xf] %vm535, %v717
      %750 = vst.msk [vmem:[%s267 + $0x38] sm:$0xf] %vm535, %v718
      %751 = vst.msk [vmem:[%s267 + $0x3c] sm:$0xf] %vm535, %v719
      %s752 = smul.u32 16, %s18
      %p753 = scmp.lt.s32.totalorder %s752, 63
      %s754 = scalar_select %p753, %s752, 63
      %s755 = smul.addr %s754, 4
      %s756 = scalar_lea.vmem %s5, %s755
      %s757 = smul.u32 16, %s18
      %p758 = scmp.lt.s32.totalorder %s757, 63
      %s759 = scalar_select %p758, %s757, 63
      %s760 = smul.addr %s759, 4
      %s761 = scalar_lea.vmem %s6, %s760
      // Predicated region
      $region41: #{gmrw_forward.28} parent=39 // pred_check
        %p762 = pneg %p146
      $region42: #{gmrw_forward.28} parent=39 // pred_check_branch
        %764 = sbr.rel (%p762) target = $region44
      $region43: #{gmrw_forward.28} parent=39 // pred_region
        %s765 = smul.u32 16, %s18
      $region44: #{gmrw_forward.28} parent=39 // pred_fallthru
        _
      // Predicated region
      $region45: #{gmrw_forward.28} parent=39 // pred_check
        %p766 = pneg %p172
      $region46: #{gmrw_forward.28} parent=39 // pred_check_branch
        %768 = sbr.rel (%p766) target = $region48
      $region47: #{gmrw_forward.28} parent=39 // pred_region
        %s769 = smul.u32 16, %s18
      $region48: #{gmrw_forward.28} parent=39 // pred_fallthru
        _
    $region40: #{gmrw_forward.28} parent=5 // pred_fallthru
      _
    %p770 = scmp.le.s32.totalorder 2, %s13
    // Predicated region
    $region49: #{gmrw_forward.28} parent=5 // pred_check
      %p771 = pneg %p770
    $region50: #{gmrw_forward.28} parent=5 // pred_check_branch
      %773 = sbr.rel (%p771) target = $region52
    $region51: #{gmrw_forward.28} parent=5 // pred_region
      %s774 = ssub.s32 %s13, 2
      // Predicated region
      $region53: #{gmrw_forward.28} parent=51 // pred_check
        %p775 = pneg %p152
      $region54: #{gmrw_forward.28} parent=51 // pred_check_branch
        %777 = sbr.rel (%p775) target = $region56
      $region55: #{gmrw_forward.28} parent=51 // pred_region
        %s778 = smul.u32 16, %s19
        %p779 = scmp.lt.s32.totalorder %s778, 63
        %s780 = scalar_select %p779, %s778, 63
        %s781 = smul.addr %s780, 4
        %s782 = scalar_lea.vmem %s5, %s781
      $region56: #{gmrw_forward.28} parent=51 // pred_fallthru
        _
      // Predicated region
      $region57: #{gmrw_forward.28} parent=51 // pred_check
        %p783 = pneg %p178
      $region58: #{gmrw_forward.28} parent=51 // pred_check_branch
        %785 = sbr.rel (%p783) target = $region60
      $region59: #{gmrw_forward.28} parent=51 // pred_region
        %s786 = smul.u32 16, %s19
        %p787 = scmp.lt.s32.totalorder %s786, 63
        %s788 = scalar_select %p787, %s786, 63
        %s789 = smul.addr %s788, 4
        %s790 = scalar_lea.vmem %s6, %s789
      $region60: #{gmrw_forward.28} parent=51 // pred_fallthru
        _
    $region52: #{gmrw_forward.28} parent=5 // pred_fallthru
      _
  $region6: #{gmrw_forward.28} parent=0 // loop_footer
    %s17 = sadd.s32 1, %s13
  $region7: #{gmrw_forward.28} parent=0 // loop_footer_branch
    %12 = sbr.rel target = $region3
  $region8: #{gmrw_forward.28} parent=0 // loop_exit
    _

// kernel: gmrw_forward.41
$region0: #{gmrw_forward.41}
  #allocation0 [shape = 'u32[]', space=smem, size = 0x4, offset = 0x4, fixed_abs, tag = 'smem constant byte address 0x4 - core index']
  #allocation1 [shape = 'u32[144,128]{1,0:T(1,128)}', space=vmem, size = 0x12000, scoped, tag = 'internal scratch']
  %s0 = inlined_call_operand.vmem [shape: bf16[4,64,32], index: 0, kind: input, shape index: {}]
  %s1 = inlined_call_operand.vmem [shape: bf16[4,64,32], index: 1, kind: input, shape index: {}]
  %s2 = inlined_call_operand.vmem [shape: bf16[4,64,64], index: 2, kind: output, shape index: {}]
  %s3 = sld [smem:[#allocation0]]
  $region41: #{gmrw_forward.41} parent=0
    _
  %s5 = ssub.s32 1, %s3
  %s6 = scalar_select 0, %s5, %s3
  loop: start=0, step=1, limit=6
  $region2: #{gmrw_forward.41} parent=0 // loop_pre_header
    _
  $region3: #{gmrw_forward.41} parent=0 // loop_header
    %s8 = sphi 0, %s12
    %p9 = scmp.ge.s32.totalorder %s8, 6
    %s15 = sphi 0, %s27
    %s16 = sphi 0, %s23
    %s17 = sphi 0, %s15
    %s18 = sphi 0, %s16
    %s19 = sphi 0, %s17
    %s20 = sphi 0, %s18
    %s32 = sphi 0, %s34
    %s35 = sphi 0, %s32
    %s36 = sphi 0, %s35
    %s52 = sphi 0, %s36
    %s58 = sphi 0, %s60
    %s61 = sphi 0, %s58
    %s62 = sphi 0, %s61
    %s78 = sphi 0, %s62
    %s86 = sphi 0, %s88
    %s89 = sphi 0, %s86
    %s90 = sphi 0, %s89
    %s106 = sphi 0, %s90
  $region4: #{gmrw_forward.41} parent=0 // loop_header_branch
    %11 = sbr.rel (%p9) target = $region8
  $region5: #{gmrw_forward.41} parent=0 // loop_body
    %s13 = ssub.s32 %s8, 1
    %s14 = ssub.s32 %s8, 2
    %s21 = sadd.s32 1, %s16
    %p22 = scmp.ge.s32.totalorder %s21, 1
    %s23 = scalar_select %p22, 0, %s21
    %s24 = sadd.s32 1, %s15
    %s25 = scalar_select %p22, %s24, %s15
    %p26 = scmp.ge.s32.totalorder %s25, 4
    %s27 = scalar_select %p26, 0, %s25
    %s28 = ssub.s32 %s15, %s27
    %s29 = ssub.s32 %s16, %s23
    %s30 = sor.u32 %s28, %s29
    %p31 = scmp.eq.s32.totalorder %s30, 0
    %s33 = sadd.s32 %s32, 1
    %s34 = scalar_select %p31, %s32, %s33
    %p37 = pneg %p31
    %p38 = scmp.eq.s32.totalorder %s8, 3
    %p39 = por %p37, %p38
    %p40 = scmp.ne.s32.totalorder %s32, %s35
    %p41 = scmp.eq.s32.totalorder %s8, 0
    %p42 = por %p40, %p41
    %p43 = scmp.ne.s32.totalorder %s32, %s35
    %p44 = scmp.eq.s32.totalorder %s13, 3
    %p45 = por %p43, %p44
    %p46 = scmp.ne.s32.totalorder %s35, %s36
    %p47 = scmp.eq.s32.totalorder %s13, 0
    %p48 = por %p46, %p47
    %p49 = scmp.ne.s32.totalorder %s35, %s36
    %p50 = scmp.eq.s32.totalorder %s14, 3
    %p51 = por %p49, %p50
    %p53 = scmp.ne.s32.totalorder %s36, %s52
    %p54 = scmp.eq.s32.totalorder %s14, 0
    %p55 = por %p53, %p54
    %s56 = ssub.s32 %s15, %s27
    %p57 = scmp.eq.s32.totalorder %s56, 0
    %s59 = sadd.s32 %s58, 1
    %s60 = scalar_select %p57, %s58, %s59
    %p63 = pneg %p57
    %p64 = scmp.eq.s32.totalorder %s8, 3
    %p65 = por %p63, %p64
    %p66 = scmp.ne.s32.totalorder %s58, %s61
    %p67 = scmp.eq.s32.totalorder %s8, 0
    %p68 = por %p66, %p67
    %p69 = scmp.ne.s32.totalorder %s58, %s61
    %p70 = scmp.eq.s32.totalorder %s13, 3
    %p71 = por %p69, %p70
    %p72 = scmp.ne.s32.totalorder %s61, %s62
    %p73 = scmp.eq.s32.totalorder %s13, 0
    %p74 = por %p72, %p73
    %p75 = scmp.ne.s32.totalorder %s61, %s62
    %p76 = scmp.eq.s32.totalorder %s14, 3
    %p77 = por %p75, %p76
    %p79 = scmp.ne.s32.totalorder %s62, %s78
    %p80 = scmp.eq.s32.totalorder %s14, 0
    %p81 = por %p79, %p80
    %s82 = ssub.s32 %s15, %s27
    %s83 = ssub.s32 %s16, %s23
    %s84 = sor.u32 %s82, %s83
    %p85 = scmp.eq.s32.totalorder %s84, 0
    %s87 = sadd.s32 %s86, 1
    %s88 = scalar_select %p85, %s86, %s87
    %p91 = pneg %p85
    %p92 = scmp.eq.s32.totalorder %s8, 3
    %p93 = por %p91, %p92
    %p94 = scmp.ne.s32.totalorder %s86, %s89
    %p95 = scmp.eq.s32.totalorder %s8, 0
    %p96 = por %p94, %p95
    %p97 = scmp.ne.s32.totalorder %s86, %s89
    %p98 = scmp.eq.s32.totalorder %s13, 3
    %p99 = por %p97, %p98
    %p100 = scmp.ne.s32.totalorder %s89, %s90
    %p101 = scmp.eq.s32.totalorder %s13, 0
    %p102 = por %p100, %p101
    %p103 = scmp.ne.s32.totalorder %s89, %s90
    %p104 = scmp.eq.s32.totalorder %s14, 3
    %p105 = por %p103, %p104
    %p107 = scmp.ne.s32.totalorder %s90, %s106
    %p108 = scmp.eq.s32.totalorder %s14, 0
    %p109 = por %p107, %p108
    %p110 = scmp.le.s32.totalorder 1, %s8
    %p111 = scmp.lt.s32.totalorder %s8, 5
    %p112 = pnand %p110, %p111
    %p113 = pneg %p112
    // Predicated region
    $region9: #{gmrw_forward.41} parent=5 // pred_check
      _
    $region10: #{gmrw_forward.41} parent=5 // pred_check_branch
      %115 = sbr.rel (%p112) target = $region12
    $region11: #{gmrw_forward.41} parent=5 // pred_region
      %s116 = ssub.s32 %s8, 1
    $region12: #{gmrw_forward.41} parent=5 // pred_fallthru
      _
    %p117 = scmp.lt.s32.totalorder %s8, 4
    // Predicated region
    $region13: #{gmrw_forward.41} parent=5 // pred_check
      %p118 = pneg %p117
    $region14: #{gmrw_forward.41} parent=5 // pred_check_branch
      %120 = sbr.rel (%p118) target = $region16
    $region15: #{gmrw_forward.41} parent=5 // pred_region
      // Predicated region
      $region17: #{gmrw_forward.41} parent=15 // pred_check
        %p121 = pneg %p42
      $region18: #{gmrw_forward.41} parent=15 // pred_check_branch
        %123 = sbr.rel (%p121) target = $region20
      $region19: #{gmrw_forward.41} parent=15 // pred_region
        %s124 = smul.u32 8, %s16
        %p125 = scmp.lt.s32.totalorder %s15, 3
        %s126 = scalar_select %p125, %s15, 3
        %p127 = scmp.lt.s32.totalorder %s124, 7
        %s128 = scalar_select %p127, %s124, 7
        %s129 = smul.addr %s126, 8
        %s130 = sadd.s32 %s128, %s129
        %s131 = smul.addr %s130, 4
        %s132 = scalar_lea.vmem %s0, %s131
        %s133 = smul.u32 8, %s16
      $region20: #{gmrw_forward.41} parent=15 // pred_fallthru
        _
      // Predicated region
      $region21: #{gmrw_forward.41} parent=15 // pred_check
        %p134 = pneg %p68
      $region22: #{gmrw_forward.41} parent=15 // pred_check_branch
        %136 = sbr.rel (%p134) target = $region24
      $region23: #{gmrw_forward.41} parent=15 // pred_region
        %p137 = scmp.lt.s32.totalorder %s15, 3
        %s138 = scalar_select %p137, %s15, 3
        %s139 = smul.addr %s138, 8
        %s140 = smul.addr %s139, 4
        %s141 = scalar_lea.vmem %s1, %s140
      $region24: #{gmrw_forward.41} parent=15 // pred_fallthru
        _
    $region16: #{gmrw_forward.41} parent=5 // pred_fallthru
      _
    %p142 = scmp.le.s32.totalorder 1, %s8
    %p143 = scmp.lt.s32.totalorder %s8, 5
    %p144 = pnand %p142, %p143
    %p145 = pneg %p144
    // Predicated region
    $region25: #{gmrw_forward.41} parent=5 // pred_check
      _
    $region26: #{gmrw_forward.41} parent=5 // pred_check_branch
      %147 = sbr.rel (%p144) target = $region28
    $region27: #{gmrw_forward.41} parent=5 // pred_region
      %s148 = ssub.s32 %s8, 1
      %s149 = smul.u32 8, %s18
      %p150 = scmp.lt.s32.totalorder %s17, 3
      %s151 = scalar_select %p150, %s17, 3
      %p152 = scmp.lt.s32.totalorder %s149, 7
      %s153 = scalar_select %p152, %s149, 7
      %s154 = smul.addr %s151, 8
      %s155 = sadd.s32 %s153, %s154
      %s156 = smul.addr %s155, 4
      %s157 = scalar_lea.vmem %s0, %s156
      %p158 = pneg %p48
      %p159 = pneg %p45
      %p160 = scmp.lt.s32.totalorder %s17, 3
      %s161 = scalar_select %p160, %s17, 3
      %s162 = smul.addr %s161, 8
      %s163 = smul.addr %s162, 4
      %s164 = scalar_lea.vmem %s1, %s163
      %p165 = pneg %p74
      %p166 = pneg %p71
      %p167 = pneg %p102
      %p168 = pneg %p99
      %s169 = smul.u32 8, %s18
      %p170 = scmp.lt.s32.totalorder %s17, 3
      %s171 = scalar_select %p170, %s17, 3
      %p172 = scmp.lt.s32.totalorder %s169, 7
      %s173 = scalar_select %p172, %s169, 7
      %s174 = smul.addr %s171, 8
      %s175 = sadd.s32 %s173, %s174
      %s176 = smul.addr %s175, 4
      %s177 = scalar_lea.vmem %s2, %s176
      %s178 = smul.u32 8, %s18
      %p179 = scmp.lt.s32.totalorder %s17, 3
      %s180 = scalar_select %p179, %s17, 3
      %p181 = scmp.lt.s32.totalorder %s178, 7
      %s182 = scalar_select %p181, %s178, 7
      %s183 = smul.addr %s180, 8
      %s184 = sadd.s32 %s182, %s183
      %s185 = smul.addr %s184, 4
      %s186 = scalar_lea.vmem %s0, %s185
      %s187 = smul.u32 8, %s18
      %p188 = scmp.lt.s32.totalorder %s17, 3
      %s189 = scalar_select %p188, %s17, 3
      %s190 = smul.addr %s189, 8
      %s191 = smul.addr %s190, 4
      %s192 = scalar_lea.vmem %s1, %s191
      %s193 = smul.u32 8, %s18
      %p194 = scmp.lt.s32.totalorder %s17, 3
      %s195 = scalar_select %p194, %s17, 3
      %p196 = scmp.lt.s32.totalorder %s193, 7
      %s197 = scalar_select %p196, %s193, 7
      %s198 = smul.addr %s195, 8
      %s199 = sadd.s32 %s197, %s198
      %s200 = smul.addr %s199, 4
      %s201 = scalar_lea.vmem %s2, %s200
      %s202 = smul.u32 8, %s18
      %v205 = vld [vmem:[%s186] sm:$0xf]
      %v206 = vld [vmem:[%s186 + $0x4] sm:$0xf]
      %v207 = vld [vmem:[%s186 + $0x8] sm:$0xf]
      %v208 = vld [vmem:[%s186 + $0xc] sm:$0xf]
      %v209 = vld [vmem:[%s186 + $0x10] sm:$0xf]
      %v210 = vld [vmem:[%s186 + $0x14] sm:$0xf]
      %v211 = vld [vmem:[%s186 + $0x18] sm:$0xf]
      %v212 = vld [vmem:[%s186 + $0x1c] sm:$0xf]
      %v213 = vmul.bf16 %v205, 1043676725
      %v214 = vmul.bf16 %v206, 1043676725
      %v215 = vmul.bf16 %v207, 1043676725
      %v216 = vmul.bf16 %v208, 1043676725
      %v217 = vmul.bf16 %v209, 1043676725
      %v218 = vmul.bf16 %v210, 1043676725
      %v219 = vmul.bf16 %v211, 1043676725
      %v220 = vmul.bf16 %v212, 1043676725
      %v221 = vld [vmem:[%s192] sm:$0xf]
      %v222 = vld [vmem:[%s192 + $0x4] sm:$0xf]
      %v223 = vld [vmem:[%s192 + $0x8] sm:$0xf]
      %v224 = vld [vmem:[%s192 + $0xc] sm:$0xf]
      %v225 = vld [vmem:[%s192 + $0x10] sm:$0xf]
      %v226 = vld [vmem:[%s192 + $0x14] sm:$0xf]
      %v227 = vld [vmem:[%s192 + $0x18] sm:$0xf]
      %v228 = vld [vmem:[%s192 + $0x1c] sm:$0xf]
      %v237 = vunpack.c.l.b16 %v213
      %v238 = vunpack.c.l.b16 %v214
      %v239 = vunpack.c.l.b16 %v215
      %v240 = vunpack.c.l.b16 %v216
      %v241 = vunpack.c.l.b16 %v217
      %v242 = vunpack.c.l.b16 %v218
      %v243 = vunpack.c.l.b16 %v219
      %v244 = vunpack.c.l.b16 %v220
      %v245 = vpack.c.b16 %v238, %v237
      %v246 = vpack.c.b16 %v240, %v239
      %v247 = vpack.c.b16 %v242, %v241
      %v248 = vpack.c.b16 %v244, %v243
      %v257 = vunpack.c.l.b16 %v221
      %v258 = vunpack.c.l.b16 %v222
      %v259 = vunpack.c.l.b16 %v223
      %v260 = vunpack.c.l.b16 %v224
      %v261 = vunpack.c.l.b16 %v225
      %v262 = vunpack.c.l.b16 %v226
      %v263 = vunpack.c.l.b16 %v227
      %v264 = vunpack.c.l.b16 %v228
      %v265 = vpack.c.b16 %v258, %v257
      %v266 = vpack.c.b16 %v260, %v259
      %v267 = vpack.c.b16 %v262, %v261
      %v268 = vpack.c.b16 %v264, %v263
      %vm269 = vcmask 261120
      %v271 = vsel %vm269, %v245, 0
      %v274 = vsel %vm269, %v246, 0
      %v277 = vsel %vm269, %v247, 0
      %v280 = vsel %vm269, %v248, 0
      %v283 = vsel %vm269, %v265, 0
      %v286 = vsel %vm269, %v266, 0
      %v289 = vsel %vm269, %v267, 0
      %v292 = vsel %vm269, %v268, 0
      %294 = vmatprep.subr.bf16.mxu0 0
      %295 = vmatpush1.bf16.xpose.msra.mxu0 %v283
      %296 = vmatprep.subr.bf16.mxu0 0
      %297 = vmatpush1.bf16.xpose.msra.mxu0 %v286
      %298 = vmatprep.subr.bf16.mxu0 0
      %299 = vmatpush1.bf16.xpose.msra.mxu0 %v289
      %300 = vmatprep.subr.bf16.mxu0 0
      %301 = vmatpush1.bf16.xpose.msra.mxu0 %v292
      %302 = vmatprep.subr.bf16.mxu0 0
      %303 = vmatpush1.bf16.xpose.msra.mxu0 0
      %304 = vmatprep.subr.bf16.mxu0 0
      %305 = vmatpush1.bf16.xpose.msra.mxu0 0
      %306 = vmatprep.subr.bf16.mxu0 0
      %307 = vmatpush1.bf16.xpose.msra.mxu0 0
      %308 = vmatprep.subr.bf16.mxu0 0
      %309 = vmatpush1.bf16.xpose.msra.mxu0 0
      %310 = vmatprep.subr.bf16.mxu0 0
      %311 = vmatpush1.bf16.xpose.msra.mxu0 0
      %312 = vmatprep.subr.bf16.mxu0 0
      %313 = vmatpush1.bf16.xpose.msra.mxu0 0
      %314 = vmatprep.subr.bf16.mxu0 0
      %315 = vmatpush1.bf16.xpose.msra.mxu0 0
      %316 = vmatprep.subr.bf16.mxu0 0
      %317 = vmatpush1.bf16.xpose.msra.mxu0 0
      %318 = vmatprep.subr.bf16.mxu0 0
      %319 = vmatpush1.bf16.xpose.msra.mxu0 0
      %320 = vmatprep.subr.bf16.mxu0 0
      %321 = vmatpush1.bf16.xpose.msra.mxu0 0
      %322 = vmatprep.subr.bf16.mxu0 0
      %323 = vmatpush1.bf16.xpose.msra.mxu0 0
      %324 = vmatprep.subr.bf16.mxu0 0
      %325 = vmatpush1.bf16.xpose.msra.mxu0 0
      %326 = vmatprep.mubr.bf16.mxu0 0
      %327 = vmatmul.mubr.bf16.gmra.mrb[0].mxu0 %v271
      %v328 = vpop.f32.mrb[0].mxu0
      %v329 = vadd.f32 0.0, %v328
      %v330 = vpop.f32.mrb[0].mxu0
      %v331 = vpop.f32.mrb[0].mxu0
      %v332 = vadd.f32 0.0, %v331
      %v333 = vpop.f32.mrb[0].mxu0
      %334 = vmatprep.mubr.bf16.mxu0 0
      %335 = vmatmul.mubr.bf16.gmra.mrb[0].mxu0 %v274
      %v336 = vpop.f32.mrb[0].mxu0
      %v337 = vadd.f32 0.0, %v336
      %v338 = vpop.f32.mrb[0].mxu0
      %v339 = vpop.f32.mrb[0].mxu0
      %v340 = vadd.f32 0.0, %v339
      %v341 = vpop.f32.mrb[0].mxu0
      %342 = vmatprep.mubr.bf16.mxu0 0
      %343 = vmatmul.mubr.bf16.gmra.mrb[0].mxu0 %v277
      %v344 = vpop.f32.mrb[0].mxu0
      %v345 = vadd.f32 0.0, %v344
      %v346 = vpop.f32.mrb[0].mxu0
      %v347 = vpop.f32.mrb[0].mxu0
      %v348 = vadd.f32 0.0, %v347
      %v349 = vpop.f32.mrb[0].mxu0
      %350 = vmatprep.mubr.bf16.mxu0 0
      %351 = vmatmul.mubr.bf16.gmra.mrb[0].mxu0 %v280
      %v352 = vpop.f32.mrb[0].mxu0
      %v353 = vadd.f32 0.0, %v352
      %v354 = vpop.f32.mrb[0].mxu0
      %v355 = vpop.f32.mrb[0].mxu0
      %v356 = vadd.f32 0.0, %v355
      %v357 = vpop.f32.mrb[0].mxu0
      %358 = vdwg.mxu0
      %vm359 = vcmask 523264
      %v360 = vsel %vm359, %v329, -inf
      %361 = vmax.xlane.f32.xlu0 %v360
      %v362 = vpop.xlane.xlu0 %361
      %v363 = vsel %vm359, %v332, -inf
      %364 = vmax.xlane.f32.xlu0 %v363
      %v365 = vpop.xlane.xlu0 %364
      %v366 = vsel %vm359, %v337, -inf
      %367 = vmax.xlane.f32.xlu0 %v366
      %v368 = vpop.xlane.xlu0 %367
      %v369 = vsel %vm359, %v340, -inf
      %370 = vmax.xlane.f32.xlu0 %v369
      %v371 = vpop.xlane.xlu0 %370
      %v372 = vsel %vm359, %v345, -inf
      %373 = vmax.xlane.f32.xlu0 %v372
      %v374 = vpop.xlane.xlu0 %373
      %v375 = vsel %vm359, %v348, -inf
      %376 = vmax.xlane.f32.xlu0 %v375
      %v377 = vpop.xlane.xlu0 %376
      %v378 = vsel %vm359, %v353, -inf
      %379 = vmax.xlane.f32.xlu0 %v378
      %v380 = vpop.xlane.xlu0 %379
      %v381 = vsel %vm359, %v356, -inf
      %382 = vmax.xlane.f32.xlu0 %v381
      %v383 = vpop.xlane.xlu0 %382
      %v384 = vsub.f32 %v329, %v362
      %v385 = vsub.f32 %v332, %v365
      %v386 = vsub.f32 %v337, %v368
      %v387 = vsub.f32 %v340, %v371
      %v388 = vsub.f32 %v345, %v374
      %v389 = vsub.f32 %v348, %v377
      %v390 = vsub.f32 %v353, %v380
      %v391 = vsub.f32 %v356, %v383
      %v392 = vmul.f32 %v384, 1.442695
      %v393 = vpow.pop %v392
      %v394 = vmul.f32 %v385, 1.442695
      %v395 = vpow.pop %v394
      %v396 = vmul.f32 %v386, 1.442695
      %v397 = vpow.pop %v396
      %v398 = vmul.f32 %v387, 1.442695
      %v399 = vpow.pop %v398
      %v400 = vmul.f32 %v388, 1.442695
      %v401 = vpow.pop %v400
      %v402 = vmul.f32 %v389, 1.442695
      %v403 = vpow.pop %v402
      %v404 = vmul.f32 %v390, 1.442695
      %v405 = vpow.pop %v404
      %v406 = vmul.f32 %v391, 1.442695
      %v407 = vpow.pop %v406
      %v408 = vsel %vm359, %v393, 0.0
      %409 = vadd.xlane.f32.xlu0 %v408
      %v410 = vpop.xlane.xlu0 %409
      %v411 = vsel %vm359, %v395, 0.0
      %412 = vadd.xlane.f32.xlu0 %v411
      %v413 = vpop.xlane.xlu0 %412
      %v414 = vsel %vm359, %v397, 0.0
      %415 = vadd.xlane.f32.xlu0 %v414
      %v416 = vpop.xlane.xlu0 %415
      %v417 = vsel %vm359, %v399, 0.0
      %418 = vadd.xlane.f32.xlu0 %v417
      %v419 = vpop.xlane.xlu0 %418
      %v420 = vsel %vm359, %v401, 0.0
      %421 = vadd.xlane.f32.xlu0 %v420
      %v422 = vpop.xlane.xlu0 %421
      %v423 = vsel %vm359, %v403, 0.0
      %424 = vadd.xlane.f32.xlu0 %v423
      %v425 = vpop.xlane.xlu0 %424
      %v426 = vsel %vm359, %v405, 0.0
      %427 = vadd.xlane.f32.xlu0 %v426
      %v428 = vpop.xlane.xlu0 %427
      %v429 = vsel %vm359, %v407, 0.0
      %430 = vadd.xlane.f32.xlu0 %v429
      %v431 = vpop.xlane.xlu0 %430
      %v432 = vrcp.pop %v410
      %v433 = vmul.f32 %v393, %v432
      %v434 = vrcp.pop %v413
      %v435 = vmul.f32 %v395, %v434
      %v436 = vrcp.pop %v416
      %v437 = vmul.f32 %v397, %v436
      %v438 = vrcp.pop %v419
      %v439 = vmul.f32 %v399, %v438
      %v440 = vrcp.pop %v422
      %v441 = vmul.f32 %v401, %v440
      %v442 = vrcp.pop %v425
      %v443 = vmul.f32 %v403, %v442
      %v444 = vrcp.pop %v428
      %v445 = vmul.f32 %v405, %v444
      %v446 = vrcp.pop %v431
      %v447 = vmul.f32 %v407, %v446
      %v448 = vpack.c.bf16 %v435, %v433
      %v449 = vpack.c.bf16 %v439, %v437
      %v450 = vpack.c.bf16 %v443, %v441
      %v451 = vpack.c.bf16 %v447, %v445
      %v456 = vunpack.c.l.b16 %v448
      %v457 = vunpack.c.h.b16 %v448
      %v458 = vunpack.c.l.b16 %v449
      %v459 = vunpack.c.h.b16 %v449
      %v460 = vunpack.c.l.b16 %v450
      %v461 = vunpack.c.h.b16 %v450
      %v462 = vunpack.c.l.b16 %v451
      %v463 = vunpack.c.h.b16 %v451
      %v464 = vpack.c.b16 %v456, %v456
      %v465 = vpack.c.b16 %v457, %v457
      %v466 = vpack.c.b16 %v458, %v458
      %v467 = vpack.c.b16 %v459, %v459
      %v468 = vpack.c.b16 %v460, %v460
      %v469 = vpack.c.b16 %v461, %v461
      %v470 = vpack.c.b16 %v462, %v462
      %v471 = vpack.c.b16 %v463, %v463
      %vm480 = vcmask 519168
      %481 = vst.msk [vmem:[%s201] sm:$0xf] %vm480, %v464
      %482 = vst.msk [vmem:[%s201 + $0x4] sm:$0xf] %vm480, %v465
      %483 = vst.msk [vmem:[%s201 + $0x8] sm:$0xf] %vm480, %v466
      %484 = vst.msk [vmem:[%s201 + $0xc] sm:$0xf] %vm480, %v467
      %485 = vst.msk [vmem:[%s201 + $0x10] sm:$0xf] %vm480, %v468
      %486 = vst.msk [vmem:[%s201 + $0x14] sm:$0xf] %vm480, %v469
      %487 = vst.msk [vmem:[%s201 + $0x18] sm:$0xf] %vm480, %v470
      %488 = vst.msk [vmem:[%s201 + $0x1c] sm:$0xf] %vm480, %v471
      %s489 = smul.u32 8, %s18
      %p490 = scmp.lt.s32.totalorder %s17, 3
      %s491 = scalar_select %p490, %s17, 3
      %p492 = scmp.lt.s32.totalorder %s489, 7
      %s493 = scalar_select %p492, %s489, 7
      %s494 = smul.addr %s491, 8
      %s495 = sadd.s32 %s493, %s494
      %s496 = smul.addr %s495, 4
      %s497 = scalar_lea.vmem %s2, %s496
      // Predicated region
      $region29: #{gmrw_forward.41} parent=27 // pred_check
        %p498 = pneg %p99
      $region30: #{gmrw_forward.41} parent=27 // pred_check_branch
        %500 = sbr.rel (%p498) target = $region32
      $region31: #{gmrw_forward.41} parent=27 // pred_region
        %s501 = smul.u32 8, %s18
      $region32: #{gmrw_forward.41} parent=27 // pred_fallthru
        _
    $region28: #{gmrw_forward.41} parent=5 // pred_fallthru
      _
    %p502 = scmp.le.s32.totalorder 2, %s8
    // Predicated region
    $region33: #{gmrw_forward.41} parent=5 // pred_check
      %p503 = pneg %p502
    $region34: #{gmrw_forward.41} parent=5 // pred_check_branch
      %505 = sbr.rel (%p503) target = $region36
    $region35: #{gmrw_forward.41} parent=5 // pred_region
      %s506 = ssub.s32 %s8, 2
      // Predicated region
      $region37: #{gmrw_forward.41} parent=35 // pred_check
        %p507 = pneg %p105
      $region38: #{gmrw_forward.41} parent=35 // pred_check_branch
        %509 = sbr.rel (%p507) target = $region40
      $region39: #{gmrw_forward.41} parent=35 // pred_region
        %s510 = smul.u32 8, %s20
        %p511 = scmp.lt.s32.totalorder %s19, 3
        %s512 = scalar_select %p511, %s19, 3
        %p513 = scmp.lt.s32.totalorder %s510, 7
        %s514 = scalar_select %p513, %s510, 7
        %s515 = smul.addr %s512, 8
        %s516 = sadd.s32 %s514, %s515
        %s517 = smul.addr %s516, 4
        %s518 = scalar_lea.vmem %s2, %s517
      $region40: #{gmrw_forward.41} parent=35 // pred_fallthru
        _
    $region36: #{gmrw_forward.41} parent=5 // pred_fallthru
      _
  $region6: #{gmrw_forward.41} parent=0 // loop_footer
    %s12 = sadd.s32 1, %s8
  $region7: #{gmrw_forward.41} parent=0 // loop_footer_branch
    %7 = sbr.rel target = $region3
  $region8: #{gmrw_forward.41} parent=0 // loop_exit
    _

// kernel: gmrw_forward.42
$region0: #{gmrw_forward.42}
  #allocation0 [shape = 'u32[]', space=smem, size = 0x4, offset = 0x4, fixed_abs, tag = 'smem constant byte address 0x4 - core index']
  #allocation1 [shape = 'u32[144,128]{1,0:T(1,128)}', space=vmem, size = 0x12000, scoped, tag = 'internal scratch']
  %s0 = inlined_call_operand.vmem [shape: bf16[2,2,64,64], index: 0, kind: input, shape index: {}]
  %s1 = inlined_call_operand.vmem [shape: f32[2,64,64], index: 1, kind: output, shape index: {}]
  %s2 = sld [smem:[#allocation0]]
  $region45: #{gmrw_forward.42} parent=0
    _
  %s4 = ssub.s32 1, %s2
  %s5 = scalar_select 0, %s4, %s2
  loop: start=0, step=1, limit=6
  $region2: #{gmrw_forward.42} parent=0 // loop_pre_header
    _
  $region3: #{gmrw_forward.42} parent=0 // loop_header
    %s7 = sphi 0, %s11
    %p8 = scmp.ge.s32.totalorder %s7, 6
    %s14 = sphi 0, %s33
    %s15 = sphi 0, %s29
    %s16 = sphi 0, %s25
    %s17 = sphi 0, %s14
    %s18 = sphi 0, %s15
    %s19 = sphi 0, %s16
    %s20 = sphi 0, %s17
    %s21 = sphi 0, %s18
    %s22 = sphi 0, %s19
    %s38 = sphi 0, %s40
    %s41 = sphi 0, %s38
    %s42 = sphi 0, %s41
    %s58 = sphi 0, %s42
    %s66 = sphi 0, %s68
    %s69 = sphi 0, %s66
    %s70 = sphi 0, %s69
    %s86 = sphi 0, %s70
  $region4: #{gmrw_forward.42} parent=0 // loop_header_branch
    %10 = sbr.rel (%p8) target = $region8
  $region5: #{gmrw_forward.42} parent=0 // loop_body
    %s12 = ssub.s32 %s7, 1
    %s13 = ssub.s32 %s7, 2
    %s23 = sadd.s32 1, %s16
    %p24 = scmp.ge.s32.totalorder %s23, 2
    %s25 = scalar_select %p24, 0, %s23
    %s26 = sadd.s32 1, %s15
    %s27 = scalar_select %p24, %s26, %s15
    %p28 = scmp.ge.s32.totalorder %s27, 1
    %s29 = scalar_select %p28, 0, %s27
    %s30 = sadd.s32 1, %s14
    %s31 = scalar_select %p28, %s30, %s14
    %p32 = scmp.ge.s32.totalorder %s31, 2
    %s33 = scalar_select %p32, 0, %s31
    %s34 = ssub.s32 %s14, %s33
    %s35 = ssub.s32 %s16, %s25
    %s36 = sor.u32 %s34, %s35
    %p37 = scmp.eq.s32.totalorder %s36, 0
    %s39 = sadd.s32 %s38, 1
    %s40 = scalar_select %p37, %s38, %s39
    %p43 = pneg %p37
    %p44 = scmp.eq.s32.totalorder %s7, 3
    %p45 = por %p43, %p44
    %p46 = scmp.ne.s32.totalorder %s38, %s41
    %p47 = scmp.eq.s32.totalorder %s7, 0
    %p48 = por %p46, %p47
    %p49 = scmp.ne.s32.totalorder %s38, %s41
    %p50 = scmp.eq.s32.totalorder %s12, 3
    %p51 = por %p49, %p50
    %p52 = scmp.ne.s32.totalorder %s41, %s42
    %p53 = scmp.eq.s32.totalorder %s12, 0
    %p54 = por %p52, %p53
    %p55 = scmp.ne.s32.totalorder %s41, %s42
    %p56 = scmp.eq.s32.totalorder %s13, 3
    %p57 = por %p55, %p56
    %p59 = scmp.ne.s32.totalorder %s42, %s58
    %p60 = scmp.eq.s32.totalorder %s13, 0
    %p61 = por %p59, %p60
    %s62 = ssub.s32 %s14, %s33
    %s63 = ssub.s32 %s15, %s29
    %s64 = sor.u32 %s62, %s63
    %p65 = scmp.eq.s32.totalorder %s64, 0
    %s67 = sadd.s32 %s66, 1
    %s68 = scalar_select %p65, %s66, %s67
    %p71 = pneg %p65
    %p72 = scmp.eq.s32.totalorder %s7, 3
    %p73 = por %p71, %p72
    %p74 = scmp.ne.s32.totalorder %s66, %s69
    %p75 = scmp.eq.s32.totalorder %s7, 0
    %p76 = por %p74, %p75
    %p77 = scmp.ne.s32.totalorder %s66, %s69
    %p78 = scmp.eq.s32.totalorder %s12, 3
    %p79 = por %p77, %p78
    %p80 = scmp.ne.s32.totalorder %s69, %s70
    %p81 = scmp.eq.s32.totalorder %s12, 0
    %p82 = por %p80, %p81
    %p83 = scmp.ne.s32.totalorder %s69, %s70
    %p84 = scmp.eq.s32.totalorder %s13, 3
    %p85 = por %p83, %p84
    %p87 = scmp.ne.s32.totalorder %s70, %s86
    %p88 = scmp.eq.s32.totalorder %s13, 0
    %p89 = por %p87, %p88
    %p90 = scmp.le.s32.totalorder 1, %s7
    %p91 = scmp.lt.s32.totalorder %s7, 5
    %p92 = pnand %p90, %p91
    %p93 = pneg %p92
    // Predicated region
    $region9: #{gmrw_forward.42} parent=5 // pred_check
      _
    $region10: #{gmrw_forward.42} parent=5 // pred_check_branch
      %95 = sbr.rel (%p92) target = $region12
    $region11: #{gmrw_forward.42} parent=5 // pred_region
      %s96 = ssub.s32 %s7, 1
    $region12: #{gmrw_forward.42} parent=5 // pred_fallthru
      _
    %p97 = scmp.lt.s32.totalorder %s7, 4
    // Predicated region
    $region13: #{gmrw_forward.42} parent=5 // pred_check
      %p98 = pneg %p97
    $region14: #{gmrw_forward.42} parent=5 // pred_check_branch
      %100 = sbr.rel (%p98) target = $region16
    $region15: #{gmrw_forward.42} parent=5 // pred_region
      // Predicated region
      $region17: #{gmrw_forward.42} parent=15 // pred_check
        %p101 = pneg %p48
      $region18: #{gmrw_forward.42} parent=15 // pred_check_branch
        %103 = sbr.rel (%p101) target = $region20
      $region19: #{gmrw_forward.42} parent=15 // pred_region
        %p104 = scmp.lt.s32.totalorder %s14, 1
        %s105 = scalar_select %p104, %s14, 1
        %p106 = scmp.lt.s32.totalorder %s16, 1
        %s107 = scalar_select %p106, %s16, 1
        %s108 = smul.addr %s107, 8
        %s109 = smul.addr %s105, 16
        %s110 = sadd.s32 %s108, %s109
        %s111 = smul.addr %s110, 4
        %s112 = scalar_lea.vmem %s0, %s111
      $region20: #{gmrw_forward.42} parent=15 // pred_fallthru
        _
    $region16: #{gmrw_forward.42} parent=5 // pred_fallthru
      _
    %p113 = scmp.le.s32.totalorder 1, %s7
    %p114 = scmp.lt.s32.totalorder %s7, 5
    %p115 = pnand %p113, %p114
    %p116 = pneg %p115
    // Predicated region
    $region21: #{gmrw_forward.42} parent=5 // pred_check
      _
    $region22: #{gmrw_forward.42} parent=5 // pred_check_branch
      %118 = sbr.rel (%p115) target = $region24
    $region23: #{gmrw_forward.42} parent=5 // pred_region
      %s119 = ssub.s32 %s7, 1
      %p120 = scmp.lt.s32.totalorder %s17, 1
      %s121 = scalar_select %p120, %s17, 1
      %p122 = scmp.lt.s32.totalorder %s19, 1
      %s123 = scalar_select %p122, %s19, 1
      %s124 = smul.addr %s123, 8
      %s125 = smul.addr %s121, 16
      %s126 = sadd.s32 %s124, %s125
      %s127 = smul.addr %s126, 4
      %s128 = scalar_lea.vmem %s0, %s127
      %p129 = pneg %p54
      %p130 = pneg %p51
      %p131 = pneg %p82
      %p132 = pneg %p79
      %s133 = smul.u32 8, %s18
      %p134 = scmp.lt.s32.totalorder %s17, 1
      %s135 = scalar_select %p134, %s17, 1
      %p136 = scmp.lt.s32.totalorder %s133, 7
      %s137 = scalar_select %p136, %s133, 7
      %s138 = smul.addr %s135, 8
      %s139 = sadd.s32 %s137, %s138
      %s140 = smul.addr %s139, 8
      %s141 = scalar_lea.vmem %s1, %s140
      %p142 = scmp.lt.s32.totalorder %s17, 1
      %s143 = scalar_select %p142, %s17, 1
      %p144 = scmp.lt.s32.totalorder %s19, 1
      %s145 = scalar_select %p144, %s19, 1
      %s146 = smul.addr %s145, 8
      %s147 = smul.addr %s143, 16
      %s148 = sadd.s32 %s146, %s147
      %s149 = smul.addr %s148, 4
      %s150 = scalar_lea.vmem %s0, %s149
      %s151 = smul.u32 8, %s18
      %p152 = scmp.lt.s32.totalorder %s17, 1
      %s153 = scalar_select %p152, %s17, 1
      %p154 = scmp.lt.s32.totalorder %s151, 7
      %s155 = scalar_select %p154, %s151, 7
      %s156 = smul.addr %s153, 8
      %s157 = sadd.s32 %s155, %s156
      %s158 = smul.addr %s157, 8
      %s159 = scalar_lea.vmem %s1, %s158
      %s160 = smul.u32 8, %s18
      %p162 = scmp.eq.s32.totalorder %s19, 0
      // Predicated region
      $region25: #{gmrw_forward.42} parent=23 // pred_check
        %p163 = pneg %p162
      $region26: #{gmrw_forward.42} parent=23 // pred_check_branch
        %165 = sbr.rel (%p163) target = $region28
      $region27: #{gmrw_forward.42} parent=23 // pred_region
        %s166 = smul.u32 %s18, 64
        %s167 = sshra.s32 %s166, 3
        %s168 = sand.u32 %s166, 7
        %s169 = smul.addr %s167, 4
        %s170 = scalar_lea.vmem %s150, %s169
        %v171 = vld [vmem:[%s170] sm:$0xf]
        %v172 = vld [vmem:[%s170 + $0x4] sm:$0xf]
        %v173 = vld [vmem:[%s170 + $0x8] sm:$0xf]
        %v174 = vld [vmem:[%s170 + $0xc] sm:$0xf]
        %v175 = vld [vmem:[%s170 + $0x10] sm:$0xf]
        %v176 = vld [vmem:[%s170 + $0x14] sm:$0xf]
        %v177 = vld [vmem:[%s170 + $0x18] sm:$0xf]
        %v178 = vld [vmem:[%s170 + $0x1c] sm:$0xf]
        %v179 = vunpack.c.l.bf16 %v171
        %v180 = vunpack.c.l.bf16 %v172
        %v181 = vunpack.c.l.bf16 %v173
        %v182 = vunpack.c.l.bf16 %v174
        %v183 = vunpack.c.l.bf16 %v175
        %v184 = vunpack.c.l.bf16 %v176
        %v185 = vunpack.c.l.bf16 %v177
        %v186 = vunpack.c.l.bf16 %v178
        %vm187 = vcmask 523264
        %188 = vst.msk [vmem:[%s159] sm:$0xff] %vm187, %v179
        %189 = vst.msk [vmem:[%s159 + $0x8] sm:$0xff] %vm187, %v180
        %190 = vst.msk [vmem:[%s159 + $0x10] sm:$0xff] %vm187, %v181
        %191 = vst.msk [vmem:[%s159 + $0x18] sm:$0xff] %vm187, %v182
        %192 = vst.msk [vmem:[%s159 + $0x20] sm:$0xff] %vm187, %v183
        %193 = vst.msk [vmem:[%s159 + $0x28] sm:$0xff] %vm187, %v184
        %194 = vst.msk [vmem:[%s159 + $0x30] sm:$0xff] %vm187, %v185
        %195 = vst.msk [vmem:[%s159 + $0x38] sm:$0xff] %vm187, %v186
      $region28: #{gmrw_forward.42} parent=23 // pred_fallthru
        _
      %p196 = scmp.gt.s32.totalorder %s19, 0
      // Predicated region
      $region29: #{gmrw_forward.42} parent=23 // pred_check
        %p197 = pneg %p196
      $region30: #{gmrw_forward.42} parent=23 // pred_check_branch
        %199 = sbr.rel (%p197) target = $region32
      $region31: #{gmrw_forward.42} parent=23 // pred_region
        %v200 = vld [vmem:[%s159] sm:$0xff]
        %v201 = vld [vmem:[%s159 + $0x8] sm:$0xff]
        %v202 = vld [vmem:[%s159 + $0x10] sm:$0xff]
        %v203 = vld [vmem:[%s159 + $0x18] sm:$0xff]
        %v204 = vld [vmem:[%s159 + $0x20] sm:$0xff]
        %v205 = vld [vmem:[%s159 + $0x28] sm:$0xff]
        %v206 = vld [vmem:[%s159 + $0x30] sm:$0xff]
        %v207 = vld [vmem:[%s159 + $0x38] sm:$0xff]
        %v208 = vpack.c.bf16 %v201, %v200
        %v209 = vpack.c.bf16 %v203, %v202
        %v210 = vpack.c.bf16 %v205, %v204
        %v211 = vpack.c.bf16 %v207, %v206
        %v212 = vld [vmem:[%s150] sm:$0xf]
        %v213 = vld [vmem:[%s150 + $0x4] sm:$0xf]
        %v214 = vld [vmem:[%s150 + $0x8] sm:$0xf]
        %v215 = vld [vmem:[%s150 + $0xc] sm:$0xf]
        %v216 = vld [vmem:[%s150 + $0x10] sm:$0xf]
        %v217 = vld [vmem:[%s150 + $0x14] sm:$0xf]
        %v218 = vld [vmem:[%s150 + $0x18] sm:$0xf]
        %v219 = vld [vmem:[%s150 + $0x1c] sm:$0xf]
        %v228 = vunpack.c.l.b16 %v212
        %v229 = vunpack.c.l.b16 %v213
        %v230 = vunpack.c.l.b16 %v214
        %v231 = vunpack.c.l.b16 %v215
        %v232 = vunpack.c.l.b16 %v216
        %v233 = vunpack.c.l.b16 %v217
        %v234 = vunpack.c.l.b16 %v218
        %v235 = vunpack.c.l.b16 %v219
        %v236 = vpack.c.b16 %v229, %v228
        %v237 = vpack.c.b16 %v231, %v230
        %v238 = vpack.c.b16 %v233, %v232
        %v239 = vpack.c.b16 %v235, %v234
        %vm244 = vcmask 523264
        %v246 = vsel %vm244, %v208, 0
        %v249 = vsel %vm244, %v209, 0
        %v252 = vsel %vm244, %v210, 0
        %v255 = vsel %vm244, %v211, 0
        %257 = vmatprep.subr.bf16.mxu0 0
        %258 = vmatpush1.bf16.msra.mxu0 %v236
        %259 = vmatprep.subr.bf16.mxu0 0
        %260 = vmatpush1.bf16.msra.mxu0 %v237
        %261 = vmatprep.subr.bf16.mxu0 0
        %262 = vmatpush1.bf16.msra.mxu0 %v238
        %263 = vmatprep.subr.bf16.mxu0 0
        %264 = vmatpush1.bf16.msra.mxu0 %v239
        %265 = vmatprep.subr.bf16.mxu0 0
        %266 = vmatpush1.bf16.msra.mxu0 0
        %267 = vmatprep.subr.bf16.mxu0 0
        %268 = vmatpush1.bf16.msra.mxu0 0
        %269 = vmatprep.subr.bf16.mxu0 0
        %270 = vmatpush1.bf16.msra.mxu0 0
        %271 = vmatprep.subr.bf16.mxu0 0
        %272 = vmatpush1.bf16.msra.mxu0 0
        %273 = vmatprep.subr.bf16.mxu0 0
        %274 = vmatpush1.bf16.msra.mxu0 0
        %275 = vmatprep.subr.bf16.mxu0 0
        %276 = vmatpush1.bf16.msra.mxu0 0
        %277 = vmatprep.subr.bf16.mxu0 0
        %278 = vmatpush1.bf16.msra.mxu0 0
        %279 = vmatprep.subr.bf16.mxu0 0
        %280 = vmatpush1.bf16.msra.mxu0 0
        %281 = vmatprep.subr.bf16.mxu0 0
        %282 = vmatpush1.bf16.msra.mxu0 0
        %283 = vmatprep.subr.bf16.mxu0 0
        %284 = vmatpush1.bf16.msra.mxu0 0
        %285 = vmatprep.subr.bf16.mxu0 0
        %286 = vmatpush1.bf16.msra.mxu0 0
        %287 = vmatprep.subr.bf16.mxu0 0
        %288 = vmatpush1.bf16.msra.mxu0 0
        %289 = vmatprep.mubr.bf16.mxu0 0
        %290 = vmatmul.mubr.bf16.gmra.mrb[0].mxu0 %v246
        %v291 = vpop.f32.mrb[0].mxu0
        %v292 = vadd.f32 0.0, %v291
        %v293 = vpop.f32.mrb[0].mxu0
        %v294 = vpop.f32.mrb[0].mxu0
        %v295 = vadd.f32 0.0, %v294
        %v296 = vpop.f32.mrb[0].mxu0
        %297 = vmatprep.mubr.bf16.mxu0 0
        %298 = vmatmul.mubr.bf16.gmra.mrb[0].mxu0 %v249
        %v299 = vpop.f32.mrb[0].mxu0
        %v300 = vadd.f32 0.0, %v299
        %v301 = vpop.f32.mrb[0].mxu0
        %v302 = vpop.f32.mrb[0].mxu0
        %v303 = vadd.f32 0.0, %v302
        %v304 = vpop.f32.mrb[0].mxu0
        %305 = vmatprep.mubr.bf16.mxu0 0
        %306 = vmatmul.mubr.bf16.gmra.mrb[0].mxu0 %v252
        %v307 = vpop.f32.mrb[0].mxu0
        %v308 = vadd.f32 0.0, %v307
        %v309 = vpop.f32.mrb[0].mxu0
        %v310 = vpop.f32.mrb[0].mxu0
        %v311 = vadd.f32 0.0, %v310
        %v312 = vpop.f32.mrb[0].mxu0
        %313 = vmatprep.mubr.bf16.mxu0 0
        %314 = vmatmul.mubr.bf16.gmra.mrb[0].mxu0 %v255
        %v315 = vpop.f32.mrb[0].mxu0
        %v316 = vadd.f32 0.0, %v315
        %v317 = vpop.f32.mrb[0].mxu0
        %v318 = vpop.f32.mrb[0].mxu0
        %v319 = vadd.f32 0.0, %v318
        %v320 = vpop.f32.mrb[0].mxu0
        %321 = vdwg.mxu0
        %322 = vst.msk [vmem:[%s159] sm:$0xff] %vm244, %v292
        %323 = vst.msk [vmem:[%s159 + $0x8] sm:$0xff] %vm244, %v295
        %324 = vst.msk [vmem:[%s159 + $0x10] sm:$0xff] %vm244, %v300
        %325 = vst.msk [vmem:[%s159 + $0x18] sm:$0xff] %vm244, %v303
        %326 = vst.msk [vmem:[%s159 + $0x20] sm:$0xff] %vm244, %v308
        %327 = vst.msk [vmem:[%s159 + $0x28] sm:$0xff] %vm244, %v311
        %328 = vst.msk [vmem:[%s159 + $0x30] sm:$0xff] %vm244, %v316
        %329 = vst.msk [vmem:[%s159 + $0x38] sm:$0xff] %vm244, %v319
      $region32: #{gmrw_forward.42} parent=23 // pred_fallthru
        _
      %s330 = smul.u32 8, %s18
      %p331 = scmp.lt.s32.totalorder %s17, 1
      %s332 = scalar_select %p331, %s17, 1
      %p333 = scmp.lt.s32.totalorder %s330, 7
      %s334 = scalar_select %p333, %s330, 7
      %s335 = smul.addr %s332, 8
      %s336 = sadd.s32 %s334, %s335
      %s337 = smul.addr %s336, 8
      %s338 = scalar_lea.vmem %s1, %s337
      // Predicated region
      $region33: #{gmrw_forward.42} parent=23 // pred_check
        %p339 = pneg %p79
      $region34: #{gmrw_forward.42} parent=23 // pred_check_branch
        %341 = sbr.rel (%p339) target = $region36
      $region35: #{gmrw_forward.42} parent=23 // pred_region
        %s342 = smul.u32 8, %s18
      $region36: #{gmrw_forward.42} parent=23 // pred_fallthru
        _
    $region24: #{gmrw_forward.42} parent=5 // pred_fallthru
      _
    %p343 = scmp.le.s32.totalorder 2, %s7
    // Predicated region
    $region37: #{gmrw_forward.42} parent=5 // pred_check
      %p344 = pneg %p343
    $region38: #{gmrw_forward.42} parent=5 // pred_check_branch
      %346 = sbr.rel (%p344) target = $region40
    $region39: #{gmrw_forward.42} parent=5 // pred_region
      %s347 = ssub.s32 %s7, 2
      // Predicated region
      $region41: #{gmrw_forward.42} parent=39 // pred_check
        %p348 = pneg %p85
      $region42: #{gmrw_forward.42} parent=39 // pred_check_branch
        %350 = sbr.rel (%p348) target = $region44
      $region43: #{gmrw_forward.42} parent=39 // pred_region
        %s351 = smul.u32 8, %s21
        %p352 = scmp.lt.s32.totalorder %s20, 1
        %s353 = scalar_select %p352, %s20, 1
        %p354 = scmp.lt.s32.totalorder %s351, 7
        %s355 = scalar_select %p354, %s351, 7
        %s356 = smul.addr %s353, 8
        %s357 = sadd.s32 %s355, %s356
        %s358 = smul.addr %s357, 8
        %s359 = scalar_lea.vmem %s1, %s358
      $region44: #{gmrw_forward.42} parent=39 // pred_fallthru
        _
    $region40: #{gmrw_forward.42} parent=5 // pred_fallthru
      _
  $region6: #{gmrw_forward.42} parent=0 // loop_footer
    %s11 = sadd.s32 1, %s7
  $region7: #{gmrw_forward.42} parent=0 // loop_footer_branch
    %6 = sbr.rel target = $region3
  $region8: #{gmrw_forward.42} parent=0 // loop_exit
    _

// kernel: gmrw_forward.43
$region0: #{gmrw_forward.43}
  #allocation0 [shape = 'u32[]', space=smem, size = 0x4, offset = 0x4, fixed_abs, tag = 'smem constant byte address 0x4 - core index']
  #allocation1 [shape = 'u32[144,128]{1,0:T(1,128)}', space=vmem, size = 0x12000, scoped, tag = 'internal scratch']
  %s0 = inlined_call_operand.vmem [shape: f32[2,64,64], index: 0, kind: input, shape index: {}]
  %s1 = inlined_call_operand.vmem [shape: s32[2,64,1], index: 1, kind: input, shape index: {}]
  %s2 = inlined_call_operand.vmem [shape: f32[2,64,1], index: 2, kind: input, shape index: {}]
  %s3 = inlined_call_operand.vmem [shape: f32[2,64,1], index: 3, kind: output, shape index: {0}]
  %s4 = inlined_call_operand.vmem [shape: f32[2,64,1], index: 4, kind: output, shape index: {1}]
  %5 = xla_tuple %s3, %s4
  %s6 = sld [smem:[#allocation0]]
  $region53: #{gmrw_forward.43} parent=0
    _
  %s8 = ssub.s32 1, %s6
  %s9 = scalar_select 0, %s8, %s6
  loop: start=0, step=1, limit=4
  $region2: #{gmrw_forward.43} parent=0 // loop_pre_header
    _
  $region3: #{gmrw_forward.43} parent=0 // loop_header
    %s11 = sphi 0, %s15
    %p12 = scmp.ge.s32.totalorder %s11, 4
    %s18 = sphi 0, %s30
    %s19 = sphi 0, %s26
    %s20 = sphi 0, %s18
    %s21 = sphi 0, %s19
    %s22 = sphi 0, %s20
    %s23 = sphi 0, %s21
    %s35 = sphi 0, %s37
    %s38 = sphi 0, %s35
    %s39 = sphi 0, %s38
    %s55 = sphi 0, %s39
    %s63 = sphi 0, %s65
    %s66 = sphi 0, %s63
    %s67 = sphi 0, %s66
    %s83 = sphi 0, %s67
    %s91 = sphi 0, %s93
    %s94 = sphi 0, %s91
    %s95 = sphi 0, %s94
    %s111 = sphi 0, %s95
    %s119 = sphi 0, %s121
    %s122 = sphi 0, %s119
    %s123 = sphi 0, %s122
    %s139 = sphi 0, %s123
    %s147 = sphi 0, %s149
    %s150 = sphi 0, %s147
    %s151 = sphi 0, %s150
    %s167 = sphi 0, %s151
  $region4: #{gmrw_forward.43} parent=0 // loop_header_branch
    %14 = sbr.rel (%p12) target = $region8
  $region5: #{gmrw_forward.43} parent=0 // loop_body
    %s16 = ssub.s32 %s11, 1
    %s17 = ssub.s32 %s11, 2
    %s24 = sadd.s32 1, %s19
    %p25 = scmp.ge.s32.totalorder %s24, 1
    %s26 = scalar_select %p25, 0, %s24
    %s27 = sadd.s32 1, %s18
    %s28 = scalar_select %p25, %s27, %s18
    %p29 = scmp.ge.s32.totalorder %s28, 2
    %s30 = scalar_select %p29, 0, %s28
    %s31 = ssub.s32 %s18, %s30
    %s32 = ssub.s32 %s19, %s26
    %s33 = sor.u32 %s31, %s32
    %p34 = scmp.eq.s32.totalorder %s33, 0
    %s36 = sadd.s32 %s35, 1
    %s37 = scalar_select %p34, %s35, %s36
    %p40 = pneg %p34
    %p41 = scmp.eq.s32.totalorder %s11, 1
    %p42 = por %p40, %p41
    %p43 = scmp.ne.s32.totalorder %s35, %s38
    %p44 = scmp.eq.s32.totalorder %s11, 0
    %p45 = por %p43, %p44
    %p46 = scmp.ne.s32.totalorder %s35, %s38
    %p47 = scmp.eq.s32.totalorder %s16, 1
    %p48 = por %p46, %p47
    %p49 = scmp.ne.s32.totalorder %s38, %s39
    %p50 = scmp.eq.s32.totalorder %s16, 0
    %p51 = por %p49, %p50
    %p52 = scmp.ne.s32.totalorder %s38, %s39
    %p53 = scmp.eq.s32.totalorder %s17, 1
    %p54 = por %p52, %p53
    %p56 = scmp.ne.s32.totalorder %s39, %s55
    %p57 = scmp.eq.s32.totalorder %s17, 0
    %p58 = por %p56, %p57
    %s59 = ssub.s32 %s18, %s30
    %s60 = ssub.s32 %s19, %s26
    %s61 = sor.u32 %s59, %s60
    %p62 = scmp.eq.s32.totalorder %s61, 0
    %s64 = sadd.s32 %s63, 1
    %s65 = scalar_select %p62, %s63, %s64
    %p68 = pneg %p62
    %p69 = scmp.eq.s32.totalorder %s11, 1
    %p70 = por %p68, %p69
    %p71 = scmp.ne.s32.totalorder %s63, %s66
    %p72 = scmp.eq.s32.totalorder %s11, 0
    %p73 = por %p71, %p72
    %p74 = scmp.ne.s32.totalorder %s63, %s66
    %p75 = scmp.eq.s32.totalorder %s16, 1
    %p76 = por %p74, %p75
    %p77 = scmp.ne.s32.totalorder %s66, %s67
    %p78 = scmp.eq.s32.totalorder %s16, 0
    %p79 = por %p77, %p78
    %p80 = scmp.ne.s32.totalorder %s66, %s67
    %p81 = scmp.eq.s32.totalorder %s17, 1
    %p82 = por %p80, %p81
    %p84 = scmp.ne.s32.totalorder %s67, %s83
    %p85 = scmp.eq.s32.totalorder %s17, 0
    %p86 = por %p84, %p85
    %s87 = ssub.s32 %s18, %s30
    %s88 = ssub.s32 %s19, %s26
    %s89 = sor.u32 %s87, %s88
    %p90 = scmp.eq.s32.totalorder %s89, 0
    %s92 = sadd.s32 %s91, 1
    %s93 = scalar_select %p90, %s91, %s92
    %p96 = pneg %p90
    %p97 = scmp.eq.s32.totalorder %s11, 1
    %p98 = por %p96, %p97
    %p99 = scmp.ne.s32.totalorder %s91, %s94
    %p100 = scmp.eq.s32.totalorder %s11, 0
    %p101 = por %p99, %p100
    %p102 = scmp.ne.s32.totalorder %s91, %s94
    %p103 = scmp.eq.s32.totalorder %s16, 1
    %p104 = por %p102, %p103
    %p105 = scmp.ne.s32.totalorder %s94, %s95
    %p106 = scmp.eq.s32.totalorder %s16, 0
    %p107 = por %p105, %p106
    %p108 = scmp.ne.s32.totalorder %s94, %s95
    %p109 = scmp.eq.s32.totalorder %s17, 1
    %p110 = por %p108, %p109
    %p112 = scmp.ne.s32.totalorder %s95, %s111
    %p113 = scmp.eq.s32.totalorder %s17, 0
    %p114 = por %p112, %p113
    %s115 = ssub.s32 %s18, %s30
    %s116 = ssub.s32 %s19, %s26
    %s117 = sor.u32 %s115, %s116
    %p118 = scmp.eq.s32.totalorder %s117, 0
    %s120 = sadd.s32 %s119, 1
    %s121 = scalar_select %p118, %s119, %s120
    %p124 = pneg %p118
    %p125 = scmp.eq.s32.totalorder %s11, 1
    %p126 = por %p124, %p125
    %p127 = scmp.ne.s32.totalorder %s119, %s122
    %p128 = scmp.eq.s32.totalorder %s11, 0
    %p129 = por %p127, %p128
    %p130 = scmp.ne.s32.totalorder %s119, %s122
    %p131 = scmp.eq.s32.totalorder %s16, 1
    %p132 = por %p130, %p131
    %p133 = scmp.ne.s32.totalorder %s122, %s123
    %p134 = scmp.eq.s32.totalorder %s16, 0
    %p135 = por %p133, %p134
    %p136 = scmp.ne.s32.totalorder %s122, %s123
    %p137 = scmp.eq.s32.totalorder %s17, 1
    %p138 = por %p136, %p137
    %p140 = scmp.ne.s32.totalorder %s123, %s139
    %p141 = scmp.eq.s32.totalorder %s17, 0
    %p142 = por %p140, %p141
    %s143 = ssub.s32 %s18, %s30
    %s144 = ssub.s32 %s19, %s26
    %s145 = sor.u32 %s143, %s144
    %p146 = scmp.eq.s32.totalorder %s145, 0
    %s148 = sadd.s32 %s147, 1
    %s149 = scalar_select %p146, %s147, %s148
    %p152 = pneg %p146
    %p153 = scmp.eq.s32.totalorder %s11, 1
    %p154 = por %p152, %p153
    %p155 = scmp.ne.s32.totalorder %s147, %s150
    %p156 = scmp.eq.s32.totalorder %s11, 0
    %p157 = por %p155, %p156
    %p158 = scmp.ne.s32.totalorder %s147, %s150
    %p159 = scmp.eq.s32.totalorder %s16, 1
    %p160 = por %p158, %p159
    %p161 = scmp.ne.s32.totalorder %s150, %s151
    %p162 = scmp.eq.s32.totalorder %s16, 0
    %p163 = por %p161, %p162
    %p164 = scmp.ne.s32.totalorder %s150, %s151
    %p165 = scmp.eq.s32.totalorder %s17, 1
    %p166 = por %p164, %p165
    %p168 = scmp.ne.s32.totalorder %s151, %s167
    %p169 = scmp.eq.s32.totalorder %s17, 0
    %p170 = por %p168, %p169
    %p171 = scmp.le.s32.totalorder 1, %s11
    %p172 = scmp.lt.s32.totalorder %s11, 3
    %p173 = pnand %p171, %p172
    %p174 = pneg %p173
    // Predicated region
    $region9: #{gmrw_forward.43} parent=5 // pred_check
      _
    $region10: #{gmrw_forward.43} parent=5 // pred_check_branch
      %176 = sbr.rel (%p173) target = $region12
    $region11: #{gmrw_forward.43} parent=5 // pred_region
      %s177 = ssub.s32 %s11, 1
    $region12: #{gmrw_forward.43} parent=5 // pred_fallthru
      _
    %p178 = scmp.lt.s32.totalorder %s11, 2
    // Predicated region
    $region13: #{gmrw_forward.43} parent=5 // pred_check
      %p179 = pneg %p178
    $region14: #{gmrw_forward.43} parent=5 // pred_check_branch
      %181 = sbr.rel (%p179) target = $region16
    $region15: #{gmrw_forward.43} parent=5 // pred_region
      // Predicated region
      $region17: #{gmrw_forward.43} parent=15 // pred_check
        %p182 = pneg %p45
      $region18: #{gmrw_forward.43} parent=15 // pred_check_branch
        %184 = sbr.rel (%p182) target = $region20
      $region19: #{gmrw_forward.43} parent=15 // pred_region
        %s185 = smul.u32 8, %s19
        %p186 = scmp.lt.s32.totalorder %s18, 1
        %s187 = scalar_select %p186, %s18, 1
        %p188 = scmp.lt.s32.totalorder %s185, 7
        %s189 = scalar_select %p188, %s185, 7
        %s190 = smul.addr %s187, 8
        %s191 = sadd.s32 %s189, %s190
        %s192 = smul.addr %s191, 8
        %s193 = scalar_lea.vmem %s0, %s192
        %s194 = smul.u32 8, %s19
      $region20: #{gmrw_forward.43} parent=15 // pred_fallthru
        _
      // Predicated region
      $region21: #{gmrw_forward.43} parent=15 // pred_check
        %p195 = pneg %p73
      $region22: #{gmrw_forward.43} parent=15 // pred_check_branch
        %197 = sbr.rel (%p195) target = $region24
      $region23: #{gmrw_forward.43} parent=15 // pred_region
        %s198 = smul.u32 8, %s19
        %p199 = scmp.lt.s32.totalorder %s18, 1
        %s200 = scalar_select %p199, %s18, 1
        %p201 = scmp.lt.s32.totalorder %s198, 7
        %s202 = scalar_select %p201, %s198, 7
        %s203 = smul.addr %s200, 8
        %s204 = sadd.s32 %s202, %s203
        %s205 = smul.addr %s204, 8
        %s206 = scalar_lea.vmem %s1, %s205
        %s207 = smul.u32 8, %s19
      $region24: #{gmrw_forward.43} parent=15 // pred_fallthru
        _
      // Predicated region
      $region25: #{gmrw_forward.43} parent=15 // pred_check
        %p208 = pneg %p101
      $region26: #{gmrw_forward.43} parent=15 // pred_check_branch
        %210 = sbr.rel (%p208) target = $region28
      $region27: #{gmrw_forward.43} parent=15 // pred_region
        %s211 = smul.u32 8, %s19
        %p212 = scmp.lt.s32.totalorder %s18, 1
        %s213 = scalar_select %p212, %s18, 1
        %p214 = scmp.lt.s32.totalorder %s211, 7
        %s215 = scalar_select %p214, %s211, 7
        %s216 = smul.addr %s213, 8
        %s217 = sadd.s32 %s215, %s216
        %s218 = smul.addr %s217, 8
        %s219 = scalar_lea.vmem %s2, %s218
        %s220 = smul.u32 8, %s19
      $region28: #{gmrw_forward.43} parent=15 // pred_fallthru
        _
    $region16: #{gmrw_forward.43} parent=5 // pred_fallthru
      _
    %p221 = scmp.le.s32.totalorder 1, %s11
    %p222 = scmp.lt.s32.totalorder %s11, 3
    %p223 = pnand %p221, %p222
    %p224 = pneg %p223
    // Predicated region
    $region29: #{gmrw_forward.43} parent=5 // pred_check
      _
    $region30: #{gmrw_forward.43} parent=5 // pred_check_branch
      %226 = sbr.rel (%p223) target = $region32
    $region31: #{gmrw_forward.43} parent=5 // pred_region
      %s227 = ssub.s32 %s11, 1
      %s228 = smul.u32 8, %s21
      %p229 = scmp.lt.s32.totalorder %s20, 1
      %s230 = scalar_select %p229, %s20, 1
      %p231 = scmp.lt.s32.totalorder %s228, 7
      %s232 = scalar_select %p231, %s228, 7
      %s233 = smul.addr %s230, 8
      %s234 = sadd.s32 %s232, %s233
      %s235 = smul.addr %s234, 8
      %s236 = scalar_lea.vmem %s0, %s235
      %p237 = pneg %p51
      %p238 = pneg %p48
      %s239 = smul.u32 8, %s21
      %p240 = scmp.lt.s32.totalorder %s20, 1
      %s241 = scalar_select %p240, %s20, 1
      %p242 = scmp.lt.s32.totalorder %s239, 7
      %s243 = scalar_select %p242, %s239, 7
      %s244 = smul.addr %s241, 8
      %s245 = sadd.s32 %s243, %s244
      %s246 = smul.addr %s245, 8
      %s247 = scalar_lea.vmem %s1, %s246
      %p248 = pneg %p79
      %p249 = pneg %p76
      %s250 = smul.u32 8, %s21
      %p251 = scmp.lt.s32.totalorder %s20, 1
      %s252 = scalar_select %p251, %s20, 1
      %p253 = scmp.lt.s32.totalorder %s250, 7
      %s254 = scalar_select %p253, %s250, 7
      %s255 = smul.addr %s252, 8
      %s256 = sadd.s32 %s254, %s255
      %s257 = smul.addr %s256, 8
      %s258 = scalar_lea.vmem %s2, %s257
      %p259 = pneg %p107
      %p260 = pneg %p104
      %p261 = pneg %p135
      %p262 = pneg %p132
      %s263 = smul.u32 8, %s21
      %p264 = scmp.lt.s32.totalorder %s20, 1
      %s265 = scalar_select %p264, %s20, 1
      %p266 = scmp.lt.s32.totalorder %s263, 7
      %s267 = scalar_select %p266, %s263, 7
      %s268 = smul.addr %s265, 8
      %s269 = sadd.s32 %s267, %s268
      %s270 = smul.addr %s269, 8
      %s271 = scalar_lea.vmem %s3, %s270
      %p272 = pneg %p163
      %p273 = pneg %p160
      %s274 = smul.u32 8, %s21
      %p275 = scmp.lt.s32.totalorder %s20, 1
      %s276 = scalar_select %p275, %s20, 1
      %p277 = scmp.lt.s32.totalorder %s274, 7
      %s278 = scalar_select %p277, %s274, 7
      %s279 = smul.addr %s276, 8
      %s280 = sadd.s32 %s278, %s279
      %s281 = smul.addr %s280, 8
      %s282 = scalar_lea.vmem %s4, %s281
      %s283 = smul.u32 8, %s21
      %p284 = scmp.lt.s32.totalorder %s20, 1
      %s285 = scalar_select %p284, %s20, 1
      %p286 = scmp.lt.s32.totalorder %s283, 7
      %s287 = scalar_select %p286, %s283, 7
      %s288 = smul.addr %s285, 8
      %s289 = sadd.s32 %s287, %s288
      %s290 = smul.addr %s289, 8
      %s291 = scalar_lea.vmem %s0, %s290
      %s292 = smul.u32 8, %s21
      %s293 = smul.u32 8, %s21
      %p294 = scmp.lt.s32.totalorder %s20, 1
      %s295 = scalar_select %p294, %s20, 1
      %p296 = scmp.lt.s32.totalorder %s293, 7
      %s297 = scalar_select %p296, %s293, 7
      %s298 = smul.addr %s295, 8
      %s299 = sadd.s32 %s297, %s298
      %s300 = smul.addr %s299, 8
      %s301 = scalar_lea.vmem %s1, %s300
      %s302 = smul.u32 8, %s21
      %s303 = smul.u32 8, %s21
      %p304 = scmp.lt.s32.totalorder %s20, 1
      %s305 = scalar_select %p304, %s20, 1
      %p306 = scmp.lt.s32.totalorder %s303, 7
      %s307 = scalar_select %p306, %s303, 7
      %s308 = smul.addr %s305, 8
      %s309 = sadd.s32 %s307, %s308
      %s310 = smul.addr %s309, 8
      %s311 = scalar_lea.vmem %s2, %s310
      %s312 = smul.u32 8, %s21
      %s313 = smul.u32 8, %s21
      %p314 = scmp.lt.s32.totalorder %s20, 1
      %s315 = scalar_select %p314, %s20, 1
      %p316 = scmp.lt.s32.totalorder %s313, 7
      %s317 = scalar_select %p316, %s313, 7
      %s318 = smul.addr %s315, 8
      %s319 = sadd.s32 %s317, %s318
      %s320 = smul.addr %s319, 8
      %s321 = scalar_lea.vmem %s3, %s320
      %s322 = smul.u32 8, %s21
      %s323 = smul.u32 8, %s21
      %p324 = scmp.lt.s32.totalorder %s20, 1
      %s325 = scalar_select %p324, %s20, 1
      %p326 = scmp.lt.s32.totalorder %s323, 7
      %s327 = scalar_select %p326, %s323, 7
      %s328 = smul.addr %s325, 8
      %s329 = sadd.s32 %s327, %s328
      %s330 = smul.addr %s329, 8
      %s331 = scalar_lea.vmem %s4, %s330
      %s332 = smul.u32 8, %s21
      %v333 = vld [vmem:[%s291] sm:$0xff]
      %v334 = vld [vmem:[%s291 + $0x8] sm:$0xff]
      %v335 = vld [vmem:[%s291 + $0x10] sm:$0xff]
      %v336 = vld [vmem:[%s291 + $0x18] sm:$0xff]
      %v337 = vld [vmem:[%s291 + $0x20] sm:$0xff]
      %v338 = vld [vmem:[%s291 + $0x28] sm:$0xff]
      %v339 = vld [vmem:[%s291 + $0x30] sm:$0xff]
      %v340 = vld [vmem:[%s291 + $0x38] sm:$0xff]
      %v341 = vld [vmem:[%s301] sm:$0xff]
      %v342 = vld [vmem:[%s301 + $0x8] sm:$0xff]
      %v343 = vld [vmem:[%s301 + $0x10] sm:$0xff]
      %v344 = vld [vmem:[%s301 + $0x18] sm:$0xff]
      %v345 = vld [vmem:[%s301 + $0x20] sm:$0xff]
      %v346 = vld [vmem:[%s301 + $0x28] sm:$0xff]
      %v347 = vld [vmem:[%s301 + $0x30] sm:$0xff]
      %v348 = vld [vmem:[%s301 + $0x38] sm:$0xff]
      %v349 = vld [vmem:[%s311] sm:$0xff]
      %v350 = vld [vmem:[%s311 + $0x8] sm:$0xff]
      %v351 = vld [vmem:[%s311 + $0x10] sm:$0xff]
      %v352 = vld [vmem:[%s311 + $0x18] sm:$0xff]
      %v353 = vld [vmem:[%s311 + $0x20] sm:$0xff]
      %v354 = vld [vmem:[%s311 + $0x28] sm:$0xff]
      %v355 = vld [vmem:[%s311 + $0x30] sm:$0xff]
      %v356 = vld [vmem:[%s311 + $0x38] sm:$0xff]
      %v357 = vlaneseq
      %v358 = vand.u32 %v357, 127
      %359 = vset.pattern.permute.xlu0 0
      %360 = vperm.xlu0 %359, %v341
      %v361 = vpop.permute.xlu0 %360
      %362 = vset.pattern.permute.xlu0 0
      %363 = vperm.xlu0 %362, %v342
      %v364 = vpop.permute.xlu0 %363
      %365 = vset.pattern.permute.xlu0 0
      %366 = vperm.xlu0 %365, %v343
      %v367 = vpop.permute.xlu0 %366
      %368 = vset.pattern.permute.xlu0 0
      %369 = vperm.xlu0 %368, %v344
      %v370 = vpop.permute.xlu0 %369
      %371 = vset.pattern.permute.xlu0 0
      %372 = vperm.xlu0 %371, %v345
      %v373 = vpop.permute.xlu0 %372
      %374 = vset.pattern.permute.xlu0 0
      %375 = vperm.xlu0 %374, %v346
      %v376 = vpop.permute.xlu0 %375
      %377 = vset.pattern.permute.xlu0 0
      %378 = vperm.xlu0 %377, %v347
      %v379 = vpop.permute.xlu0 %378
      %380 = vset.pattern.permute.xlu0 0
      %381 = vperm.xlu0 %380, %v348
      %v382 = vpop.permute.xlu0 %381
      %vm383 = vcmp.eq.s32.totalorder %v358, %v361
      %vm384 = vcmp.eq.s32.totalorder %v358, %v364
      %vm385 = vcmp.eq.s32.totalorder %v358, %v367
      %vm386 = vcmp.eq.s32.totalorder %v358, %v370
      %vm387 = vcmp.eq.s32.totalorder %v358, %v373
      %vm388 = vcmp.eq.s32.totalorder %v358, %v376
      %vm389 = vcmp.eq.s32.totalorder %v358, %v379
      %vm390 = vcmp.eq.s32.totalorder %v358, %v382
      %v391 = vsel %vm383, %v333, 0.0
      %v392 = vsel %vm384, %v334, 0.0
      %v393 = vsel %vm385, %v335, 0.0
      %v394 = vsel %vm386, %v336, 0.0
      %v395 = vsel %vm387, %v337, 0.0
      %v396 = vsel %vm388, %v338, 0.0
      %v397 = vsel %vm389, %v339, 0.0
      %v398 = vsel %vm390, %v340, 0.0
      %vm399 = vcmask 523264
      %v400 = vsel %vm399, %v391, 0.0
      %401 = vadd.xlane.f32.xlu0 %v400
      %v402 = vpop.xlane.xlu0 %401
      %v403 = vsel %vm399, %v392, 0.0
      %404 = vadd.xlane.f32.xlu0 %v403
      %v405 = vpop.xlane.xlu0 %404
      %v406 = vsel %vm399, %v393, 0.0
      %407 = vadd.xlane.f32.xlu0 %v406
      %v408 = vpop.xlane.xlu0 %407
      %v409 = vsel %vm399, %v394, 0.0
      %410 = vadd.xlane.f32.xlu0 %v409
      %v411 = vpop.xlane.xlu0 %410
      %v412 = vsel %vm399, %v395, 0.0
      %413 = vadd.xlane.f32.xlu0 %v412
      %v414 = vpop.xlane.xlu0 %413
      %v415 = vsel %vm399, %v396, 0.0
      %416 = vadd.xlane.f32.xlu0 %v415
      %v417 = vpop.xlane.xlu0 %416
      %v418 = vsel %vm399, %v397, 0.0
      %419 = vadd.xlane.f32.xlu0 %v418
      %v420 = vpop.xlane.xlu0 %419
      %v421 = vsel %vm399, %v398, 0.0
      %422 = vadd.xlane.f32.xlu0 %v421
      %v423 = vpop.xlane.xlu0 %422
      %v424 = vadd.f32 %v402, 1e-12
      %v425 = vadd.f32 %v405, 1e-12
      %v426 = vadd.f32 %v408, 1e-12
      %v427 = vadd.f32 %v411, 1e-12
      %v428 = vadd.f32 %v414, 1e-12
      %v429 = vadd.f32 %v417, 1e-12
      %v430 = vadd.f32 %v420, 1e-12
      %v431 = vadd.f32 %v423, 1e-12
      %v432 = vlog2.pop %v424
      %v433 = vmul.f32 %v432, 0.6931472
      %v434 = vlog2.pop %v425
      %v435 = vmul.f32 %v434, 0.6931472
      %v436 = vlog2.pop %v426
      %v437 = vmul.f32 %v436, 0.6931472
      %v438 = vlog2.pop %v427
      %v439 = vmul.f32 %v438, 0.6931472
      %v440 = vlog2.pop %v428
      %v441 = vmul.f32 %v440, 0.6931472
      %v442 = vlog2.pop %v429
      %v443 = vmul.f32 %v442, 0.6931472
      %v444 = vlog2.pop %v430
      %v445 = vmul.f32 %v444, 0.6931472
      %v446 = vlog2.pop %v431
      %v447 = vmul.f32 %v446, 0.6931472
      %v448 = vsub.f32 0.0, %v433
      %v449 = vsub.f32 0.0, %v435
      %v450 = vsub.f32 0.0, %v437
      %v451 = vsub.f32 0.0, %v439
      %v452 = vsub.f32 0.0, %v441
      %v453 = vsub.f32 0.0, %v443
      %v454 = vsub.f32 0.0, %v445
      %v455 = vsub.f32 0.0, %v447
      %v456 = vmul.f32 %v349, %v448
      %v457 = vmul.f32 %v350, %v449
      %v458 = vmul.f32 %v351, %v450
      %v459 = vmul.f32 %v352, %v451
      %v460 = vmul.f32 %v353, %v452
      %v461 = vmul.f32 %v354, %v453
      %v462 = vmul.f32 %v355, %v454
      %v463 = vmul.f32 %v356, %v455
      %vm464 = vcmask 7168
      %465 = vst.msk [vmem:[%s321] sm:$0xff] %vm464, %v456
      %466 = vst.msk [vmem:[%s321 + $0x8] sm:$0xff] %vm464, %v457
      %467 = vst.msk [vmem:[%s321 + $0x10] sm:$0xff] %vm464, %v458
      %468 = vst.msk [vmem:[%s321 + $0x18] sm:$0xff] %vm464, %v459
      %469 = vst.msk [vmem:[%s321 + $0x20] sm:$0xff] %vm464, %v460
      %470 = vst.msk [vmem:[%s321 + $0x28] sm:$0xff] %vm464, %v461
      %471 = vst.msk [vmem:[%s321 + $0x30] sm:$0xff] %vm464, %v462
      %472 = vst.msk [vmem:[%s321 + $0x38] sm:$0xff] %vm464, %v463
      %v473 = vsel %vm399, %v333, -inf
      %474 = vmax.xlane.f32.xlu0 %v473
      %v475 = vpop.xlane.xlu0 %474
      %v476 = vsel %vm399, %v334, -inf
      %477 = vmax.xlane.f32.xlu0 %v476
      %v478 = vpop.xlane.xlu0 %477
      %v479 = vsel %vm399, %v335, -inf
      %480 = vmax.xlane.f32.xlu0 %v479
      %v481 = vpop.xlane.xlu0 %480
      %v482 = vsel %vm399, %v336, -inf
      %483 = vmax.xlane.f32.xlu0 %v482
      %v484 = vpop.xlane.xlu0 %483
      %v485 = vsel %vm399, %v337, -inf
      %486 = vmax.xlane.f32.xlu0 %v485
      %v487 = vpop.xlane.xlu0 %486
      %v488 = vsel %vm399, %v338, -inf
      %489 = vmax.xlane.f32.xlu0 %v488
      %v490 = vpop.xlane.xlu0 %489
      %v491 = vsel %vm399, %v339, -inf
      %492 = vmax.xlane.f32.xlu0 %v491
      %v493 = vpop.xlane.xlu0 %492
      %v494 = vsel %vm399, %v340, -inf
      %495 = vmax.xlane.f32.xlu0 %v494
      %v496 = vpop.xlane.xlu0 %495
      %vm497 = vcmp.eq.f32.partialorder %v333, %v475
      %vm498 = vcmp.eq.f32.partialorder %v334, %v478
      %vm499 = vcmp.eq.f32.partialorder %v335, %v481
      %vm500 = vcmp.eq.f32.partialorder %v336, %v484
      %vm501 = vcmp.eq.f32.partialorder %v337, %v487
      %vm502 = vcmp.eq.f32.partialorder %v338, %v490
      %vm503 = vcmp.eq.f32.partialorder %v339, %v493
      %vm504 = vcmp.eq.f32.partialorder %v340, %v496
      %v505 = vsel %vm497, %v358, 64
      %v506 = vsel %vm498, %v358, 64
      %v507 = vsel %vm499, %v358, 64
      %v508 = vsel %vm500, %v358, 64
      %v509 = vsel %vm501, %v358, 64
      %v510 = vsel %vm502, %v358, 64
      %v511 = vsel %vm503, %v358, 64
      %v512 = vsel %vm504, %v358, 64
      %v513 = vsel %vm399, %v505, 2147483647
      %v514 = vand.u32 %v513, 65535
      %v515 = vshra.s32 %v513, 16
      %v516 = vcvt.s32.f32 %v514
      %v517 = vcvt.s32.f32 %v515
      %518 = vmin.xlane.f32.xlu0 %v517
      %v519 = vpop.xlane.xlu0 %518
      %vm520 = vcmp.eq.f32.partialorder %v517, %v519
      %v521 = vsel %vm520, %v516, inf
      %522 = vmin.xlane.f32.xlu0 %v521
      %v523 = vpop.xlane.xlu0 %522
      %v524 = vcvt.f32.s32 %v523
      %v525 = vcvt.f32.s32 %v519
      %v526 = vshll.u32 %v525, 16
      %v527 = vadd.s32 %v526, %v524
      %v528 = vsel %vm399, %v506, 2147483647
      %v529 = vand.u32 %v528, 65535
      %v530 = vshra.s32 %v528, 16
      %v531 = vcvt.s32.f32 %v529
      %v532 = vcvt.s32.f32 %v530
      %533 = vmin.xlane.f32.xlu0 %v532
      %v534 = vpop.xlane.xlu0 %533
      %vm535 = vcmp.eq.f32.partialorder %v532, %v534
      %v536 = vsel %vm535, %v531, inf
      %537 = vmin.xlane.f32.xlu0 %v536
      %v538 = vpop.xlane.xlu0 %537
      %v539 = vcvt.f32.s32 %v538
      %v540 = vcvt.f32.s32 %v534
      %v541 = vshll.u32 %v540, 16
      %v542 = vadd.s32 %v541, %v539
      %v543 = vsel %vm399, %v507, 2147483647
      %v544 = vand.u32 %v543, 65535
      %v545 = vshra.s32 %v543, 16
      %v546 = vcvt.s32.f32 %v544
      %v547 = vcvt.s32.f32 %v545
      %548 = vmin.xlane.f32.xlu0 %v547
      %v549 = vpop.xlane.xlu0 %548
      %vm550 = vcmp.eq.f32.partialorder %v547, %v549
      %v551 = vsel %vm550, %v546, inf
      %552 = vmin.xlane.f32.xlu0 %v551
      %v553 = vpop.xlane.xlu0 %552
      %v554 = vcvt.f32.s32 %v553
      %v555 = vcvt.f32.s32 %v549
      %v556 = vshll.u32 %v555, 16
      %v557 = vadd.s32 %v556, %v554
      %v558 = vsel %vm399, %v508, 2147483647
      %v559 = vand.u32 %v558, 65535
      %v560 = vshra.s32 %v558, 16
      %v561 = vcvt.s32.f32 %v559
      %v562 = vcvt.s32.f32 %v560
      %563 = vmin.xlane.f32.xlu0 %v562
      %v564 = vpop.xlane.xlu0 %563
      %vm565 = vcmp.eq.f32.partialorder %v562, %v564
      %v566 = vsel %vm565, %v561, inf
      %567 = vmin.xlane.f32.xlu0 %v566
      %v568 = vpop.xlane.xlu0 %567
      %v569 = vcvt.f32.s32 %v568
      %v570 = vcvt.f32.s32 %v564
      %v571 = vshll.u32 %v570, 16
      %v572 = vadd.s32 %v571, %v569
      %v573 = vsel %vm399, %v509, 2147483647
      %v574 = vand.u32 %v573, 65535
      %v575 = vshra.s32 %v573, 16
      %v576 = vcvt.s32.f32 %v574
      %v577 = vcvt.s32.f32 %v575
      %578 = vmin.xlane.f32.xlu0 %v577
      %v579 = vpop.xlane.xlu0 %578
      %vm580 = vcmp.eq.f32.partialorder %v577, %v579
      %v581 = vsel %vm580, %v576, inf
      %582 = vmin.xlane.f32.xlu0 %v581
      %v583 = vpop.xlane.xlu0 %582
      %v584 = vcvt.f32.s32 %v583
      %v585 = vcvt.f32.s32 %v579
      %v586 = vshll.u32 %v585, 16
      %v587 = vadd.s32 %v586, %v584
      %v588 = vsel %vm399, %v510, 2147483647
      %v589 = vand.u32 %v588, 65535
      %v590 = vshra.s32 %v588, 16
      %v591 = vcvt.s32.f32 %v589
      %v592 = vcvt.s32.f32 %v590
      %593 = vmin.xlane.f32.xlu0 %v592
      %v594 = vpop.xlane.xlu0 %593
      %vm595 = vcmp.eq.f32.partialorder %v592, %v594
      %v596 = vsel %vm595, %v591, inf
      %597 = vmin.xlane.f32.xlu0 %v596
      %v598 = vpop.xlane.xlu0 %597
      %v599 = vcvt.f32.s32 %v598
      %v600 = vcvt.f32.s32 %v594
      %v601 = vshll.u32 %v600, 16
      %v602 = vadd.s32 %v601, %v599
      %v603 = vsel %vm399, %v511, 2147483647
      %v604 = vand.u32 %v603, 65535
      %v605 = vshra.s32 %v603, 16
      %v606 = vcvt.s32.f32 %v604
      %v607 = vcvt.s32.f32 %v605
      %608 = vmin.xlane.f32.xlu0 %v607
      %v609 = vpop.xlane.xlu0 %608
      %vm610 = vcmp.eq.f32.partialorder %v607, %v609
      %v611 = vsel %vm610, %v606, inf
      %612 = vmin.xlane.f32.xlu0 %v611
      %v613 = vpop.xlane.xlu0 %612
      %v614 = vcvt.f32.s32 %v613
      %v615 = vcvt.f32.s32 %v609
      %v616 = vshll.u32 %v615, 16
      %v617 = vadd.s32 %v616, %v614
      %v618 = vsel %vm399, %v512, 2147483647
      %v619 = vand.u32 %v618, 65535
      %v620 = vshra.s32 %v618, 16
      %v621 = vcvt.s32.f32 %v619
      %v622 = vcvt.s32.f32 %v620
      %623 = vmin.xlane.f32.xlu0 %v622
      %v624 = vpop.xlane.xlu0 %623
      %vm625 = vcmp.eq.f32.partialorder %v622, %v624
      %v626 = vsel %vm625, %v621, inf
      %627 = vmin.xlane.f32.xlu0 %v626
      %v628 = vpop.xlane.xlu0 %627
      %v629 = vcvt.f32.s32 %v628
      %v630 = vcvt.f32.s32 %v624
      %v631 = vshll.u32 %v630, 16
      %v632 = vadd.s32 %v631, %v629
      %vm633 = vcmp.eq.s32.totalorder %v527, %v341
      %vm634 = vcmp.eq.s32.totalorder %v542, %v342
      %vm635 = vcmp.eq.s32.totalorder %v557, %v343
      %vm636 = vcmp.eq.s32.totalorder %v572, %v344
      %vm637 = vcmp.eq.s32.totalorder %v587, %v345
      %vm638 = vcmp.eq.s32.totalorder %v602, %v346
      %vm639 = vcmp.eq.s32.totalorder %v617, %v347
      %vm640 = vcmp.eq.s32.totalorder %v632, %v348
      %v641 = vsel %vm633, 1, 0
      %v642 = vsel %vm634, 1, 0
      %v643 = vsel %vm635, 1, 0
      %v644 = vsel %vm636, 1, 0
      %v645 = vsel %vm637, 1, 0
      %v646 = vsel %vm638, 1, 0
      %v647 = vsel %vm639, 1, 0
      %v648 = vsel %vm640, 1, 0
      %v649 = vcvt.s32.f32 %v641
      %v650 = vcvt.s32.f32 %v642
      %v651 = vcvt.s32.f32 %v643
      %v652 = vcvt.s32.f32 %v644
      %v653 = vcvt.s32.f32 %v645
      %v654 = vcvt.s32.f32 %v646
      %v655 = vcvt.s32.f32 %v647
      %v656 = vcvt.s32.f32 %v648
      %v657 = vmul.f32 %v349, %v649
      %v658 = vmul.f32 %v350, %v650
      %v659 = vmul.f32 %v351, %v651
      %v660 = vmul.f32 %v352, %v652
      %v661 = vmul.f32 %v353, %v653
      %v662 = vmul.f32 %v354, %v654
      %v663 = vmul.f32 %v355, %v655
      %v664 = vmul.f32 %v356, %v656
      %665 = vst.msk [vmem:[%s331] sm:$0xff] %vm464, %v657
      %666 = vst.msk [vmem:[%s331 + $0x8] sm:$0xff] %vm464, %v658
      %667 = vst.msk [vmem:[%s331 + $0x10] sm:$0xff] %vm464, %v659
      %668 = vst.msk [vmem:[%s331 + $0x18] sm:$0xff] %vm464, %v660
      %669 = vst.msk [vmem:[%s331 + $0x20] sm:$0xff] %vm464, %v661
      %670 = vst.msk [vmem:[%s331 + $0x28] sm:$0xff] %vm464, %v662
      %671 = vst.msk [vmem:[%s331 + $0x30] sm:$0xff] %vm464, %v663
      %672 = vst.msk [vmem:[%s331 + $0x38] sm:$0xff] %vm464, %v664
      %s673 = smul.u32 8, %s21
      %p674 = scmp.lt.s32.totalorder %s20, 1
      %s675 = scalar_select %p674, %s20, 1
      %p676 = scmp.lt.s32.totalorder %s673, 7
      %s677 = scalar_select %p676, %s673, 7
      %s678 = smul.addr %s675, 8
      %s679 = sadd.s32 %s677, %s678
      %s680 = smul.addr %s679, 8
      %s681 = scalar_lea.vmem %s3, %s680
      %s682 = smul.u32 8, %s21
      %p683 = scmp.lt.s32.totalorder %s20, 1
      %s684 = scalar_select %p683, %s20, 1
      %p685 = scmp.lt.s32.totalorder %s682, 7
      %s686 = scalar_select %p685, %s682, 7
      %s687 = smul.addr %s684, 8
      %s688 = sadd.s32 %s686, %s687
      %s689 = smul.addr %s688, 8
      %s690 = scalar_lea.vmem %s4, %s689
      // Predicated region
      $region33: #{gmrw_forward.43} parent=31 // pred_check
        %p691 = pneg %p132
      $region34: #{gmrw_forward.43} parent=31 // pred_check_branch
        %693 = sbr.rel (%p691) target = $region36
      $region35: #{gmrw_forward.43} parent=31 // pred_region
        %s694 = smul.u32 8, %s21
      $region36: #{gmrw_forward.43} parent=31 // pred_fallthru
        _
      // Predicated region
      $region37: #{gmrw_forward.43} parent=31 // pred_check
        %p695 = pneg %p160
      $region38: #{gmrw_forward.43} parent=31 // pred_check_branch
        %697 = sbr.rel (%p695) target = $region40
      $region39: #{gmrw_forward.43} parent=31 // pred_region
        %s698 = smul.u32 8, %s21
      $region40: #{gmrw_forward.43} parent=31 // pred_fallthru
        _
    $region32: #{gmrw_forward.43} parent=5 // pred_fallthru
      _
    %p699 = scmp.le.s32.totalorder 2, %s11
    // Predicated region
    $region41: #{gmrw_forward.43} parent=5 // pred_check
      %p700 = pneg %p699
    $region42: #{gmrw_forward.43} parent=5 // pred_check_branch
      %702 = sbr.rel (%p700) target = $region44
    $region43: #{gmrw_forward.43} parent=5 // pred_region
      %s703 = ssub.s32 %s11, 2
      // Predicated region
      $region45: #{gmrw_forward.43} parent=43 // pred_check
        %p704 = pneg %p138
      $region46: #{gmrw_forward.43} parent=43 // pred_check_branch
        %706 = sbr.rel (%p704) target = $region48
      $region47: #{gmrw_forward.43} parent=43 // pred_region
        %s707 = smul.u32 8, %s23
        %p708 = scmp.lt.s32.totalorder %s22, 1
        %s709 = scalar_select %p708, %s22, 1
        %p710 = scmp.lt.s32.totalorder %s707, 7
        %s711 = scalar_select %p710, %s707, 7
        %s712 = smul.addr %s709, 8
        %s713 = sadd.s32 %s711, %s712
        %s714 = smul.addr %s713, 8
        %s715 = scalar_lea.vmem %s3, %s714
      $region48: #{gmrw_forward.43} parent=43 // pred_fallthru
        _
      // Predicated region
      $region49: #{gmrw_forward.43} parent=43 // pred_check
        %p716 = pneg %p166
      $region50: #{gmrw_forward.43} parent=43 // pred_check_branch
        %718 = sbr.rel (%p716) target = $region52
      $region51: #{gmrw_forward.43} parent=43 // pred_region
        %s719 = smul.u32 8, %s23
        %p720 = scmp.lt.s32.totalorder %s22, 1
        %s721 = scalar_select %p720, %s22, 1
        %p722 = scmp.lt.s32.totalorder %s719, 7
        %s723 = scalar_select %p722, %s719, 7
        %s724 = smul.addr %s721, 8
        %s725 = sadd.s32 %s723, %s724
        %s726 = smul.addr %s725, 8
        %s727 = scalar_lea.vmem %s4, %s726
      $region52: #{gmrw_forward.43} parent=43 // pred_fallthru
        _
    $region44: #{gmrw_forward.43} parent=5 // pred_fallthru
      _
  $region6: #{gmrw_forward.43} parent=0 // loop_footer
    %s15 = sadd.s32 1, %s11
  $region7: #{gmrw_forward.43} parent=0 // loop_footer_branch
    %10 = sbr.rel target = $region3
  $region8: #{gmrw_forward.43} parent=0 // loop_exit
    _

</llo_original>
